<compile_context>
chip_gen: v6e
topology: v6e:2x2x1
jax: 0.10.0
libtpu: 0.0.40
codegen_flags: <defaults>
</compile_context>

<pallas_src>
import math
import functools

import jax
import jax.numpy as jnp
from jax.experimental import pallas as pl
from jax.experimental.pallas import tpu as pltpu

_LANE = 128          # TPU lane width; output-channel tile
_TM_MAX = 512        # coarse M (pixel) tile: ~85% of HBM roofline vs ~29% at 128


def _round_up(v, m):
    return (v + m - 1) // m * m


# --------------------------------------------------------------------------
# Pallas kernel: single-pass matmul with fused scale/bias (+ optional ReLU).
# The reduction (K) is loaded as one full block, so there is no K grid axis,
# no f32 accumulator scratch and no pl.when init/finalize phases.
# Inputs are bf16 (MXU), accumulation and the epilogue are f32.
# --------------------------------------------------------------------------
def _mm_kernel(relu, x_ref, w_ref, s_ref, b_ref, o_ref):
    y = jnp.dot(x_ref[...], w_ref[...], preferred_element_type=jnp.float32)
    y = y * s_ref[...] + b_ref[...]
    if relu:
        y = jnp.maximum(y, 0.0)
    o_ref[...] = y.astype(o_ref.dtype)


def _pick_tm(m):
    """M tile: large for big pixel counts, >=2 M-steps when possible (v7x)."""
    if m >= 1024:
        return _TM_MAX
    if m >= 512:
        return 256
    return max(8, _round_up(m, 8))   # block == full (padded) M dim -> always legal


def _pad_weight(w2d):
    """Pad a (K, N) weight matrix to lane multiples and cast to bf16 (once)."""
    k, n = w2d.shape
    kp, np_ = _round_up(k, _LANE), _round_up(n, _LANE)
    return jnp.pad(w2d, ((0, kp - k), (0, np_ - n))).astype(jnp.bfloat16)


def fused_matmul(x, wp, scale, bias, relu, out_dtype=jnp.bfloat16):
    """act((x @ w) * scale + bias).

    x:     (M, K) any float dtype (cast to bf16 here)
    wp:    (Kp, Np) pre-padded bf16 weight
    scale: (1, n_out) f32, bias: (1, n_out) f32
    """
    m, k = x.shape
    kp, np_ = wp.shape
    n_out = scale.shape[1]
    assert k <= kp and n_out <= np_

    tm = _pick_tm(m)
    mp = _round_up(m, tm)
    xp = jnp.pad(x.astype(jnp.bfloat16), ((0, mp - m), (0, kp - k)))
    sp = jnp.pad(scale.astype(jnp.float32), ((0, 0), (0, np_ - n_out)))
    bp = jnp.pad(bias.astype(jnp.float32), ((0, 0), (0, np_ - n_out)))

    grid = (mp // tm, np_ // _LANE)
    out = pl.pallas_call(
        functools.partial(_mm_kernel, relu),
        out_shape=jax.ShapeDtypeStruct((mp, np_), out_dtype),
        grid_spec=pltpu.PrefetchScalarGridSpec(
            num_scalar_prefetch=0,
            grid=grid,
            in_specs=[
                pl.BlockSpec((tm, kp), lambda i, j: (i, 0)),     # A tile, full K
                pl.BlockSpec((kp, _LANE), lambda i, j: (0, j)),  # W tile, full K
                pl.BlockSpec((1, _LANE), lambda i, j: (0, j)),   # scale
                pl.BlockSpec((1, _LANE), lambda i, j: (0, j)),   # bias
            ],
            out_specs=pl.BlockSpec((tm, _LANE), lambda i, j: (i, j)),
        ),
        compiler_params=pltpu.CompilerParams(
            dimension_semantics=("parallel", "parallel"),
            vmem_limit_bytes=32 * 1024 * 1024),
    )(xp, wp, sp, bp)
    return out[:m, :n_out]


# --------------------------------------------------------------------------
# Conv (im2col + fused Pallas matmul) and bilinear resize (one Pallas matmul)
# --------------------------------------------------------------------------
def conv_apply(x, p, ksize, stride=1, padding=0, dilation=1, relu=True):
    """Conv2d (BN folded into scale/bias) + optional ReLU on NHWC input."""
    n, h, w, cin = x.shape
    cout = p["scale"].shape[1]
    assert p["wm"].shape[0] == _round_up(ksize * ksize * cin, _LANE)

    x = x.astype(jnp.bfloat16)
    xp = jnp.pad(x, ((0, 0), (padding, padding), (padding, padding), (0, 0)))
    ho = (h + 2 * padding - dilation * (ksize - 1) - 1) // stride + 1
    wo = (w + 2 * padding - dilation * (ksize - 1) - 1) // stride + 1

    # TODO(synk): im2col is still materialized by XLA (in bf16, halving the
    # traffic vs f32); folding the k*k taps into the kernel's reduction would
    # remove the remaining read/write amplification for 3x3 convs.
    cols = []
    for i in range(ksize):
        for j in range(ksize):
            cols.append(
                xp[:, i * dilation:i * dilation + (ho - 1) * stride + 1:stride,
                      j * dilation:j * dilation + (wo - 1) * stride + 1:stride, :])
    patches = cols[0] if len(cols) == 1 else jnp.concatenate(cols, axis=-1)
    a = patches.reshape(n * ho * wo, ksize * ksize * cin)

    out = fused_matmul(a, p["wm"], p["scale"], p["bias"], relu)
    return out.reshape(n, ho, wo, cout)


def _interp_matrix(out_size, in_size):
    # PyTorch bilinear, align_corners=False (half-pixel centers, clamped).
    scale = in_size / out_size
    dst = jnp.arange(out_size, dtype=jnp.float32)
    src = jnp.clip((dst + 0.5) * scale - 0.5, 0.0, in_size - 1)
    lo = jnp.floor(src).astype(jnp.int32)
    hi = jnp.minimum(lo + 1, in_size - 1)
    frac = src - lo.astype(jnp.float32)
    m = jnp.zeros((out_size, in_size), jnp.float32)
    m = m.at[jnp.arange(out_size), lo].add(1.0 - frac)
    m = m.at[jnp.arange(out_size), hi].add(frac)
    return m


def bilinear_resize(x, out_h, out_w, out_layout="NHWC", out_dtype=jnp.bfloat16):
    """F.interpolate(bilinear, align_corners=False) as ONE fused Pallas matmul.

    The separable row/column interpolation matrices are combined into a single
    (H*W, Ho*Wo) operator; the activation is viewed channels-first as
    (N*C, H*W) so the matmul output (N*C, Ho*Wo) is lane-dense and no per-axis
    HBM transposes/extra matmuls are needed.  Can emit NCHW directly (used for
    the final logits upsample).
    """
    n, h, w, c = x.shape
    mh = _interp_matrix(out_h, h)                       # (Ho, H)
    mw = _interp_matrix(out_w, w)                       # (Wo, W)
    m = (mh[:, None, :, None] * mw[None, :, None, :]).reshape(out_h * out_w, h * w)
    wp = _pad_weight(m.T)                               # (H*W -> Kp, Ho*Wo -> Np)
    scale = jnp.ones((1, out_h * out_w), jnp.float32)
    bias = jnp.zeros((1, out_h * out_w), jnp.float32)

    xt = x.transpose(0, 3, 1, 2).reshape(n * c, h * w)  # channels-first rows
    y = fused_matmul(xt, wp, scale, bias, relu=False, out_dtype=out_dtype)
    y = y.reshape(n, c, out_h, out_w)                   # NCHW
    if out_layout == "NCHW":
        return y
    return y.transpose(0, 2, 3, 1)                      # back to NHWC


# --------------------------------------------------------------------------
# Parameter construction (deterministic, synthetic); weights pre-padded/bf16.
# --------------------------------------------------------------------------
class ParamGen:
    def __init__(self, key):
        self.key = key

    def next(self):
        self.key, sub = jax.random.split(self.key)
        return sub


def make_convx(pg, cin, cout, k):
    """ConvX = Conv2d(bias=False) + BatchNorm2d (eval, folded) + ReLU."""
    fan_in = k * k * cin
    w = jax.random.normal(pg.next(), (k, k, cin, cout), jnp.float32) / math.sqrt(fan_in)
    gamma = 1.0 + 0.05 * jax.random.normal(pg.next(), (cout,), jnp.float32)
    beta = 0.05 * jax.random.normal(pg.next(), (cout,), jnp.float32)
    running_mean = jnp.zeros((cout,), jnp.float32)
    running_var = jnp.ones((cout,), jnp.float32)
    eps = 1e-5
    scale = gamma / jnp.sqrt(running_var + eps)
    bias = beta - running_mean * scale
    return dict(wm=_pad_weight(w.reshape(k * k * cin, cout)),
                scale=scale.reshape(1, -1), bias=bias.reshape(1, -1))


def make_conv(pg, cin, cout, k):
    """Plain Conv2d with bias (classifier conv of SegHead)."""
    fan_in = k * k * cin
    w = jax.random.normal(pg.next(), (k, k, cin, cout), jnp.float32) / math.sqrt(fan_in)
    b = 0.01 * jax.random.normal(pg.next(), (cout,), jnp.float32)
    return dict(wm=_pad_weight(w.reshape(k * k * cin, cout)),
                scale=jnp.ones((1, cout), jnp.float32), bias=b.reshape(1, -1))


def build_deeplab_params(num_classes, filters=(16, 32, 64, 128), key=None):
    # TODO(synk): ResNet18 / ConvX / SegHead source was not provided; a
    # structurally-equivalent stand-in backbone (strided ConvX stack producing
    # stride-4/8/16/32 features with `filters` channels), the conventional
    # ConvX (conv + BN + ReLU) and SegHead (ConvX3x3 + Conv1x1-with-bias) are
    # used with deterministic synthetic weights.
    pg = ParamGen(key)
    f0, f1, f2, f3 = filters
    inter = f0  # DeepLabHead(in_channels=filters[-1], inter_channel=filters[0])
    p = {}
    p["backbone"] = [
        make_convx(pg, 3, f0, 3),    # stride 2
        make_convx(pg, f0, f0, 3),   # stride 2 -> feat4
        make_convx(pg, f0, f1, 3),   # stride 2 -> feat8
        make_convx(pg, f1, f2, 3),   # stride 2 -> feat16
        make_convx(pg, f2, f3, 3),   # stride 2 -> feat32
    ]
    # ASPP(in=f3, rates=[3,5,7], out=inter)
    p["aspp_c0"] = make_convx(pg, f3, inter, 1)
    p["aspp_c1"] = make_convx(pg, f3, inter, 3)
    p["aspp_c2"] = make_convx(pg, f3, inter, 3)
    p["aspp_c3"] = make_convx(pg, f3, inter, 3)
    p["aspp_pool"] = make_convx(pg, f3, inter, 1)
    p["aspp_proj"] = make_convx(pg, 5 * inter, inter, 1)
    # DeepLabHead
    p["lconv"] = make_convx(pg, f0, inter, 1)
    p["mconv"] = make_convx(pg, 2 * inter, inter, 3)
    # SegHead
    p["seg1"] = make_convx(pg, inter, inter, 3)
    p["seg2"] = make_conv(pg, inter, num_classes, 1)
    return p


# --------------------------------------------------------------------------
# Forward pass (mirrors DeepLab.forward)
# --------------------------------------------------------------------------
def deeplab_forward(params, x_nchw, atrous_rates=(3, 5, 7)):
    x = jnp.transpose(x_nchw, (0, 2, 3, 1)).astype(jnp.float32)  # NCHW -> NHWC
    in_h, in_w = x.shape[1], x.shape[2]

    # backbone: features at strides 4, 8, 16, 32
    b = params["backbone"]
    y = conv_apply(x, b[0], 3, stride=2, padding=1)
    feat4 = conv_apply(y, b[1], 3, stride=2, padding=1)
    feat8 = conv_apply(feat4, b[2], 3, stride=2, padding=1)
    feat16 = conv_apply(feat8, b[3], 3, stride=2, padding=1)
    feat32 = conv_apply(feat16, b[4], 3, stride=2, padding=1)
    del feat8, feat16  # unused by the head (kept for interface parity)

    # --- DeepLabHead: ASPP on feat32 ---
    n, h32, w32, c32 = feat32.shape
    branches = [conv_apply(feat32, params["aspp_c0"], 1)]
    for rate, name in zip(atrous_rates, ("aspp_c1", "aspp_c2", "aspp_c3")):
        branches.append(conv_apply(feat32, params[name], 3, padding=rate, dilation=rate))

    # ASPPPooling: AdaptiveAvgPool2d(1) + 1x1 ConvX + bilinear back to (h32,w32).
    # The pooled map is a single pixel, so the bilinear resize is an exact
    # broadcast; the tiny (N, C) matmul is left to XLA (a pallas_call launch
    # would cost more than the op itself).
    pp = params["aspp_pool"]
    cout_p = pp["scale"].shape[1]
    pooled = jnp.mean(feat32.astype(jnp.float32), axis=(1, 2))         # (N, C)
    pooled = pooled @ pp["wm"][:c32, :cout_p].astype(jnp.float32)
    pooled = jnp.maximum(pooled * pp["scale"] + pp["bias"], 0.0)
    branches.append(jnp.broadcast_to(
        pooled[:, None, None, :].astype(jnp.bfloat16), (n, h32, w32, cout_p)))

    hfeat = conv_apply(jnp.concatenate(branches, axis=-1), params["aspp_proj"], 1)

    # upsample to feat4 resolution, fuse with low-level features
    hfeat = bilinear_resize(hfeat, feat4.shape[1], feat4.shape[2])
    lfeat = conv_apply(feat4, params["lconv"], 1)
    feat = conv_apply(jnp.concatenate([hfeat, lfeat], axis=-1),
                      params["mconv"], 3, padding=1)

    # --- SegHead ---
    s = conv_apply(feat, params["seg1"], 3, padding=1)
    logits = conv_apply(s, params["seg2"], 1, relu=False)

    # final bilinear upsample to input resolution; resize emits NCHW directly.
    logits = bilinear_resize(logits, in_h, in_w, out_layout="NCHW",
                             out_dtype=jnp.float32)
    return [logits]


# --------------------------------------------------------------------------
if __name__ == "__main__":
    key = jax.random.PRNGKey(0)
    k_params, k_x = jax.random.split(key)

    num_classes = 4
    params = build_deeplab_params(num_classes, filters=(16, 32, 64, 128), key=k_params)

    x = jax.random.normal(k_x, (2, 3, 64, 64), jnp.float32)  # NCHW, like PyTorch
    fwd = jax.jit(deeplab_forward)
    out = fwd(params, x)
    logits = jax.block_until_ready(out[0])

    assert logits.shape == (2, num_classes, 64, 64), logits.shape
    assert bool(jnp.all(jnp.isfinite(logits)))
    print("KERNEL_OK")
</pallas_src>

<mosaic_0001>
module attributes {stable_mosaic.version = 11 : i64} {
  func.func private @main(%arg0: i32) attributes {dimension_semantics = [#tpu.dimension_semantics<core_parallel>], iteration_bounds = array<i64: 2>, tpu.core_type = #tpu.core_type<sc_scalar_subcore>, window_params = []} {
    return
  }
}

module attributes {stable_mosaic.version = 11 : i64} {
  func.func private @main(%arg0: i32) attributes {dimension_semantics = [#tpu.dimension_semantics<core_parallel>], iteration_bounds = array<i64: 2>, tpu.core_type = #tpu.core_type<sc_scalar_subcore>, window_params = []} {
    return
  }
}

module attributes {stable_mosaic.version = 11 : i64} {
  func.func @_mm_kernel(%arg0: i32, %arg1: i32, %arg2: memref<512x128xbf16, #tpu.memory_space<vmem>>, %arg3: memref<128x128xbf16, #tpu.memory_space<vmem>>, %arg4: memref<1x128xf32, #tpu.memory_space<vmem>>, %arg5: memref<1x128xf32, #tpu.memory_space<vmem>>, %arg6: memref<512x128xbf16, #tpu.memory_space<vmem>>) attributes {dimension_semantics = [#tpu.dimension_semantics<parallel>, #tpu.dimension_semantics<parallel>], iteration_bounds = array<i64: 4, 1>, scalar_prefetch = 0 : i64, scratch_operands = 0 : i64, tpu.core_type = #tpu.core_type<tc>, window_params = [{transform_indices = @transform_0, window_bounds = array<i64: 512, 128>}, {transform_indices = @transform_1, window_bounds = array<i64: 128, 128>}, {transform_indices = @transform_2, window_bounds = array<i64: 1, 128>}, {transform_indices = @transform_3, window_bounds = array<i64: 1, 128>}, {transform_indices = @transform_4, window_bounds = array<i64: 512, 128>}]} {
    %c0 = arith.constant 0 : index
    %c0_0 = arith.constant 0 : index
    %0 = vector.load %arg2[%c0, %c0_0] : memref<512x128xbf16, #tpu.memory_space<vmem>>, vector<512x128xbf16>
    %c0_1 = arith.constant 0 : index
    %c0_2 = arith.constant 0 : index
    %1 = vector.load %arg3[%c0_1, %c0_2] : memref<128x128xbf16, #tpu.memory_space<vmem>>, vector<128x128xbf16>
    %cst = arith.constant dense<0.000000e+00> : vector<512x128xf32>
    %2 = tpu.matmul %0, %1, %cst {dimension_numbers = #tpu.dot_dimension_numbers<[1], [0], [0], [1], [0, 0, 1, 1], [], []>} : vector<512x128xbf16>, vector<128x128xbf16>, vector<512x128xf32> -> vector<512x128xf32>
    %c0_3 = arith.constant 0 : index
    %c0_4 = arith.constant 0 : index
    %3 = vector.load %arg4[%c0_3, %c0_4] : memref<1x128xf32, #tpu.memory_space<vmem>>, vector<1x128xf32>
    %4 = vector.broadcast %3 : vector<1x128xf32> to vector<512x128xf32>
    %5 = arith.mulf %2, %4 : vector<512x128xf32>
    %c0_5 = arith.constant 0 : index
    %c0_6 = arith.constant 0 : index
    %6 = vector.load %arg5[%c0_5, %c0_6] : memref<1x128xf32, #tpu.memory_space<vmem>>, vector<1x128xf32>
    %7 = vector.broadcast %6 : vector<1x128xf32> to vector<512x128xf32>
    %8 = arith.addf %5, %7 : vector<512x128xf32>
    %cst_7 = arith.constant 0.000000e+00 : f32
    %9 = vector.broadcast %cst_7 : f32 to vector<512x128xf32>
    %10 = arith.maximumf %8, %9 : vector<512x128xf32>
    %11 = arith.truncf %10 : vector<512x128xf32> to vector<512x128xbf16>
    %c0_8 = arith.constant 0 : index
    %c0_9 = arith.constant 0 : index
    %12 = vector.load %arg6[%c0_8, %c0_9] : memref<512x128xbf16, #tpu.memory_space<vmem>>, vector<512x128xbf16>
    tpu.vector_store %arg6[%c0_8, %c0_9], %11 {strides = array<i32>} : memref<512x128xbf16, #tpu.memory_space<vmem>>, vector<512x128xbf16>,
    return
  }
  func.func @transform_0(%arg0: i32, %arg1: i32) -> (i32, i32) {
    %c0_i32 = arith.constant 0 : i32
    %c0_i32_0 = arith.constant 0 : i32
    return %arg0, %c0_i32 : i32, i32
  }
  func.func @transform_1(%arg0: i32, %arg1: i32) -> (i32, i32) {
    %c0_i32 = arith.constant 0 : i32
    %c0_i32_0 = arith.constant 0 : i32
    return %c0_i32, %arg1 : i32, i32
  }
  func.func @transform_2(%arg0: i32, %arg1: i32) -> (i32, i32) {
    %c0_i32 = arith.constant 0 : i32
    %c0_i32_0 = arith.constant 0 : i32
    return %c0_i32, %arg1 : i32, i32
  }
  func.func @transform_3(%arg0: i32, %arg1: i32) -> (i32, i32) {
    %c0_i32 = arith.constant 0 : i32
    %c0_i32_0 = arith.constant 0 : i32
    return %c0_i32, %arg1 : i32, i32
  }
  func.func @transform_4(%arg0: i32, %arg1: i32) -> (i32, i32) {
    %c0_i32 = arith.constant 0 : i32
    return %arg0, %arg1 : i32, i32
  }
}

module attributes {stable_mosaic.version = 11 : i64} {
  func.func @_mm_kernel(%arg0: i32, %arg1: i32, %arg2: memref<256x256xbf16, #tpu.memory_space<vmem>>, %arg3: memref<256x128xbf16, #tpu.memory_space<vmem>>, %arg4: memref<1x128xf32, #tpu.memory_space<vmem>>, %arg5: memref<1x128xf32, #tpu.memory_space<vmem>>, %arg6: memref<256x128xbf16, #tpu.memory_space<vmem>>) attributes {dimension_semantics = [#tpu.dimension_semantics<parallel>, #tpu.dimension_semantics<parallel>], iteration_bounds = array<i64: 2, 1>, scalar_prefetch = 0 : i64, scratch_operands = 0 : i64, tpu.core_type = #tpu.core_type<tc>, window_params = [{transform_indices = @transform_0, window_bounds = array<i64: 256, 256>}, {transform_indices = @transform_1, window_bounds = array<i64: 256, 128>}, {transform_indices = @transform_2, window_bounds = array<i64: 1, 128>}, {transform_indices = @transform_3, window_bounds = array<i64: 1, 128>}, {transform_indices = @transform_4, window_bounds = array<i64: 256, 128>}]} {
    %c0 = arith.constant 0 : index
    %c0_0 = arith.constant 0 : index
    %0 = vector.load %arg2[%c0, %c0_0] : memref<256x256xbf16, #tpu.memory_space<vmem>>, vector<256x256xbf16>
    %c0_1 = arith.constant 0 : index
    %c0_2 = arith.constant 0 : index
    %1 = vector.load %arg3[%c0_1, %c0_2] : memref<256x128xbf16, #tpu.memory_space<vmem>>, vector<256x128xbf16>
    %cst = arith.constant dense<0.000000e+00> : vector<256x128xf32>
    %2 = tpu.matmul %0, %1, %cst {dimension_numbers = #tpu.dot_dimension_numbers<[1], [0], [0], [1], [0, 0, 1, 1], [], []>} : vector<256x256xbf16>, vector<256x128xbf16>, vector<256x128xf32> -> vector<256x128xf32>
    %c0_3 = arith.constant 0 : index
    %c0_4 = arith.constant 0 : index
    %3 = vector.load %arg4[%c0_3, %c0_4] : memref<1x128xf32, #tpu.memory_space<vmem>>, vector<1x128xf32>
    %4 = vector.broadcast %3 : vector<1x128xf32> to vector<256x128xf32>
    %5 = arith.mulf %2, %4 : vector<256x128xf32>
    %c0_5 = arith.constant 0 : index
    %c0_6 = arith.constant 0 : index
    %6 = vector.load %arg5[%c0_5, %c0_6] : memref<1x128xf32, #tpu.memory_space<vmem>>, vector<1x128xf32>
    %7 = vector.broadcast %6 : vector<1x128xf32> to vector<256x128xf32>
    %8 = arith.addf %5, %7 : vector<256x128xf32>
    %cst_7 = arith.constant 0.000000e+00 : f32
    %9 = vector.broadcast %cst_7 : f32 to vector<256x128xf32>
    %10 = arith.maximumf %8, %9 : vector<256x128xf32>
    %11 = arith.truncf %10 : vector<256x128xf32> to vector<256x128xbf16>
    %c0_8 = arith.constant 0 : index
    %c0_9 = arith.constant 0 : index
    %12 = vector.load %arg6[%c0_8, %c0_9] : memref<256x128xbf16, #tpu.memory_space<vmem>>, vector<256x128xbf16>
    tpu.vector_store %arg6[%c0_8, %c0_9], %11 {strides = array<i32>} : memref<256x128xbf16, #tpu.memory_space<vmem>>, vector<256x128xbf16>,
    return
  }
  func.func @transform_0(%arg0: i32, %arg1: i32) -> (i32, i32) {
    %c0_i32 = arith.constant 0 : i32
    %c0_i32_0 = arith.constant 0 : i32
    return %arg0, %c0_i32 : i32, i32
  }
  func.func @transform_1(%arg0: i32, %arg1: i32) -> (i32, i32) {
    %c0_i32 = arith.constant 0 : i32
    %c0_i32_0 = arith.constant 0 : i32
    return %c0_i32, %arg1 : i32, i32
  }
  func.func @transform_2(%arg0: i32, %arg1: i32) -> (i32, i32) {
    %c0_i32 = arith.constant 0 : i32
    %c0_i32_0 = arith.constant 0 : i32
    return %c0_i32, %arg1 : i32, i32
  }
  func.func @transform_3(%arg0: i32, %arg1: i32) -> (i32, i32) {
    %c0_i32 = arith.constant 0 : i32
    %c0_i32_0 = arith.constant 0 : i32
    return %c0_i32, %arg1 : i32, i32
  }
  func.func @transform_4(%arg0: i32, %arg1: i32) -> (i32, i32) {
    %c0_i32 = arith.constant 0 : i32
    return %arg0, %arg1 : i32, i32
  }
}

module attributes {stable_mosaic.version = 11 : i64} {
  func.func @_mm_kernel(%arg0: i32, %arg1: i32, %arg2: memref<128x256xbf16, #tpu.memory_space<vmem>>, %arg3: memref<256x128xbf16, #tpu.memory_space<vmem>>, %arg4: memref<1x128xf32, #tpu.memory_space<vmem>>, %arg5: memref<1x128xf32, #tpu.memory_space<vmem>>, %arg6: memref<128x128xbf16, #tpu.memory_space<vmem>>) attributes {dimension_semantics = [#tpu.dimension_semantics<parallel>, #tpu.dimension_semantics<parallel>], iteration_bounds = array<i64: 1, 1>, scalar_prefetch = 0 : i64, scratch_operands = 0 : i64, tpu.core_type = #tpu.core_type<tc>, window_params = [{transform_indices = @transform_0, window_bounds = array<i64: 128, 256>}, {transform_indices = @transform_1, window_bounds = array<i64: 256, 128>}, {transform_indices = @transform_2, window_bounds = array<i64: 1, 128>}, {transform_indices = @transform_3, window_bounds = array<i64: 1, 128>}, {transform_indices = @transform_4, window_bounds = array<i64: 128, 128>}]} {
    %c0 = arith.constant 0 : index
    %c0_0 = arith.constant 0 : index
    %0 = vector.load %arg2[%c0, %c0_0] : memref<128x256xbf16, #tpu.memory_space<vmem>>, vector<128x256xbf16>
    %c0_1 = arith.constant 0 : index
    %c0_2 = arith.constant 0 : index
    %1 = vector.load %arg3[%c0_1, %c0_2] : memref<256x128xbf16, #tpu.memory_space<vmem>>, vector<256x128xbf16>
    %cst = arith.constant dense<0.000000e+00> : vector<128x128xf32>
    %2 = tpu.matmul %0, %1, %cst {dimension_numbers = #tpu.dot_dimension_numbers<[1], [0], [0], [1], [0, 0, 1, 1], [], []>} : vector<128x256xbf16>, vector<256x128xbf16>, vector<128x128xf32> -> vector<128x128xf32>
    %c0_3 = arith.constant 0 : index
    %c0_4 = arith.constant 0 : index
    %3 = vector.load %arg4[%c0_3, %c0_4] : memref<1x128xf32, #tpu.memory_space<vmem>>, vector<1x128xf32>
    %4 = vector.broadcast %3 : vector<1x128xf32> to vector<128x128xf32>
    %5 = arith.mulf %2, %4 : vector<128x128xf32>
    %c0_5 = arith.constant 0 : index
    %c0_6 = arith.constant 0 : index
    %6 = vector.load %arg5[%c0_5, %c0_6] : memref<1x128xf32, #tpu.memory_space<vmem>>, vector<1x128xf32>
    %7 = vector.broadcast %6 : vector<1x128xf32> to vector<128x128xf32>
    %8 = arith.addf %5, %7 : vector<128x128xf32>
    %cst_7 = arith.constant 0.000000e+00 : f32
    %9 = vector.broadcast %cst_7 : f32 to vector<128x128xf32>
    %10 = arith.maximumf %8, %9 : vector<128x128xf32>
    %11 = arith.truncf %10 : vector<128x128xf32> to vector<128x128xbf16>
    %c0_8 = arith.constant 0 : index
    %c0_9 = arith.constant 0 : index
    %12 = vector.load %arg6[%c0_8, %c0_9] : memref<128x128xbf16, #tpu.memory_space<vmem>>, vector<128x128xbf16>
    tpu.vector_store %arg6[%c0_8, %c0_9], %11 {strides = array<i32>} : memref<128x128xbf16, #tpu.memory_space<vmem>>, vector<128x128xbf16>,
    return
  }
  func.func @transform_0(%arg0: i32, %arg1: i32) -> (i32, i32) {
    %c0_i32 = arith.constant 0 : i32
    %c0_i32_0 = arith.constant 0 : i32
    return %arg0, %c0_i32 : i32, i32
  }
  func.func @transform_1(%arg0: i32, %arg1: i32) -> (i32, i32) {
    %c0_i32 = arith.constant 0 : i32
    %c0_i32_0 = arith.constant 0 : i32
    return %c0_i32, %arg1 : i32, i32
  }
  func.func @transform_2(%arg0: i32, %arg1: i32) -> (i32, i32) {
    %c0_i32 = arith.constant 0 : i32
    %c0_i32_0 = arith.constant 0 : i32
    return %c0_i32, %arg1 : i32, i32
  }
  func.func @transform_3(%arg0: i32, %arg1: i32) -> (i32, i32) {
    %c0_i32 = arith.constant 0 : i32
    %c0_i32_0 = arith.constant 0 : i32
    return %c0_i32, %arg1 : i32, i32
  }
  func.func @transform_4(%arg0: i32, %arg1: i32) -> (i32, i32) {
    %c0_i32 = arith.constant 0 : i32
    return %arg0, %arg1 : i32, i32
  }
}

module attributes {stable_mosaic.version = 11 : i64} {
  func.func @_mm_kernel(%arg0: i32, %arg1: i32, %arg2: memref<32x384xbf16, #tpu.memory_space<vmem>>, %arg3: memref<384x128xbf16, #tpu.memory_space<vmem>>, %arg4: memref<1x128xf32, #tpu.memory_space<vmem>>, %arg5: memref<1x128xf32, #tpu.memory_space<vmem>>, %arg6: memref<32x128xbf16, #tpu.memory_space<vmem>>) attributes {dimension_semantics = [#tpu.dimension_semantics<parallel>, #tpu.dimension_semantics<parallel>], iteration_bounds = array<i64: 1, 1>, scalar_prefetch = 0 : i64, scratch_operands = 0 : i64, tpu.core_type = #tpu.core_type<tc>, window_params = [{transform_indices = @transform_0, window_bounds = array<i64: 32, 384>}, {transform_indices = @transform_1, window_bounds = array<i64: 384, 128>}, {transform_indices = @transform_2, window_bounds = array<i64: 1, 128>}, {transform_indices = @transform_3, window_bounds = array<i64: 1, 128>}, {transform_indices = @transform_4, window_bounds = array<i64: 32, 128>}]} {
    %c0 = arith.constant 0 : index
    %c0_0 = arith.constant 0 : index
    %0 = vector.load %arg2[%c0, %c0_0] : memref<32x384xbf16, #tpu.memory_space<vmem>>, vector<32x384xbf16>
    %c0_1 = arith.constant 0 : index
    %c0_2 = arith.constant 0 : index
    %1 = vector.load %arg3[%c0_1, %c0_2] : memref<384x128xbf16, #tpu.memory_space<vmem>>, vector<384x128xbf16>
    %cst = arith.constant dense<0.000000e+00> : vector<32x128xf32>
    %2 = tpu.matmul %0, %1, %cst {dimension_numbers = #tpu.dot_dimension_numbers<[1], [0], [0], [1], [0, 0, 1, 1], [], []>} : vector<32x384xbf16>, vector<384x128xbf16>, vector<32x128xf32> -> vector<32x128xf32>
    %c0_3 = arith.constant 0 : index
    %c0_4 = arith.constant 0 : index
    %3 = vector.load %arg4[%c0_3, %c0_4] : memref<1x128xf32, #tpu.memory_space<vmem>>, vector<1x128xf32>
    %4 = vector.broadcast %3 : vector<1x128xf32> to vector<32x128xf32>
    %5 = arith.mulf %2, %4 : vector<32x128xf32>
    %c0_5 = arith.constant 0 : index
    %c0_6 = arith.constant 0 : index
    %6 = vector.load %arg5[%c0_5, %c0_6] : memref<1x128xf32, #tpu.memory_space<vmem>>, vector<1x128xf32>
    %7 = vector.broadcast %6 : vector<1x128xf32> to vector<32x128xf32>
    %8 = arith.addf %5, %7 : vector<32x128xf32>
    %cst_7 = arith.constant 0.000000e+00 : f32
    %9 = vector.broadcast %cst_7 : f32 to vector<32x128xf32>
    %10 = arith.maximumf %8, %9 : vector<32x128xf32>
    %11 = arith.truncf %10 : vector<32x128xf32> to vector<32x128xbf16>
    %c0_8 = arith.constant 0 : index
    %c0_9 = arith.constant 0 : index
    %12 = vector.load %arg6[%c0_8, %c0_9] : memref<32x128xbf16, #tpu.memory_space<vmem>>, vector<32x128xbf16>
    tpu.vector_store %arg6[%c0_8, %c0_9], %11 {strides = array<i32>} : memref<32x128xbf16, #tpu.memory_space<vmem>>, vector<32x128xbf16>,
    return
  }
  func.func @transform_0(%arg0: i32, %arg1: i32) -> (i32, i32) {
    %c0_i32 = arith.constant 0 : i32
    %c0_i32_0 = arith.constant 0 : i32
    return %arg0, %c0_i32 : i32, i32
  }
  func.func @transform_1(%arg0: i32, %arg1: i32) -> (i32, i32) {
    %c0_i32 = arith.constant 0 : i32
    %c0_i32_0 = arith.constant 0 : i32
    return %c0_i32, %arg1 : i32, i32
  }
  func.func @transform_2(%arg0: i32, %arg1: i32) -> (i32, i32) {
    %c0_i32 = arith.constant 0 : i32
    %c0_i32_0 = arith.constant 0 : i32
    return %c0_i32, %arg1 : i32, i32
  }
  func.func @transform_3(%arg0: i32, %arg1: i32) -> (i32, i32) {
    %c0_i32 = arith.constant 0 : i32
    %c0_i32_0 = arith.constant 0 : i32
    return %c0_i32, %arg1 : i32, i32
  }
  func.func @transform_4(%arg0: i32, %arg1: i32) -> (i32, i32) {
    %c0_i32 = arith.constant 0 : i32
    return %arg0, %arg1 : i32, i32
  }
}

module attributes {stable_mosaic.version = 11 : i64} {
  func.func @_mm_kernel(%arg0: i32, %arg1: i32, %arg2: memref<8x1152xbf16, #tpu.memory_space<vmem>>, %arg3: memref<1152x128xbf16, #tpu.memory_space<vmem>>, %arg4: memref<1x128xf32, #tpu.memory_space<vmem>>, %arg5: memref<1x128xf32, #tpu.memory_space<vmem>>, %arg6: memref<8x128xbf16, #tpu.memory_space<vmem>>) attributes {dimension_semantics = [#tpu.dimension_semantics<parallel>, #tpu.dimension_semantics<parallel>], iteration_bounds = array<i64: 1, 1>, scalar_prefetch = 0 : i64, scratch_operands = 0 : i64, tpu.core_type = #tpu.core_type<tc>, window_params = [{transform_indices = @transform_0, window_bounds = array<i64: 8, 1152>}, {transform_indices = @transform_1, window_bounds = array<i64: 1152, 128>}, {transform_indices = @transform_2, window_bounds = array<i64: 1, 128>}, {transform_indices = @transform_3, window_bounds = array<i64: 1, 128>}, {transform_indices = @transform_4, window_bounds = array<i64: 8, 128>}]} {
    %c0 = arith.constant 0 : index
    %c0_0 = arith.constant 0 : index
    %0 = vector.load %arg2[%c0, %c0_0] : memref<8x1152xbf16, #tpu.memory_space<vmem>>, vector<8x1152xbf16>
    %c0_1 = arith.constant 0 : index
    %c0_2 = arith.constant 0 : index
    %1 = vector.load %arg3[%c0_1, %c0_2] : memref<1152x128xbf16, #tpu.memory_space<vmem>>, vector<1152x128xbf16>
    %cst = arith.constant dense<0.000000e+00> : vector<8x128xf32>
    %2 = tpu.matmul %0, %1, %cst {dimension_numbers = #tpu.dot_dimension_numbers<[1], [0], [0], [1], [0, 0, 1, 1], [], []>} : vector<8x1152xbf16>, vector<1152x128xbf16>, vector<8x128xf32> -> vector<8x128xf32>
    %c0_3 = arith.constant 0 : index
    %c0_4 = arith.constant 0 : index
    %3 = vector.load %arg4[%c0_3, %c0_4] : memref<1x128xf32, #tpu.memory_space<vmem>>, vector<1x128xf32>
    %4 = vector.broadcast %3 : vector<1x128xf32> to vector<8x128xf32>
    %5 = arith.mulf %2, %4 : vector<8x128xf32>
    %c0_5 = arith.constant 0 : index
    %c0_6 = arith.constant 0 : index
    %6 = vector.load %arg5[%c0_5, %c0_6] : memref<1x128xf32, #tpu.memory_space<vmem>>, vector<1x128xf32>
    %7 = vector.broadcast %6 : vector<1x128xf32> to vector<8x128xf32>
    %8 = arith.addf %5, %7 : vector<8x128xf32>
    %cst_7 = arith.constant 0.000000e+00 : f32
    %9 = vector.broadcast %cst_7 : f32 to vector<8x128xf32>
    %10 = arith.maximumf %8, %9 : vector<8x128xf32>
    %11 = arith.truncf %10 : vector<8x128xf32> to vector<8x128xbf16>
    %c0_8 = arith.constant 0 : index
    %c0_9 = arith.constant 0 : index
    %12 = vector.load %arg6[%c0_8, %c0_9] : memref<8x128xbf16, #tpu.memory_space<vmem>>, vector<8x128xbf16>
    tpu.vector_store %arg6[%c0_8, %c0_9], %11 {strides = array<i32>} : memref<8x128xbf16, #tpu.memory_space<vmem>>, vector<8x128xbf16>,
    return
  }
  func.func @transform_0(%arg0: i32, %arg1: i32) -> (i32, i32) {
    %c0_i32 = arith.constant 0 : i32
    %c0_i32_0 = arith.constant 0 : i32
    return %arg0, %c0_i32 : i32, i32
  }
  func.func @transform_1(%arg0: i32, %arg1: i32) -> (i32, i32) {
    %c0_i32 = arith.constant 0 : i32
    %c0_i32_0 = arith.constant 0 : i32
    return %c0_i32, %arg1 : i32, i32
  }
  func.func @transform_2(%arg0: i32, %arg1: i32) -> (i32, i32) {
    %c0_i32 = arith.constant 0 : i32
    %c0_i32_0 = arith.constant 0 : i32
    return %c0_i32, %arg1 : i32, i32
  }
  func.func @transform_3(%arg0: i32, %arg1: i32) -> (i32, i32) {
    %c0_i32 = arith.constant 0 : i32
    %c0_i32_0 = arith.constant 0 : i32
    return %c0_i32, %arg1 : i32, i32
  }
  func.func @transform_4(%arg0: i32, %arg1: i32) -> (i32, i32) {
    %c0_i32 = arith.constant 0 : i32
    return %arg0, %arg1 : i32, i32
  }
}

module attributes {stable_mosaic.version = 11 : i64} {
  func.func @_mm_kernel(%arg0: i32, %arg1: i32, %arg2: memref<8x640xbf16, #tpu.memory_space<vmem>>, %arg3: memref<640x128xbf16, #tpu.memory_space<vmem>>, %arg4: memref<1x128xf32, #tpu.memory_space<vmem>>, %arg5: memref<1x128xf32, #tpu.memory_space<vmem>>, %arg6: memref<8x128xbf16, #tpu.memory_space<vmem>>) attributes {dimension_semantics = [#tpu.dimension_semantics<parallel>, #tpu.dimension_semantics<parallel>], iteration_bounds = array<i64: 1, 1>, scalar_prefetch = 0 : i64, scratch_operands = 0 : i64, tpu.core_type = #tpu.core_type<tc>, window_params = [{transform_indices = @transform_0, window_bounds = array<i64: 8, 640>}, {transform_indices = @transform_1, window_bounds = array<i64: 640, 128>}, {transform_indices = @transform_2, window_bounds = array<i64: 1, 128>}, {transform_indices = @transform_3, window_bounds = array<i64: 1, 128>}, {transform_indices = @transform_4, window_bounds = array<i64: 8, 128>}]} {
    %c0 = arith.constant 0 : index
    %c0_0 = arith.constant 0 : index
    %0 = vector.load %arg2[%c0, %c0_0] : memref<8x640xbf16, #tpu.memory_space<vmem>>, vector<8x640xbf16>
    %c0_1 = arith.constant 0 : index
    %c0_2 = arith.constant 0 : index
    %1 = vector.load %arg3[%c0_1, %c0_2] : memref<640x128xbf16, #tpu.memory_space<vmem>>, vector<640x128xbf16>
    %cst = arith.constant dense<0.000000e+00> : vector<8x128xf32>
    %2 = tpu.matmul %0, %1, %cst {dimension_numbers = #tpu.dot_dimension_numbers<[1], [0], [0], [1], [0, 0, 1, 1], [], []>} : vector<8x640xbf16>, vector<640x128xbf16>, vector<8x128xf32> -> vector<8x128xf32>
    %c0_3 = arith.constant 0 : index
    %c0_4 = arith.constant 0 : index
    %3 = vector.load %arg4[%c0_3, %c0_4] : memref<1x128xf32, #tpu.memory_space<vmem>>, vector<1x128xf32>
    %4 = vector.broadcast %3 : vector<1x128xf32> to vector<8x128xf32>
    %5 = arith.mulf %2, %4 : vector<8x128xf32>
    %c0_5 = arith.constant 0 : index
    %c0_6 = arith.constant 0 : index
    %6 = vector.load %arg5[%c0_5, %c0_6] : memref<1x128xf32, #tpu.memory_space<vmem>>, vector<1x128xf32>
    %7 = vector.broadcast %6 : vector<1x128xf32> to vector<8x128xf32>
    %8 = arith.addf %5, %7 : vector<8x128xf32>
    %cst_7 = arith.constant 0.000000e+00 : f32
    %9 = vector.broadcast %cst_7 : f32 to vector<8x128xf32>
    %10 = arith.maximumf %8, %9 : vector<8x128xf32>
    %11 = arith.truncf %10 : vector<8x128xf32> to vector<8x128xbf16>
    %c0_8 = arith.constant 0 : index
    %c0_9 = arith.constant 0 : index
    %12 = vector.load %arg6[%c0_8, %c0_9] : memref<8x128xbf16, #tpu.memory_space<vmem>>, vector<8x128xbf16>
    tpu.vector_store %arg6[%c0_8, %c0_9], %11 {strides = array<i32>} : memref<8x128xbf16, #tpu.memory_space<vmem>>, vector<8x128xbf16>,
    return
  }
  func.func @transform_0(%arg0: i32, %arg1: i32) -> (i32, i32) {
    %c0_i32 = arith.constant 0 : i32
    %c0_i32_0 = arith.constant 0 : i32
    return %arg0, %c0_i32 : i32, i32
  }
  func.func @transform_1(%arg0: i32, %arg1: i32) -> (i32, i32) {
    %c0_i32 = arith.constant 0 : i32
    %c0_i32_0 = arith.constant 0 : i32
    return %c0_i32, %arg1 : i32, i32
  }
  func.func @transform_2(%arg0: i32, %arg1: i32) -> (i32, i32) {
    %c0_i32 = arith.constant 0 : i32
    %c0_i32_0 = arith.constant 0 : i32
    return %c0_i32, %arg1 : i32, i32
  }
  func.func @transform_3(%arg0: i32, %arg1: i32) -> (i32, i32) {
    %c0_i32 = arith.constant 0 : i32
    %c0_i32_0 = arith.constant 0 : i32
    return %c0_i32, %arg1 : i32, i32
  }
  func.func @transform_4(%arg0: i32, %arg1: i32) -> (i32, i32) {
    %c0_i32 = arith.constant 0 : i32
    return %arg0, %arg1 : i32, i32
  }
}

module attributes {stable_mosaic.version = 11 : i64} {
  func.func @_mm_kernel(%arg0: i32, %arg1: i32, %arg2: memref<8x128xbf16, #tpu.memory_space<vmem>>, %arg3: memref<128x128xbf16, #tpu.memory_space<vmem>>, %arg4: memref<1x128xf32, #tpu.memory_space<vmem>>, %arg5: memref<1x128xf32, #tpu.memory_space<vmem>>, %arg6: memref<8x128xbf16, #tpu.memory_space<vmem>>) attributes {dimension_semantics = [#tpu.dimension_semantics<parallel>, #tpu.dimension_semantics<parallel>], iteration_bounds = array<i64: 1, 1>, scalar_prefetch = 0 : i64, scratch_operands = 0 : i64, tpu.core_type = #tpu.core_type<tc>, window_params = [{transform_indices = @transform_0, window_bounds = array<i64: 8, 128>}, {transform_indices = @transform_1, window_bounds = array<i64: 128, 128>}, {transform_indices = @transform_2, window_bounds = array<i64: 1, 128>}, {transform_indices = @transform_3, window_bounds = array<i64: 1, 128>}, {transform_indices = @transform_4, window_bounds = array<i64: 8, 128>}]} {
    %c0 = arith.constant 0 : index
    %c0_0 = arith.constant 0 : index
    %0 = vector.load %arg2[%c0, %c0_0] : memref<8x128xbf16, #tpu.memory_space<vmem>>, vector<8x128xbf16>
    %c0_1 = arith.constant 0 : index
    %c0_2 = arith.constant 0 : index
    %1 = vector.load %arg3[%c0_1, %c0_2] : memref<128x128xbf16, #tpu.memory_space<vmem>>, vector<128x128xbf16>
    %cst = arith.constant dense<0.000000e+00> : vector<8x128xf32>
    %2 = tpu.matmul %0, %1, %cst {dimension_numbers = #tpu.dot_dimension_numbers<[1], [0], [0], [1], [0, 0, 1, 1], [], []>} : vector<8x128xbf16>, vector<128x128xbf16>, vector<8x128xf32> -> vector<8x128xf32>
    %c0_3 = arith.constant 0 : index
    %c0_4 = arith.constant 0 : index
    %3 = vector.load %arg4[%c0_3, %c0_4] : memref<1x128xf32, #tpu.memory_space<vmem>>, vector<1x128xf32>
    %4 = vector.broadcast %3 : vector<1x128xf32> to vector<8x128xf32>
    %5 = arith.mulf %2, %4 : vector<8x128xf32>
    %c0_5 = arith.constant 0 : index
    %c0_6 = arith.constant 0 : index
    %6 = vector.load %arg5[%c0_5, %c0_6] : memref<1x128xf32, #tpu.memory_space<vmem>>, vector<1x128xf32>
    %7 = vector.broadcast %6 : vector<1x128xf32> to vector<8x128xf32>
    %8 = arith.addf %5, %7 : vector<8x128xf32>
    %cst_7 = arith.constant 0.000000e+00 : f32
    %9 = vector.broadcast %cst_7 : f32 to vector<8x128xf32>
    %10 = arith.maximumf %8, %9 : vector<8x128xf32>
    %11 = arith.truncf %10 : vector<8x128xf32> to vector<8x128xbf16>
    %c0_8 = arith.constant 0 : index
    %c0_9 = arith.constant 0 : index
    %12 = vector.load %arg6[%c0_8, %c0_9] : memref<8x128xbf16, #tpu.memory_space<vmem>>, vector<8x128xbf16>
    tpu.vector_store %arg6[%c0_8, %c0_9], %11 {strides = array<i32>} : memref<8x128xbf16, #tpu.memory_space<vmem>>, vector<8x128xbf16>,
    return
  }
  func.func @transform_0(%arg0: i32, %arg1: i32) -> (i32, i32) {
    %c0_i32 = arith.constant 0 : i32
    %c0_i32_0 = arith.constant 0 : i32
    return %arg0, %c0_i32 : i32, i32
  }
  func.func @transform_1(%arg0: i32, %arg1: i32) -> (i32, i32) {
    %c0_i32 = arith.constant 0 : i32
    %c0_i32_0 = arith.constant 0 : i32
    return %c0_i32, %arg1 : i32, i32
  }
  func.func @transform_2(%arg0: i32, %arg1: i32) -> (i32, i32) {
    %c0_i32 = arith.constant 0 : i32
    %c0_i32_0 = arith.constant 0 : i32
    return %c0_i32, %arg1 : i32, i32
  }
  func.func @transform_3(%arg0: i32, %arg1: i32) -> (i32, i32) {
    %c0_i32 = arith.constant 0 : i32
    %c0_i32_0 = arith.constant 0 : i32
    return %c0_i32, %arg1 : i32, i32
  }
  func.func @transform_4(%arg0: i32, %arg1: i32) -> (i32, i32) {
    %c0_i32 = arith.constant 0 : i32
    return %arg0, %arg1 : i32, i32
  }
}

module attributes {stable_mosaic.version = 11 : i64} {
  func.func @_mm_kernel(%arg0: i32, %arg1: i32, %arg2: memref<256x128xbf16, #tpu.memory_space<vmem>>, %arg3: memref<128x128xbf16, #tpu.memory_space<vmem>>, %arg4: memref<1x128xf32, #tpu.memory_space<vmem>>, %arg5: memref<1x128xf32, #tpu.memory_space<vmem>>, %arg6: memref<256x128xbf16, #tpu.memory_space<vmem>>) attributes {dimension_semantics = [#tpu.dimension_semantics<parallel>, #tpu.dimension_semantics<parallel>], iteration_bounds = array<i64: 2, 1>, scalar_prefetch = 0 : i64, scratch_operands = 0 : i64, tpu.core_type = #tpu.core_type<tc>, window_params = [{transform_indices = @transform_0, window_bounds = array<i64: 256, 128>}, {transform_indices = @transform_1, window_bounds = array<i64: 128, 128>}, {transform_indices = @transform_2, window_bounds = array<i64: 1, 128>}, {transform_indices = @transform_3, window_bounds = array<i64: 1, 128>}, {transform_indices = @transform_4, window_bounds = array<i64: 256, 128>}]} {
    %c0 = arith.constant 0 : index
    %c0_0 = arith.constant 0 : index
    %0 = vector.load %arg2[%c0, %c0_0] : memref<256x128xbf16, #tpu.memory_space<vmem>>, vector<256x128xbf16>
    %c0_1 = arith.constant 0 : index
    %c0_2 = arith.constant 0 : index
    %1 = vector.load %arg3[%c0_1, %c0_2] : memref<128x128xbf16, #tpu.memory_space<vmem>>, vector<128x128xbf16>
    %cst = arith.constant dense<0.000000e+00> : vector<256x128xf32>
    %2 = tpu.matmul %0, %1, %cst {dimension_numbers = #tpu.dot_dimension_numbers<[1], [0], [0], [1], [0, 0, 1, 1], [], []>} : vector<256x128xbf16>, vector<128x128xbf16>, vector<256x128xf32> -> vector<256x128xf32>
    %c0_3 = arith.constant 0 : index
    %c0_4 = arith.constant 0 : index
    %3 = vector.load %arg4[%c0_3, %c0_4] : memref<1x128xf32, #tpu.memory_space<vmem>>, vector<1x128xf32>
    %4 = vector.broadcast %3 : vector<1x128xf32> to vector<256x128xf32>
    %5 = arith.mulf %2, %4 : vector<256x128xf32>
    %c0_5 = arith.constant 0 : index
    %c0_6 = arith.constant 0 : index
    %6 = vector.load %arg5[%c0_5, %c0_6] : memref<1x128xf32, #tpu.memory_space<vmem>>, vector<1x128xf32>
    %7 = vector.broadcast %6 : vector<1x128xf32> to vector<256x128xf32>
    %8 = arith.addf %5, %7 : vector<256x128xf32>
    %cst_7 = arith.constant 0.000000e+00 : f32
    %9 = vector.broadcast %cst_7 : f32 to vector<256x128xf32>
    %10 = arith.maximumf %8, %9 : vector<256x128xf32>
    %11 = arith.truncf %10 : vector<256x128xf32> to vector<256x128xbf16>
    %c0_8 = arith.constant 0 : index
    %c0_9 = arith.constant 0 : index
    %12 = vector.load %arg6[%c0_8, %c0_9] : memref<256x128xbf16, #tpu.memory_space<vmem>>, vector<256x128xbf16>
    tpu.vector_store %arg6[%c0_8, %c0_9], %11 {strides = array<i32>} : memref<256x128xbf16, #tpu.memory_space<vmem>>, vector<256x128xbf16>,
    return
  }
  func.func @transform_0(%arg0: i32, %arg1: i32) -> (i32, i32) {
    %c0_i32 = arith.constant 0 : i32
    %c0_i32_0 = arith.constant 0 : i32
    return %arg0, %c0_i32 : i32, i32
  }
  func.func @transform_1(%arg0: i32, %arg1: i32) -> (i32, i32) {
    %c0_i32 = arith.constant 0 : i32
    %c0_i32_0 = arith.constant 0 : i32
    return %c0_i32, %arg1 : i32, i32
  }
  func.func @transform_2(%arg0: i32, %arg1: i32) -> (i32, i32) {
    %c0_i32 = arith.constant 0 : i32
    %c0_i32_0 = arith.constant 0 : i32
    return %c0_i32, %arg1 : i32, i32
  }
  func.func @transform_3(%arg0: i32, %arg1: i32) -> (i32, i32) {
    %c0_i32 = arith.constant 0 : i32
    %c0_i32_0 = arith.constant 0 : i32
    return %c0_i32, %arg1 : i32, i32
  }
  func.func @transform_4(%arg0: i32, %arg1: i32) -> (i32, i32) {
    %c0_i32 = arith.constant 0 : i32
    return %arg0, %arg1 : i32, i32
  }
}

module attributes {stable_mosaic.version = 11 : i64} {
  func.func @_mm_kernel(%arg0: i32, %arg1: i32, %arg2: memref<32x128xbf16, #tpu.memory_space<vmem>>, %arg3: memref<128x128xbf16, #tpu.memory_space<vmem>>, %arg4: memref<1x128xf32, #tpu.memory_space<vmem>>, %arg5: memref<1x128xf32, #tpu.memory_space<vmem>>, %arg6: memref<32x128xbf16, #tpu.memory_space<vmem>>) attributes {dimension_semantics = [#tpu.dimension_semantics<parallel>, #tpu.dimension_semantics<parallel>], iteration_bounds = array<i64: 1, 2>, scalar_prefetch = 0 : i64, scratch_operands = 0 : i64, tpu.core_type = #tpu.core_type<tc>, window_params = [{transform_indices = @transform_0, window_bounds = array<i64: 32, 128>}, {transform_indices = @transform_1, window_bounds = array<i64: 128, 128>}, {transform_indices = @transform_2, window_bounds = array<i64: 1, 128>}, {transform_indices = @transform_3, window_bounds = array<i64: 1, 128>}, {transform_indices = @transform_4, window_bounds = array<i64: 32, 128>}]} {
    %c0 = arith.constant 0 : index
    %c0_0 = arith.constant 0 : index
    %0 = vector.load %arg2[%c0, %c0_0] : memref<32x128xbf16, #tpu.memory_space<vmem>>, vector<32x128xbf16>
    %c0_1 = arith.constant 0 : index
    %c0_2 = arith.constant 0 : index
    %1 = vector.load %arg3[%c0_1, %c0_2] : memref<128x128xbf16, #tpu.memory_space<vmem>>, vector<128x128xbf16>
    %cst = arith.constant dense<0.000000e+00> : vector<32x128xf32>
    %2 = tpu.matmul %0, %1, %cst {dimension_numbers = #tpu.dot_dimension_numbers<[1], [0], [0], [1], [0, 0, 1, 1], [], []>} : vector<32x128xbf16>, vector<128x128xbf16>, vector<32x128xf32> -> vector<32x128xf32>
    %c0_3 = arith.constant 0 : index
    %c0_4 = arith.constant 0 : index
    %3 = vector.load %arg4[%c0_3, %c0_4] : memref<1x128xf32, #tpu.memory_space<vmem>>, vector<1x128xf32>
    %4 = vector.broadcast %3 : vector<1x128xf32> to vector<32x128xf32>
    %5 = arith.mulf %2, %4 : vector<32x128xf32>
    %c0_5 = arith.constant 0 : index
    %c0_6 = arith.constant 0 : index
    %6 = vector.load %arg5[%c0_5, %c0_6] : memref<1x128xf32, #tpu.memory_space<vmem>>, vector<1x128xf32>
    %7 = vector.broadcast %6 : vector<1x128xf32> to vector<32x128xf32>
    %8 = arith.addf %5, %7 : vector<32x128xf32>
    %9 = arith.truncf %8 : vector<32x128xf32> to vector<32x128xbf16>
    %c0_7 = arith.constant 0 : index
    %c0_8 = arith.constant 0 : index
    %10 = vector.load %arg6[%c0_7, %c0_8] : memref<32x128xbf16, #tpu.memory_space<vmem>>, vector<32x128xbf16>
    tpu.vector_store %arg6[%c0_7, %c0_8], %9 {strides = array<i32>} : memref<32x128xbf16, #tpu.memory_space<vmem>>, vector<32x128xbf16>,
    return
  }
  func.func @transform_0(%arg0: i32, %arg1: i32) -> (i32, i32) {
    %c0_i32 = arith.constant 0 : i32
    %c0_i32_0 = arith.constant 0 : i32
    return %arg0, %c0_i32 : i32, i32
  }
  func.func @transform_1(%arg0: i32, %arg1: i32) -> (i32, i32) {
    %c0_i32 = arith.constant 0 : i32
    %c0_i32_0 = arith.constant 0 : i32
    return %c0_i32, %arg1 : i32, i32
  }
  func.func @transform_2(%arg0: i32, %arg1: i32) -> (i32, i32) {
    %c0_i32 = arith.constant 0 : i32
    %c0_i32_0 = arith.constant 0 : i32
    return %c0_i32, %arg1 : i32, i32
  }
  func.func @transform_3(%arg0: i32, %arg1: i32) -> (i32, i32) {
    %c0_i32 = arith.constant 0 : i32
    %c0_i32_0 = arith.constant 0 : i32
    return %c0_i32, %arg1 : i32, i32
  }
  func.func @transform_4(%arg0: i32, %arg1: i32) -> (i32, i32) {
    %c0_i32 = arith.constant 0 : i32
    return %arg0, %arg1 : i32, i32
  }
}

module attributes {stable_mosaic.version = 11 : i64} {
  func.func @_mm_kernel(%arg0: i32, %arg1: i32, %arg2: memref<256x384xbf16, #tpu.memory_space<vmem>>, %arg3: memref<384x128xbf16, #tpu.memory_space<vmem>>, %arg4: memref<1x128xf32, #tpu.memory_space<vmem>>, %arg5: memref<1x128xf32, #tpu.memory_space<vmem>>, %arg6: memref<256x128xbf16, #tpu.memory_space<vmem>>) attributes {dimension_semantics = [#tpu.dimension_semantics<parallel>, #tpu.dimension_semantics<parallel>], iteration_bounds = array<i64: 2, 1>, scalar_prefetch = 0 : i64, scratch_operands = 0 : i64, tpu.core_type = #tpu.core_type<tc>, window_params = [{transform_indices = @transform_0, window_bounds = array<i64: 256, 384>}, {transform_indices = @transform_1, window_bounds = array<i64: 384, 128>}, {transform_indices = @transform_2, window_bounds = array<i64: 1, 128>}, {transform_indices = @transform_3, window_bounds = array<i64: 1, 128>}, {transform_indices = @transform_4, window_bounds = array<i64: 256, 128>}]} {
    %c0 = arith.constant 0 : index
    %c0_0 = arith.constant 0 : index
    %0 = vector.load %arg2[%c0, %c0_0] : memref<256x384xbf16, #tpu.memory_space<vmem>>, vector<256x384xbf16>
    %c0_1 = arith.constant 0 : index
    %c0_2 = arith.constant 0 : index
    %1 = vector.load %arg3[%c0_1, %c0_2] : memref<384x128xbf16, #tpu.memory_space<vmem>>, vector<384x128xbf16>
    %cst = arith.constant dense<0.000000e+00> : vector<256x128xf32>
    %2 = tpu.matmul %0, %1, %cst {dimension_numbers = #tpu.dot_dimension_numbers<[1], [0], [0], [1], [0, 0, 1, 1], [], []>} : vector<256x384xbf16>, vector<384x128xbf16>, vector<256x128xf32> -> vector<256x128xf32>
    %c0_3 = arith.constant 0 : index
    %c0_4 = arith.constant 0 : index
    %3 = vector.load %arg4[%c0_3, %c0_4] : memref<1x128xf32, #tpu.memory_space<vmem>>, vector<1x128xf32>
    %4 = vector.broadcast %3 : vector<1x128xf32> to vector<256x128xf32>
    %5 = arith.mulf %2, %4 : vector<256x128xf32>
    %c0_5 = arith.constant 0 : index
    %c0_6 = arith.constant 0 : index
    %6 = vector.load %arg5[%c0_5, %c0_6] : memref<1x128xf32, #tpu.memory_space<vmem>>, vector<1x128xf32>
    %7 = vector.broadcast %6 : vector<1x128xf32> to vector<256x128xf32>
    %8 = arith.addf %5, %7 : vector<256x128xf32>
    %cst_7 = arith.constant 0.000000e+00 : f32
    %9 = vector.broadcast %cst_7 : f32 to vector<256x128xf32>
    %10 = arith.maximumf %8, %9 : vector<256x128xf32>
    %11 = arith.truncf %10 : vector<256x128xf32> to vector<256x128xbf16>
    %c0_8 = arith.constant 0 : index
    %c0_9 = arith.constant 0 : index
    %12 = vector.load %arg6[%c0_8, %c0_9] : memref<256x128xbf16, #tpu.memory_space<vmem>>, vector<256x128xbf16>
    tpu.vector_store %arg6[%c0_8, %c0_9], %11 {strides = array<i32>} : memref<256x128xbf16, #tpu.memory_space<vmem>>, vector<256x128xbf16>,
    return
  }
  func.func @transform_0(%arg0: i32, %arg1: i32) -> (i32, i32) {
    %c0_i32 = arith.constant 0 : i32
    %c0_i32_0 = arith.constant 0 : i32
    return %arg0, %c0_i32 : i32, i32
  }
  func.func @transform_1(%arg0: i32, %arg1: i32) -> (i32, i32) {
    %c0_i32 = arith.constant 0 : i32
    %c0_i32_0 = arith.constant 0 : i32
    return %c0_i32, %arg1 : i32, i32
  }
  func.func @transform_2(%arg0: i32, %arg1: i32) -> (i32, i32) {
    %c0_i32 = arith.constant 0 : i32
    %c0_i32_0 = arith.constant 0 : i32
    return %c0_i32, %arg1 : i32, i32
  }
  func.func @transform_3(%arg0: i32, %arg1: i32) -> (i32, i32) {
    %c0_i32 = arith.constant 0 : i32
    %c0_i32_0 = arith.constant 0 : i32
    return %c0_i32, %arg1 : i32, i32
  }
  func.func @transform_4(%arg0: i32, %arg1: i32) -> (i32, i32) {
    %c0_i32 = arith.constant 0 : i32
    return %arg0, %arg1 : i32, i32
  }
}

module attributes {stable_mosaic.version = 11 : i64} {
  func.func @_mm_kernel(%arg0: i32, %arg1: i32, %arg2: memref<256x128xbf16, #tpu.memory_space<vmem>>, %arg3: memref<128x128xbf16, #tpu.memory_space<vmem>>, %arg4: memref<1x128xf32, #tpu.memory_space<vmem>>, %arg5: memref<1x128xf32, #tpu.memory_space<vmem>>, %arg6: memref<256x128xbf16, #tpu.memory_space<vmem>>) attributes {dimension_semantics = [#tpu.dimension_semantics<parallel>, #tpu.dimension_semantics<parallel>], iteration_bounds = array<i64: 2, 1>, scalar_prefetch = 0 : i64, scratch_operands = 0 : i64, tpu.core_type = #tpu.core_type<tc>, window_params = [{transform_indices = @transform_0, window_bounds = array<i64: 256, 128>}, {transform_indices = @transform_1, window_bounds = array<i64: 128, 128>}, {transform_indices = @transform_2, window_bounds = array<i64: 1, 128>}, {transform_indices = @transform_3, window_bounds = array<i64: 1, 128>}, {transform_indices = @transform_4, window_bounds = array<i64: 256, 128>}]} {
    %c0 = arith.constant 0 : index
    %c0_0 = arith.constant 0 : index
    %0 = vector.load %arg2[%c0, %c0_0] : memref<256x128xbf16, #tpu.memory_space<vmem>>, vector<256x128xbf16>
    %c0_1 = arith.constant 0 : index
    %c0_2 = arith.constant 0 : index
    %1 = vector.load %arg3[%c0_1, %c0_2] : memref<128x128xbf16, #tpu.memory_space<vmem>>, vector<128x128xbf16>
    %cst = arith.constant dense<0.000000e+00> : vector<256x128xf32>
    %2 = tpu.matmul %0, %1, %cst {dimension_numbers = #tpu.dot_dimension_numbers<[1], [0], [0], [1], [0, 0, 1, 1], [], []>} : vector<256x128xbf16>, vector<128x128xbf16>, vector<256x128xf32> -> vector<256x128xf32>
    %c0_3 = arith.constant 0 : index
    %c0_4 = arith.constant 0 : index
    %3 = vector.load %arg4[%c0_3, %c0_4] : memref<1x128xf32, #tpu.memory_space<vmem>>, vector<1x128xf32>
    %4 = vector.broadcast %3 : vector<1x128xf32> to vector<256x128xf32>
    %5 = arith.mulf %2, %4 : vector<256x128xf32>
    %c0_5 = arith.constant 0 : index
    %c0_6 = arith.constant 0 : index
    %6 = vector.load %arg5[%c0_5, %c0_6] : memref<1x128xf32, #tpu.memory_space<vmem>>, vector<1x128xf32>
    %7 = vector.broadcast %6 : vector<1x128xf32> to vector<256x128xf32>
    %8 = arith.addf %5, %7 : vector<256x128xf32>
    %9 = arith.truncf %8 : vector<256x128xf32> to vector<256x128xbf16>
    %c0_7 = arith.constant 0 : index
    %c0_8 = arith.constant 0 : index
    %10 = vector.load %arg6[%c0_7, %c0_8] : memref<256x128xbf16, #tpu.memory_space<vmem>>, vector<256x128xbf16>
    tpu.vector_store %arg6[%c0_7, %c0_8], %9 {strides = array<i32>} : memref<256x128xbf16, #tpu.memory_space<vmem>>, vector<256x128xbf16>,
    return
  }
  func.func @transform_0(%arg0: i32, %arg1: i32) -> (i32, i32) {
    %c0_i32 = arith.constant 0 : i32
    %c0_i32_0 = arith.constant 0 : i32
    return %arg0, %c0_i32 : i32, i32
  }
  func.func @transform_1(%arg0: i32, %arg1: i32) -> (i32, i32) {
    %c0_i32 = arith.constant 0 : i32
    %c0_i32_0 = arith.constant 0 : i32
    return %c0_i32, %arg1 : i32, i32
  }
  func.func @transform_2(%arg0: i32, %arg1: i32) -> (i32, i32) {
    %c0_i32 = arith.constant 0 : i32
    %c0_i32_0 = arith.constant 0 : i32
    return %c0_i32, %arg1 : i32, i32
  }
  func.func @transform_3(%arg0: i32, %arg1: i32) -> (i32, i32) {
    %c0_i32 = arith.constant 0 : i32
    %c0_i32_0 = arith.constant 0 : i32
    return %c0_i32, %arg1 : i32, i32
  }
  func.func @transform_4(%arg0: i32, %arg1: i32) -> (i32, i32) {
    %c0_i32 = arith.constant 0 : i32
    return %arg0, %arg1 : i32, i32
  }
}

module attributes {stable_mosaic.version = 11 : i64} {
  func.func @_mm_kernel(%arg0: i32, %arg1: i32, %arg2: memref<8x256xbf16, #tpu.memory_space<vmem>>, %arg3: memref<256x128xbf16, #tpu.memory_space<vmem>>, %arg4: memref<1x128xf32, #tpu.memory_space<vmem>>, %arg5: memref<1x128xf32, #tpu.memory_space<vmem>>, %arg6: memref<8x128xf32, #tpu.memory_space<vmem>>) attributes {dimension_semantics = [#tpu.dimension_semantics<parallel>, #tpu.dimension_semantics<parallel>], iteration_bounds = array<i64: 1, 32>, scalar_prefetch = 0 : i64, scratch_operands = 0 : i64, tpu.core_type = #tpu.core_type<tc>, window_params = [{transform_indices = @transform_0, window_bounds = array<i64: 8, 256>}, {transform_indices = @transform_1, window_bounds = array<i64: 256, 128>}, {transform_indices = @transform_2, window_bounds = array<i64: 1, 128>}, {transform_indices = @transform_3, window_bounds = array<i64: 1, 128>}, {transform_indices = @transform_4, window_bounds = array<i64: 8, 128>}]} {
    %c0 = arith.constant 0 : index
    %c0_0 = arith.constant 0 : index
    %0 = vector.load %arg2[%c0, %c0_0] : memref<8x256xbf16, #tpu.memory_space<vmem>>, vector<8x256xbf16>
    %c0_1 = arith.constant 0 : index
    %c0_2 = arith.constant 0 : index
    %1 = vector.load %arg3[%c0_1, %c0_2] : memref<256x128xbf16, #tpu.memory_space<vmem>>, vector<256x128xbf16>
    %cst = arith.constant dense<0.000000e+00> : vector<8x128xf32>
    %2 = tpu.matmul %0, %1, %cst {dimension_numbers = #tpu.dot_dimension_numbers<[1], [0], [0], [1], [0, 0, 1, 1], [], []>} : vector<8x256xbf16>, vector<256x128xbf16>, vector<8x128xf32> -> vector<8x128xf32>
    %c0_3 = arith.constant 0 : index
    %c0_4 = arith.constant 0 : index
    %3 = vector.load %arg4[%c0_3, %c0_4] : memref<1x128xf32, #tpu.memory_space<vmem>>, vector<1x128xf32>
    %4 = vector.broadcast %3 : vector<1x128xf32> to vector<8x128xf32>
    %5 = arith.mulf %2, %4 : vector<8x128xf32>
    %c0_5 = arith.constant 0 : index
    %c0_6 = arith.constant 0 : index
    %6 = vector.load %arg5[%c0_5, %c0_6] : memref<1x128xf32, #tpu.memory_space<vmem>>, vector<1x128xf32>
    %7 = vector.broadcast %6 : vector<1x128xf32> to vector<8x128xf32>
    %8 = arith.addf %5, %7 : vector<8x128xf32>
    %c0_7 = arith.constant 0 : index
    %c0_8 = arith.constant 0 : index
    %9 = vector.load %arg6[%c0_7, %c0_8] : memref<8x128xf32, #tpu.memory_space<vmem>>, vector<8x128xf32>
    tpu.vector_store %arg6[%c0_7, %c0_8], %8 {strides = array<i32>} : memref<8x128xf32, #tpu.memory_space<vmem>>, vector<8x128xf32>,
    return
  }
  func.func @transform_0(%arg0: i32, %arg1: i32) -> (i32, i32) {
    %c0_i32 = arith.constant 0 : i32
    %c0_i32_0 = arith.constant 0 : i32
    return %arg0, %c0_i32 : i32, i32
  }
  func.func @transform_1(%arg0: i32, %arg1: i32) -> (i32, i32) {
    %c0_i32 = arith.constant 0 : i32
    %c0_i32_0 = arith.constant 0 : i32
    return %c0_i32, %arg1 : i32, i32
  }
  func.func @transform_2(%arg0: i32, %arg1: i32) -> (i32, i32) {
    %c0_i32 = arith.constant 0 : i32
    %c0_i32_0 = arith.constant 0 : i32
    return %c0_i32, %arg1 : i32, i32
  }
  func.func @transform_3(%arg0: i32, %arg1: i32) -> (i32, i32) {
    %c0_i32 = arith.constant 0 : i32
    %c0_i32_0 = arith.constant 0 : i32
    return %c0_i32, %arg1 : i32, i32
  }
  func.func @transform_4(%arg0: i32, %arg1: i32) -> (i32, i32) {
    %c0_i32 = arith.constant 0 : i32
    return %arg0, %arg1 : i32, i32
  }
}

</mosaic_0001>

<llo_original>
// kernel: deeplab_forward.16
$region0: #{deeplab_forward.16}
  #allocation0 [shape = 'u32[]', space=smem, size = 0x4, offset = 0x4, fixed_abs, tag = 'smem constant byte address 0x4 - core index']
  #allocation1 [shape = 'u32[144,128]{1,0:T(1,128)}', space=vmem, size = 0x12000, scoped, tag = 'internal scratch']
  %s0 = inlined_call_operand.vmem [shape: bf16[2048,128], index: 0, kind: input, shape index: {}]
  %s1 = inlined_call_operand.vmem [shape: bf16[128,128], index: 1, kind: input, shape index: {}]
  %s2 = inlined_call_operand.vmem [shape: f32[1,128], index: 2, kind: input, shape index: {}]
  %s3 = inlined_call_operand.vmem [shape: f32[1,128], index: 3, kind: input, shape index: {}]
  %s4 = inlined_call_operand.vmem [shape: bf16[2048,128], index: 4, kind: output, shape index: {}]
  %s5 = sld [smem:[#allocation0]]
  $region49: #{deeplab_forward.16} parent=0
    _
  %s7 = ssub.s32 1, %s5
  %s8 = scalar_select 0, %s7, %s5
  loop: start=0, step=1, limit=6
  $region2: #{deeplab_forward.16} parent=0 // loop_pre_header
    _
  $region3: #{deeplab_forward.16} parent=0 // loop_header
    %s10 = sphi 0, %s14
    %p11 = scmp.ge.s32.totalorder %s10, 6
    %s17 = sphi 0, %s29
    %s18 = sphi 0, %s25
    %s19 = sphi 0, %s17
    %s20 = sphi 0, %s18
    %s21 = sphi 0, %s19
    %s22 = sphi 0, %s20
    %s32 = sphi 0, %s34
    %s35 = sphi 0, %s32
    %s36 = sphi 0, %s35
    %s52 = sphi 0, %s36
    %s58 = sphi 0, %s60
    %s61 = sphi 0, %s58
    %s62 = sphi 0, %s61
    %s78 = sphi 0, %s62
    %s84 = sphi 0, %s86
    %s87 = sphi 0, %s84
    %s88 = sphi 0, %s87
    %s104 = sphi 0, %s88
    %s110 = sphi 0, %s112
    %s113 = sphi 0, %s110
    %s114 = sphi 0, %s113
    %s130 = sphi 0, %s114
    %s138 = sphi 0, %s140
    %s141 = sphi 0, %s138
    %s142 = sphi 0, %s141
    %s158 = sphi 0, %s142
  $region4: #{deeplab_forward.16} parent=0 // loop_header_branch
    %13 = sbr.rel (%p11) target = $region8
  $region5: #{deeplab_forward.16} parent=0 // loop_body
    %s15 = ssub.s32 %s10, 1
    %s16 = ssub.s32 %s10, 2
    %s23 = sadd.s32 1, %s18
    %p24 = scmp.ge.s32.totalorder %s23, 1
    %s25 = scalar_select %p24, 0, %s23
    %s26 = sadd.s32 1, %s17
    %s27 = scalar_select %p24, %s26, %s17
    %p28 = scmp.ge.s32.totalorder %s27, 4
    %s29 = scalar_select %p28, 0, %s27
    %s30 = ssub.s32 %s17, %s29
    %p31 = scmp.eq.s32.totalorder %s30, 0
    %s33 = sadd.s32 %s32, 1
    %s34 = scalar_select %p31, %s32, %s33
    %p37 = pneg %p31
    %p38 = scmp.eq.s32.totalorder %s10, 3
    %p39 = por %p37, %p38
    %p40 = scmp.ne.s32.totalorder %s32, %s35
    %p41 = scmp.eq.s32.totalorder %s10, 0
    %p42 = por %p40, %p41
    %p43 = scmp.ne.s32.totalorder %s32, %s35
    %p44 = scmp.eq.s32.totalorder %s15, 3
    %p45 = por %p43, %p44
    %p46 = scmp.ne.s32.totalorder %s35, %s36
    %p47 = scmp.eq.s32.totalorder %s15, 0
    %p48 = por %p46, %p47
    %p49 = scmp.ne.s32.totalorder %s35, %s36
    %p50 = scmp.eq.s32.totalorder %s16, 3
    %p51 = por %p49, %p50
    %p53 = scmp.ne.s32.totalorder %s36, %s52
    %p54 = scmp.eq.s32.totalorder %s16, 0
    %p55 = por %p53, %p54
    %s56 = ssub.s32 %s18, %s25
    %p57 = scmp.eq.s32.totalorder %s56, 0
    %s59 = sadd.s32 %s58, 1
    %s60 = scalar_select %p57, %s58, %s59
    %p63 = pneg %p57
    %p64 = scmp.eq.s32.totalorder %s10, 3
    %p65 = por %p63, %p64
    %p66 = scmp.ne.s32.totalorder %s58, %s61
    %p67 = scmp.eq.s32.totalorder %s10, 0
    %p68 = por %p66, %p67
    %p69 = scmp.ne.s32.totalorder %s58, %s61
    %p70 = scmp.eq.s32.totalorder %s15, 3
    %p71 = por %p69, %p70
    %p72 = scmp.ne.s32.totalorder %s61, %s62
    %p73 = scmp.eq.s32.totalorder %s15, 0
    %p74 = por %p72, %p73
    %p75 = scmp.ne.s32.totalorder %s61, %s62
    %p76 = scmp.eq.s32.totalorder %s16, 3
    %p77 = por %p75, %p76
    %p79 = scmp.ne.s32.totalorder %s62, %s78
    %p80 = scmp.eq.s32.totalorder %s16, 0
    %p81 = por %p79, %p80
    %s82 = ssub.s32 %s18, %s25
    %p83 = scmp.eq.s32.totalorder %s82, 0
    %s85 = sadd.s32 %s84, 1
    %s86 = scalar_select %p83, %s84, %s85
    %p89 = pneg %p83
    %p90 = scmp.eq.s32.totalorder %s10, 3
    %p91 = por %p89, %p90
    %p92 = scmp.ne.s32.totalorder %s84, %s87
    %p93 = scmp.eq.s32.totalorder %s10, 0
    %p94 = por %p92, %p93
    %p95 = scmp.ne.s32.totalorder %s84, %s87
    %p96 = scmp.eq.s32.totalorder %s15, 3
    %p97 = por %p95, %p96
    %p98 = scmp.ne.s32.totalorder %s87, %s88
    %p99 = scmp.eq.s32.totalorder %s15, 0
    %p100 = por %p98, %p99
    %p101 = scmp.ne.s32.totalorder %s87, %s88
    %p102 = scmp.eq.s32.totalorder %s16, 3
    %p103 = por %p101, %p102
    %p105 = scmp.ne.s32.totalorder %s88, %s104
    %p106 = scmp.eq.s32.totalorder %s16, 0
    %p107 = por %p105, %p106
    %s108 = ssub.s32 %s18, %s25
    %p109 = scmp.eq.s32.totalorder %s108, 0
    %s111 = sadd.s32 %s110, 1
    %s112 = scalar_select %p109, %s110, %s111
    %p115 = pneg %p109
    %p116 = scmp.eq.s32.totalorder %s10, 3
    %p117 = por %p115, %p116
    %p118 = scmp.ne.s32.totalorder %s110, %s113
    %p119 = scmp.eq.s32.totalorder %s10, 0
    %p120 = por %p118, %p119
    %p121 = scmp.ne.s32.totalorder %s110, %s113
    %p122 = scmp.eq.s32.totalorder %s15, 3
    %p123 = por %p121, %p122
    %p124 = scmp.ne.s32.totalorder %s113, %s114
    %p125 = scmp.eq.s32.totalorder %s15, 0
    %p126 = por %p124, %p125
    %p127 = scmp.ne.s32.totalorder %s113, %s114
    %p128 = scmp.eq.s32.totalorder %s16, 3
    %p129 = por %p127, %p128
    %p131 = scmp.ne.s32.totalorder %s114, %s130
    %p132 = scmp.eq.s32.totalorder %s16, 0
    %p133 = por %p131, %p132
    %s134 = ssub.s32 %s17, %s29
    %s135 = ssub.s32 %s18, %s25
    %s136 = sor.u32 %s134, %s135
    %p137 = scmp.eq.s32.totalorder %s136, 0
    %s139 = sadd.s32 %s138, 1
    %s140 = scalar_select %p137, %s138, %s139
    %p143 = pneg %p137
    %p144 = scmp.eq.s32.totalorder %s10, 3
    %p145 = por %p143, %p144
    %p146 = scmp.ne.s32.totalorder %s138, %s141
    %p147 = scmp.eq.s32.totalorder %s10, 0
    %p148 = por %p146, %p147
    %p149 = scmp.ne.s32.totalorder %s138, %s141
    %p150 = scmp.eq.s32.totalorder %s15, 3
    %p151 = por %p149, %p150
    %p152 = scmp.ne.s32.totalorder %s141, %s142
    %p153 = scmp.eq.s32.totalorder %s15, 0
    %p154 = por %p152, %p153
    %p155 = scmp.ne.s32.totalorder %s141, %s142
    %p156 = scmp.eq.s32.totalorder %s16, 3
    %p157 = por %p155, %p156
    %p159 = scmp.ne.s32.totalorder %s142, %s158
    %p160 = scmp.eq.s32.totalorder %s16, 0
    %p161 = por %p159, %p160
    %p162 = scmp.le.s32.totalorder 1, %s10
    %p163 = scmp.lt.s32.totalorder %s10, 5
    %p164 = pnand %p162, %p163
    %p165 = pneg %p164
    // Predicated region
    $region9: #{deeplab_forward.16} parent=5 // pred_check
      _
    $region10: #{deeplab_forward.16} parent=5 // pred_check_branch
      %167 = sbr.rel (%p164) target = $region12
    $region11: #{deeplab_forward.16} parent=5 // pred_region
      %s168 = ssub.s32 %s10, 1
      // Predicated region
      $region13: #{deeplab_forward.16} parent=11 // pred_check
        %p169 = pneg %p74
      $region14: #{deeplab_forward.16} parent=11 // pred_check_branch
        %171 = sbr.rel (%p169) target = $region16
      $region15: #{deeplab_forward.16} parent=11 // pred_region
        %p172 = scmp.lt.s32.totalorder %s20, 0
        %s173 = scalar_select %p172, %s20, 0
        %s174 = smul.addr %s173, 4
        %s175 = scalar_lea.vmem %s1, %s174
      $region16: #{deeplab_forward.16} parent=11 // pred_fallthru
        _
      // Predicated region
      $region17: #{deeplab_forward.16} parent=11 // pred_check
        %p176 = pneg %p100
      $region18: #{deeplab_forward.16} parent=11 // pred_check_branch
        %178 = sbr.rel (%p176) target = $region20
      $region19: #{deeplab_forward.16} parent=11 // pred_region
        %p179 = scmp.lt.s32.totalorder %s20, 0
        %s180 = scalar_select %p179, %s20, 0
        %s181 = scalar_lea.vmem %s2, %s180
      $region20: #{deeplab_forward.16} parent=11 // pred_fallthru
        _
      // Predicated region
      $region21: #{deeplab_forward.16} parent=11 // pred_check
        %p182 = pneg %p126
      $region22: #{deeplab_forward.16} parent=11 // pred_check_branch
        %184 = sbr.rel (%p182) target = $region24
      $region23: #{deeplab_forward.16} parent=11 // pred_region
        %p185 = scmp.lt.s32.totalorder %s20, 0
        %s186 = scalar_select %p185, %s20, 0
        %s187 = scalar_lea.vmem %s3, %s186
      $region24: #{deeplab_forward.16} parent=11 // pred_fallthru
        _
    $region12: #{deeplab_forward.16} parent=5 // pred_fallthru
      _
    %p188 = scmp.lt.s32.totalorder %s10, 4
    // Predicated region
    $region25: #{deeplab_forward.16} parent=5 // pred_check
      %p189 = pneg %p188
    $region26: #{deeplab_forward.16} parent=5 // pred_check_branch
      %191 = sbr.rel (%p189) target = $region28
    $region27: #{deeplab_forward.16} parent=5 // pred_region
      // Predicated region
      $region29: #{deeplab_forward.16} parent=27 // pred_check
        %p192 = pneg %p42
      $region30: #{deeplab_forward.16} parent=27 // pred_check_branch
        %194 = sbr.rel (%p192) target = $region32
      $region31: #{deeplab_forward.16} parent=27 // pred_region
        %s195 = smul.u32 64, %s17
        %p196 = scmp.lt.s32.totalorder %s195, 255
        %s197 = scalar_select %p196, %s195, 255
        %s198 = smul.addr %s197, 4
        %s199 = scalar_lea.vmem %s0, %s198
        %s200 = smul.u32 64, %s17
      $region32: #{deeplab_forward.16} parent=27 // pred_fallthru
        _
    $region28: #{deeplab_forward.16} parent=5 // pred_fallthru
      _
    %p201 = scmp.le.s32.totalorder 1, %s10
    %p202 = scmp.lt.s32.totalorder %s10, 5
    %p203 = pnand %p201, %p202
    %p204 = pneg %p203
    // Predicated region
    $region33: #{deeplab_forward.16} parent=5 // pred_check
      _
    $region34: #{deeplab_forward.16} parent=5 // pred_check_branch
      %206 = sbr.rel (%p203) target = $region36
    $region35: #{deeplab_forward.16} parent=5 // pred_region
      %s207 = ssub.s32 %s10, 1
      %s208 = smul.u32 64, %s19
      %p209 = scmp.lt.s32.totalorder %s208, 255
      %s210 = scalar_select %p209, %s208, 255
      %s211 = smul.addr %s210, 4
      %s212 = scalar_lea.vmem %s0, %s211
      %p213 = pneg %p48
      %p214 = pneg %p45
      %p215 = scmp.lt.s32.totalorder %s20, 0
      %s216 = scalar_select %p215, %s20, 0
      %s217 = smul.addr %s216, 4
      %s218 = scalar_lea.vmem %s1, %s217
      %p219 = pneg %p74
      %p220 = pneg %p71
      %p221 = scmp.lt.s32.totalorder %s20, 0
      %s222 = scalar_select %p221, %s20, 0
      %s223 = scalar_lea.vmem %s2, %s222
      %p224 = pneg %p100
      %p225 = pneg %p97
      %p226 = scmp.lt.s32.totalorder %s20, 0
      %s227 = scalar_select %p226, %s20, 0
      %s228 = scalar_lea.vmem %s3, %s227
      %p229 = pneg %p126
      %p230 = pneg %p123
      %p231 = pneg %p154
      %p232 = pneg %p151
      %s233 = smul.u32 64, %s19
      %p234 = scmp.lt.s32.totalorder %s233, 255
      %s235 = scalar_select %p234, %s233, 255
      %p236 = scmp.lt.s32.totalorder %s20, 0
      %s237 = scalar_select %p236, %s20, 0
      %s238 = sadd.s32 %s237, %s235
      %s239 = smul.addr %s238, 4
      %s240 = scalar_lea.vmem %s4, %s239
      %s241 = smul.u32 64, %s19
      %p242 = scmp.lt.s32.totalorder %s241, 255
      %s243 = scalar_select %p242, %s241, 255
      %s244 = smul.addr %s243, 4
      %s245 = scalar_lea.vmem %s0, %s244
      %s246 = smul.u32 64, %s19
      %p247 = scmp.lt.s32.totalorder %s20, 0
      %s248 = scalar_select %p247, %s20, 0
      %s249 = smul.addr %s248, 4
      %s250 = scalar_lea.vmem %s1, %s249
      %p251 = scmp.lt.s32.totalorder %s20, 0
      %s252 = scalar_select %p251, %s20, 0
      %s253 = scalar_lea.vmem %s2, %s252
      %p254 = scmp.lt.s32.totalorder %s20, 0
      %s255 = scalar_select %p254, %s20, 0
      %s256 = scalar_lea.vmem %s3, %s255
      %s257 = smul.u32 64, %s19
      %p258 = scmp.lt.s32.totalorder %s257, 255
      %s259 = scalar_select %p258, %s257, 255
      %p260 = scmp.lt.s32.totalorder %s20, 0
      %s261 = scalar_select %p260, %s20, 0
      %s262 = sadd.s32 %s261, %s259
      %s263 = smul.addr %s262, 4
      %s264 = scalar_lea.vmem %s4, %s263
      %s265 = smul.u32 64, %s19
      %v267 = vld [vmem:[%s245] sm:$0xf]
      %v268 = vld [vmem:[%s245 + $0x4] sm:$0xf]
      %v269 = vld [vmem:[%s245 + $0x8] sm:$0xf]
      %v270 = vld [vmem:[%s245 + $0xc] sm:$0xf]
      %v271 = vld [vmem:[%s245 + $0x10] sm:$0xf]
      %v272 = vld [vmem:[%s245 + $0x14] sm:$0xf]
      %v273 = vld [vmem:[%s245 + $0x18] sm:$0xf]
      %v274 = vld [vmem:[%s245 + $0x1c] sm:$0xf]
      %v275 = vld [vmem:[%s245 + $0x20] sm:$0xf]
      %v276 = vld [vmem:[%s245 + $0x24] sm:$0xf]
      %v277 = vld [vmem:[%s245 + $0x28] sm:$0xf]
      %v278 = vld [vmem:[%s245 + $0x2c] sm:$0xf]
      %v279 = vld [vmem:[%s245 + $0x30] sm:$0xf]
      %v280 = vld [vmem:[%s245 + $0x34] sm:$0xf]
      %v281 = vld [vmem:[%s245 + $0x38] sm:$0xf]
      %v282 = vld [vmem:[%s245 + $0x3c] sm:$0xf]
      %v283 = vld [vmem:[%s245 + $0x40] sm:$0xf]
      %v284 = vld [vmem:[%s245 + $0x44] sm:$0xf]
      %v285 = vld [vmem:[%s245 + $0x48] sm:$0xf]
      %v286 = vld [vmem:[%s245 + $0x4c] sm:$0xf]
      %v287 = vld [vmem:[%s245 + $0x50] sm:$0xf]
      %v288 = vld [vmem:[%s245 + $0x54] sm:$0xf]
      %v289 = vld [vmem:[%s245 + $0x58] sm:$0xf]
      %v290 = vld [vmem:[%s245 + $0x5c] sm:$0xf]
      %v291 = vld [vmem:[%s245 + $0x60] sm:$0xf]
      %v292 = vld [vmem:[%s245 + $0x64] sm:$0xf]
      %v293 = vld [vmem:[%s245 + $0x68] sm:$0xf]
      %v294 = vld [vmem:[%s245 + $0x6c] sm:$0xf]
      %v295 = vld [vmem:[%s245 + $0x70] sm:$0xf]
      %v296 = vld [vmem:[%s245 + $0x74] sm:$0xf]
      %v297 = vld [vmem:[%s245 + $0x78] sm:$0xf]
      %v298 = vld [vmem:[%s245 + $0x7c] sm:$0xf]
      %v299 = vld [vmem:[%s245 + $0x80] sm:$0xf]
      %v300 = vld [vmem:[%s245 + $0x84] sm:$0xf]
      %v301 = vld [vmem:[%s245 + $0x88] sm:$0xf]
      %v302 = vld [vmem:[%s245 + $0x8c] sm:$0xf]
      %v303 = vld [vmem:[%s245 + $0x90] sm:$0xf]
      %v304 = vld [vmem:[%s245 + $0x94] sm:$0xf]
      %v305 = vld [vmem:[%s245 + $0x98] sm:$0xf]
      %v306 = vld [vmem:[%s245 + $0x9c] sm:$0xf]
      %v307 = vld [vmem:[%s245 + $0xa0] sm:$0xf]
      %v308 = vld [vmem:[%s245 + $0xa4] sm:$0xf]
      %v309 = vld [vmem:[%s245 + $0xa8] sm:$0xf]
      %v310 = vld [vmem:[%s245 + $0xac] sm:$0xf]
      %v311 = vld [vmem:[%s245 + $0xb0] sm:$0xf]
      %v312 = vld [vmem:[%s245 + $0xb4] sm:$0xf]
      %v313 = vld [vmem:[%s245 + $0xb8] sm:$0xf]
      %v314 = vld [vmem:[%s245 + $0xbc] sm:$0xf]
      %v315 = vld [vmem:[%s245 + $0xc0] sm:$0xf]
      %v316 = vld [vmem:[%s245 + $0xc4] sm:$0xf]
      %v317 = vld [vmem:[%s245 + $0xc8] sm:$0xf]
      %v318 = vld [vmem:[%s245 + $0xcc] sm:$0xf]
      %v319 = vld [vmem:[%s245 + $0xd0] sm:$0xf]
      %v320 = vld [vmem:[%s245 + $0xd4] sm:$0xf]
      %v321 = vld [vmem:[%s245 + $0xd8] sm:$0xf]
      %v322 = vld [vmem:[%s245 + $0xdc] sm:$0xf]
      %v323 = vld [vmem:[%s245 + $0xe0] sm:$0xf]
      %v324 = vld [vmem:[%s245 + $0xe4] sm:$0xf]
      %v325 = vld [vmem:[%s245 + $0xe8] sm:$0xf]
      %v326 = vld [vmem:[%s245 + $0xec] sm:$0xf]
      %v327 = vld [vmem:[%s245 + $0xf0] sm:$0xf]
      %v328 = vld [vmem:[%s245 + $0xf4] sm:$0xf]
      %v329 = vld [vmem:[%s245 + $0xf8] sm:$0xf]
      %v330 = vld [vmem:[%s245 + $0xfc] sm:$0xf]
      %v331 = vld [vmem:[%s250] sm:$0xf]
      %v332 = vld [vmem:[%s250 + $0x4] sm:$0xf]
      %v333 = vld [vmem:[%s250 + $0x8] sm:$0xf]
      %v334 = vld [vmem:[%s250 + $0xc] sm:$0xf]
      %v335 = vld [vmem:[%s250 + $0x10] sm:$0xf]
      %v336 = vld [vmem:[%s250 + $0x14] sm:$0xf]
      %v337 = vld [vmem:[%s250 + $0x18] sm:$0xf]
      %v338 = vld [vmem:[%s250 + $0x1c] sm:$0xf]
      %v339 = vld [vmem:[%s250 + $0x20] sm:$0xf]
      %v340 = vld [vmem:[%s250 + $0x24] sm:$0xf]
      %v341 = vld [vmem:[%s250 + $0x28] sm:$0xf]
      %v342 = vld [vmem:[%s250 + $0x2c] sm:$0xf]
      %v343 = vld [vmem:[%s250 + $0x30] sm:$0xf]
      %v344 = vld [vmem:[%s250 + $0x34] sm:$0xf]
      %v345 = vld [vmem:[%s250 + $0x38] sm:$0xf]
      %v346 = vld [vmem:[%s250 + $0x3c] sm:$0xf]
      %v411 = vunpack.c.l.b16 %v267
      %v412 = vunpack.c.l.b16 %v268
      %v413 = vunpack.c.l.b16 %v269
      %v414 = vunpack.c.l.b16 %v270
      %v415 = vunpack.c.l.b16 %v271
      %v416 = vunpack.c.l.b16 %v272
      %v417 = vunpack.c.l.b16 %v273
      %v418 = vunpack.c.l.b16 %v274
      %v419 = vunpack.c.l.b16 %v275
      %v420 = vunpack.c.l.b16 %v276
      %v421 = vunpack.c.l.b16 %v277
      %v422 = vunpack.c.l.b16 %v278
      %v423 = vunpack.c.l.b16 %v279
      %v424 = vunpack.c.l.b16 %v280
      %v425 = vunpack.c.l.b16 %v281
      %v426 = vunpack.c.l.b16 %v282
      %v427 = vunpack.c.l.b16 %v283
      %v428 = vunpack.c.l.b16 %v284
      %v429 = vunpack.c.l.b16 %v285
      %v430 = vunpack.c.l.b16 %v286
      %v431 = vunpack.c.l.b16 %v287
      %v432 = vunpack.c.l.b16 %v288
      %v433 = vunpack.c.l.b16 %v289
      %v434 = vunpack.c.l.b16 %v290
      %v435 = vunpack.c.l.b16 %v291
      %v436 = vunpack.c.l.b16 %v292
      %v437 = vunpack.c.l.b16 %v293
      %v438 = vunpack.c.l.b16 %v294
      %v439 = vunpack.c.l.b16 %v295
      %v440 = vunpack.c.l.b16 %v296
      %v441 = vunpack.c.l.b16 %v297
      %v442 = vunpack.c.l.b16 %v298
      %v443 = vunpack.c.l.b16 %v299
      %v444 = vunpack.c.l.b16 %v300
      %v445 = vunpack.c.l.b16 %v301
      %v446 = vunpack.c.l.b16 %v302
      %v447 = vunpack.c.l.b16 %v303
      %v448 = vunpack.c.l.b16 %v304
      %v449 = vunpack.c.l.b16 %v305
      %v450 = vunpack.c.l.b16 %v306
      %v451 = vunpack.c.l.b16 %v307
      %v452 = vunpack.c.l.b16 %v308
      %v453 = vunpack.c.l.b16 %v309
      %v454 = vunpack.c.l.b16 %v310
      %v455 = vunpack.c.l.b16 %v311
      %v456 = vunpack.c.l.b16 %v312
      %v457 = vunpack.c.l.b16 %v313
      %v458 = vunpack.c.l.b16 %v314
      %v459 = vunpack.c.l.b16 %v315
      %v460 = vunpack.c.l.b16 %v316
      %v461 = vunpack.c.l.b16 %v317
      %v462 = vunpack.c.l.b16 %v318
      %v463 = vunpack.c.l.b16 %v319
      %v464 = vunpack.c.l.b16 %v320
      %v465 = vunpack.c.l.b16 %v321
      %v466 = vunpack.c.l.b16 %v322
      %v467 = vunpack.c.l.b16 %v323
      %v468 = vunpack.c.l.b16 %v324
      %v469 = vunpack.c.l.b16 %v325
      %v470 = vunpack.c.l.b16 %v326
      %v471 = vunpack.c.l.b16 %v327
      %v472 = vunpack.c.l.b16 %v328
      %v473 = vunpack.c.l.b16 %v329
      %v474 = vunpack.c.l.b16 %v330
      %v475 = vpack.c.b16 %v412, %v411
      %v476 = vpack.c.b16 %v414, %v413
      %v477 = vpack.c.b16 %v416, %v415
      %v478 = vpack.c.b16 %v418, %v417
      %v479 = vpack.c.b16 %v420, %v419
      %v480 = vpack.c.b16 %v422, %v421
      %v481 = vpack.c.b16 %v424, %v423
      %v482 = vpack.c.b16 %v426, %v425
      %v483 = vpack.c.b16 %v428, %v427
      %v484 = vpack.c.b16 %v430, %v429
      %v485 = vpack.c.b16 %v432, %v431
      %v486 = vpack.c.b16 %v434, %v433
      %v487 = vpack.c.b16 %v436, %v435
      %v488 = vpack.c.b16 %v438, %v437
      %v489 = vpack.c.b16 %v440, %v439
      %v490 = vpack.c.b16 %v442, %v441
      %v491 = vpack.c.b16 %v444, %v443
      %v492 = vpack.c.b16 %v446, %v445
      %v493 = vpack.c.b16 %v448, %v447
      %v494 = vpack.c.b16 %v450, %v449
      %v495 = vpack.c.b16 %v452, %v451
      %v496 = vpack.c.b16 %v454, %v453
      %v497 = vpack.c.b16 %v456, %v455
      %v498 = vpack.c.b16 %v458, %v457
      %v499 = vpack.c.b16 %v460, %v459
      %v500 = vpack.c.b16 %v462, %v461
      %v501 = vpack.c.b16 %v464, %v463
      %v502 = vpack.c.b16 %v466, %v465
      %v503 = vpack.c.b16 %v468, %v467
      %v504 = vpack.c.b16 %v470, %v469
      %v505 = vpack.c.b16 %v472, %v471
      %v506 = vpack.c.b16 %v474, %v473
      %v555 = vunpack.c.l.b16 %v331
      %v556 = vunpack.c.l.b16 %v332
      %v557 = vunpack.c.l.b16 %v333
      %v558 = vunpack.c.l.b16 %v334
      %v559 = vunpack.c.l.b16 %v335
      %v560 = vunpack.c.l.b16 %v336
      %v561 = vunpack.c.l.b16 %v337
      %v562 = vunpack.c.l.b16 %v338
      %v563 = vunpack.c.l.b16 %v339
      %v564 = vunpack.c.l.b16 %v340
      %v565 = vunpack.c.l.b16 %v341
      %v566 = vunpack.c.l.b16 %v342
      %v567 = vunpack.c.l.b16 %v343
      %v568 = vunpack.c.l.b16 %v344
      %v569 = vunpack.c.l.b16 %v345
      %v570 = vunpack.c.l.b16 %v346
      %v571 = vpack.c.b16 %v556, %v555
      %v572 = vpack.c.b16 %v558, %v557
      %v573 = vpack.c.b16 %v560, %v559
      %v574 = vpack.c.b16 %v562, %v561
      %v575 = vpack.c.b16 %v564, %v563
      %v576 = vpack.c.b16 %v566, %v565
      %v577 = vpack.c.b16 %v568, %v567
      %v578 = vpack.c.b16 %v570, %v569
      %587 = vmatprep.subr.bf16.mxu0 0
      %588 = vmatpush1.bf16.msra.mxu0 %v578
      %589 = vmatprep.subr.bf16.mxu0 0
      %590 = vmatpush1.bf16.msra.mxu0 %v577
      %591 = vmatprep.subr.bf16.mxu0 0
      %592 = vmatpush1.bf16.msra.mxu0 %v576
      %593 = vmatprep.subr.bf16.mxu0 0
      %594 = vmatpush1.bf16.msra.mxu0 %v575
      %595 = vmatprep.subr.bf16.mxu0 0
      %596 = vmatpush1.bf16.msra.mxu0 %v574
      %597 = vmatprep.subr.bf16.mxu0 0
      %598 = vmatpush1.bf16.msra.mxu0 %v573
      %599 = vmatprep.subr.bf16.mxu0 0
      %600 = vmatpush1.bf16.msra.mxu0 %v572
      %601 = vmatprep.subr.bf16.mxu0 0
      %602 = vmatpush1.bf16.msra.mxu0 %v571
      %603 = vmatprep.subr.bf16.mxu0 0
      %604 = vmatpush2.bf16.msra.mxu0 0
      %605 = vmatprep.subr.bf16.mxu0 0
      %606 = vmatpush2.bf16.msra.mxu0 0
      %607 = vmatprep.subr.bf16.mxu0 0
      %608 = vmatpush2.bf16.msra.mxu0 0
      %609 = vmatprep.subr.bf16.mxu0 0
      %610 = vmatpush2.bf16.msra.mxu0 0
      %611 = vmatprep.subr.bf16.mxu0 0
      %612 = vmatpush2.bf16.msra.mxu0 0
      %613 = vmatprep.subr.bf16.mxu0 0
      %614 = vmatpush2.bf16.msra.mxu0 0
      %615 = vmatprep.subr.bf16.mxu0 0
      %616 = vmatpush2.bf16.msra.mxu0 0
      %617 = vmatprep.subr.bf16.mxu0 0
      %618 = vmatpush2.bf16.msra.mxu0 0
      %619 = vmatprep.mubr.bf16.mxu0 0
      %620 = vmatmul.mubr.bf16.gmra.mxu0 %v475
      %v621 = vpop.f32.mrf.mxu0
      %v622 = vadd.f32 0.0, %v621
      %v623 = vpop.f32.mrf.mxu0
      %v624 = vpop.f32.mrf.mxu0
      %v625 = vadd.f32 0.0, %v624
      %v626 = vpop.f32.mrf.mxu0
      %627 = vmatprep.mubr.bf16.mxu0 0
      %628 = vmatmul.mubr.bf16.gmra.mxu0 %v476
      %v629 = vpop.f32.mrf.mxu0
      %v630 = vadd.f32 0.0, %v629
      %v631 = vpop.f32.mrf.mxu0
      %v632 = vpop.f32.mrf.mxu0
      %v633 = vadd.f32 0.0, %v632
      %v634 = vpop.f32.mrf.mxu0
      %635 = vmatprep.mubr.bf16.mxu0 0
      %636 = vmatmul.mubr.bf16.gmra.mxu0 %v477
      %v637 = vpop.f32.mrf.mxu0
      %v638 = vadd.f32 0.0, %v637
      %v639 = vpop.f32.mrf.mxu0
      %v640 = vpop.f32.mrf.mxu0
      %v641 = vadd.f32 0.0, %v640
      %v642 = vpop.f32.mrf.mxu0
      %643 = vmatprep.mubr.bf16.mxu0 0
      %644 = vmatmul.mubr.bf16.gmra.mxu0 %v478
      %v645 = vpop.f32.mrf.mxu0
      %v646 = vadd.f32 0.0, %v645
      %v647 = vpop.f32.mrf.mxu0
      %v648 = vpop.f32.mrf.mxu0
      %v649 = vadd.f32 0.0, %v648
      %v650 = vpop.f32.mrf.mxu0
      %651 = vmatprep.mubr.bf16.mxu0 0
      %652 = vmatmul.mubr.bf16.gmra.mxu0 %v479
      %v653 = vpop.f32.mrf.mxu0
      %v654 = vadd.f32 0.0, %v653
      %v655 = vpop.f32.mrf.mxu0
      %v656 = vpop.f32.mrf.mxu0
      %v657 = vadd.f32 0.0, %v656
      %v658 = vpop.f32.mrf.mxu0
      %659 = vmatprep.mubr.bf16.mxu0 0
      %660 = vmatmul.mubr.bf16.gmra.mxu0 %v480
      %v661 = vpop.f32.mrf.mxu0
      %v662 = vadd.f32 0.0, %v661
      %v663 = vpop.f32.mrf.mxu0
      %v664 = vpop.f32.mrf.mxu0
      %v665 = vadd.f32 0.0, %v664
      %v666 = vpop.f32.mrf.mxu0
      %667 = vmatprep.mubr.bf16.mxu0 0
      %668 = vmatmul.mubr.bf16.gmra.mxu0 %v481
      %v669 = vpop.f32.mrf.mxu0
      %v670 = vadd.f32 0.0, %v669
      %v671 = vpop.f32.mrf.mxu0
      %v672 = vpop.f32.mrf.mxu0
      %v673 = vadd.f32 0.0, %v672
      %v674 = vpop.f32.mrf.mxu0
      %675 = vmatprep.mubr.bf16.mxu0 0
      %676 = vmatmul.mubr.bf16.gmra.mxu0 %v482
      %v677 = vpop.f32.mrf.mxu0
      %v678 = vadd.f32 0.0, %v677
      %v679 = vpop.f32.mrf.mxu0
      %v680 = vpop.f32.mrf.mxu0
      %v681 = vadd.f32 0.0, %v680
      %v682 = vpop.f32.mrf.mxu0
      %683 = vmatprep.mubr.bf16.mxu0 0
      %684 = vmatmul.mubr.bf16.gmra.mxu0 %v483
      %v685 = vpop.f32.mrf.mxu0
      %v686 = vadd.f32 0.0, %v685
      %v687 = vpop.f32.mrf.mxu0
      %v688 = vpop.f32.mrf.mxu0
      %v689 = vadd.f32 0.0, %v688
      %v690 = vpop.f32.mrf.mxu0
      %691 = vmatprep.mubr.bf16.mxu0 0
      %692 = vmatmul.mubr.bf16.gmra.mxu0 %v484
      %v693 = vpop.f32.mrf.mxu0
      %v694 = vadd.f32 0.0, %v693
      %v695 = vpop.f32.mrf.mxu0
      %v696 = vpop.f32.mrf.mxu0
      %v697 = vadd.f32 0.0, %v696
      %v698 = vpop.f32.mrf.mxu0
      %699 = vmatprep.mubr.bf16.mxu0 0
      %700 = vmatmul.mubr.bf16.gmra.mxu0 %v485
      %v701 = vpop.f32.mrf.mxu0
      %v702 = vadd.f32 0.0, %v701
      %v703 = vpop.f32.mrf.mxu0
      %v704 = vpop.f32.mrf.mxu0
      %v705 = vadd.f32 0.0, %v704
      %v706 = vpop.f32.mrf.mxu0
      %707 = vmatprep.mubr.bf16.mxu0 0
      %708 = vmatmul.mubr.bf16.gmra.mxu0 %v486
      %v709 = vpop.f32.mrf.mxu0
      %v710 = vadd.f32 0.0, %v709
      %v711 = vpop.f32.mrf.mxu0
      %v712 = vpop.f32.mrf.mxu0
      %v713 = vadd.f32 0.0, %v712
      %v714 = vpop.f32.mrf.mxu0
      %715 = vmatprep.mubr.bf16.mxu0 0
      %716 = vmatmul.mubr.bf16.gmra.mxu0 %v487
      %v717 = vpop.f32.mrf.mxu0
      %v718 = vadd.f32 0.0, %v717
      %v719 = vpop.f32.mrf.mxu0
      %v720 = vpop.f32.mrf.mxu0
      %v721 = vadd.f32 0.0, %v720
      %v722 = vpop.f32.mrf.mxu0
      %723 = vmatprep.mubr.bf16.mxu0 0
      %724 = vmatmul.mubr.bf16.gmra.mxu0 %v488
      %v725 = vpop.f32.mrf.mxu0
      %v726 = vadd.f32 0.0, %v725
      %v727 = vpop.f32.mrf.mxu0
      %v728 = vpop.f32.mrf.mxu0
      %v729 = vadd.f32 0.0, %v728
      %v730 = vpop.f32.mrf.mxu0
      %731 = vmatprep.mubr.bf16.mxu0 0
      %732 = vmatmul.mubr.bf16.gmra.mxu0 %v489
      %v733 = vpop.f32.mrf.mxu0
      %v734 = vadd.f32 0.0, %v733
      %v735 = vpop.f32.mrf.mxu0
      %v736 = vpop.f32.mrf.mxu0
      %v737 = vadd.f32 0.0, %v736
      %v738 = vpop.f32.mrf.mxu0
      %739 = vmatprep.mubr.bf16.mxu0 0
      %740 = vmatmul.mubr.bf16.gmra.mxu0 %v490
      %v741 = vpop.f32.mrf.mxu0
      %v742 = vadd.f32 0.0, %v741
      %v743 = vpop.f32.mrf.mxu0
      %v744 = vpop.f32.mrf.mxu0
      %v745 = vadd.f32 0.0, %v744
      %v746 = vpop.f32.mrf.mxu0
      %747 = vmatprep.mubr.bf16.mxu0 0
      %748 = vmatmul.mubr.bf16.gmra.mxu0 %v491
      %v749 = vpop.f32.mrf.mxu0
      %v750 = vadd.f32 0.0, %v749
      %v751 = vpop.f32.mrf.mxu0
      %v752 = vpop.f32.mrf.mxu0
      %v753 = vadd.f32 0.0, %v752
      %v754 = vpop.f32.mrf.mxu0
      %755 = vmatprep.mubr.bf16.mxu0 0
      %756 = vmatmul.mubr.bf16.gmra.mxu0 %v492
      %v757 = vpop.f32.mrf.mxu0
      %v758 = vadd.f32 0.0, %v757
      %v759 = vpop.f32.mrf.mxu0
      %v760 = vpop.f32.mrf.mxu0
      %v761 = vadd.f32 0.0, %v760
      %v762 = vpop.f32.mrf.mxu0
      %763 = vmatprep.mubr.bf16.mxu0 0
      %764 = vmatmul.mubr.bf16.gmra.mxu0 %v493
      %v765 = vpop.f32.mrf.mxu0
      %v766 = vadd.f32 0.0, %v765
      %v767 = vpop.f32.mrf.mxu0
      %v768 = vpop.f32.mrf.mxu0
      %v769 = vadd.f32 0.0, %v768
      %v770 = vpop.f32.mrf.mxu0
      %771 = vmatprep.mubr.bf16.mxu0 0
      %772 = vmatmul.mubr.bf16.gmra.mxu0 %v494
      %v773 = vpop.f32.mrf.mxu0
      %v774 = vadd.f32 0.0, %v773
      %v775 = vpop.f32.mrf.mxu0
      %v776 = vpop.f32.mrf.mxu0
      %v777 = vadd.f32 0.0, %v776
      %v778 = vpop.f32.mrf.mxu0
      %779 = vmatprep.mubr.bf16.mxu0 0
      %780 = vmatmul.mubr.bf16.gmra.mxu0 %v495
      %v781 = vpop.f32.mrf.mxu0
      %v782 = vadd.f32 0.0, %v781
      %v783 = vpop.f32.mrf.mxu0
      %v784 = vpop.f32.mrf.mxu0
      %v785 = vadd.f32 0.0, %v784
      %v786 = vpop.f32.mrf.mxu0
      %787 = vmatprep.mubr.bf16.mxu0 0
      %788 = vmatmul.mubr.bf16.gmra.mxu0 %v496
      %v789 = vpop.f32.mrf.mxu0
      %v790 = vadd.f32 0.0, %v789
      %v791 = vpop.f32.mrf.mxu0
      %v792 = vpop.f32.mrf.mxu0
      %v793 = vadd.f32 0.0, %v792
      %v794 = vpop.f32.mrf.mxu0
      %795 = vmatprep.mubr.bf16.mxu0 0
      %796 = vmatmul.mubr.bf16.gmra.mxu0 %v497
      %v797 = vpop.f32.mrf.mxu0
      %v798 = vadd.f32 0.0, %v797
      %v799 = vpop.f32.mrf.mxu0
      %v800 = vpop.f32.mrf.mxu0
      %v801 = vadd.f32 0.0, %v800
      %v802 = vpop.f32.mrf.mxu0
      %803 = vmatprep.mubr.bf16.mxu0 0
      %804 = vmatmul.mubr.bf16.gmra.mxu0 %v498
      %v805 = vpop.f32.mrf.mxu0
      %v806 = vadd.f32 0.0, %v805
      %v807 = vpop.f32.mrf.mxu0
      %v808 = vpop.f32.mrf.mxu0
      %v809 = vadd.f32 0.0, %v808
      %v810 = vpop.f32.mrf.mxu0
      %811 = vmatprep.mubr.bf16.mxu0 0
      %812 = vmatmul.mubr.bf16.gmra.mxu0 %v499
      %v813 = vpop.f32.mrf.mxu0
      %v814 = vadd.f32 0.0, %v813
      %v815 = vpop.f32.mrf.mxu0
      %v816 = vpop.f32.mrf.mxu0
      %v817 = vadd.f32 0.0, %v816
      %v818 = vpop.f32.mrf.mxu0
      %819 = vmatprep.mubr.bf16.mxu0 0
      %820 = vmatmul.mubr.bf16.gmra.mxu0 %v500
      %v821 = vpop.f32.mrf.mxu0
      %v822 = vadd.f32 0.0, %v821
      %v823 = vpop.f32.mrf.mxu0
      %v824 = vpop.f32.mrf.mxu0
      %v825 = vadd.f32 0.0, %v824
      %v826 = vpop.f32.mrf.mxu0
      %827 = vmatprep.mubr.bf16.mxu0 0
      %828 = vmatmul.mubr.bf16.gmra.mxu0 %v501
      %v829 = vpop.f32.mrf.mxu0
      %v830 = vadd.f32 0.0, %v829
      %v831 = vpop.f32.mrf.mxu0
      %v832 = vpop.f32.mrf.mxu0
      %v833 = vadd.f32 0.0, %v832
      %v834 = vpop.f32.mrf.mxu0
      %835 = vmatprep.mubr.bf16.mxu0 0
      %836 = vmatmul.mubr.bf16.gmra.mxu0 %v502
      %v837 = vpop.f32.mrf.mxu0
      %v838 = vadd.f32 0.0, %v837
      %v839 = vpop.f32.mrf.mxu0
      %v840 = vpop.f32.mrf.mxu0
      %v841 = vadd.f32 0.0, %v840
      %v842 = vpop.f32.mrf.mxu0
      %843 = vmatprep.mubr.bf16.mxu0 0
      %844 = vmatmul.mubr.bf16.gmra.mxu0 %v503
      %v845 = vpop.f32.mrf.mxu0
      %v846 = vadd.f32 0.0, %v845
      %v847 = vpop.f32.mrf.mxu0
      %v848 = vpop.f32.mrf.mxu0
      %v849 = vadd.f32 0.0, %v848
      %v850 = vpop.f32.mrf.mxu0
      %851 = vmatprep.mubr.bf16.mxu0 0
      %852 = vmatmul.mubr.bf16.gmra.mxu0 %v504
      %v853 = vpop.f32.mrf.mxu0
      %v854 = vadd.f32 0.0, %v853
      %v855 = vpop.f32.mrf.mxu0
      %v856 = vpop.f32.mrf.mxu0
      %v857 = vadd.f32 0.0, %v856
      %v858 = vpop.f32.mrf.mxu0
      %859 = vmatprep.mubr.bf16.mxu0 0
      %860 = vmatmul.mubr.bf16.gmra.mxu0 %v505
      %v861 = vpop.f32.mrf.mxu0
      %v862 = vadd.f32 0.0, %v861
      %v863 = vpop.f32.mrf.mxu0
      %v864 = vpop.f32.mrf.mxu0
      %v865 = vadd.f32 0.0, %v864
      %v866 = vpop.f32.mrf.mxu0
      %867 = vmatprep.mubr.bf16.mxu0 0
      %868 = vmatmul.mubr.bf16.gmra.mxu0 %v506
      %v869 = vpop.f32.mrf.mxu0
      %v870 = vadd.f32 0.0, %v869
      %v871 = vpop.f32.mrf.mxu0
      %v872 = vpop.f32.mrf.mxu0
      %v873 = vadd.f32 0.0, %v872
      %v874 = vpop.f32.mrf.mxu0
      %875 = vdwg.mxu0
      %v876 = vld [vmem:[%s253] sm:$0x1]
      %v878 = vlaneseq
      %v879 = vshrl.u32 %v878, 7
      %v880 = vsub.s32 0, %v879
      %v881 = vrot.slane %v876, %v880
      %v883 = vmul.f32 %v622, %v881
      %v884 = vmul.f32 %v625, %v881
      %v885 = vmul.f32 %v630, %v881
      %v886 = vmul.f32 %v633, %v881
      %v887 = vmul.f32 %v638, %v881
      %v888 = vmul.f32 %v641, %v881
      %v889 = vmul.f32 %v646, %v881
      %v890 = vmul.f32 %v649, %v881
      %v891 = vmul.f32 %v654, %v881
      %v892 = vmul.f32 %v657, %v881
      %v893 = vmul.f32 %v662, %v881
      %v894 = vmul.f32 %v665, %v881
      %v895 = vmul.f32 %v670, %v881
      %v896 = vmul.f32 %v673, %v881
      %v897 = vmul.f32 %v678, %v881
      %v898 = vmul.f32 %v681, %v881
      %v899 = vmul.f32 %v686, %v881
      %v900 = vmul.f32 %v689, %v881
      %v901 = vmul.f32 %v694, %v881
      %v902 = vmul.f32 %v697, %v881
      %v903 = vmul.f32 %v702, %v881
      %v904 = vmul.f32 %v705, %v881
      %v905 = vmul.f32 %v710, %v881
      %v906 = vmul.f32 %v713, %v881
      %v907 = vmul.f32 %v718, %v881
      %v908 = vmul.f32 %v721, %v881
      %v909 = vmul.f32 %v726, %v881
      %v910 = vmul.f32 %v729, %v881
      %v911 = vmul.f32 %v734, %v881
      %v912 = vmul.f32 %v737, %v881
      %v913 = vmul.f32 %v742, %v881
      %v914 = vmul.f32 %v745, %v881
      %v915 = vmul.f32 %v750, %v881
      %v916 = vmul.f32 %v753, %v881
      %v917 = vmul.f32 %v758, %v881
      %v918 = vmul.f32 %v761, %v881
      %v919 = vmul.f32 %v766, %v881
      %v920 = vmul.f32 %v769, %v881
      %v921 = vmul.f32 %v774, %v881
      %v922 = vmul.f32 %v777, %v881
      %v923 = vmul.f32 %v782, %v881
      %v924 = vmul.f32 %v785, %v881
      %v925 = vmul.f32 %v790, %v881
      %v926 = vmul.f32 %v793, %v881
      %v927 = vmul.f32 %v798, %v881
      %v928 = vmul.f32 %v801, %v881
      %v929 = vmul.f32 %v806, %v881
      %v930 = vmul.f32 %v809, %v881
      %v931 = vmul.f32 %v814, %v881
      %v932 = vmul.f32 %v817, %v881
      %v933 = vmul.f32 %v822, %v881
      %v934 = vmul.f32 %v825, %v881
      %v935 = vmul.f32 %v830, %v881
      %v936 = vmul.f32 %v833, %v881
      %v937 = vmul.f32 %v838, %v881
      %v938 = vmul.f32 %v841, %v881
      %v939 = vmul.f32 %v846, %v881
      %v940 = vmul.f32 %v849, %v881
      %v941 = vmul.f32 %v854, %v881
      %v942 = vmul.f32 %v857, %v881
      %v943 = vmul.f32 %v862, %v881
      %v944 = vmul.f32 %v865, %v881
      %v945 = vmul.f32 %v870, %v881
      %v946 = vmul.f32 %v873, %v881
      %v947 = vld [vmem:[%s256] sm:$0x1]
      %v949 = vlaneseq
      %v950 = vshrl.u32 %v949, 7
      %v951 = vsub.s32 0, %v950
      %v952 = vrot.slane %v947, %v951
      %v954 = vadd.f32 %v883, %v952
      %v955 = vadd.f32 %v884, %v952
      %v956 = vadd.f32 %v885, %v952
      %v957 = vadd.f32 %v886, %v952
      %v958 = vadd.f32 %v887, %v952
      %v959 = vadd.f32 %v888, %v952
      %v960 = vadd.f32 %v889, %v952
      %v961 = vadd.f32 %v890, %v952
      %v962 = vadd.f32 %v891, %v952
      %v963 = vadd.f32 %v892, %v952
      %v964 = vadd.f32 %v893, %v952
      %v965 = vadd.f32 %v894, %v952
      %v966 = vadd.f32 %v895, %v952
      %v967 = vadd.f32 %v896, %v952
      %v968 = vadd.f32 %v897, %v952
      %v969 = vadd.f32 %v898, %v952
      %v970 = vadd.f32 %v899, %v952
      %v971 = vadd.f32 %v900, %v952
      %v972 = vadd.f32 %v901, %v952
      %v973 = vadd.f32 %v902, %v952
      %v974 = vadd.f32 %v903, %v952
      %v975 = vadd.f32 %v904, %v952
      %v976 = vadd.f32 %v905, %v952
      %v977 = vadd.f32 %v906, %v952
      %v978 = vadd.f32 %v907, %v952
      %v979 = vadd.f32 %v908, %v952
      %v980 = vadd.f32 %v909, %v952
      %v981 = vadd.f32 %v910, %v952
      %v982 = vadd.f32 %v911, %v952
      %v983 = vadd.f32 %v912, %v952
      %v984 = vadd.f32 %v913, %v952
      %v985 = vadd.f32 %v914, %v952
      %v986 = vadd.f32 %v915, %v952
      %v987 = vadd.f32 %v916, %v952
      %v988 = vadd.f32 %v917, %v952
      %v989 = vadd.f32 %v918, %v952
      %v990 = vadd.f32 %v919, %v952
      %v991 = vadd.f32 %v920, %v952
      %v992 = vadd.f32 %v921, %v952
      %v993 = vadd.f32 %v922, %v952
      %v994 = vadd.f32 %v923, %v952
      %v995 = vadd.f32 %v924, %v952
      %v996 = vadd.f32 %v925, %v952
      %v997 = vadd.f32 %v926, %v952
      %v998 = vadd.f32 %v927, %v952
      %v999 = vadd.f32 %v928, %v952
      %v1000 = vadd.f32 %v929, %v952
      %v1001 = vadd.f32 %v930, %v952
      %v1002 = vadd.f32 %v931, %v952
      %v1003 = vadd.f32 %v932, %v952
      %v1004 = vadd.f32 %v933, %v952
      %v1005 = vadd.f32 %v934, %v952
      %v1006 = vadd.f32 %v935, %v952
      %v1007 = vadd.f32 %v936, %v952
      %v1008 = vadd.f32 %v937, %v952
      %v1009 = vadd.f32 %v938, %v952
      %v1010 = vadd.f32 %v939, %v952
      %v1011 = vadd.f32 %v940, %v952
      %v1012 = vadd.f32 %v941, %v952
      %v1013 = vadd.f32 %v942, %v952
      %v1014 = vadd.f32 %v943, %v952
      %v1015 = vadd.f32 %v944, %v952
      %v1016 = vadd.f32 %v945, %v952
      %v1017 = vadd.f32 %v946, %v952
      %v1018 = vmax.f32 %v954, 0.0
      %v1019 = vmax.f32 %v955, 0.0
      %v1020 = vmax.f32 %v956, 0.0
      %v1021 = vmax.f32 %v957, 0.0
      %v1022 = vmax.f32 %v958, 0.0
      %v1023 = vmax.f32 %v959, 0.0
      %v1024 = vmax.f32 %v960, 0.0
      %v1025 = vmax.f32 %v961, 0.0
      %v1026 = vmax.f32 %v962, 0.0
      %v1027 = vmax.f32 %v963, 0.0
      %v1028 = vmax.f32 %v964, 0.0
      %v1029 = vmax.f32 %v965, 0.0
      %v1030 = vmax.f32 %v966, 0.0
      %v1031 = vmax.f32 %v967, 0.0
      %v1032 = vmax.f32 %v968, 0.0
      %v1033 = vmax.f32 %v969, 0.0
      %v1034 = vmax.f32 %v970, 0.0
      %v1035 = vmax.f32 %v971, 0.0
      %v1036 = vmax.f32 %v972, 0.0
      %v1037 = vmax.f32 %v973, 0.0
      %v1038 = vmax.f32 %v974, 0.0
      %v1039 = vmax.f32 %v975, 0.0
      %v1040 = vmax.f32 %v976, 0.0
      %v1041 = vmax.f32 %v977, 0.0
      %v1042 = vmax.f32 %v978, 0.0
      %v1043 = vmax.f32 %v979, 0.0
      %v1044 = vmax.f32 %v980, 0.0
      %v1045 = vmax.f32 %v981, 0.0
      %v1046 = vmax.f32 %v982, 0.0
      %v1047 = vmax.f32 %v983, 0.0
      %v1048 = vmax.f32 %v984, 0.0
      %v1049 = vmax.f32 %v985, 0.0
      %v1050 = vmax.f32 %v986, 0.0
      %v1051 = vmax.f32 %v987, 0.0
      %v1052 = vmax.f32 %v988, 0.0
      %v1053 = vmax.f32 %v989, 0.0
      %v1054 = vmax.f32 %v990, 0.0
      %v1055 = vmax.f32 %v991, 0.0
      %v1056 = vmax.f32 %v992, 0.0
      %v1057 = vmax.f32 %v993, 0.0
      %v1058 = vmax.f32 %v994, 0.0
      %v1059 = vmax.f32 %v995, 0.0
      %v1060 = vmax.f32 %v996, 0.0
      %v1061 = vmax.f32 %v997, 0.0
      %v1062 = vmax.f32 %v998, 0.0
      %v1063 = vmax.f32 %v999, 0.0
      %v1064 = vmax.f32 %v1000, 0.0
      %v1065 = vmax.f32 %v1001, 0.0
      %v1066 = vmax.f32 %v1002, 0.0
      %v1067 = vmax.f32 %v1003, 0.0
      %v1068 = vmax.f32 %v1004, 0.0
      %v1069 = vmax.f32 %v1005, 0.0
      %v1070 = vmax.f32 %v1006, 0.0
      %v1071 = vmax.f32 %v1007, 0.0
      %v1072 = vmax.f32 %v1008, 0.0
      %v1073 = vmax.f32 %v1009, 0.0
      %v1074 = vmax.f32 %v1010, 0.0
      %v1075 = vmax.f32 %v1011, 0.0
      %v1076 = vmax.f32 %v1012, 0.0
      %v1077 = vmax.f32 %v1013, 0.0
      %v1078 = vmax.f32 %v1014, 0.0
      %v1079 = vmax.f32 %v1015, 0.0
      %v1080 = vmax.f32 %v1016, 0.0
      %v1081 = vmax.f32 %v1017, 0.0
      %v1082 = vpack.c.bf16 %v1019, %v1018
      %v1083 = vpack.c.bf16 %v1021, %v1020
      %v1084 = vpack.c.bf16 %v1023, %v1022
      %v1085 = vpack.c.bf16 %v1025, %v1024
      %v1086 = vpack.c.bf16 %v1027, %v1026
      %v1087 = vpack.c.bf16 %v1029, %v1028
      %v1088 = vpack.c.bf16 %v1031, %v1030
      %v1089 = vpack.c.bf16 %v1033, %v1032
      %v1090 = vpack.c.bf16 %v1035, %v1034
      %v1091 = vpack.c.bf16 %v1037, %v1036
      %v1092 = vpack.c.bf16 %v1039, %v1038
      %v1093 = vpack.c.bf16 %v1041, %v1040
      %v1094 = vpack.c.bf16 %v1043, %v1042
      %v1095 = vpack.c.bf16 %v1045, %v1044
      %v1096 = vpack.c.bf16 %v1047, %v1046
      %v1097 = vpack.c.bf16 %v1049, %v1048
      %v1098 = vpack.c.bf16 %v1051, %v1050
      %v1099 = vpack.c.bf16 %v1053, %v1052
      %v1100 = vpack.c.bf16 %v1055, %v1054
      %v1101 = vpack.c.bf16 %v1057, %v1056
      %v1102 = vpack.c.bf16 %v1059, %v1058
      %v1103 = vpack.c.bf16 %v1061, %v1060
      %v1104 = vpack.c.bf16 %v1063, %v1062
      %v1105 = vpack.c.bf16 %v1065, %v1064
      %v1106 = vpack.c.bf16 %v1067, %v1066
      %v1107 = vpack.c.bf16 %v1069, %v1068
      %v1108 = vpack.c.bf16 %v1071, %v1070
      %v1109 = vpack.c.bf16 %v1073, %v1072
      %v1110 = vpack.c.bf16 %v1075, %v1074
      %v1111 = vpack.c.bf16 %v1077, %v1076
      %v1112 = vpack.c.bf16 %v1079, %v1078
      %v1113 = vpack.c.bf16 %v1081, %v1080
      %v1146 = vunpack.c.l.b16 %v1082
      %v1147 = vunpack.c.h.b16 %v1082
      %v1148 = vunpack.c.l.b16 %v1083
      %v1149 = vunpack.c.h.b16 %v1083
      %v1150 = vunpack.c.l.b16 %v1084
      %v1151 = vunpack.c.h.b16 %v1084
      %v1152 = vunpack.c.l.b16 %v1085
      %v1153 = vunpack.c.h.b16 %v1085
      %v1154 = vunpack.c.l.b16 %v1086
      %v1155 = vunpack.c.h.b16 %v1086
      %v1156 = vunpack.c.l.b16 %v1087
      %v1157 = vunpack.c.h.b16 %v1087
      %v1158 = vunpack.c.l.b16 %v1088
      %v1159 = vunpack.c.h.b16 %v1088
      %v1160 = vunpack.c.l.b16 %v1089
      %v1161 = vunpack.c.h.b16 %v1089
      %v1162 = vunpack.c.l.b16 %v1090
      %v1163 = vunpack.c.h.b16 %v1090
      %v1164 = vunpack.c.l.b16 %v1091
      %v1165 = vunpack.c.h.b16 %v1091
      %v1166 = vunpack.c.l.b16 %v1092
      %v1167 = vunpack.c.h.b16 %v1092
      %v1168 = vunpack.c.l.b16 %v1093
      %v1169 = vunpack.c.h.b16 %v1093
      %v1170 = vunpack.c.l.b16 %v1094
      %v1171 = vunpack.c.h.b16 %v1094
      %v1172 = vunpack.c.l.b16 %v1095
      %v1173 = vunpack.c.h.b16 %v1095
      %v1174 = vunpack.c.l.b16 %v1096
      %v1175 = vunpack.c.h.b16 %v1096
      %v1176 = vunpack.c.l.b16 %v1097
      %v1177 = vunpack.c.h.b16 %v1097
      %v1178 = vunpack.c.l.b16 %v1098
      %v1179 = vunpack.c.h.b16 %v1098
      %v1180 = vunpack.c.l.b16 %v1099
      %v1181 = vunpack.c.h.b16 %v1099
      %v1182 = vunpack.c.l.b16 %v1100
      %v1183 = vunpack.c.h.b16 %v1100
      %v1184 = vunpack.c.l.b16 %v1101
      %v1185 = vunpack.c.h.b16 %v1101
      %v1186 = vunpack.c.l.b16 %v1102
      %v1187 = vunpack.c.h.b16 %v1102
      %v1188 = vunpack.c.l.b16 %v1103
      %v1189 = vunpack.c.h.b16 %v1103
      %v1190 = vunpack.c.l.b16 %v1104
      %v1191 = vunpack.c.h.b16 %v1104
      %v1192 = vunpack.c.l.b16 %v1105
      %v1193 = vunpack.c.h.b16 %v1105
      %v1194 = vunpack.c.l.b16 %v1106
      %v1195 = vunpack.c.h.b16 %v1106
      %v1196 = vunpack.c.l.b16 %v1107
      %v1197 = vunpack.c.h.b16 %v1107
      %v1198 = vunpack.c.l.b16 %v1108
      %v1199 = vunpack.c.h.b16 %v1108
      %v1200 = vunpack.c.l.b16 %v1109
      %v1201 = vunpack.c.h.b16 %v1109
      %v1202 = vunpack.c.l.b16 %v1110
      %v1203 = vunpack.c.h.b16 %v1110
      %v1204 = vunpack.c.l.b16 %v1111
      %v1205 = vunpack.c.h.b16 %v1111
      %v1206 = vunpack.c.l.b16 %v1112
      %v1207 = vunpack.c.h.b16 %v1112
      %v1208 = vunpack.c.l.b16 %v1113
      %v1209 = vunpack.c.h.b16 %v1113
      %v1210 = vpack.c.b16 %v1146, %v1146
      %v1211 = vpack.c.b16 %v1147, %v1147
      %v1212 = vpack.c.b16 %v1148, %v1148
      %v1213 = vpack.c.b16 %v1149, %v1149
      %v1214 = vpack.c.b16 %v1150, %v1150
      %v1215 = vpack.c.b16 %v1151, %v1151
      %v1216 = vpack.c.b16 %v1152, %v1152
      %v1217 = vpack.c.b16 %v1153, %v1153
      %v1218 = vpack.c.b16 %v1154, %v1154
      %v1219 = vpack.c.b16 %v1155, %v1155
      %v1220 = vpack.c.b16 %v1156, %v1156
      %v1221 = vpack.c.b16 %v1157, %v1157
      %v1222 = vpack.c.b16 %v1158, %v1158
      %v1223 = vpack.c.b16 %v1159, %v1159
      %v1224 = vpack.c.b16 %v1160, %v1160
      %v1225 = vpack.c.b16 %v1161, %v1161
      %v1226 = vpack.c.b16 %v1162, %v1162
      %v1227 = vpack.c.b16 %v1163, %v1163
      %v1228 = vpack.c.b16 %v1164, %v1164
      %v1229 = vpack.c.b16 %v1165, %v1165
      %v1230 = vpack.c.b16 %v1166, %v1166
      %v1231 = vpack.c.b16 %v1167, %v1167
      %v1232 = vpack.c.b16 %v1168, %v1168
      %v1233 = vpack.c.b16 %v1169, %v1169
      %v1234 = vpack.c.b16 %v1170, %v1170
      %v1235 = vpack.c.b16 %v1171, %v1171
      %v1236 = vpack.c.b16 %v1172, %v1172
      %v1237 = vpack.c.b16 %v1173, %v1173
      %v1238 = vpack.c.b16 %v1174, %v1174
      %v1239 = vpack.c.b16 %v1175, %v1175
      %v1240 = vpack.c.b16 %v1176, %v1176
      %v1241 = vpack.c.b16 %v1177, %v1177
      %v1242 = vpack.c.b16 %v1178, %v1178
      %v1243 = vpack.c.b16 %v1179, %v1179
      %v1244 = vpack.c.b16 %v1180, %v1180
      %v1245 = vpack.c.b16 %v1181, %v1181
      %v1246 = vpack.c.b16 %v1182, %v1182
      %v1247 = vpack.c.b16 %v1183, %v1183
      %v1248 = vpack.c.b16 %v1184, %v1184
      %v1249 = vpack.c.b16 %v1185, %v1185
      %v1250 = vpack.c.b16 %v1186, %v1186
      %v1251 = vpack.c.b16 %v1187, %v1187
      %v1252 = vpack.c.b16 %v1188, %v1188
      %v1253 = vpack.c.b16 %v1189, %v1189
      %v1254 = vpack.c.b16 %v1190, %v1190
      %v1255 = vpack.c.b16 %v1191, %v1191
      %v1256 = vpack.c.b16 %v1192, %v1192
      %v1257 = vpack.c.b16 %v1193, %v1193
      %v1258 = vpack.c.b16 %v1194, %v1194
      %v1259 = vpack.c.b16 %v1195, %v1195
      %v1260 = vpack.c.b16 %v1196, %v1196
      %v1261 = vpack.c.b16 %v1197, %v1197
      %v1262 = vpack.c.b16 %v1198, %v1198
      %v1263 = vpack.c.b16 %v1199, %v1199
      %v1264 = vpack.c.b16 %v1200, %v1200
      %v1265 = vpack.c.b16 %v1201, %v1201
      %v1266 = vpack.c.b16 %v1202, %v1202
      %v1267 = vpack.c.b16 %v1203, %v1203
      %v1268 = vpack.c.b16 %v1204, %v1204
      %v1269 = vpack.c.b16 %v1205, %v1205
      %v1270 = vpack.c.b16 %v1206, %v1206
      %v1271 = vpack.c.b16 %v1207, %v1207
      %v1272 = vpack.c.b16 %v1208, %v1208
      %v1273 = vpack.c.b16 %v1209, %v1209
      %1338 = vst [vmem:[%s264] sm:$0xf] %v1210
      %1339 = vst [vmem:[%s264 + $0x4] sm:$0xf] %v1211
      %1340 = vst [vmem:[%s264 + $0x8] sm:$0xf] %v1212
      %1341 = vst [vmem:[%s264 + $0xc] sm:$0xf] %v1213
      %1342 = vst [vmem:[%s264 + $0x10] sm:$0xf] %v1214
      %1343 = vst [vmem:[%s264 + $0x14] sm:$0xf] %v1215
      %1344 = vst [vmem:[%s264 + $0x18] sm:$0xf] %v1216
      %1345 = vst [vmem:[%s264 + $0x1c] sm:$0xf] %v1217
      %1346 = vst [vmem:[%s264 + $0x20] sm:$0xf] %v1218
      %1347 = vst [vmem:[%s264 + $0x24] sm:$0xf] %v1219
      %1348 = vst [vmem:[%s264 + $0x28] sm:$0xf] %v1220
      %1349 = vst [vmem:[%s264 + $0x2c] sm:$0xf] %v1221
      %1350 = vst [vmem:[%s264 + $0x30] sm:$0xf] %v1222
      %1351 = vst [vmem:[%s264 + $0x34] sm:$0xf] %v1223
      %1352 = vst [vmem:[%s264 + $0x38] sm:$0xf] %v1224
      %1353 = vst [vmem:[%s264 + $0x3c] sm:$0xf] %v1225
      %1354 = vst [vmem:[%s264 + $0x40] sm:$0xf] %v1226
      %1355 = vst [vmem:[%s264 + $0x44] sm:$0xf] %v1227
      %1356 = vst [vmem:[%s264 + $0x48] sm:$0xf] %v1228
      %1357 = vst [vmem:[%s264 + $0x4c] sm:$0xf] %v1229
      %1358 = vst [vmem:[%s264 + $0x50] sm:$0xf] %v1230
      %1359 = vst [vmem:[%s264 + $0x54] sm:$0xf] %v1231
      %1360 = vst [vmem:[%s264 + $0x58] sm:$0xf] %v1232
      %1361 = vst [vmem:[%s264 + $0x5c] sm:$0xf] %v1233
      %1362 = vst [vmem:[%s264 + $0x60] sm:$0xf] %v1234
      %1363 = vst [vmem:[%s264 + $0x64] sm:$0xf] %v1235
      %1364 = vst [vmem:[%s264 + $0x68] sm:$0xf] %v1236
      %1365 = vst [vmem:[%s264 + $0x6c] sm:$0xf] %v1237
      %1366 = vst [vmem:[%s264 + $0x70] sm:$0xf] %v1238
      %1367 = vst [vmem:[%s264 + $0x74] sm:$0xf] %v1239
      %1368 = vst [vmem:[%s264 + $0x78] sm:$0xf] %v1240
      %1369 = vst [vmem:[%s264 + $0x7c] sm:$0xf] %v1241
      %1370 = vst [vmem:[%s264 + $0x80] sm:$0xf] %v1242
      %1371 = vst [vmem:[%s264 + $0x84] sm:$0xf] %v1243
      %1372 = vst [vmem:[%s264 + $0x88] sm:$0xf] %v1244
      %1373 = vst [vmem:[%s264 + $0x8c] sm:$0xf] %v1245
      %1374 = vst [vmem:[%s264 + $0x90] sm:$0xf] %v1246
      %1375 = vst [vmem:[%s264 + $0x94] sm:$0xf] %v1247
      %1376 = vst [vmem:[%s264 + $0x98] sm:$0xf] %v1248
      %1377 = vst [vmem:[%s264 + $0x9c] sm:$0xf] %v1249
      %1378 = vst [vmem:[%s264 + $0xa0] sm:$0xf] %v1250
      %1379 = vst [vmem:[%s264 + $0xa4] sm:$0xf] %v1251
      %1380 = vst [vmem:[%s264 + $0xa8] sm:$0xf] %v1252
      %1381 = vst [vmem:[%s264 + $0xac] sm:$0xf] %v1253
      %1382 = vst [vmem:[%s264 + $0xb0] sm:$0xf] %v1254
      %1383 = vst [vmem:[%s264 + $0xb4] sm:$0xf] %v1255
      %1384 = vst [vmem:[%s264 + $0xb8] sm:$0xf] %v1256
      %1385 = vst [vmem:[%s264 + $0xbc] sm:$0xf] %v1257
      %1386 = vst [vmem:[%s264 + $0xc0] sm:$0xf] %v1258
      %1387 = vst [vmem:[%s264 + $0xc4] sm:$0xf] %v1259
      %1388 = vst [vmem:[%s264 + $0xc8] sm:$0xf] %v1260
      %1389 = vst [vmem:[%s264 + $0xcc] sm:$0xf] %v1261
      %1390 = vst [vmem:[%s264 + $0xd0] sm:$0xf] %v1262
      %1391 = vst [vmem:[%s264 + $0xd4] sm:$0xf] %v1263
      %1392 = vst [vmem:[%s264 + $0xd8] sm:$0xf] %v1264
      %1393 = vst [vmem:[%s264 + $0xdc] sm:$0xf] %v1265
      %1394 = vst [vmem:[%s264 + $0xe0] sm:$0xf] %v1266
      %1395 = vst [vmem:[%s264 + $0xe4] sm:$0xf] %v1267
      %1396 = vst [vmem:[%s264 + $0xe8] sm:$0xf] %v1268
      %1397 = vst [vmem:[%s264 + $0xec] sm:$0xf] %v1269
      %1398 = vst [vmem:[%s264 + $0xf0] sm:$0xf] %v1270
      %1399 = vst [vmem:[%s264 + $0xf4] sm:$0xf] %v1271
      %1400 = vst [vmem:[%s264 + $0xf8] sm:$0xf] %v1272
      %1401 = vst [vmem:[%s264 + $0xfc] sm:$0xf] %v1273
      %s1402 = smul.u32 64, %s19
      %p1403 = scmp.lt.s32.totalorder %s1402, 255
      %s1404 = scalar_select %p1403, %s1402, 255
      %p1405 = scmp.lt.s32.totalorder %s20, 0
      %s1406 = scalar_select %p1405, %s20, 0
      %s1407 = sadd.s32 %s1406, %s1404
      %s1408 = smul.addr %s1407, 4
      %s1409 = scalar_lea.vmem %s4, %s1408
      // Predicated region
      $region37: #{deeplab_forward.16} parent=35 // pred_check
        %p1410 = pneg %p151
      $region38: #{deeplab_forward.16} parent=35 // pred_check_branch
        %1412 = sbr.rel (%p1410) target = $region40
      $region39: #{deeplab_forward.16} parent=35 // pred_region
        %s1413 = smul.u32 64, %s19
      $region40: #{deeplab_forward.16} parent=35 // pred_fallthru
        _
    $region36: #{deeplab_forward.16} parent=5 // pred_fallthru
      _
    %p1414 = scmp.le.s32.totalorder 2, %s10
    // Predicated region
    $region41: #{deeplab_forward.16} parent=5 // pred_check
      %p1415 = pneg %p1414
    $region42: #{deeplab_forward.16} parent=5 // pred_check_branch
      %1417 = sbr.rel (%p1415) target = $region44
    $region43: #{deeplab_forward.16} parent=5 // pred_region
      %s1418 = ssub.s32 %s10, 2
      // Predicated region
      $region45: #{deeplab_forward.16} parent=43 // pred_check
        %p1419 = pneg %p157
      $region46: #{deeplab_forward.16} parent=43 // pred_check_branch
        %1421 = sbr.rel (%p1419) target = $region48
      $region47: #{deeplab_forward.16} parent=43 // pred_region
        %s1422 = smul.u32 64, %s21
        %p1423 = scmp.lt.s32.totalorder %s1422, 255
        %s1424 = scalar_select %p1423, %s1422, 255
        %p1425 = scmp.lt.s32.totalorder %s22, 0
        %s1426 = scalar_select %p1425, %s22, 0
        %s1427 = sadd.s32 %s1426, %s1424
        %s1428 = smul.addr %s1427, 4
        %s1429 = scalar_lea.vmem %s4, %s1428
      $region48: #{deeplab_forward.16} parent=43 // pred_fallthru
        _
    $region44: #{deeplab_forward.16} parent=5 // pred_fallthru
      _
  $region6: #{deeplab_forward.16} parent=0 // loop_footer
    %s14 = sadd.s32 1, %s10
  $region7: #{deeplab_forward.16} parent=0 // loop_footer_branch
    %9 = sbr.rel target = $region3
  $region8: #{deeplab_forward.16} parent=0 // loop_exit
    _

// kernel: deeplab_forward.17
$region0: #{deeplab_forward.17}
  #allocation0 [shape = 'u32[]', space=smem, size = 0x4, offset = 0x4, fixed_abs, tag = 'smem constant byte address 0x4 - core index']
  #allocation1 [shape = 'u32[144,128]{1,0:T(1,128)}', space=vmem, size = 0x12000, scoped, tag = 'internal scratch']
  %s0 = inlined_call_operand.vmem [shape: bf16[512,256], index: 0, kind: input, shape index: {}]
  %s1 = inlined_call_operand.vmem [shape: bf16[256,128], index: 1, kind: input, shape index: {}]
  %s2 = inlined_call_operand.vmem [shape: f32[1,128], index: 2, kind: input, shape index: {}]
  %s3 = inlined_call_operand.vmem [shape: f32[1,128], index: 3, kind: input, shape index: {}]
  %s4 = inlined_call_operand.vmem [shape: bf16[512,128], index: 4, kind: output, shape index: {}]
  %s5 = sld [smem:[#allocation0]]
  $region49: #{deeplab_forward.17} parent=0
    _
  %s7 = ssub.s32 1, %s5
  %s8 = scalar_select 0, %s7, %s5
  loop: start=0, step=1, limit=4
  $region2: #{deeplab_forward.17} parent=0 // loop_pre_header
    _
  $region3: #{deeplab_forward.17} parent=0 // loop_header
    %s10 = sphi 0, %s14
    %p11 = scmp.ge.s32.totalorder %s10, 4
    %s17 = sphi 0, %s29
    %s18 = sphi 0, %s25
    %s19 = sphi 0, %s17
    %s20 = sphi 0, %s18
    %s21 = sphi 0, %s19
    %s22 = sphi 0, %s20
    %s32 = sphi 0, %s34
    %s35 = sphi 0, %s32
    %s36 = sphi 0, %s35
    %s52 = sphi 0, %s36
    %s58 = sphi 0, %s60
    %s61 = sphi 0, %s58
    %s62 = sphi 0, %s61
    %s78 = sphi 0, %s62
    %s84 = sphi 0, %s86
    %s87 = sphi 0, %s84
    %s88 = sphi 0, %s87
    %s104 = sphi 0, %s88
    %s110 = sphi 0, %s112
    %s113 = sphi 0, %s110
    %s114 = sphi 0, %s113
    %s130 = sphi 0, %s114
    %s138 = sphi 0, %s140
    %s141 = sphi 0, %s138
    %s142 = sphi 0, %s141
    %s158 = sphi 0, %s142
  $region4: #{deeplab_forward.17} parent=0 // loop_header_branch
    %13 = sbr.rel (%p11) target = $region8
  $region5: #{deeplab_forward.17} parent=0 // loop_body
    %s15 = ssub.s32 %s10, 1
    %s16 = ssub.s32 %s10, 2
    %s23 = sadd.s32 1, %s18
    %p24 = scmp.ge.s32.totalorder %s23, 1
    %s25 = scalar_select %p24, 0, %s23
    %s26 = sadd.s32 1, %s17
    %s27 = scalar_select %p24, %s26, %s17
    %p28 = scmp.ge.s32.totalorder %s27, 2
    %s29 = scalar_select %p28, 0, %s27
    %s30 = ssub.s32 %s17, %s29
    %p31 = scmp.eq.s32.totalorder %s30, 0
    %s33 = sadd.s32 %s32, 1
    %s34 = scalar_select %p31, %s32, %s33
    %p37 = pneg %p31
    %p38 = scmp.eq.s32.totalorder %s10, 1
    %p39 = por %p37, %p38
    %p40 = scmp.ne.s32.totalorder %s32, %s35
    %p41 = scmp.eq.s32.totalorder %s10, 0
    %p42 = por %p40, %p41
    %p43 = scmp.ne.s32.totalorder %s32, %s35
    %p44 = scmp.eq.s32.totalorder %s15, 1
    %p45 = por %p43, %p44
    %p46 = scmp.ne.s32.totalorder %s35, %s36
    %p47 = scmp.eq.s32.totalorder %s15, 0
    %p48 = por %p46, %p47
    %p49 = scmp.ne.s32.totalorder %s35, %s36
    %p50 = scmp.eq.s32.totalorder %s16, 1
    %p51 = por %p49, %p50
    %p53 = scmp.ne.s32.totalorder %s36, %s52
    %p54 = scmp.eq.s32.totalorder %s16, 0
    %p55 = por %p53, %p54
    %s56 = ssub.s32 %s18, %s25
    %p57 = scmp.eq.s32.totalorder %s56, 0
    %s59 = sadd.s32 %s58, 1
    %s60 = scalar_select %p57, %s58, %s59
    %p63 = pneg %p57
    %p64 = scmp.eq.s32.totalorder %s10, 1
    %p65 = por %p63, %p64
    %p66 = scmp.ne.s32.totalorder %s58, %s61
    %p67 = scmp.eq.s32.totalorder %s10, 0
    %p68 = por %p66, %p67
    %p69 = scmp.ne.s32.totalorder %s58, %s61
    %p70 = scmp.eq.s32.totalorder %s15, 1
    %p71 = por %p69, %p70
    %p72 = scmp.ne.s32.totalorder %s61, %s62
    %p73 = scmp.eq.s32.totalorder %s15, 0
    %p74 = por %p72, %p73
    %p75 = scmp.ne.s32.totalorder %s61, %s62
    %p76 = scmp.eq.s32.totalorder %s16, 1
    %p77 = por %p75, %p76
    %p79 = scmp.ne.s32.totalorder %s62, %s78
    %p80 = scmp.eq.s32.totalorder %s16, 0
    %p81 = por %p79, %p80
    %s82 = ssub.s32 %s18, %s25
    %p83 = scmp.eq.s32.totalorder %s82, 0
    %s85 = sadd.s32 %s84, 1
    %s86 = scalar_select %p83, %s84, %s85
    %p89 = pneg %p83
    %p90 = scmp.eq.s32.totalorder %s10, 1
    %p91 = por %p89, %p90
    %p92 = scmp.ne.s32.totalorder %s84, %s87
    %p93 = scmp.eq.s32.totalorder %s10, 0
    %p94 = por %p92, %p93
    %p95 = scmp.ne.s32.totalorder %s84, %s87
    %p96 = scmp.eq.s32.totalorder %s15, 1
    %p97 = por %p95, %p96
    %p98 = scmp.ne.s32.totalorder %s87, %s88
    %p99 = scmp.eq.s32.totalorder %s15, 0
    %p100 = por %p98, %p99
    %p101 = scmp.ne.s32.totalorder %s87, %s88
    %p102 = scmp.eq.s32.totalorder %s16, 1
    %p103 = por %p101, %p102
    %p105 = scmp.ne.s32.totalorder %s88, %s104
    %p106 = scmp.eq.s32.totalorder %s16, 0
    %p107 = por %p105, %p106
    %s108 = ssub.s32 %s18, %s25
    %p109 = scmp.eq.s32.totalorder %s108, 0
    %s111 = sadd.s32 %s110, 1
    %s112 = scalar_select %p109, %s110, %s111
    %p115 = pneg %p109
    %p116 = scmp.eq.s32.totalorder %s10, 1
    %p117 = por %p115, %p116
    %p118 = scmp.ne.s32.totalorder %s110, %s113
    %p119 = scmp.eq.s32.totalorder %s10, 0
    %p120 = por %p118, %p119
    %p121 = scmp.ne.s32.totalorder %s110, %s113
    %p122 = scmp.eq.s32.totalorder %s15, 1
    %p123 = por %p121, %p122
    %p124 = scmp.ne.s32.totalorder %s113, %s114
    %p125 = scmp.eq.s32.totalorder %s15, 0
    %p126 = por %p124, %p125
    %p127 = scmp.ne.s32.totalorder %s113, %s114
    %p128 = scmp.eq.s32.totalorder %s16, 1
    %p129 = por %p127, %p128
    %p131 = scmp.ne.s32.totalorder %s114, %s130
    %p132 = scmp.eq.s32.totalorder %s16, 0
    %p133 = por %p131, %p132
    %s134 = ssub.s32 %s17, %s29
    %s135 = ssub.s32 %s18, %s25
    %s136 = sor.u32 %s134, %s135
    %p137 = scmp.eq.s32.totalorder %s136, 0
    %s139 = sadd.s32 %s138, 1
    %s140 = scalar_select %p137, %s138, %s139
    %p143 = pneg %p137
    %p144 = scmp.eq.s32.totalorder %s10, 1
    %p145 = por %p143, %p144
    %p146 = scmp.ne.s32.totalorder %s138, %s141
    %p147 = scmp.eq.s32.totalorder %s10, 0
    %p148 = por %p146, %p147
    %p149 = scmp.ne.s32.totalorder %s138, %s141
    %p150 = scmp.eq.s32.totalorder %s15, 1
    %p151 = por %p149, %p150
    %p152 = scmp.ne.s32.totalorder %s141, %s142
    %p153 = scmp.eq.s32.totalorder %s15, 0
    %p154 = por %p152, %p153
    %p155 = scmp.ne.s32.totalorder %s141, %s142
    %p156 = scmp.eq.s32.totalorder %s16, 1
    %p157 = por %p155, %p156
    %p159 = scmp.ne.s32.totalorder %s142, %s158
    %p160 = scmp.eq.s32.totalorder %s16, 0
    %p161 = por %p159, %p160
    %p162 = scmp.le.s32.totalorder 1, %s10
    %p163 = scmp.lt.s32.totalorder %s10, 3
    %p164 = pnand %p162, %p163
    %p165 = pneg %p164
    // Predicated region
    $region9: #{deeplab_forward.17} parent=5 // pred_check
      _
    $region10: #{deeplab_forward.17} parent=5 // pred_check_branch
      %167 = sbr.rel (%p164) target = $region12
    $region11: #{deeplab_forward.17} parent=5 // pred_region
      %s168 = ssub.s32 %s10, 1
      // Predicated region
      $region13: #{deeplab_forward.17} parent=11 // pred_check
        %p169 = pneg %p74
      $region14: #{deeplab_forward.17} parent=11 // pred_check_branch
        %171 = sbr.rel (%p169) target = $region16
      $region15: #{deeplab_forward.17} parent=11 // pred_region
        %p172 = scmp.lt.s32.totalorder %s20, 0
        %s173 = scalar_select %p172, %s20, 0
        %s174 = smul.addr %s173, 4
        %s175 = scalar_lea.vmem %s1, %s174
      $region16: #{deeplab_forward.17} parent=11 // pred_fallthru
        _
      // Predicated region
      $region17: #{deeplab_forward.17} parent=11 // pred_check
        %p176 = pneg %p100
      $region18: #{deeplab_forward.17} parent=11 // pred_check_branch
        %178 = sbr.rel (%p176) target = $region20
      $region19: #{deeplab_forward.17} parent=11 // pred_region
        %p179 = scmp.lt.s32.totalorder %s20, 0
        %s180 = scalar_select %p179, %s20, 0
        %s181 = scalar_lea.vmem %s2, %s180
      $region20: #{deeplab_forward.17} parent=11 // pred_fallthru
        _
      // Predicated region
      $region21: #{deeplab_forward.17} parent=11 // pred_check
        %p182 = pneg %p126
      $region22: #{deeplab_forward.17} parent=11 // pred_check_branch
        %184 = sbr.rel (%p182) target = $region24
      $region23: #{deeplab_forward.17} parent=11 // pred_region
        %p185 = scmp.lt.s32.totalorder %s20, 0
        %s186 = scalar_select %p185, %s20, 0
        %s187 = scalar_lea.vmem %s3, %s186
      $region24: #{deeplab_forward.17} parent=11 // pred_fallthru
        _
    $region12: #{deeplab_forward.17} parent=5 // pred_fallthru
      _
    %p188 = scmp.lt.s32.totalorder %s10, 2
    // Predicated region
    $region25: #{deeplab_forward.17} parent=5 // pred_check
      %p189 = pneg %p188
    $region26: #{deeplab_forward.17} parent=5 // pred_check_branch
      %191 = sbr.rel (%p189) target = $region28
    $region27: #{deeplab_forward.17} parent=5 // pred_region
      // Predicated region
      $region29: #{deeplab_forward.17} parent=27 // pred_check
        %p192 = pneg %p42
      $region30: #{deeplab_forward.17} parent=27 // pred_check_branch
        %194 = sbr.rel (%p192) target = $region32
      $region31: #{deeplab_forward.17} parent=27 // pred_region
        %s195 = smul.u32 32, %s17
        %p196 = scmp.lt.s32.totalorder %s195, 63
        %s197 = scalar_select %p196, %s195, 63
        %s198 = smul.addr %s197, 2
        %s199 = smul.addr %s198, 4
        %s200 = scalar_lea.vmem %s0, %s199
        %s201 = smul.u32 32, %s17
      $region32: #{deeplab_forward.17} parent=27 // pred_fallthru
        _
    $region28: #{deeplab_forward.17} parent=5 // pred_fallthru
      _
    %p202 = scmp.le.s32.totalorder 1, %s10
    %p203 = scmp.lt.s32.totalorder %s10, 3
    %p204 = pnand %p202, %p203
    %p205 = pneg %p204
    // Predicated region
    $region33: #{deeplab_forward.17} parent=5 // pred_check
      _
    $region34: #{deeplab_forward.17} parent=5 // pred_check_branch
      %207 = sbr.rel (%p204) target = $region36
    $region35: #{deeplab_forward.17} parent=5 // pred_region
      %s208 = ssub.s32 %s10, 1
      %s209 = smul.u32 32, %s19
      %p210 = scmp.lt.s32.totalorder %s209, 63
      %s211 = scalar_select %p210, %s209, 63
      %s212 = smul.addr %s211, 2
      %s213 = smul.addr %s212, 4
      %s214 = scalar_lea.vmem %s0, %s213
      %p215 = pneg %p48
      %p216 = pneg %p45
      %p217 = scmp.lt.s32.totalorder %s20, 0
      %s218 = scalar_select %p217, %s20, 0
      %s219 = smul.addr %s218, 4
      %s220 = scalar_lea.vmem %s1, %s219
      %p221 = pneg %p74
      %p222 = pneg %p71
      %p223 = scmp.lt.s32.totalorder %s20, 0
      %s224 = scalar_select %p223, %s20, 0
      %s225 = scalar_lea.vmem %s2, %s224
      %p226 = pneg %p100
      %p227 = pneg %p97
      %p228 = scmp.lt.s32.totalorder %s20, 0
      %s229 = scalar_select %p228, %s20, 0
      %s230 = scalar_lea.vmem %s3, %s229
      %p231 = pneg %p126
      %p232 = pneg %p123
      %p233 = pneg %p154
      %p234 = pneg %p151
      %s235 = smul.u32 32, %s19
      %p236 = scmp.lt.s32.totalorder %s235, 63
      %s237 = scalar_select %p236, %s235, 63
      %p238 = scmp.lt.s32.totalorder %s20, 0
      %s239 = scalar_select %p238, %s20, 0
      %s240 = sadd.s32 %s239, %s237
      %s241 = smul.addr %s240, 4
      %s242 = scalar_lea.vmem %s4, %s241
      %s243 = smul.u32 32, %s19
      %p244 = scmp.lt.s32.totalorder %s243, 63
      %s245 = scalar_select %p244, %s243, 63
      %s246 = smul.addr %s245, 2
      %s247 = smul.addr %s246, 4
      %s248 = scalar_lea.vmem %s0, %s247
      %s249 = smul.u32 32, %s19
      %p250 = scmp.lt.s32.totalorder %s20, 0
      %s251 = scalar_select %p250, %s20, 0
      %s252 = smul.addr %s251, 4
      %s253 = scalar_lea.vmem %s1, %s252
      %p254 = scmp.lt.s32.totalorder %s20, 0
      %s255 = scalar_select %p254, %s20, 0
      %s256 = scalar_lea.vmem %s2, %s255
      %p257 = scmp.lt.s32.totalorder %s20, 0
      %s258 = scalar_select %p257, %s20, 0
      %s259 = scalar_lea.vmem %s3, %s258
      %s260 = smul.u32 32, %s19
      %p261 = scmp.lt.s32.totalorder %s260, 63
      %s262 = scalar_select %p261, %s260, 63
      %p263 = scmp.lt.s32.totalorder %s20, 0
      %s264 = scalar_select %p263, %s20, 0
      %s265 = sadd.s32 %s264, %s262
      %s266 = smul.addr %s265, 4
      %s267 = scalar_lea.vmem %s4, %s266
      %s268 = smul.u32 32, %s19
      %v270 = vld [vmem:[%s248] sm:$0xff]
      %v271 = vld [vmem:[%s248 + $0x8] sm:$0xff]
      %v272 = vld [vmem:[%s248 + $0x10] sm:$0xff]
      %v273 = vld [vmem:[%s248 + $0x18] sm:$0xff]
      %v274 = vld [vmem:[%s248 + $0x20] sm:$0xff]
      %v275 = vld [vmem:[%s248 + $0x28] sm:$0xff]
      %v276 = vld [vmem:[%s248 + $0x30] sm:$0xff]
      %v277 = vld [vmem:[%s248 + $0x38] sm:$0xff]
      %v278 = vld [vmem:[%s248 + $0x40] sm:$0xff]
      %v279 = vld [vmem:[%s248 + $0x48] sm:$0xff]
      %v280 = vld [vmem:[%s248 + $0x50] sm:$0xff]
      %v281 = vld [vmem:[%s248 + $0x58] sm:$0xff]
      %v282 = vld [vmem:[%s248 + $0x60] sm:$0xff]
      %v283 = vld [vmem:[%s248 + $0x68] sm:$0xff]
      %v284 = vld [vmem:[%s248 + $0x70] sm:$0xff]
      %v285 = vld [vmem:[%s248 + $0x78] sm:$0xff]
      %v286 = vld [vmem:[%s248 + $0x80] sm:$0xff]
      %v287 = vld [vmem:[%s248 + $0x88] sm:$0xff]
      %v288 = vld [vmem:[%s248 + $0x90] sm:$0xff]
      %v289 = vld [vmem:[%s248 + $0x98] sm:$0xff]
      %v290 = vld [vmem:[%s248 + $0xa0] sm:$0xff]
      %v291 = vld [vmem:[%s248 + $0xa8] sm:$0xff]
      %v292 = vld [vmem:[%s248 + $0xb0] sm:$0xff]
      %v293 = vld [vmem:[%s248 + $0xb8] sm:$0xff]
      %v294 = vld [vmem:[%s248 + $0xc0] sm:$0xff]
      %v295 = vld [vmem:[%s248 + $0xc8] sm:$0xff]
      %v296 = vld [vmem:[%s248 + $0xd0] sm:$0xff]
      %v297 = vld [vmem:[%s248 + $0xd8] sm:$0xff]
      %v298 = vld [vmem:[%s248 + $0xe0] sm:$0xff]
      %v299 = vld [vmem:[%s248 + $0xe8] sm:$0xff]
      %v300 = vld [vmem:[%s248 + $0xf0] sm:$0xff]
      %v301 = vld [vmem:[%s248 + $0xf8] sm:$0xff]
      %v302 = vld [vmem:[%s253] sm:$0xf]
      %v303 = vld [vmem:[%s253 + $0x4] sm:$0xf]
      %v304 = vld [vmem:[%s253 + $0x8] sm:$0xf]
      %v305 = vld [vmem:[%s253 + $0xc] sm:$0xf]
      %v306 = vld [vmem:[%s253 + $0x10] sm:$0xf]
      %v307 = vld [vmem:[%s253 + $0x14] sm:$0xf]
      %v308 = vld [vmem:[%s253 + $0x18] sm:$0xf]
      %v309 = vld [vmem:[%s253 + $0x1c] sm:$0xf]
      %v310 = vld [vmem:[%s253 + $0x20] sm:$0xf]
      %v311 = vld [vmem:[%s253 + $0x24] sm:$0xf]
      %v312 = vld [vmem:[%s253 + $0x28] sm:$0xf]
      %v313 = vld [vmem:[%s253 + $0x2c] sm:$0xf]
      %v314 = vld [vmem:[%s253 + $0x30] sm:$0xf]
      %v315 = vld [vmem:[%s253 + $0x34] sm:$0xf]
      %v316 = vld [vmem:[%s253 + $0x38] sm:$0xf]
      %v317 = vld [vmem:[%s253 + $0x3c] sm:$0xf]
      %v318 = vld [vmem:[%s253 + $0x40] sm:$0xf]
      %v319 = vld [vmem:[%s253 + $0x44] sm:$0xf]
      %v320 = vld [vmem:[%s253 + $0x48] sm:$0xf]
      %v321 = vld [vmem:[%s253 + $0x4c] sm:$0xf]
      %v322 = vld [vmem:[%s253 + $0x50] sm:$0xf]
      %v323 = vld [vmem:[%s253 + $0x54] sm:$0xf]
      %v324 = vld [vmem:[%s253 + $0x58] sm:$0xf]
      %v325 = vld [vmem:[%s253 + $0x5c] sm:$0xf]
      %v326 = vld [vmem:[%s253 + $0x60] sm:$0xf]
      %v327 = vld [vmem:[%s253 + $0x64] sm:$0xf]
      %v328 = vld [vmem:[%s253 + $0x68] sm:$0xf]
      %v329 = vld [vmem:[%s253 + $0x6c] sm:$0xf]
      %v330 = vld [vmem:[%s253 + $0x70] sm:$0xf]
      %v331 = vld [vmem:[%s253 + $0x74] sm:$0xf]
      %v332 = vld [vmem:[%s253 + $0x78] sm:$0xf]
      %v333 = vld [vmem:[%s253 + $0x7c] sm:$0xf]
      %v366 = vunpack.c.l.b16 %v270
      %v367 = vunpack.c.h.b16 %v270
      %v368 = vunpack.c.l.b16 %v271
      %v369 = vunpack.c.h.b16 %v271
      %v370 = vunpack.c.l.b16 %v272
      %v371 = vunpack.c.h.b16 %v272
      %v372 = vunpack.c.l.b16 %v273
      %v373 = vunpack.c.h.b16 %v273
      %v374 = vunpack.c.l.b16 %v274
      %v375 = vunpack.c.h.b16 %v274
      %v376 = vunpack.c.l.b16 %v275
      %v377 = vunpack.c.h.b16 %v275
      %v378 = vunpack.c.l.b16 %v276
      %v379 = vunpack.c.h.b16 %v276
      %v380 = vunpack.c.l.b16 %v277
      %v381 = vunpack.c.h.b16 %v277
      %v382 = vunpack.c.l.b16 %v278
      %v383 = vunpack.c.h.b16 %v278
      %v384 = vunpack.c.l.b16 %v279
      %v385 = vunpack.c.h.b16 %v279
      %v386 = vunpack.c.l.b16 %v280
      %v387 = vunpack.c.h.b16 %v280
      %v388 = vunpack.c.l.b16 %v281
      %v389 = vunpack.c.h.b16 %v281
      %v390 = vunpack.c.l.b16 %v282
      %v391 = vunpack.c.h.b16 %v282
      %v392 = vunpack.c.l.b16 %v283
      %v393 = vunpack.c.h.b16 %v283
      %v394 = vunpack.c.l.b16 %v284
      %v395 = vunpack.c.h.b16 %v284
      %v396 = vunpack.c.l.b16 %v285
      %v397 = vunpack.c.h.b16 %v285
      %v398 = vunpack.c.l.b16 %v286
      %v399 = vunpack.c.h.b16 %v286
      %v400 = vunpack.c.l.b16 %v287
      %v401 = vunpack.c.h.b16 %v287
      %v402 = vunpack.c.l.b16 %v288
      %v403 = vunpack.c.h.b16 %v288
      %v404 = vunpack.c.l.b16 %v289
      %v405 = vunpack.c.h.b16 %v289
      %v406 = vunpack.c.l.b16 %v290
      %v407 = vunpack.c.h.b16 %v290
      %v408 = vunpack.c.l.b16 %v291
      %v409 = vunpack.c.h.b16 %v291
      %v410 = vunpack.c.l.b16 %v292
      %v411 = vunpack.c.h.b16 %v292
      %v412 = vunpack.c.l.b16 %v293
      %v413 = vunpack.c.h.b16 %v293
      %v414 = vunpack.c.l.b16 %v294
      %v415 = vunpack.c.h.b16 %v294
      %v416 = vunpack.c.l.b16 %v295
      %v417 = vunpack.c.h.b16 %v295
      %v418 = vunpack.c.l.b16 %v296
      %v419 = vunpack.c.h.b16 %v296
      %v420 = vunpack.c.l.b16 %v297
      %v421 = vunpack.c.h.b16 %v297
      %v422 = vunpack.c.l.b16 %v298
      %v423 = vunpack.c.h.b16 %v298
      %v424 = vunpack.c.l.b16 %v299
      %v425 = vunpack.c.h.b16 %v299
      %v426 = vunpack.c.l.b16 %v300
      %v427 = vunpack.c.h.b16 %v300
      %v428 = vunpack.c.l.b16 %v301
      %v429 = vunpack.c.h.b16 %v301
      %v430 = vpack.c.b16 %v368, %v366
      %v431 = vpack.c.b16 %v369, %v367
      %v432 = vpack.c.b16 %v372, %v370
      %v433 = vpack.c.b16 %v373, %v371
      %v434 = vpack.c.b16 %v376, %v374
      %v435 = vpack.c.b16 %v377, %v375
      %v436 = vpack.c.b16 %v380, %v378
      %v437 = vpack.c.b16 %v381, %v379
      %v438 = vpack.c.b16 %v384, %v382
      %v439 = vpack.c.b16 %v385, %v383
      %v440 = vpack.c.b16 %v388, %v386
      %v441 = vpack.c.b16 %v389, %v387
      %v442 = vpack.c.b16 %v392, %v390
      %v443 = vpack.c.b16 %v393, %v391
      %v444 = vpack.c.b16 %v396, %v394
      %v445 = vpack.c.b16 %v397, %v395
      %v446 = vpack.c.b16 %v400, %v398
      %v447 = vpack.c.b16 %v401, %v399
      %v448 = vpack.c.b16 %v404, %v402
      %v449 = vpack.c.b16 %v405, %v403
      %v450 = vpack.c.b16 %v408, %v406
      %v451 = vpack.c.b16 %v409, %v407
      %v452 = vpack.c.b16 %v412, %v410
      %v453 = vpack.c.b16 %v413, %v411
      %v454 = vpack.c.b16 %v416, %v414
      %v455 = vpack.c.b16 %v417, %v415
      %v456 = vpack.c.b16 %v420, %v418
      %v457 = vpack.c.b16 %v421, %v419
      %v458 = vpack.c.b16 %v424, %v422
      %v459 = vpack.c.b16 %v425, %v423
      %v460 = vpack.c.b16 %v428, %v426
      %v461 = vpack.c.b16 %v429, %v427
      %v526 = vunpack.c.l.b16 %v302
      %v527 = vunpack.c.l.b16 %v303
      %v528 = vunpack.c.l.b16 %v304
      %v529 = vunpack.c.l.b16 %v305
      %v530 = vunpack.c.l.b16 %v306
      %v531 = vunpack.c.l.b16 %v307
      %v532 = vunpack.c.l.b16 %v308
      %v533 = vunpack.c.l.b16 %v309
      %v534 = vunpack.c.l.b16 %v310
      %v535 = vunpack.c.l.b16 %v311
      %v536 = vunpack.c.l.b16 %v312
      %v537 = vunpack.c.l.b16 %v313
      %v538 = vunpack.c.l.b16 %v314
      %v539 = vunpack.c.l.b16 %v315
      %v540 = vunpack.c.l.b16 %v316
      %v541 = vunpack.c.l.b16 %v317
      %v542 = vunpack.c.l.b16 %v318
      %v543 = vunpack.c.l.b16 %v319
      %v544 = vunpack.c.l.b16 %v320
      %v545 = vunpack.c.l.b16 %v321
      %v546 = vunpack.c.l.b16 %v322
      %v547 = vunpack.c.l.b16 %v323
      %v548 = vunpack.c.l.b16 %v324
      %v549 = vunpack.c.l.b16 %v325
      %v550 = vunpack.c.l.b16 %v326
      %v551 = vunpack.c.l.b16 %v327
      %v552 = vunpack.c.l.b16 %v328
      %v553 = vunpack.c.l.b16 %v329
      %v554 = vunpack.c.l.b16 %v330
      %v555 = vunpack.c.l.b16 %v331
      %v556 = vunpack.c.l.b16 %v332
      %v557 = vunpack.c.l.b16 %v333
      %v558 = vpack.c.b16 %v527, %v526
      %v559 = vpack.c.b16 %v529, %v528
      %v560 = vpack.c.b16 %v531, %v530
      %v561 = vpack.c.b16 %v533, %v532
      %v562 = vpack.c.b16 %v535, %v534
      %v563 = vpack.c.b16 %v537, %v536
      %v564 = vpack.c.b16 %v539, %v538
      %v565 = vpack.c.b16 %v541, %v540
      %v566 = vpack.c.b16 %v543, %v542
      %v567 = vpack.c.b16 %v545, %v544
      %v568 = vpack.c.b16 %v547, %v546
      %v569 = vpack.c.b16 %v549, %v548
      %v570 = vpack.c.b16 %v551, %v550
      %v571 = vpack.c.b16 %v553, %v552
      %v572 = vpack.c.b16 %v555, %v554
      %v573 = vpack.c.b16 %v557, %v556
      %590 = vmatprep.subr.bf16.mxu0 0
      %591 = vmatpush1.bf16.msra.mxu0 %v565
      %592 = vmatprep.subr.bf16.mxu0 0
      %593 = vmatpush1.bf16.msra.mxu0 %v564
      %594 = vmatprep.subr.bf16.mxu0 0
      %595 = vmatpush1.bf16.msra.mxu0 %v563
      %596 = vmatprep.subr.bf16.mxu0 0
      %597 = vmatpush1.bf16.msra.mxu0 %v562
      %598 = vmatprep.subr.bf16.mxu0 0
      %599 = vmatpush1.bf16.msra.mxu0 %v561
      %600 = vmatprep.subr.bf16.mxu0 0
      %601 = vmatpush1.bf16.msra.mxu0 %v560
      %602 = vmatprep.subr.bf16.mxu0 0
      %603 = vmatpush1.bf16.msra.mxu0 %v559
      %604 = vmatprep.subr.bf16.mxu0 0
      %605 = vmatpush1.bf16.msra.mxu0 %v558
      %606 = vmatprep.subr.bf16.mxu0 0
      %607 = vmatpush2.bf16.msra.mxu0 %v573
      %608 = vmatprep.subr.bf16.mxu0 0
      %609 = vmatpush2.bf16.msra.mxu0 %v572
      %610 = vmatprep.subr.bf16.mxu0 0
      %611 = vmatpush2.bf16.msra.mxu0 %v571
      %612 = vmatprep.subr.bf16.mxu0 0
      %613 = vmatpush2.bf16.msra.mxu0 %v570
      %614 = vmatprep.subr.bf16.mxu0 0
      %615 = vmatpush2.bf16.msra.mxu0 %v569
      %616 = vmatprep.subr.bf16.mxu0 0
      %617 = vmatpush2.bf16.msra.mxu0 %v568
      %618 = vmatprep.subr.bf16.mxu0 0
      %619 = vmatpush2.bf16.msra.mxu0 %v567
      %620 = vmatprep.subr.bf16.mxu0 0
      %621 = vmatpush2.bf16.msra.mxu0 %v566
      %622 = vmatprep.mubr.bf16.mxu0 %v431
      %623 = vmatmul.mubr.bf16.gmra.mxu0 %v430
      %v624 = vpop.f32.mrf.mxu0
      %v625 = vadd.f32 0.0, %v624
      %v626 = vpop.f32.mrf.mxu0
      %v627 = vpop.f32.mrf.mxu0
      %v628 = vadd.f32 0.0, %v627
      %v629 = vpop.f32.mrf.mxu0
      %630 = vmatprep.mubr.bf16.mxu0 %v433
      %631 = vmatmul.mubr.bf16.gmra.mxu0 %v432
      %v632 = vpop.f32.mrf.mxu0
      %v633 = vadd.f32 0.0, %v632
      %v634 = vpop.f32.mrf.mxu0
      %v635 = vpop.f32.mrf.mxu0
      %v636 = vadd.f32 0.0, %v635
      %v637 = vpop.f32.mrf.mxu0
      %638 = vmatprep.mubr.bf16.mxu0 %v435
      %639 = vmatmul.mubr.bf16.gmra.mxu0 %v434
      %v640 = vpop.f32.mrf.mxu0
      %v641 = vadd.f32 0.0, %v640
      %v642 = vpop.f32.mrf.mxu0
      %v643 = vpop.f32.mrf.mxu0
      %v644 = vadd.f32 0.0, %v643
      %v645 = vpop.f32.mrf.mxu0
      %646 = vmatprep.mubr.bf16.mxu0 %v437
      %647 = vmatmul.mubr.bf16.gmra.mxu0 %v436
      %v648 = vpop.f32.mrf.mxu0
      %v649 = vadd.f32 0.0, %v648
      %v650 = vpop.f32.mrf.mxu0
      %v651 = vpop.f32.mrf.mxu0
      %v652 = vadd.f32 0.0, %v651
      %v653 = vpop.f32.mrf.mxu0
      %654 = vmatprep.mubr.bf16.mxu0 %v439
      %655 = vmatmul.mubr.bf16.gmra.mxu0 %v438
      %v656 = vpop.f32.mrf.mxu0
      %v657 = vadd.f32 0.0, %v656
      %v658 = vpop.f32.mrf.mxu0
      %v659 = vpop.f32.mrf.mxu0
      %v660 = vadd.f32 0.0, %v659
      %v661 = vpop.f32.mrf.mxu0
      %662 = vmatprep.mubr.bf16.mxu0 %v441
      %663 = vmatmul.mubr.bf16.gmra.mxu0 %v440
      %v664 = vpop.f32.mrf.mxu0
      %v665 = vadd.f32 0.0, %v664
      %v666 = vpop.f32.mrf.mxu0
      %v667 = vpop.f32.mrf.mxu0
      %v668 = vadd.f32 0.0, %v667
      %v669 = vpop.f32.mrf.mxu0
      %670 = vmatprep.mubr.bf16.mxu0 %v443
      %671 = vmatmul.mubr.bf16.gmra.mxu0 %v442
      %v672 = vpop.f32.mrf.mxu0
      %v673 = vadd.f32 0.0, %v672
      %v674 = vpop.f32.mrf.mxu0
      %v675 = vpop.f32.mrf.mxu0
      %v676 = vadd.f32 0.0, %v675
      %v677 = vpop.f32.mrf.mxu0
      %678 = vmatprep.mubr.bf16.mxu0 %v445
      %679 = vmatmul.mubr.bf16.gmra.mxu0 %v444
      %v680 = vpop.f32.mrf.mxu0
      %v681 = vadd.f32 0.0, %v680
      %v682 = vpop.f32.mrf.mxu0
      %v683 = vpop.f32.mrf.mxu0
      %v684 = vadd.f32 0.0, %v683
      %v685 = vpop.f32.mrf.mxu0
      %686 = vmatprep.mubr.bf16.mxu0 %v447
      %687 = vmatmul.mubr.bf16.gmra.mxu0 %v446
      %v688 = vpop.f32.mrf.mxu0
      %v689 = vadd.f32 0.0, %v688
      %v690 = vpop.f32.mrf.mxu0
      %v691 = vpop.f32.mrf.mxu0
      %v692 = vadd.f32 0.0, %v691
      %v693 = vpop.f32.mrf.mxu0
      %694 = vmatprep.mubr.bf16.mxu0 %v449
      %695 = vmatmul.mubr.bf16.gmra.mxu0 %v448
      %v696 = vpop.f32.mrf.mxu0
      %v697 = vadd.f32 0.0, %v696
      %v698 = vpop.f32.mrf.mxu0
      %v699 = vpop.f32.mrf.mxu0
      %v700 = vadd.f32 0.0, %v699
      %v701 = vpop.f32.mrf.mxu0
      %702 = vmatprep.mubr.bf16.mxu0 %v451
      %703 = vmatmul.mubr.bf16.gmra.mxu0 %v450
      %v704 = vpop.f32.mrf.mxu0
      %v705 = vadd.f32 0.0, %v704
      %v706 = vpop.f32.mrf.mxu0
      %v707 = vpop.f32.mrf.mxu0
      %v708 = vadd.f32 0.0, %v707
      %v709 = vpop.f32.mrf.mxu0
      %710 = vmatprep.mubr.bf16.mxu0 %v453
      %711 = vmatmul.mubr.bf16.gmra.mxu0 %v452
      %v712 = vpop.f32.mrf.mxu0
      %v713 = vadd.f32 0.0, %v712
      %v714 = vpop.f32.mrf.mxu0
      %v715 = vpop.f32.mrf.mxu0
      %v716 = vadd.f32 0.0, %v715
      %v717 = vpop.f32.mrf.mxu0
      %718 = vmatprep.mubr.bf16.mxu0 %v455
      %719 = vmatmul.mubr.bf16.gmra.mxu0 %v454
      %v720 = vpop.f32.mrf.mxu0
      %v721 = vadd.f32 0.0, %v720
      %v722 = vpop.f32.mrf.mxu0
      %v723 = vpop.f32.mrf.mxu0
      %v724 = vadd.f32 0.0, %v723
      %v725 = vpop.f32.mrf.mxu0
      %726 = vmatprep.mubr.bf16.mxu0 %v457
      %727 = vmatmul.mubr.bf16.gmra.mxu0 %v456
      %v728 = vpop.f32.mrf.mxu0
      %v729 = vadd.f32 0.0, %v728
      %v730 = vpop.f32.mrf.mxu0
      %v731 = vpop.f32.mrf.mxu0
      %v732 = vadd.f32 0.0, %v731
      %v733 = vpop.f32.mrf.mxu0
      %734 = vmatprep.mubr.bf16.mxu0 %v459
      %735 = vmatmul.mubr.bf16.gmra.mxu0 %v458
      %v736 = vpop.f32.mrf.mxu0
      %v737 = vadd.f32 0.0, %v736
      %v738 = vpop.f32.mrf.mxu0
      %v739 = vpop.f32.mrf.mxu0
      %v740 = vadd.f32 0.0, %v739
      %v741 = vpop.f32.mrf.mxu0
      %742 = vmatprep.mubr.bf16.mxu0 %v461
      %743 = vmatmul.mubr.bf16.gmra.mxu0 %v460
      %v744 = vpop.f32.mrf.mxu0
      %v745 = vadd.f32 0.0, %v744
      %v746 = vpop.f32.mrf.mxu0
      %v747 = vpop.f32.mrf.mxu0
      %v748 = vadd.f32 0.0, %v747
      %v749 = vpop.f32.mrf.mxu0
      %750 = vdwg.mxu0
      %v751 = vld [vmem:[%s256] sm:$0x1]
      %v753 = vlaneseq
      %v754 = vshrl.u32 %v753, 7
      %v755 = vsub.s32 0, %v754
      %v756 = vrot.slane %v751, %v755
      %v758 = vmul.f32 %v625, %v756
      %v759 = vmul.f32 %v628, %v756
      %v760 = vmul.f32 %v633, %v756
      %v761 = vmul.f32 %v636, %v756
      %v762 = vmul.f32 %v641, %v756
      %v763 = vmul.f32 %v644, %v756
      %v764 = vmul.f32 %v649, %v756
      %v765 = vmul.f32 %v652, %v756
      %v766 = vmul.f32 %v657, %v756
      %v767 = vmul.f32 %v660, %v756
      %v768 = vmul.f32 %v665, %v756
      %v769 = vmul.f32 %v668, %v756
      %v770 = vmul.f32 %v673, %v756
      %v771 = vmul.f32 %v676, %v756
      %v772 = vmul.f32 %v681, %v756
      %v773 = vmul.f32 %v684, %v756
      %v774 = vmul.f32 %v689, %v756
      %v775 = vmul.f32 %v692, %v756
      %v776 = vmul.f32 %v697, %v756
      %v777 = vmul.f32 %v700, %v756
      %v778 = vmul.f32 %v705, %v756
      %v779 = vmul.f32 %v708, %v756
      %v780 = vmul.f32 %v713, %v756
      %v781 = vmul.f32 %v716, %v756
      %v782 = vmul.f32 %v721, %v756
      %v783 = vmul.f32 %v724, %v756
      %v784 = vmul.f32 %v729, %v756
      %v785 = vmul.f32 %v732, %v756
      %v786 = vmul.f32 %v737, %v756
      %v787 = vmul.f32 %v740, %v756
      %v788 = vmul.f32 %v745, %v756
      %v789 = vmul.f32 %v748, %v756
      %v790 = vld [vmem:[%s259] sm:$0x1]
      %v792 = vlaneseq
      %v793 = vshrl.u32 %v792, 7
      %v794 = vsub.s32 0, %v793
      %v795 = vrot.slane %v790, %v794
      %v797 = vadd.f32 %v758, %v795
      %v798 = vadd.f32 %v759, %v795
      %v799 = vadd.f32 %v760, %v795
      %v800 = vadd.f32 %v761, %v795
      %v801 = vadd.f32 %v762, %v795
      %v802 = vadd.f32 %v763, %v795
      %v803 = vadd.f32 %v764, %v795
      %v804 = vadd.f32 %v765, %v795
      %v805 = vadd.f32 %v766, %v795
      %v806 = vadd.f32 %v767, %v795
      %v807 = vadd.f32 %v768, %v795
      %v808 = vadd.f32 %v769, %v795
      %v809 = vadd.f32 %v770, %v795
      %v810 = vadd.f32 %v771, %v795
      %v811 = vadd.f32 %v772, %v795
      %v812 = vadd.f32 %v773, %v795
      %v813 = vadd.f32 %v774, %v795
      %v814 = vadd.f32 %v775, %v795
      %v815 = vadd.f32 %v776, %v795
      %v816 = vadd.f32 %v777, %v795
      %v817 = vadd.f32 %v778, %v795
      %v818 = vadd.f32 %v779, %v795
      %v819 = vadd.f32 %v780, %v795
      %v820 = vadd.f32 %v781, %v795
      %v821 = vadd.f32 %v782, %v795
      %v822 = vadd.f32 %v783, %v795
      %v823 = vadd.f32 %v784, %v795
      %v824 = vadd.f32 %v785, %v795
      %v825 = vadd.f32 %v786, %v795
      %v826 = vadd.f32 %v787, %v795
      %v827 = vadd.f32 %v788, %v795
      %v828 = vadd.f32 %v789, %v795
      %v829 = vmax.f32 %v797, 0.0
      %v830 = vmax.f32 %v798, 0.0
      %v831 = vmax.f32 %v799, 0.0
      %v832 = vmax.f32 %v800, 0.0
      %v833 = vmax.f32 %v801, 0.0
      %v834 = vmax.f32 %v802, 0.0
      %v835 = vmax.f32 %v803, 0.0
      %v836 = vmax.f32 %v804, 0.0
      %v837 = vmax.f32 %v805, 0.0
      %v838 = vmax.f32 %v806, 0.0
      %v839 = vmax.f32 %v807, 0.0
      %v840 = vmax.f32 %v808, 0.0
      %v841 = vmax.f32 %v809, 0.0
      %v842 = vmax.f32 %v810, 0.0
      %v843 = vmax.f32 %v811, 0.0
      %v844 = vmax.f32 %v812, 0.0
      %v845 = vmax.f32 %v813, 0.0
      %v846 = vmax.f32 %v814, 0.0
      %v847 = vmax.f32 %v815, 0.0
      %v848 = vmax.f32 %v816, 0.0
      %v849 = vmax.f32 %v817, 0.0
      %v850 = vmax.f32 %v818, 0.0
      %v851 = vmax.f32 %v819, 0.0
      %v852 = vmax.f32 %v820, 0.0
      %v853 = vmax.f32 %v821, 0.0
      %v854 = vmax.f32 %v822, 0.0
      %v855 = vmax.f32 %v823, 0.0
      %v856 = vmax.f32 %v824, 0.0
      %v857 = vmax.f32 %v825, 0.0
      %v858 = vmax.f32 %v826, 0.0
      %v859 = vmax.f32 %v827, 0.0
      %v860 = vmax.f32 %v828, 0.0
      %v861 = vpack.c.bf16 %v830, %v829
      %v862 = vpack.c.bf16 %v832, %v831
      %v863 = vpack.c.bf16 %v834, %v833
      %v864 = vpack.c.bf16 %v836, %v835
      %v865 = vpack.c.bf16 %v838, %v837
      %v866 = vpack.c.bf16 %v840, %v839
      %v867 = vpack.c.bf16 %v842, %v841
      %v868 = vpack.c.bf16 %v844, %v843
      %v869 = vpack.c.bf16 %v846, %v845
      %v870 = vpack.c.bf16 %v848, %v847
      %v871 = vpack.c.bf16 %v850, %v849
      %v872 = vpack.c.bf16 %v852, %v851
      %v873 = vpack.c.bf16 %v854, %v853
      %v874 = vpack.c.bf16 %v856, %v855
      %v875 = vpack.c.bf16 %v858, %v857
      %v876 = vpack.c.bf16 %v860, %v859
      %v893 = vunpack.c.l.b16 %v861
      %v894 = vunpack.c.h.b16 %v861
      %v895 = vunpack.c.l.b16 %v862
      %v896 = vunpack.c.h.b16 %v862
      %v897 = vunpack.c.l.b16 %v863
      %v898 = vunpack.c.h.b16 %v863
      %v899 = vunpack.c.l.b16 %v864
      %v900 = vunpack.c.h.b16 %v864
      %v901 = vunpack.c.l.b16 %v865
      %v902 = vunpack.c.h.b16 %v865
      %v903 = vunpack.c.l.b16 %v866
      %v904 = vunpack.c.h.b16 %v866
      %v905 = vunpack.c.l.b16 %v867
      %v906 = vunpack.c.h.b16 %v867
      %v907 = vunpack.c.l.b16 %v868
      %v908 = vunpack.c.h.b16 %v868
      %v909 = vunpack.c.l.b16 %v869
      %v910 = vunpack.c.h.b16 %v869
      %v911 = vunpack.c.l.b16 %v870
      %v912 = vunpack.c.h.b16 %v870
      %v913 = vunpack.c.l.b16 %v871
      %v914 = vunpack.c.h.b16 %v871
      %v915 = vunpack.c.l.b16 %v872
      %v916 = vunpack.c.h.b16 %v872
      %v917 = vunpack.c.l.b16 %v873
      %v918 = vunpack.c.h.b16 %v873
      %v919 = vunpack.c.l.b16 %v874
      %v920 = vunpack.c.h.b16 %v874
      %v921 = vunpack.c.l.b16 %v875
      %v922 = vunpack.c.h.b16 %v875
      %v923 = vunpack.c.l.b16 %v876
      %v924 = vunpack.c.h.b16 %v876
      %v925 = vpack.c.b16 %v893, %v893
      %v926 = vpack.c.b16 %v894, %v894
      %v927 = vpack.c.b16 %v895, %v895
      %v928 = vpack.c.b16 %v896, %v896
      %v929 = vpack.c.b16 %v897, %v897
      %v930 = vpack.c.b16 %v898, %v898
      %v931 = vpack.c.b16 %v899, %v899
      %v932 = vpack.c.b16 %v900, %v900
      %v933 = vpack.c.b16 %v901, %v901
      %v934 = vpack.c.b16 %v902, %v902
      %v935 = vpack.c.b16 %v903, %v903
      %v936 = vpack.c.b16 %v904, %v904
      %v937 = vpack.c.b16 %v905, %v905
      %v938 = vpack.c.b16 %v906, %v906
      %v939 = vpack.c.b16 %v907, %v907
      %v940 = vpack.c.b16 %v908, %v908
      %v941 = vpack.c.b16 %v909, %v909
      %v942 = vpack.c.b16 %v910, %v910
      %v943 = vpack.c.b16 %v911, %v911
      %v944 = vpack.c.b16 %v912, %v912
      %v945 = vpack.c.b16 %v913, %v913
      %v946 = vpack.c.b16 %v914, %v914
      %v947 = vpack.c.b16 %v915, %v915
      %v948 = vpack.c.b16 %v916, %v916
      %v949 = vpack.c.b16 %v917, %v917
      %v950 = vpack.c.b16 %v918, %v918
      %v951 = vpack.c.b16 %v919, %v919
      %v952 = vpack.c.b16 %v920, %v920
      %v953 = vpack.c.b16 %v921, %v921
      %v954 = vpack.c.b16 %v922, %v922
      %v955 = vpack.c.b16 %v923, %v923
      %v956 = vpack.c.b16 %v924, %v924
      %989 = vst [vmem:[%s267] sm:$0xf] %v925
      %990 = vst [vmem:[%s267 + $0x4] sm:$0xf] %v926
      %991 = vst [vmem:[%s267 + $0x8] sm:$0xf] %v927
      %992 = vst [vmem:[%s267 + $0xc] sm:$0xf] %v928
      %993 = vst [vmem:[%s267 + $0x10] sm:$0xf] %v929
      %994 = vst [vmem:[%s267 + $0x14] sm:$0xf] %v930
      %995 = vst [vmem:[%s267 + $0x18] sm:$0xf] %v931
      %996 = vst [vmem:[%s267 + $0x1c] sm:$0xf] %v932
      %997 = vst [vmem:[%s267 + $0x20] sm:$0xf] %v933
      %998 = vst [vmem:[%s267 + $0x24] sm:$0xf] %v934
      %999 = vst [vmem:[%s267 + $0x28] sm:$0xf] %v935
      %1000 = vst [vmem:[%s267 + $0x2c] sm:$0xf] %v936
      %1001 = vst [vmem:[%s267 + $0x30] sm:$0xf] %v937
      %1002 = vst [vmem:[%s267 + $0x34] sm:$0xf] %v938
      %1003 = vst [vmem:[%s267 + $0x38] sm:$0xf] %v939
      %1004 = vst [vmem:[%s267 + $0x3c] sm:$0xf] %v940
      %1005 = vst [vmem:[%s267 + $0x40] sm:$0xf] %v941
      %1006 = vst [vmem:[%s267 + $0x44] sm:$0xf] %v942
      %1007 = vst [vmem:[%s267 + $0x48] sm:$0xf] %v943
      %1008 = vst [vmem:[%s267 + $0x4c] sm:$0xf] %v944
      %1009 = vst [vmem:[%s267 + $0x50] sm:$0xf] %v945
      %1010 = vst [vmem:[%s267 + $0x54] sm:$0xf] %v946
      %1011 = vst [vmem:[%s267 + $0x58] sm:$0xf] %v947
      %1012 = vst [vmem:[%s267 + $0x5c] sm:$0xf] %v948
      %1013 = vst [vmem:[%s267 + $0x60] sm:$0xf] %v949
      %1014 = vst [vmem:[%s267 + $0x64] sm:$0xf] %v950
      %1015 = vst [vmem:[%s267 + $0x68] sm:$0xf] %v951
      %1016 = vst [vmem:[%s267 + $0x6c] sm:$0xf] %v952
      %1017 = vst [vmem:[%s267 + $0x70] sm:$0xf] %v953
      %1018 = vst [vmem:[%s267 + $0x74] sm:$0xf] %v954
      %1019 = vst [vmem:[%s267 + $0x78] sm:$0xf] %v955
      %1020 = vst [vmem:[%s267 + $0x7c] sm:$0xf] %v956
      %s1021 = smul.u32 32, %s19
      %p1022 = scmp.lt.s32.totalorder %s1021, 63
      %s1023 = scalar_select %p1022, %s1021, 63
      %p1024 = scmp.lt.s32.totalorder %s20, 0
      %s1025 = scalar_select %p1024, %s20, 0
      %s1026 = sadd.s32 %s1025, %s1023
      %s1027 = smul.addr %s1026, 4
      %s1028 = scalar_lea.vmem %s4, %s1027
      // Predicated region
      $region37: #{deeplab_forward.17} parent=35 // pred_check
        %p1029 = pneg %p151
      $region38: #{deeplab_forward.17} parent=35 // pred_check_branch
        %1031 = sbr.rel (%p1029) target = $region40
      $region39: #{deeplab_forward.17} parent=35 // pred_region
        %s1032 = smul.u32 32, %s19
      $region40: #{deeplab_forward.17} parent=35 // pred_fallthru
        _
    $region36: #{deeplab_forward.17} parent=5 // pred_fallthru
      _
    %p1033 = scmp.le.s32.totalorder 2, %s10
    // Predicated region
    $region41: #{deeplab_forward.17} parent=5 // pred_check
      %p1034 = pneg %p1033
    $region42: #{deeplab_forward.17} parent=5 // pred_check_branch
      %1036 = sbr.rel (%p1034) target = $region44
    $region43: #{deeplab_forward.17} parent=5 // pred_region
      %s1037 = ssub.s32 %s10, 2
      // Predicated region
      $region45: #{deeplab_forward.17} parent=43 // pred_check
        %p1038 = pneg %p157
      $region46: #{deeplab_forward.17} parent=43 // pred_check_branch
        %1040 = sbr.rel (%p1038) target = $region48
      $region47: #{deeplab_forward.17} parent=43 // pred_region
        %s1041 = smul.u32 32, %s21
        %p1042 = scmp.lt.s32.totalorder %s1041, 63
        %s1043 = scalar_select %p1042, %s1041, 63
        %p1044 = scmp.lt.s32.totalorder %s22, 0
        %s1045 = scalar_select %p1044, %s22, 0
        %s1046 = sadd.s32 %s1045, %s1043
        %s1047 = smul.addr %s1046, 4
        %s1048 = scalar_lea.vmem %s4, %s1047
      $region48: #{deeplab_forward.17} parent=43 // pred_fallthru
        _
    $region44: #{deeplab_forward.17} parent=5 // pred_fallthru
      _
  $region6: #{deeplab_forward.17} parent=0 // loop_footer
    %s14 = sadd.s32 1, %s10
  $region7: #{deeplab_forward.17} parent=0 // loop_footer_branch
    %9 = sbr.rel target = $region3
  $region8: #{deeplab_forward.17} parent=0 // loop_exit
    _

// kernel: deeplab_forward.18
$region0: #{deeplab_forward.18}
  #allocation0 [shape = 'u32[]', space=smem, size = 0x4, offset = 0x4, fixed_abs, tag = 'smem constant byte address 0x4 - core index']
  #allocation1 [shape = 'u32[144,128]{1,0:T(1,128)}', space=vmem, size = 0x12000, scoped, tag = 'internal scratch']
  %s0 = inlined_call_operand.vmem [shape: bf16[128,256], index: 0, kind: input, shape index: {}]
  %s1 = inlined_call_operand.vmem [shape: bf16[256,128], index: 1, kind: input, shape index: {}]
  %s2 = inlined_call_operand.vmem [shape: f32[1,128], index: 2, kind: input, shape index: {}]
  %s3 = inlined_call_operand.vmem [shape: f32[1,128], index: 3, kind: input, shape index: {}]
  %s4 = inlined_call_operand.vmem [shape: bf16[128,128], index: 4, kind: output, shape index: {}]
  %s5 = sld [smem:[#allocation0]]
  $region26: #{deeplab_forward.18} parent=0
    _
  %s7 = ssub.s32 1, %s5
  %s8 = scalar_select 0, %s7, %s5
  // Predicated region
  $region2: #{deeplab_forward.18} parent=0 // pred_check
    _
  $region3: #{deeplab_forward.18} parent=0 // pred_check_branch
    %10 = sbr.rel (0) target = $region5
  $region4: #{deeplab_forward.18} parent=0 // pred_region
    _
  $region5: #{deeplab_forward.18} parent=0 // pred_fallthru
    _
  // Predicated region
  $region6: #{deeplab_forward.18} parent=0 // pred_check
    _
  $region7: #{deeplab_forward.18} parent=0 // pred_check_branch
    %12 = sbr.rel (0) target = $region9
  $region8: #{deeplab_forward.18} parent=0 // pred_region
    _
  $region9: #{deeplab_forward.18} parent=0 // pred_fallthru
    _
  // Predicated region
  $region10: #{deeplab_forward.18} parent=0 // pred_check
    _
  $region11: #{deeplab_forward.18} parent=0 // pred_check_branch
    %14 = sbr.rel (0) target = $region13
  $region12: #{deeplab_forward.18} parent=0 // pred_region
    _
  $region13: #{deeplab_forward.18} parent=0 // pred_fallthru
    _
  // Predicated region
  $region14: #{deeplab_forward.18} parent=0 // pred_check
    _
  $region15: #{deeplab_forward.18} parent=0 // pred_check_branch
    %16 = sbr.rel (0) target = $region17
  $region16: #{deeplab_forward.18} parent=0 // pred_region
    _
  $region17: #{deeplab_forward.18} parent=0 // pred_fallthru
    _
  %v18 = vld [vmem:[%s0] sm:$0xff]
  %v19 = vld [vmem:[%s0 + $0x8] sm:$0xff]
  %v20 = vld [vmem:[%s0 + $0x10] sm:$0xff]
  %v21 = vld [vmem:[%s0 + $0x18] sm:$0xff]
  %v22 = vld [vmem:[%s0 + $0x20] sm:$0xff]
  %v23 = vld [vmem:[%s0 + $0x28] sm:$0xff]
  %v24 = vld [vmem:[%s0 + $0x30] sm:$0xff]
  %v25 = vld [vmem:[%s0 + $0x38] sm:$0xff]
  %v26 = vld [vmem:[%s0 + $0x40] sm:$0xff]
  %v27 = vld [vmem:[%s0 + $0x48] sm:$0xff]
  %v28 = vld [vmem:[%s0 + $0x50] sm:$0xff]
  %v29 = vld [vmem:[%s0 + $0x58] sm:$0xff]
  %v30 = vld [vmem:[%s0 + $0x60] sm:$0xff]
  %v31 = vld [vmem:[%s0 + $0x68] sm:$0xff]
  %v32 = vld [vmem:[%s0 + $0x70] sm:$0xff]
  %v33 = vld [vmem:[%s0 + $0x78] sm:$0xff]
  %v34 = vld [vmem:[%s1] sm:$0xf]
  %v35 = vld [vmem:[%s1 + $0x4] sm:$0xf]
  %v36 = vld [vmem:[%s1 + $0x8] sm:$0xf]
  %v37 = vld [vmem:[%s1 + $0xc] sm:$0xf]
  %v38 = vld [vmem:[%s1 + $0x10] sm:$0xf]
  %v39 = vld [vmem:[%s1 + $0x14] sm:$0xf]
  %v40 = vld [vmem:[%s1 + $0x18] sm:$0xf]
  %v41 = vld [vmem:[%s1 + $0x1c] sm:$0xf]
  %v42 = vld [vmem:[%s1 + $0x20] sm:$0xf]
  %v43 = vld [vmem:[%s1 + $0x24] sm:$0xf]
  %v44 = vld [vmem:[%s1 + $0x28] sm:$0xf]
  %v45 = vld [vmem:[%s1 + $0x2c] sm:$0xf]
  %v46 = vld [vmem:[%s1 + $0x30] sm:$0xf]
  %v47 = vld [vmem:[%s1 + $0x34] sm:$0xf]
  %v48 = vld [vmem:[%s1 + $0x38] sm:$0xf]
  %v49 = vld [vmem:[%s1 + $0x3c] sm:$0xf]
  %v50 = vld [vmem:[%s1 + $0x40] sm:$0xf]
  %v51 = vld [vmem:[%s1 + $0x44] sm:$0xf]
  %v52 = vld [vmem:[%s1 + $0x48] sm:$0xf]
  %v53 = vld [vmem:[%s1 + $0x4c] sm:$0xf]
  %v54 = vld [vmem:[%s1 + $0x50] sm:$0xf]
  %v55 = vld [vmem:[%s1 + $0x54] sm:$0xf]
  %v56 = vld [vmem:[%s1 + $0x58] sm:$0xf]
  %v57 = vld [vmem:[%s1 + $0x5c] sm:$0xf]
  %v58 = vld [vmem:[%s1 + $0x60] sm:$0xf]
  %v59 = vld [vmem:[%s1 + $0x64] sm:$0xf]
  %v60 = vld [vmem:[%s1 + $0x68] sm:$0xf]
  %v61 = vld [vmem:[%s1 + $0x6c] sm:$0xf]
  %v62 = vld [vmem:[%s1 + $0x70] sm:$0xf]
  %v63 = vld [vmem:[%s1 + $0x74] sm:$0xf]
  %v64 = vld [vmem:[%s1 + $0x78] sm:$0xf]
  %v65 = vld [vmem:[%s1 + $0x7c] sm:$0xf]
  %v82 = vunpack.c.l.b16 %v18
  %v83 = vunpack.c.h.b16 %v18
  %v84 = vunpack.c.l.b16 %v19
  %v85 = vunpack.c.h.b16 %v19
  %v86 = vunpack.c.l.b16 %v20
  %v87 = vunpack.c.h.b16 %v20
  %v88 = vunpack.c.l.b16 %v21
  %v89 = vunpack.c.h.b16 %v21
  %v90 = vunpack.c.l.b16 %v22
  %v91 = vunpack.c.h.b16 %v22
  %v92 = vunpack.c.l.b16 %v23
  %v93 = vunpack.c.h.b16 %v23
  %v94 = vunpack.c.l.b16 %v24
  %v95 = vunpack.c.h.b16 %v24
  %v96 = vunpack.c.l.b16 %v25
  %v97 = vunpack.c.h.b16 %v25
  %v98 = vunpack.c.l.b16 %v26
  %v99 = vunpack.c.h.b16 %v26
  %v100 = vunpack.c.l.b16 %v27
  %v101 = vunpack.c.h.b16 %v27
  %v102 = vunpack.c.l.b16 %v28
  %v103 = vunpack.c.h.b16 %v28
  %v104 = vunpack.c.l.b16 %v29
  %v105 = vunpack.c.h.b16 %v29
  %v106 = vunpack.c.l.b16 %v30
  %v107 = vunpack.c.h.b16 %v30
  %v108 = vunpack.c.l.b16 %v31
  %v109 = vunpack.c.h.b16 %v31
  %v110 = vunpack.c.l.b16 %v32
  %v111 = vunpack.c.h.b16 %v32
  %v112 = vunpack.c.l.b16 %v33
  %v113 = vunpack.c.h.b16 %v33
  %v114 = vpack.c.b16 %v84, %v82
  %v115 = vpack.c.b16 %v85, %v83
  %v116 = vpack.c.b16 %v88, %v86
  %v117 = vpack.c.b16 %v89, %v87
  %v118 = vpack.c.b16 %v92, %v90
  %v119 = vpack.c.b16 %v93, %v91
  %v120 = vpack.c.b16 %v96, %v94
  %v121 = vpack.c.b16 %v97, %v95
  %v122 = vpack.c.b16 %v100, %v98
  %v123 = vpack.c.b16 %v101, %v99
  %v124 = vpack.c.b16 %v104, %v102
  %v125 = vpack.c.b16 %v105, %v103
  %v126 = vpack.c.b16 %v108, %v106
  %v127 = vpack.c.b16 %v109, %v107
  %v128 = vpack.c.b16 %v112, %v110
  %v129 = vpack.c.b16 %v113, %v111
  %v178 = vunpack.c.l.b16 %v34
  %v179 = vunpack.c.l.b16 %v35
  %v180 = vunpack.c.l.b16 %v36
  %v181 = vunpack.c.l.b16 %v37
  %v182 = vunpack.c.l.b16 %v38
  %v183 = vunpack.c.l.b16 %v39
  %v184 = vunpack.c.l.b16 %v40
  %v185 = vunpack.c.l.b16 %v41
  %v186 = vunpack.c.l.b16 %v42
  %v187 = vunpack.c.l.b16 %v43
  %v188 = vunpack.c.l.b16 %v44
  %v189 = vunpack.c.l.b16 %v45
  %v190 = vunpack.c.l.b16 %v46
  %v191 = vunpack.c.l.b16 %v47
  %v192 = vunpack.c.l.b16 %v48
  %v193 = vunpack.c.l.b16 %v49
  %v194 = vunpack.c.l.b16 %v50
  %v195 = vunpack.c.l.b16 %v51
  %v196 = vunpack.c.l.b16 %v52
  %v197 = vunpack.c.l.b16 %v53
  %v198 = vunpack.c.l.b16 %v54
  %v199 = vunpack.c.l.b16 %v55
  %v200 = vunpack.c.l.b16 %v56
  %v201 = vunpack.c.l.b16 %v57
  %v202 = vunpack.c.l.b16 %v58
  %v203 = vunpack.c.l.b16 %v59
  %v204 = vunpack.c.l.b16 %v60
  %v205 = vunpack.c.l.b16 %v61
  %v206 = vunpack.c.l.b16 %v62
  %v207 = vunpack.c.l.b16 %v63
  %v208 = vunpack.c.l.b16 %v64
  %v209 = vunpack.c.l.b16 %v65
  %v210 = vpack.c.b16 %v179, %v178
  %v211 = vpack.c.b16 %v181, %v180
  %v212 = vpack.c.b16 %v183, %v182
  %v213 = vpack.c.b16 %v185, %v184
  %v214 = vpack.c.b16 %v187, %v186
  %v215 = vpack.c.b16 %v189, %v188
  %v216 = vpack.c.b16 %v191, %v190
  %v217 = vpack.c.b16 %v193, %v192
  %v218 = vpack.c.b16 %v195, %v194
  %v219 = vpack.c.b16 %v197, %v196
  %v220 = vpack.c.b16 %v199, %v198
  %v221 = vpack.c.b16 %v201, %v200
  %v222 = vpack.c.b16 %v203, %v202
  %v223 = vpack.c.b16 %v205, %v204
  %v224 = vpack.c.b16 %v207, %v206
  %v225 = vpack.c.b16 %v209, %v208
  %242 = vmatprep.subr.bf16.mxu0 0
  %243 = vmatpush1.bf16.msra.mxu0 %v217
  %244 = vmatprep.subr.bf16.mxu0 0
  %245 = vmatpush1.bf16.msra.mxu0 %v216
  %246 = vmatprep.subr.bf16.mxu0 0
  %247 = vmatpush1.bf16.msra.mxu0 %v215
  %248 = vmatprep.subr.bf16.mxu0 0
  %249 = vmatpush1.bf16.msra.mxu0 %v214
  %250 = vmatprep.subr.bf16.mxu0 0
  %251 = vmatpush1.bf16.msra.mxu0 %v213
  %252 = vmatprep.subr.bf16.mxu0 0
  %253 = vmatpush1.bf16.msra.mxu0 %v212
  %254 = vmatprep.subr.bf16.mxu0 0
  %255 = vmatpush1.bf16.msra.mxu0 %v211
  %256 = vmatprep.subr.bf16.mxu0 0
  %257 = vmatpush1.bf16.msra.mxu0 %v210
  %258 = vmatprep.subr.bf16.mxu0 0
  %259 = vmatpush2.bf16.msra.mxu0 %v225
  %260 = vmatprep.subr.bf16.mxu0 0
  %261 = vmatpush2.bf16.msra.mxu0 %v224
  %262 = vmatprep.subr.bf16.mxu0 0
  %263 = vmatpush2.bf16.msra.mxu0 %v223
  %264 = vmatprep.subr.bf16.mxu0 0
  %265 = vmatpush2.bf16.msra.mxu0 %v222
  %266 = vmatprep.subr.bf16.mxu0 0
  %267 = vmatpush2.bf16.msra.mxu0 %v221
  %268 = vmatprep.subr.bf16.mxu0 0
  %269 = vmatpush2.bf16.msra.mxu0 %v220
  %270 = vmatprep.subr.bf16.mxu0 0
  %271 = vmatpush2.bf16.msra.mxu0 %v219
  %272 = vmatprep.subr.bf16.mxu0 0
  %273 = vmatpush2.bf16.msra.mxu0 %v218
  %274 = vmatprep.mubr.bf16.mxu0 %v115
  %275 = vmatmul.mubr.bf16.gmra.mxu0 %v114
  %v276 = vpop.f32.mrf.mxu0
  %v277 = vadd.f32 0.0, %v276
  %v278 = vpop.f32.mrf.mxu0
  %v279 = vpop.f32.mrf.mxu0
  %v280 = vadd.f32 0.0, %v279
  %v281 = vpop.f32.mrf.mxu0
  %282 = vmatprep.mubr.bf16.mxu0 %v117
  %283 = vmatmul.mubr.bf16.gmra.mxu0 %v116
  %v284 = vpop.f32.mrf.mxu0
  %v285 = vadd.f32 0.0, %v284
  %v286 = vpop.f32.mrf.mxu0
  %v287 = vpop.f32.mrf.mxu0
  %v288 = vadd.f32 0.0, %v287
  %v289 = vpop.f32.mrf.mxu0
  %290 = vmatprep.mubr.bf16.mxu0 %v119
  %291 = vmatmul.mubr.bf16.gmra.mxu0 %v118
  %v292 = vpop.f32.mrf.mxu0
  %v293 = vadd.f32 0.0, %v292
  %v294 = vpop.f32.mrf.mxu0
  %v295 = vpop.f32.mrf.mxu0
  %v296 = vadd.f32 0.0, %v295
  %v297 = vpop.f32.mrf.mxu0
  %298 = vmatprep.mubr.bf16.mxu0 %v121
  %299 = vmatmul.mubr.bf16.gmra.mxu0 %v120
  %v300 = vpop.f32.mrf.mxu0
  %v301 = vadd.f32 0.0, %v300
  %v302 = vpop.f32.mrf.mxu0
  %v303 = vpop.f32.mrf.mxu0
  %v304 = vadd.f32 0.0, %v303
  %v305 = vpop.f32.mrf.mxu0
  %306 = vmatprep.mubr.bf16.mxu0 %v123
  %307 = vmatmul.mubr.bf16.gmra.mxu0 %v122
  %v308 = vpop.f32.mrf.mxu0
  %v309 = vadd.f32 0.0, %v308
  %v310 = vpop.f32.mrf.mxu0
  %v311 = vpop.f32.mrf.mxu0
  %v312 = vadd.f32 0.0, %v311
  %v313 = vpop.f32.mrf.mxu0
  %314 = vmatprep.mubr.bf16.mxu0 %v125
  %315 = vmatmul.mubr.bf16.gmra.mxu0 %v124
  %v316 = vpop.f32.mrf.mxu0
  %v317 = vadd.f32 0.0, %v316
  %v318 = vpop.f32.mrf.mxu0
  %v319 = vpop.f32.mrf.mxu0
  %v320 = vadd.f32 0.0, %v319
  %v321 = vpop.f32.mrf.mxu0
  %322 = vmatprep.mubr.bf16.mxu0 %v127
  %323 = vmatmul.mubr.bf16.gmra.mxu0 %v126
  %v324 = vpop.f32.mrf.mxu0
  %v325 = vadd.f32 0.0, %v324
  %v326 = vpop.f32.mrf.mxu0
  %v327 = vpop.f32.mrf.mxu0
  %v328 = vadd.f32 0.0, %v327
  %v329 = vpop.f32.mrf.mxu0
  %330 = vmatprep.mubr.bf16.mxu0 %v129
  %331 = vmatmul.mubr.bf16.gmra.mxu0 %v128
  %v332 = vpop.f32.mrf.mxu0
  %v333 = vadd.f32 0.0, %v332
  %v334 = vpop.f32.mrf.mxu0
  %v335 = vpop.f32.mrf.mxu0
  %v336 = vadd.f32 0.0, %v335
  %v337 = vpop.f32.mrf.mxu0
  %338 = vdwg.mxu0
  %v339 = vld [vmem:[%s2] sm:$0x1]
  %v341 = vlaneseq
  %v342 = vshrl.u32 %v341, 7
  %v343 = vsub.s32 0, %v342
  %v344 = vrot.slane %v339, %v343
  %v346 = vmul.f32 %v277, %v344
  %v347 = vmul.f32 %v280, %v344
  %v348 = vmul.f32 %v285, %v344
  %v349 = vmul.f32 %v288, %v344
  %v350 = vmul.f32 %v293, %v344
  %v351 = vmul.f32 %v296, %v344
  %v352 = vmul.f32 %v301, %v344
  %v353 = vmul.f32 %v304, %v344
  %v354 = vmul.f32 %v309, %v344
  %v355 = vmul.f32 %v312, %v344
  %v356 = vmul.f32 %v317, %v344
  %v357 = vmul.f32 %v320, %v344
  %v358 = vmul.f32 %v325, %v344
  %v359 = vmul.f32 %v328, %v344
  %v360 = vmul.f32 %v333, %v344
  %v361 = vmul.f32 %v336, %v344
  %v362 = vld [vmem:[%s3] sm:$0x1]
  %v364 = vlaneseq
  %v365 = vshrl.u32 %v364, 7
  %v366 = vsub.s32 0, %v365
  %v367 = vrot.slane %v362, %v366
  %v369 = vadd.f32 %v346, %v367
  %v370 = vadd.f32 %v347, %v367
  %v371 = vadd.f32 %v348, %v367
  %v372 = vadd.f32 %v349, %v367
  %v373 = vadd.f32 %v350, %v367
  %v374 = vadd.f32 %v351, %v367
  %v375 = vadd.f32 %v352, %v367
  %v376 = vadd.f32 %v353, %v367
  %v377 = vadd.f32 %v354, %v367
  %v378 = vadd.f32 %v355, %v367
  %v379 = vadd.f32 %v356, %v367
  %v380 = vadd.f32 %v357, %v367
  %v381 = vadd.f32 %v358, %v367
  %v382 = vadd.f32 %v359, %v367
  %v383 = vadd.f32 %v360, %v367
  %v384 = vadd.f32 %v361, %v367
  %v385 = vmax.f32 %v369, 0.0
  %v386 = vmax.f32 %v370, 0.0
  %v387 = vmax.f32 %v371, 0.0
  %v388 = vmax.f32 %v372, 0.0
  %v389 = vmax.f32 %v373, 0.0
  %v390 = vmax.f32 %v374, 0.0
  %v391 = vmax.f32 %v375, 0.0
  %v392 = vmax.f32 %v376, 0.0
  %v393 = vmax.f32 %v377, 0.0
  %v394 = vmax.f32 %v378, 0.0
  %v395 = vmax.f32 %v379, 0.0
  %v396 = vmax.f32 %v380, 0.0
  %v397 = vmax.f32 %v381, 0.0
  %v398 = vmax.f32 %v382, 0.0
  %v399 = vmax.f32 %v383, 0.0
  %v400 = vmax.f32 %v384, 0.0
  %v401 = vpack.c.bf16 %v386, %v385
  %v402 = vpack.c.bf16 %v388, %v387
  %v403 = vpack.c.bf16 %v390, %v389
  %v404 = vpack.c.bf16 %v392, %v391
  %v405 = vpack.c.bf16 %v394, %v393
  %v406 = vpack.c.bf16 %v396, %v395
  %v407 = vpack.c.bf16 %v398, %v397
  %v408 = vpack.c.bf16 %v400, %v399
  %v417 = vunpack.c.l.b16 %v401
  %v418 = vunpack.c.h.b16 %v401
  %v419 = vunpack.c.l.b16 %v402
  %v420 = vunpack.c.h.b16 %v402
  %v421 = vunpack.c.l.b16 %v403
  %v422 = vunpack.c.h.b16 %v403
  %v423 = vunpack.c.l.b16 %v404
  %v424 = vunpack.c.h.b16 %v404
  %v425 = vunpack.c.l.b16 %v405
  %v426 = vunpack.c.h.b16 %v405
  %v427 = vunpack.c.l.b16 %v406
  %v428 = vunpack.c.h.b16 %v406
  %v429 = vunpack.c.l.b16 %v407
  %v430 = vunpack.c.h.b16 %v407
  %v431 = vunpack.c.l.b16 %v408
  %v432 = vunpack.c.h.b16 %v408
  %v433 = vpack.c.b16 %v417, %v417
  %v434 = vpack.c.b16 %v418, %v418
  %v435 = vpack.c.b16 %v419, %v419
  %v436 = vpack.c.b16 %v420, %v420
  %v437 = vpack.c.b16 %v421, %v421
  %v438 = vpack.c.b16 %v422, %v422
  %v439 = vpack.c.b16 %v423, %v423
  %v440 = vpack.c.b16 %v424, %v424
  %v441 = vpack.c.b16 %v425, %v425
  %v442 = vpack.c.b16 %v426, %v426
  %v443 = vpack.c.b16 %v427, %v427
  %v444 = vpack.c.b16 %v428, %v428
  %v445 = vpack.c.b16 %v429, %v429
  %v446 = vpack.c.b16 %v430, %v430
  %v447 = vpack.c.b16 %v431, %v431
  %v448 = vpack.c.b16 %v432, %v432
  %465 = vst [vmem:[%s4] sm:$0xf] %v433
  %466 = vst [vmem:[%s4 + $0x4] sm:$0xf] %v434
  %467 = vst [vmem:[%s4 + $0x8] sm:$0xf] %v435
  %468 = vst [vmem:[%s4 + $0xc] sm:$0xf] %v436
  %469 = vst [vmem:[%s4 + $0x10] sm:$0xf] %v437
  %470 = vst [vmem:[%s4 + $0x14] sm:$0xf] %v438
  %471 = vst [vmem:[%s4 + $0x18] sm:$0xf] %v439
  %472 = vst [vmem:[%s4 + $0x1c] sm:$0xf] %v440
  %473 = vst [vmem:[%s4 + $0x20] sm:$0xf] %v441
  %474 = vst [vmem:[%s4 + $0x24] sm:$0xf] %v442
  %475 = vst [vmem:[%s4 + $0x28] sm:$0xf] %v443
  %476 = vst [vmem:[%s4 + $0x2c] sm:$0xf] %v444
  %477 = vst [vmem:[%s4 + $0x30] sm:$0xf] %v445
  %478 = vst [vmem:[%s4 + $0x34] sm:$0xf] %v446
  %479 = vst [vmem:[%s4 + $0x38] sm:$0xf] %v447
  %480 = vst [vmem:[%s4 + $0x3c] sm:$0xf] %v448
  // Predicated region
  $region18: #{deeplab_forward.18} parent=0 // pred_check
    _
  $region19: #{deeplab_forward.18} parent=0 // pred_check_branch
    %482 = sbr.rel (0) target = $region21
  $region20: #{deeplab_forward.18} parent=0 // pred_region
    _
  $region21: #{deeplab_forward.18} parent=0 // pred_fallthru
    _
  // Predicated region
  $region22: #{deeplab_forward.18} parent=0 // pred_check
    _
  $region23: #{deeplab_forward.18} parent=0 // pred_check_branch
    %484 = sbr.rel (0) target = $region25
  $region24: #{deeplab_forward.18} parent=0 // pred_region
    _
  $region25: #{deeplab_forward.18} parent=0 // pred_fallthru
    _

// kernel: deeplab_forward.19
$region0: #{deeplab_forward.19}
  #allocation0 [shape = 'u32[]', space=smem, size = 0x4, offset = 0x4, fixed_abs, tag = 'smem constant byte address 0x4 - core index']
  #allocation1 [shape = 'u32[144,128]{1,0:T(1,128)}', space=vmem, size = 0x12000, scoped, tag = 'internal scratch']
  %s0 = inlined_call_operand.vmem [shape: bf16[32,384], index: 0, kind: input, shape index: {}]
  %s1 = inlined_call_operand.vmem [shape: bf16[384,128], index: 1, kind: input, shape index: {}]
  %s2 = inlined_call_operand.vmem [shape: f32[1,128], index: 2, kind: input, shape index: {}]
  %s3 = inlined_call_operand.vmem [shape: f32[1,128], index: 3, kind: input, shape index: {}]
  %s4 = inlined_call_operand.vmem [shape: bf16[32,128], index: 4, kind: output, shape index: {}]
  %s5 = sld [smem:[#allocation0]]
  $region26: #{deeplab_forward.19} parent=0
    _
  %s7 = ssub.s32 1, %s5
  %s8 = scalar_select 0, %s7, %s5
  // Predicated region
  $region2: #{deeplab_forward.19} parent=0 // pred_check
    _
  $region3: #{deeplab_forward.19} parent=0 // pred_check_branch
    %10 = sbr.rel (0) target = $region5
  $region4: #{deeplab_forward.19} parent=0 // pred_region
    _
  $region5: #{deeplab_forward.19} parent=0 // pred_fallthru
    _
  // Predicated region
  $region6: #{deeplab_forward.19} parent=0 // pred_check
    _
  $region7: #{deeplab_forward.19} parent=0 // pred_check_branch
    %12 = sbr.rel (0) target = $region9
  $region8: #{deeplab_forward.19} parent=0 // pred_region
    _
  $region9: #{deeplab_forward.19} parent=0 // pred_fallthru
    _
  // Predicated region
  $region10: #{deeplab_forward.19} parent=0 // pred_check
    _
  $region11: #{deeplab_forward.19} parent=0 // pred_check_branch
    %14 = sbr.rel (0) target = $region13
  $region12: #{deeplab_forward.19} parent=0 // pred_region
    _
  $region13: #{deeplab_forward.19} parent=0 // pred_fallthru
    _
  // Predicated region
  $region14: #{deeplab_forward.19} parent=0 // pred_check
    _
  $region15: #{deeplab_forward.19} parent=0 // pred_check_branch
    %16 = sbr.rel (0) target = $region17
  $region16: #{deeplab_forward.19} parent=0 // pred_region
    _
  $region17: #{deeplab_forward.19} parent=0 // pred_fallthru
    _
  %v18 = vld [vmem:[%s0] sm:$0xff]
  %v19 = vld [vmem:[%s0 + $0x8] sm:$0xf]
  %v20 = vld [vmem:[%s0 + $0xc] sm:$0xff]
  %v21 = vld [vmem:[%s0 + $0x14] sm:$0xf]
  %v22 = vld [vmem:[%s0 + $0x18] sm:$0xff]
  %v23 = vld [vmem:[%s0 + $0x20] sm:$0xf]
  %v24 = vld [vmem:[%s0 + $0x24] sm:$0xff]
  %v25 = vld [vmem:[%s0 + $0x2c] sm:$0xf]
  %v26 = vld [vmem:[%s1] sm:$0xf]
  %v27 = vld [vmem:[%s1 + $0x4] sm:$0xf]
  %v28 = vld [vmem:[%s1 + $0x8] sm:$0xf]
  %v29 = vld [vmem:[%s1 + $0xc] sm:$0xf]
  %v30 = vld [vmem:[%s1 + $0x10] sm:$0xf]
  %v31 = vld [vmem:[%s1 + $0x14] sm:$0xf]
  %v32 = vld [vmem:[%s1 + $0x18] sm:$0xf]
  %v33 = vld [vmem:[%s1 + $0x1c] sm:$0xf]
  %v34 = vld [vmem:[%s1 + $0x20] sm:$0xf]
  %v35 = vld [vmem:[%s1 + $0x24] sm:$0xf]
  %v36 = vld [vmem:[%s1 + $0x28] sm:$0xf]
  %v37 = vld [vmem:[%s1 + $0x2c] sm:$0xf]
  %v38 = vld [vmem:[%s1 + $0x30] sm:$0xf]
  %v39 = vld [vmem:[%s1 + $0x34] sm:$0xf]
  %v40 = vld [vmem:[%s1 + $0x38] sm:$0xf]
  %v41 = vld [vmem:[%s1 + $0x3c] sm:$0xf]
  %v42 = vld [vmem:[%s1 + $0x40] sm:$0xf]
  %v43 = vld [vmem:[%s1 + $0x44] sm:$0xf]
  %v44 = vld [vmem:[%s1 + $0x48] sm:$0xf]
  %v45 = vld [vmem:[%s1 + $0x4c] sm:$0xf]
  %v46 = vld [vmem:[%s1 + $0x50] sm:$0xf]
  %v47 = vld [vmem:[%s1 + $0x54] sm:$0xf]
  %v48 = vld [vmem:[%s1 + $0x58] sm:$0xf]
  %v49 = vld [vmem:[%s1 + $0x5c] sm:$0xf]
  %v50 = vld [vmem:[%s1 + $0x60] sm:$0xf]
  %v51 = vld [vmem:[%s1 + $0x64] sm:$0xf]
  %v52 = vld [vmem:[%s1 + $0x68] sm:$0xf]
  %v53 = vld [vmem:[%s1 + $0x6c] sm:$0xf]
  %v54 = vld [vmem:[%s1 + $0x70] sm:$0xf]
  %v55 = vld [vmem:[%s1 + $0x74] sm:$0xf]
  %v56 = vld [vmem:[%s1 + $0x78] sm:$0xf]
  %v57 = vld [vmem:[%s1 + $0x7c] sm:$0xf]
  %v58 = vld [vmem:[%s1 + $0x80] sm:$0xf]
  %v59 = vld [vmem:[%s1 + $0x84] sm:$0xf]
  %v60 = vld [vmem:[%s1 + $0x88] sm:$0xf]
  %v61 = vld [vmem:[%s1 + $0x8c] sm:$0xf]
  %v62 = vld [vmem:[%s1 + $0x90] sm:$0xf]
  %v63 = vld [vmem:[%s1 + $0x94] sm:$0xf]
  %v64 = vld [vmem:[%s1 + $0x98] sm:$0xf]
  %v65 = vld [vmem:[%s1 + $0x9c] sm:$0xf]
  %v66 = vld [vmem:[%s1 + $0xa0] sm:$0xf]
  %v67 = vld [vmem:[%s1 + $0xa4] sm:$0xf]
  %v68 = vld [vmem:[%s1 + $0xa8] sm:$0xf]
  %v69 = vld [vmem:[%s1 + $0xac] sm:$0xf]
  %v70 = vld [vmem:[%s1 + $0xb0] sm:$0xf]
  %v71 = vld [vmem:[%s1 + $0xb4] sm:$0xf]
  %v72 = vld [vmem:[%s1 + $0xb8] sm:$0xf]
  %v73 = vld [vmem:[%s1 + $0xbc] sm:$0xf]
  %v82 = vunpack.c.l.b16 %v18
  %v83 = vunpack.c.h.b16 %v18
  %v84 = vunpack.c.l.b16 %v19
  %v85 = vunpack.c.l.b16 %v20
  %v86 = vunpack.c.h.b16 %v20
  %v87 = vunpack.c.l.b16 %v21
  %v88 = vunpack.c.l.b16 %v22
  %v89 = vunpack.c.h.b16 %v22
  %v90 = vunpack.c.l.b16 %v23
  %v91 = vunpack.c.l.b16 %v24
  %v92 = vunpack.c.h.b16 %v24
  %v93 = vunpack.c.l.b16 %v25
  %v94 = vpack.c.b16 %v85, %v82
  %v95 = vpack.c.b16 %v86, %v83
  %v96 = vpack.c.b16 %v87, %v84
  %v97 = vpack.c.b16 %v91, %v88
  %v98 = vpack.c.b16 %v92, %v89
  %v99 = vpack.c.b16 %v93, %v90
  %v154 = vunpack.c.l.b16 %v26
  %v155 = vunpack.c.l.b16 %v27
  %v156 = vunpack.c.l.b16 %v28
  %v157 = vunpack.c.l.b16 %v29
  %v158 = vunpack.c.l.b16 %v30
  %v159 = vunpack.c.l.b16 %v31
  %v160 = vunpack.c.l.b16 %v32
  %v161 = vunpack.c.l.b16 %v33
  %v162 = vunpack.c.l.b16 %v34
  %v163 = vunpack.c.l.b16 %v35
  %v164 = vunpack.c.l.b16 %v36
  %v165 = vunpack.c.l.b16 %v37
  %v166 = vunpack.c.l.b16 %v38
  %v167 = vunpack.c.l.b16 %v39
  %v168 = vunpack.c.l.b16 %v40
  %v169 = vunpack.c.l.b16 %v41
  %v170 = vunpack.c.l.b16 %v42
  %v171 = vunpack.c.l.b16 %v43
  %v172 = vunpack.c.l.b16 %v44
  %v173 = vunpack.c.l.b16 %v45
  %v174 = vunpack.c.l.b16 %v46
  %v175 = vunpack.c.l.b16 %v47
  %v176 = vunpack.c.l.b16 %v48
  %v177 = vunpack.c.l.b16 %v49
  %v178 = vunpack.c.l.b16 %v50
  %v179 = vunpack.c.l.b16 %v51
  %v180 = vunpack.c.l.b16 %v52
  %v181 = vunpack.c.l.b16 %v53
  %v182 = vunpack.c.l.b16 %v54
  %v183 = vunpack.c.l.b16 %v55
  %v184 = vunpack.c.l.b16 %v56
  %v185 = vunpack.c.l.b16 %v57
  %v186 = vunpack.c.l.b16 %v58
  %v187 = vunpack.c.l.b16 %v59
  %v188 = vunpack.c.l.b16 %v60
  %v189 = vunpack.c.l.b16 %v61
  %v190 = vunpack.c.l.b16 %v62
  %v191 = vunpack.c.l.b16 %v63
  %v192 = vunpack.c.l.b16 %v64
  %v193 = vunpack.c.l.b16 %v65
  %v194 = vunpack.c.l.b16 %v66
  %v195 = vunpack.c.l.b16 %v67
  %v196 = vunpack.c.l.b16 %v68
  %v197 = vunpack.c.l.b16 %v69
  %v198 = vunpack.c.l.b16 %v70
  %v199 = vunpack.c.l.b16 %v71
  %v200 = vunpack.c.l.b16 %v72
  %v201 = vunpack.c.l.b16 %v73
  %v202 = vpack.c.b16 %v155, %v154
  %v203 = vpack.c.b16 %v157, %v156
  %v204 = vpack.c.b16 %v159, %v158
  %v205 = vpack.c.b16 %v161, %v160
  %v206 = vpack.c.b16 %v163, %v162
  %v207 = vpack.c.b16 %v165, %v164
  %v208 = vpack.c.b16 %v167, %v166
  %v209 = vpack.c.b16 %v169, %v168
  %v210 = vpack.c.b16 %v171, %v170
  %v211 = vpack.c.b16 %v173, %v172
  %v212 = vpack.c.b16 %v175, %v174
  %v213 = vpack.c.b16 %v177, %v176
  %v214 = vpack.c.b16 %v179, %v178
  %v215 = vpack.c.b16 %v181, %v180
  %v216 = vpack.c.b16 %v183, %v182
  %v217 = vpack.c.b16 %v185, %v184
  %v218 = vpack.c.b16 %v187, %v186
  %v219 = vpack.c.b16 %v189, %v188
  %v220 = vpack.c.b16 %v191, %v190
  %v221 = vpack.c.b16 %v193, %v192
  %v222 = vpack.c.b16 %v195, %v194
  %v223 = vpack.c.b16 %v197, %v196
  %v224 = vpack.c.b16 %v199, %v198
  %v225 = vpack.c.b16 %v201, %v200
  %250 = vmatprep.subr.bf16.mxu0 0
  %251 = vmatpush1.bf16.msra.mxu0 %v209
  %252 = vmatprep.subr.bf16.mxu0 0
  %253 = vmatpush1.bf16.msra.mxu0 %v208
  %254 = vmatprep.subr.bf16.mxu0 0
  %255 = vmatpush1.bf16.msra.mxu0 %v207
  %256 = vmatprep.subr.bf16.mxu0 0
  %257 = vmatpush1.bf16.msra.mxu0 %v206
  %258 = vmatprep.subr.bf16.mxu0 0
  %259 = vmatpush1.bf16.msra.mxu0 %v205
  %260 = vmatprep.subr.bf16.mxu0 0
  %261 = vmatpush1.bf16.msra.mxu0 %v204
  %262 = vmatprep.subr.bf16.mxu0 0
  %263 = vmatpush1.bf16.msra.mxu0 %v203
  %264 = vmatprep.subr.bf16.mxu0 0
  %265 = vmatpush1.bf16.msra.mxu0 %v202
  %266 = vmatprep.subr.bf16.mxu0 0
  %267 = vmatpush2.bf16.msra.mxu0 %v217
  %268 = vmatprep.subr.bf16.mxu0 0
  %269 = vmatpush2.bf16.msra.mxu0 %v216
  %270 = vmatprep.subr.bf16.mxu0 0
  %271 = vmatpush2.bf16.msra.mxu0 %v215
  %272 = vmatprep.subr.bf16.mxu0 0
  %273 = vmatpush2.bf16.msra.mxu0 %v214
  %274 = vmatprep.subr.bf16.mxu0 0
  %275 = vmatpush2.bf16.msra.mxu0 %v213
  %276 = vmatprep.subr.bf16.mxu0 0
  %277 = vmatpush2.bf16.msra.mxu0 %v212
  %278 = vmatprep.subr.bf16.mxu0 0
  %279 = vmatpush2.bf16.msra.mxu0 %v211
  %280 = vmatprep.subr.bf16.mxu0 0
  %281 = vmatpush2.bf16.msra.mxu0 %v210
  %282 = vmatprep.mubr.bf16.mxu0 %v95
  %283 = vmatmul.mubr.bf16.gmra.mxu0 %v94
  %v284 = vpop.f32.mrf.mxu0
  %v285 = vadd.f32 0.0, %v284
  %v286 = vpop.f32.mrf.mxu0
  %v287 = vpop.f32.mrf.mxu0
  %v288 = vadd.f32 0.0, %v287
  %v289 = vpop.f32.mrf.mxu0
  %290 = vmatprep.mubr.bf16.mxu0 %v98
  %291 = vmatmul.mubr.bf16.gmra.mxu0 %v97
  %v292 = vpop.f32.mrf.mxu0
  %v293 = vadd.f32 0.0, %v292
  %v294 = vpop.f32.mrf.mxu0
  %v295 = vpop.f32.mrf.mxu0
  %v296 = vadd.f32 0.0, %v295
  %v297 = vpop.f32.mrf.mxu0
  %298 = vdwg.mxu0
  %299 = vmatprep.subr.bf16.mxu0 0
  %300 = vmatpush1.bf16.msra.mxu0 %v225
  %301 = vmatprep.subr.bf16.mxu0 0
  %302 = vmatpush1.bf16.msra.mxu0 %v224
  %303 = vmatprep.subr.bf16.mxu0 0
  %304 = vmatpush1.bf16.msra.mxu0 %v223
  %305 = vmatprep.subr.bf16.mxu0 0
  %306 = vmatpush1.bf16.msra.mxu0 %v222
  %307 = vmatprep.subr.bf16.mxu0 0
  %308 = vmatpush1.bf16.msra.mxu0 %v221
  %309 = vmatprep.subr.bf16.mxu0 0
  %310 = vmatpush1.bf16.msra.mxu0 %v220
  %311 = vmatprep.subr.bf16.mxu0 0
  %312 = vmatpush1.bf16.msra.mxu0 %v219
  %313 = vmatprep.subr.bf16.mxu0 0
  %314 = vmatpush1.bf16.msra.mxu0 %v218
  %315 = vmatprep.subr.bf16.mxu0 0
  %316 = vmatpush2.bf16.msra.mxu0 0
  %317 = vmatprep.subr.bf16.mxu0 0
  %318 = vmatpush2.bf16.msra.mxu0 0
  %319 = vmatprep.subr.bf16.mxu0 0
  %320 = vmatpush2.bf16.msra.mxu0 0
  %321 = vmatprep.subr.bf16.mxu0 0
  %322 = vmatpush2.bf16.msra.mxu0 0
  %323 = vmatprep.subr.bf16.mxu0 0
  %324 = vmatpush2.bf16.msra.mxu0 0
  %325 = vmatprep.subr.bf16.mxu0 0
  %326 = vmatpush2.bf16.msra.mxu0 0
  %327 = vmatprep.subr.bf16.mxu0 0
  %328 = vmatpush2.bf16.msra.mxu0 0
  %329 = vmatprep.subr.bf16.mxu0 0
  %330 = vmatpush2.bf16.msra.mxu0 0
  %331 = vmatprep.mubr.bf16.mxu0 0
  %332 = vmatmul.mubr.bf16.gmra.mxu0 %v96
  %v333 = vpop.f32.mrf.mxu0
  %v334 = vadd.f32 %v285, %v333
  %v335 = vpop.f32.mrf.mxu0
  %v336 = vpop.f32.mrf.mxu0
  %v337 = vadd.f32 %v288, %v336
  %v338 = vpop.f32.mrf.mxu0
  %339 = vmatprep.mubr.bf16.mxu0 0
  %340 = vmatmul.mubr.bf16.gmra.mxu0 %v99
  %v341 = vpop.f32.mrf.mxu0
  %v342 = vadd.f32 %v293, %v341
  %v343 = vpop.f32.mrf.mxu0
  %v344 = vpop.f32.mrf.mxu0
  %v345 = vadd.f32 %v296, %v344
  %v346 = vpop.f32.mrf.mxu0
  %347 = vdwg.mxu0
  %v348 = vld [vmem:[%s2] sm:$0x1]
  %v350 = vlaneseq
  %v351 = vshrl.u32 %v350, 7
  %v352 = vsub.s32 0, %v351
  %v353 = vrot.slane %v348, %v352
  %v355 = vmul.f32 %v334, %v353
  %v356 = vmul.f32 %v337, %v353
  %v357 = vmul.f32 %v342, %v353
  %v358 = vmul.f32 %v345, %v353
  %v359 = vld [vmem:[%s3] sm:$0x1]
  %v361 = vlaneseq
  %v362 = vshrl.u32 %v361, 7
  %v363 = vsub.s32 0, %v362
  %v364 = vrot.slane %v359, %v363
  %v366 = vadd.f32 %v355, %v364
  %v367 = vadd.f32 %v356, %v364
  %v368 = vadd.f32 %v357, %v364
  %v369 = vadd.f32 %v358, %v364
  %v370 = vmax.f32 %v366, 0.0
  %v371 = vmax.f32 %v367, 0.0
  %v372 = vmax.f32 %v368, 0.0
  %v373 = vmax.f32 %v369, 0.0
  %v374 = vpack.c.bf16 %v371, %v370
  %v375 = vpack.c.bf16 %v373, %v372
  %v378 = vunpack.c.l.b16 %v374
  %v379 = vunpack.c.h.b16 %v374
  %v380 = vunpack.c.l.b16 %v375
  %v381 = vunpack.c.h.b16 %v375
  %v382 = vpack.c.b16 %v378, %v378
  %v383 = vpack.c.b16 %v379, %v379
  %v384 = vpack.c.b16 %v380, %v380
  %v385 = vpack.c.b16 %v381, %v381
  %390 = vst [vmem:[%s4] sm:$0xf] %v382
  %391 = vst [vmem:[%s4 + $0x4] sm:$0xf] %v383
  %392 = vst [vmem:[%s4 + $0x8] sm:$0xf] %v384
  %393 = vst [vmem:[%s4 + $0xc] sm:$0xf] %v385
  // Predicated region
  $region18: #{deeplab_forward.19} parent=0 // pred_check
    _
  $region19: #{deeplab_forward.19} parent=0 // pred_check_branch
    %395 = sbr.rel (0) target = $region21
  $region20: #{deeplab_forward.19} parent=0 // pred_region
    _
  $region21: #{deeplab_forward.19} parent=0 // pred_fallthru
    _
  // Predicated region
  $region22: #{deeplab_forward.19} parent=0 // pred_check
    _
  $region23: #{deeplab_forward.19} parent=0 // pred_check_branch
    %397 = sbr.rel (0) target = $region25
  $region24: #{deeplab_forward.19} parent=0 // pred_region
    _
  $region25: #{deeplab_forward.19} parent=0 // pred_fallthru
    _

// kernel: deeplab_forward.21
$region0: #{deeplab_forward.21}
  #allocation0 [shape = 'u32[]', space=smem, size = 0x4, offset = 0x4, fixed_abs, tag = 'smem constant byte address 0x4 - core index']
  #allocation1 [shape = 'u32[144,128]{1,0:T(1,128)}', space=vmem, size = 0x12000, scoped, tag = 'internal scratch']
  %s0 = inlined_call_operand.vmem [shape: bf16[8,128], index: 0, kind: input, shape index: {}]
  %s1 = inlined_call_operand.vmem [shape: bf16[128,128], index: 1, kind: input, shape index: {}]
  %s2 = inlined_call_operand.vmem [shape: f32[1,128], index: 2, kind: input, shape index: {}]
  %s3 = inlined_call_operand.vmem [shape: f32[1,128], index: 3, kind: input, shape index: {}]
  %s4 = inlined_call_operand.vmem [shape: bf16[8,128], index: 4, kind: output, shape index: {}]
  %s5 = sld [smem:[#allocation0]]
  $region26: #{deeplab_forward.21} parent=0
    _
  %s7 = ssub.s32 1, %s5
  %s8 = scalar_select 0, %s7, %s5
  // Predicated region
  $region2: #{deeplab_forward.21} parent=0 // pred_check
    _
  $region3: #{deeplab_forward.21} parent=0 // pred_check_branch
    %10 = sbr.rel (0) target = $region5
  $region4: #{deeplab_forward.21} parent=0 // pred_region
    _
  $region5: #{deeplab_forward.21} parent=0 // pred_fallthru
    _
  // Predicated region
  $region6: #{deeplab_forward.21} parent=0 // pred_check
    _
  $region7: #{deeplab_forward.21} parent=0 // pred_check_branch
    %12 = sbr.rel (0) target = $region9
  $region8: #{deeplab_forward.21} parent=0 // pred_region
    _
  $region9: #{deeplab_forward.21} parent=0 // pred_fallthru
    _
  // Predicated region
  $region10: #{deeplab_forward.21} parent=0 // pred_check
    _
  $region11: #{deeplab_forward.21} parent=0 // pred_check_branch
    %14 = sbr.rel (0) target = $region13
  $region12: #{deeplab_forward.21} parent=0 // pred_region
    _
  $region13: #{deeplab_forward.21} parent=0 // pred_fallthru
    _
  // Predicated region
  $region14: #{deeplab_forward.21} parent=0 // pred_check
    _
  $region15: #{deeplab_forward.21} parent=0 // pred_check_branch
    %16 = sbr.rel (0) target = $region17
  $region16: #{deeplab_forward.21} parent=0 // pred_region
    _
  $region17: #{deeplab_forward.21} parent=0 // pred_fallthru
    _
  %v18 = vld [vmem:[%s0] sm:$0xf]
  %v19 = vld [vmem:[%s1] sm:$0xf]
  %v20 = vld [vmem:[%s1 + $0x4] sm:$0xf]
  %v21 = vld [vmem:[%s1 + $0x8] sm:$0xf]
  %v22 = vld [vmem:[%s1 + $0xc] sm:$0xf]
  %v23 = vld [vmem:[%s1 + $0x10] sm:$0xf]
  %v24 = vld [vmem:[%s1 + $0x14] sm:$0xf]
  %v25 = vld [vmem:[%s1 + $0x18] sm:$0xf]
  %v26 = vld [vmem:[%s1 + $0x1c] sm:$0xf]
  %v27 = vld [vmem:[%s1 + $0x20] sm:$0xf]
  %v28 = vld [vmem:[%s1 + $0x24] sm:$0xf]
  %v29 = vld [vmem:[%s1 + $0x28] sm:$0xf]
  %v30 = vld [vmem:[%s1 + $0x2c] sm:$0xf]
  %v31 = vld [vmem:[%s1 + $0x30] sm:$0xf]
  %v32 = vld [vmem:[%s1 + $0x34] sm:$0xf]
  %v33 = vld [vmem:[%s1 + $0x38] sm:$0xf]
  %v34 = vld [vmem:[%s1 + $0x3c] sm:$0xf]
  %v51 = vunpack.c.l.b16 %v19
  %v52 = vunpack.c.l.b16 %v20
  %v53 = vunpack.c.l.b16 %v21
  %v54 = vunpack.c.l.b16 %v22
  %v55 = vunpack.c.l.b16 %v23
  %v56 = vunpack.c.l.b16 %v24
  %v57 = vunpack.c.l.b16 %v25
  %v58 = vunpack.c.l.b16 %v26
  %v59 = vunpack.c.l.b16 %v27
  %v60 = vunpack.c.l.b16 %v28
  %v61 = vunpack.c.l.b16 %v29
  %v62 = vunpack.c.l.b16 %v30
  %v63 = vunpack.c.l.b16 %v31
  %v64 = vunpack.c.l.b16 %v32
  %v65 = vunpack.c.l.b16 %v33
  %v66 = vunpack.c.l.b16 %v34
  %v67 = vpack.c.b16 %v52, %v51
  %v68 = vpack.c.b16 %v54, %v53
  %v69 = vpack.c.b16 %v56, %v55
  %v70 = vpack.c.b16 %v58, %v57
  %v71 = vpack.c.b16 %v60, %v59
  %v72 = vpack.c.b16 %v62, %v61
  %v73 = vpack.c.b16 %v64, %v63
  %v74 = vpack.c.b16 %v66, %v65
  %83 = vmatprep.subr.bf16.mxu0 0
  %84 = vmatpush1.bf16.msra.mxu0 %v74
  %85 = vmatprep.subr.bf16.mxu0 0
  %86 = vmatpush1.bf16.msra.mxu0 %v73
  %87 = vmatprep.subr.bf16.mxu0 0
  %88 = vmatpush1.bf16.msra.mxu0 %v72
  %89 = vmatprep.subr.bf16.mxu0 0
  %90 = vmatpush1.bf16.msra.mxu0 %v71
  %91 = vmatprep.subr.bf16.mxu0 0
  %92 = vmatpush1.bf16.msra.mxu0 %v70
  %93 = vmatprep.subr.bf16.mxu0 0
  %94 = vmatpush1.bf16.msra.mxu0 %v69
  %95 = vmatprep.subr.bf16.mxu0 0
  %96 = vmatpush1.bf16.msra.mxu0 %v68
  %97 = vmatprep.subr.bf16.mxu0 0
  %98 = vmatpush1.bf16.msra.mxu0 %v67
  %99 = vmatprep.subr.bf16.mxu0 0
  %100 = vmatpush2.bf16.msra.mxu0 0
  %101 = vmatprep.subr.bf16.mxu0 0
  %102 = vmatpush2.bf16.msra.mxu0 0
  %103 = vmatprep.subr.bf16.mxu0 0
  %104 = vmatpush2.bf16.msra.mxu0 0
  %105 = vmatprep.subr.bf16.mxu0 0
  %106 = vmatpush2.bf16.msra.mxu0 0
  %107 = vmatprep.subr.bf16.mxu0 0
  %108 = vmatpush2.bf16.msra.mxu0 0
  %109 = vmatprep.subr.bf16.mxu0 0
  %110 = vmatpush2.bf16.msra.mxu0 0
  %111 = vmatprep.subr.bf16.mxu0 0
  %112 = vmatpush2.bf16.msra.mxu0 0
  %113 = vmatprep.subr.bf16.mxu0 0
  %114 = vmatpush2.bf16.msra.mxu0 0
  %115 = vmatprep.mubr.bf16.mxu0 0
  %116 = vmatmul.mubr.bf16.gmra.mxu0 %v18
  %v117 = vpop.f32.mrf.mxu0
  %v118 = vadd.f32 0.0, %v117
  %v119 = vpop.f32.mrf.mxu0
  %v120 = vpop.f32.mrf.mxu0
  %v121 = vpop.f32.mrf.mxu0
  %122 = vdwg.mxu0
  %v123 = vld [vmem:[%s2] sm:$0x1]
  %v125 = vlaneseq
  %v126 = vshrl.u32 %v125, 7
  %v127 = vsub.s32 0, %v126
  %v128 = vrot.slane %v123, %v127
  %v130 = vmul.f32 %v118, %v128
  %v131 = vld [vmem:[%s3] sm:$0x1]
  %v133 = vlaneseq
  %v134 = vshrl.u32 %v133, 7
  %v135 = vsub.s32 0, %v134
  %v136 = vrot.slane %v131, %v135
  %v138 = vadd.f32 %v130, %v136
  %v139 = vmax.f32 %v138, 0.0
  %v140 = vpack.c.bf16 %v139, %v139
  %141 = vst [vmem:[%s4] sm:$0xf] %v140
  // Predicated region
  $region18: #{deeplab_forward.21} parent=0 // pred_check
    _
  $region19: #{deeplab_forward.21} parent=0 // pred_check_branch
    %143 = sbr.rel (0) target = $region21
  $region20: #{deeplab_forward.21} parent=0 // pred_region
    _
  $region21: #{deeplab_forward.21} parent=0 // pred_fallthru
    _
  // Predicated region
  $region22: #{deeplab_forward.21} parent=0 // pred_check
    _
  $region23: #{deeplab_forward.21} parent=0 // pred_check_branch
    %145 = sbr.rel (0) target = $region25
  $region24: #{deeplab_forward.21} parent=0 // pred_region
    _
  $region25: #{deeplab_forward.21} parent=0 // pred_fallthru
    _

// kernel: deeplab_forward.22
$region0: #{deeplab_forward.22}
  #allocation0 [shape = 'u32[]', space=smem, size = 0x4, offset = 0x4, fixed_abs, tag = 'smem constant byte address 0x4 - core index']
  #allocation1 [shape = 'u32[144,128]{1,0:T(1,128)}', space=vmem, size = 0x12000, scoped, tag = 'internal scratch']
  %s0 = inlined_call_operand.vmem [shape: bf16[8,1152], index: 0, kind: input, shape index: {}]
  %s1 = inlined_call_operand.vmem [shape: bf16[1152,128], index: 1, kind: input, shape index: {}]
  %s2 = inlined_call_operand.vmem [shape: f32[1,128], index: 2, kind: input, shape index: {}]
  %s3 = inlined_call_operand.vmem [shape: f32[1,128], index: 3, kind: input, shape index: {}]
  %s4 = inlined_call_operand.vmem [shape: bf16[8,128], index: 4, kind: output, shape index: {}]
  %s5 = sld [smem:[#allocation0]]
  $region26: #{deeplab_forward.22} parent=0
    _
  %s7 = ssub.s32 1, %s5
  %s8 = scalar_select 0, %s7, %s5
  // Predicated region
  $region2: #{deeplab_forward.22} parent=0 // pred_check
    _
  $region3: #{deeplab_forward.22} parent=0 // pred_check_branch
    %10 = sbr.rel (0) target = $region5
  $region4: #{deeplab_forward.22} parent=0 // pred_region
    _
  $region5: #{deeplab_forward.22} parent=0 // pred_fallthru
    _
  // Predicated region
  $region6: #{deeplab_forward.22} parent=0 // pred_check
    _
  $region7: #{deeplab_forward.22} parent=0 // pred_check_branch
    %12 = sbr.rel (0) target = $region9
  $region8: #{deeplab_forward.22} parent=0 // pred_region
    _
  $region9: #{deeplab_forward.22} parent=0 // pred_fallthru
    _
  // Predicated region
  $region10: #{deeplab_forward.22} parent=0 // pred_check
    _
  $region11: #{deeplab_forward.22} parent=0 // pred_check_branch
    %14 = sbr.rel (0) target = $region13
  $region12: #{deeplab_forward.22} parent=0 // pred_region
    _
  $region13: #{deeplab_forward.22} parent=0 // pred_fallthru
    _
  // Predicated region
  $region14: #{deeplab_forward.22} parent=0 // pred_check
    _
  $region15: #{deeplab_forward.22} parent=0 // pred_check_branch
    %16 = sbr.rel (0) target = $region17
  $region16: #{deeplab_forward.22} parent=0 // pred_region
    _
  $region17: #{deeplab_forward.22} parent=0 // pred_fallthru
    _
  %v18 = vld [vmem:[%s0] sm:$0xff]
  %v19 = vld [vmem:[%s0 + $0x8] sm:$0xff]
  %v20 = vld [vmem:[%s0 + $0x10] sm:$0xff]
  %v21 = vld [vmem:[%s0 + $0x18] sm:$0xff]
  %v22 = vld [vmem:[%s0 + $0x20] sm:$0xf]
  %v23 = vld [vmem:[%s1] sm:$0xf]
  %v24 = vld [vmem:[%s1 + $0x4] sm:$0xf]
  %v25 = vld [vmem:[%s1 + $0x8] sm:$0xf]
  %v26 = vld [vmem:[%s1 + $0xc] sm:$0xf]
  %v27 = vld [vmem:[%s1 + $0x10] sm:$0xf]
  %v28 = vld [vmem:[%s1 + $0x14] sm:$0xf]
  %v29 = vld [vmem:[%s1 + $0x18] sm:$0xf]
  %v30 = vld [vmem:[%s1 + $0x1c] sm:$0xf]
  %v31 = vld [vmem:[%s1 + $0x20] sm:$0xf]
  %v32 = vld [vmem:[%s1 + $0x24] sm:$0xf]
  %v33 = vld [vmem:[%s1 + $0x28] sm:$0xf]
  %v34 = vld [vmem:[%s1 + $0x2c] sm:$0xf]
  %v35 = vld [vmem:[%s1 + $0x30] sm:$0xf]
  %v36 = vld [vmem:[%s1 + $0x34] sm:$0xf]
  %v37 = vld [vmem:[%s1 + $0x38] sm:$0xf]
  %v38 = vld [vmem:[%s1 + $0x3c] sm:$0xf]
  %v39 = vld [vmem:[%s1 + $0x40] sm:$0xf]
  %v40 = vld [vmem:[%s1 + $0x44] sm:$0xf]
  %v41 = vld [vmem:[%s1 + $0x48] sm:$0xf]
  %v42 = vld [vmem:[%s1 + $0x4c] sm:$0xf]
  %v43 = vld [vmem:[%s1 + $0x50] sm:$0xf]
  %v44 = vld [vmem:[%s1 + $0x54] sm:$0xf]
  %v45 = vld [vmem:[%s1 + $0x58] sm:$0xf]
  %v46 = vld [vmem:[%s1 + $0x5c] sm:$0xf]
  %v47 = vld [vmem:[%s1 + $0x60] sm:$0xf]
  %v48 = vld [vmem:[%s1 + $0x64] sm:$0xf]
  %v49 = vld [vmem:[%s1 + $0x68] sm:$0xf]
  %v50 = vld [vmem:[%s1 + $0x6c] sm:$0xf]
  %v51 = vld [vmem:[%s1 + $0x70] sm:$0xf]
  %v52 = vld [vmem:[%s1 + $0x74] sm:$0xf]
  %v53 = vld [vmem:[%s1 + $0x78] sm:$0xf]
  %v54 = vld [vmem:[%s1 + $0x7c] sm:$0xf]
  %v55 = vld [vmem:[%s1 + $0x80] sm:$0xf]
  %v56 = vld [vmem:[%s1 + $0x84] sm:$0xf]
  %v57 = vld [vmem:[%s1 + $0x88] sm:$0xf]
  %v58 = vld [vmem:[%s1 + $0x8c] sm:$0xf]
  %v59 = vld [vmem:[%s1 + $0x90] sm:$0xf]
  %v60 = vld [vmem:[%s1 + $0x94] sm:$0xf]
  %v61 = vld [vmem:[%s1 + $0x98] sm:$0xf]
  %v62 = vld [vmem:[%s1 + $0x9c] sm:$0xf]
  %v63 = vld [vmem:[%s1 + $0xa0] sm:$0xf]
  %v64 = vld [vmem:[%s1 + $0xa4] sm:$0xf]
  %v65 = vld [vmem:[%s1 + $0xa8] sm:$0xf]
  %v66 = vld [vmem:[%s1 + $0xac] sm:$0xf]
  %v67 = vld [vmem:[%s1 + $0xb0] sm:$0xf]
  %v68 = vld [vmem:[%s1 + $0xb4] sm:$0xf]
  %v69 = vld [vmem:[%s1 + $0xb8] sm:$0xf]
  %v70 = vld [vmem:[%s1 + $0xbc] sm:$0xf]
  %v71 = vld [vmem:[%s1 + $0xc0] sm:$0xf]
  %v72 = vld [vmem:[%s1 + $0xc4] sm:$0xf]
  %v73 = vld [vmem:[%s1 + $0xc8] sm:$0xf]
  %v74 = vld [vmem:[%s1 + $0xcc] sm:$0xf]
  %v75 = vld [vmem:[%s1 + $0xd0] sm:$0xf]
  %v76 = vld [vmem:[%s1 + $0xd4] sm:$0xf]
  %v77 = vld [vmem:[%s1 + $0xd8] sm:$0xf]
  %v78 = vld [vmem:[%s1 + $0xdc] sm:$0xf]
  %v79 = vld [vmem:[%s1 + $0xe0] sm:$0xf]
  %v80 = vld [vmem:[%s1 + $0xe4] sm:$0xf]
  %v81 = vld [vmem:[%s1 + $0xe8] sm:$0xf]
  %v82 = vld [vmem:[%s1 + $0xec] sm:$0xf]
  %v83 = vld [vmem:[%s1 + $0xf0] sm:$0xf]
  %v84 = vld [vmem:[%s1 + $0xf4] sm:$0xf]
  %v85 = vld [vmem:[%s1 + $0xf8] sm:$0xf]
  %v86 = vld [vmem:[%s1 + $0xfc] sm:$0xf]
  %v87 = vld [vmem:[%s1 + $0x100] sm:$0xf]
  %v88 = vld [vmem:[%s1 + $0x104] sm:$0xf]
  %v89 = vld [vmem:[%s1 + $0x108] sm:$0xf]
  %v90 = vld [vmem:[%s1 + $0x10c] sm:$0xf]
  %v91 = vld [vmem:[%s1 + $0x110] sm:$0xf]
  %v92 = vld [vmem:[%s1 + $0x114] sm:$0xf]
  %v93 = vld [vmem:[%s1 + $0x118] sm:$0xf]
  %v94 = vld [vmem:[%s1 + $0x11c] sm:$0xf]
  %v95 = vld [vmem:[%s1 + $0x120] sm:$0xf]
  %v96 = vld [vmem:[%s1 + $0x124] sm:$0xf]
  %v97 = vld [vmem:[%s1 + $0x128] sm:$0xf]
  %v98 = vld [vmem:[%s1 + $0x12c] sm:$0xf]
  %v99 = vld [vmem:[%s1 + $0x130] sm:$0xf]
  %v100 = vld [vmem:[%s1 + $0x134] sm:$0xf]
  %v101 = vld [vmem:[%s1 + $0x138] sm:$0xf]
  %v102 = vld [vmem:[%s1 + $0x13c] sm:$0xf]
  %v103 = vld [vmem:[%s1 + $0x140] sm:$0xf]
  %v104 = vld [vmem:[%s1 + $0x144] sm:$0xf]
  %v105 = vld [vmem:[%s1 + $0x148] sm:$0xf]
  %v106 = vld [vmem:[%s1 + $0x14c] sm:$0xf]
  %v107 = vld [vmem:[%s1 + $0x150] sm:$0xf]
  %v108 = vld [vmem:[%s1 + $0x154] sm:$0xf]
  %v109 = vld [vmem:[%s1 + $0x158] sm:$0xf]
  %v110 = vld [vmem:[%s1 + $0x15c] sm:$0xf]
  %v111 = vld [vmem:[%s1 + $0x160] sm:$0xf]
  %v112 = vld [vmem:[%s1 + $0x164] sm:$0xf]
  %v113 = vld [vmem:[%s1 + $0x168] sm:$0xf]
  %v114 = vld [vmem:[%s1 + $0x16c] sm:$0xf]
  %v115 = vld [vmem:[%s1 + $0x170] sm:$0xf]
  %v116 = vld [vmem:[%s1 + $0x174] sm:$0xf]
  %v117 = vld [vmem:[%s1 + $0x178] sm:$0xf]
  %v118 = vld [vmem:[%s1 + $0x17c] sm:$0xf]
  %v119 = vld [vmem:[%s1 + $0x180] sm:$0xf]
  %v120 = vld [vmem:[%s1 + $0x184] sm:$0xf]
  %v121 = vld [vmem:[%s1 + $0x188] sm:$0xf]
  %v122 = vld [vmem:[%s1 + $0x18c] sm:$0xf]
  %v123 = vld [vmem:[%s1 + $0x190] sm:$0xf]
  %v124 = vld [vmem:[%s1 + $0x194] sm:$0xf]
  %v125 = vld [vmem:[%s1 + $0x198] sm:$0xf]
  %v126 = vld [vmem:[%s1 + $0x19c] sm:$0xf]
  %v127 = vld [vmem:[%s1 + $0x1a0] sm:$0xf]
  %v128 = vld [vmem:[%s1 + $0x1a4] sm:$0xf]
  %v129 = vld [vmem:[%s1 + $0x1a8] sm:$0xf]
  %v130 = vld [vmem:[%s1 + $0x1ac] sm:$0xf]
  %v131 = vld [vmem:[%s1 + $0x1b0] sm:$0xf]
  %v132 = vld [vmem:[%s1 + $0x1b4] sm:$0xf]
  %v133 = vld [vmem:[%s1 + $0x1b8] sm:$0xf]
  %v134 = vld [vmem:[%s1 + $0x1bc] sm:$0xf]
  %v135 = vld [vmem:[%s1 + $0x1c0] sm:$0xf]
  %v136 = vld [vmem:[%s1 + $0x1c4] sm:$0xf]
  %v137 = vld [vmem:[%s1 + $0x1c8] sm:$0xf]
  %v138 = vld [vmem:[%s1 + $0x1cc] sm:$0xf]
  %v139 = vld [vmem:[%s1 + $0x1d0] sm:$0xf]
  %v140 = vld [vmem:[%s1 + $0x1d4] sm:$0xf]
  %v141 = vld [vmem:[%s1 + $0x1d8] sm:$0xf]
  %v142 = vld [vmem:[%s1 + $0x1dc] sm:$0xf]
  %v143 = vld [vmem:[%s1 + $0x1e0] sm:$0xf]
  %v144 = vld [vmem:[%s1 + $0x1e4] sm:$0xf]
  %v145 = vld [vmem:[%s1 + $0x1e8] sm:$0xf]
  %v146 = vld [vmem:[%s1 + $0x1ec] sm:$0xf]
  %v147 = vld [vmem:[%s1 + $0x1f0] sm:$0xf]
  %v148 = vld [vmem:[%s1 + $0x1f4] sm:$0xf]
  %v149 = vld [vmem:[%s1 + $0x1f8] sm:$0xf]
  %v150 = vld [vmem:[%s1 + $0x1fc] sm:$0xf]
  %v151 = vld [vmem:[%s1 + $0x200] sm:$0xf]
  %v152 = vld [vmem:[%s1 + $0x204] sm:$0xf]
  %v153 = vld [vmem:[%s1 + $0x208] sm:$0xf]
  %v154 = vld [vmem:[%s1 + $0x20c] sm:$0xf]
  %v155 = vld [vmem:[%s1 + $0x210] sm:$0xf]
  %v156 = vld [vmem:[%s1 + $0x214] sm:$0xf]
  %v157 = vld [vmem:[%s1 + $0x218] sm:$0xf]
  %v158 = vld [vmem:[%s1 + $0x21c] sm:$0xf]
  %v159 = vld [vmem:[%s1 + $0x220] sm:$0xf]
  %v160 = vld [vmem:[%s1 + $0x224] sm:$0xf]
  %v161 = vld [vmem:[%s1 + $0x228] sm:$0xf]
  %v162 = vld [vmem:[%s1 + $0x22c] sm:$0xf]
  %v163 = vld [vmem:[%s1 + $0x230] sm:$0xf]
  %v164 = vld [vmem:[%s1 + $0x234] sm:$0xf]
  %v165 = vld [vmem:[%s1 + $0x238] sm:$0xf]
  %v166 = vld [vmem:[%s1 + $0x23c] sm:$0xf]
  %v172 = vunpack.c.l.b16 %v18
  %v173 = vunpack.c.h.b16 %v18
  %v174 = vunpack.c.l.b16 %v19
  %v175 = vunpack.c.h.b16 %v19
  %v176 = vunpack.c.l.b16 %v20
  %v177 = vunpack.c.h.b16 %v20
  %v178 = vunpack.c.l.b16 %v21
  %v179 = vunpack.c.h.b16 %v21
  %v180 = vunpack.c.l.b16 %v22
  %v181 = vpack.c.b16 %v172, %v172
  %v182 = vpack.c.b16 %v173, %v173
  %v183 = vpack.c.b16 %v174, %v174
  %v184 = vpack.c.b16 %v175, %v175
  %v185 = vpack.c.b16 %v176, %v176
  %v186 = vpack.c.b16 %v177, %v177
  %v187 = vpack.c.b16 %v178, %v178
  %v188 = vpack.c.b16 %v179, %v179
  %v189 = vpack.c.b16 %v180, %v180
  %v343 = vunpack.c.l.b16 %v23
  %v344 = vunpack.c.l.b16 %v24
  %v345 = vunpack.c.l.b16 %v25
  %v346 = vunpack.c.l.b16 %v26
  %v347 = vunpack.c.l.b16 %v27
  %v348 = vunpack.c.l.b16 %v28
  %v349 = vunpack.c.l.b16 %v29
  %v350 = vunpack.c.l.b16 %v30
  %v351 = vunpack.c.l.b16 %v31
  %v352 = vunpack.c.l.b16 %v32
  %v353 = vunpack.c.l.b16 %v33
  %v354 = vunpack.c.l.b16 %v34
  %v355 = vunpack.c.l.b16 %v35
  %v356 = vunpack.c.l.b16 %v36
  %v357 = vunpack.c.l.b16 %v37
  %v358 = vunpack.c.l.b16 %v38
  %v359 = vunpack.c.l.b16 %v39
  %v360 = vunpack.c.l.b16 %v40
  %v361 = vunpack.c.l.b16 %v41
  %v362 = vunpack.c.l.b16 %v42
  %v363 = vunpack.c.l.b16 %v43
  %v364 = vunpack.c.l.b16 %v44
  %v365 = vunpack.c.l.b16 %v45
  %v366 = vunpack.c.l.b16 %v46
  %v367 = vunpack.c.l.b16 %v47
  %v368 = vunpack.c.l.b16 %v48
  %v369 = vunpack.c.l.b16 %v49
  %v370 = vunpack.c.l.b16 %v50
  %v371 = vunpack.c.l.b16 %v51
  %v372 = vunpack.c.l.b16 %v52
  %v373 = vunpack.c.l.b16 %v53
  %v374 = vunpack.c.l.b16 %v54
  %v375 = vunpack.c.l.b16 %v55
  %v376 = vunpack.c.l.b16 %v56
  %v377 = vunpack.c.l.b16 %v57
  %v378 = vunpack.c.l.b16 %v58
  %v379 = vunpack.c.l.b16 %v59
  %v380 = vunpack.c.l.b16 %v60
  %v381 = vunpack.c.l.b16 %v61
  %v382 = vunpack.c.l.b16 %v62
  %v383 = vunpack.c.l.b16 %v63
  %v384 = vunpack.c.l.b16 %v64
  %v385 = vunpack.c.l.b16 %v65
  %v386 = vunpack.c.l.b16 %v66
  %v387 = vunpack.c.l.b16 %v67
  %v388 = vunpack.c.l.b16 %v68
  %v389 = vunpack.c.l.b16 %v69
  %v390 = vunpack.c.l.b16 %v70
  %v391 = vunpack.c.l.b16 %v71
  %v392 = vunpack.c.l.b16 %v72
  %v393 = vunpack.c.l.b16 %v73
  %v394 = vunpack.c.l.b16 %v74
  %v395 = vunpack.c.l.b16 %v75
  %v396 = vunpack.c.l.b16 %v76
  %v397 = vunpack.c.l.b16 %v77
  %v398 = vunpack.c.l.b16 %v78
  %v399 = vunpack.c.l.b16 %v79
  %v400 = vunpack.c.l.b16 %v80
  %v401 = vunpack.c.l.b16 %v81
  %v402 = vunpack.c.l.b16 %v82
  %v403 = vunpack.c.l.b16 %v83
  %v404 = vunpack.c.l.b16 %v84
  %v405 = vunpack.c.l.b16 %v85
  %v406 = vunpack.c.l.b16 %v86
  %v407 = vunpack.c.l.b16 %v87
  %v408 = vunpack.c.l.b16 %v88
  %v409 = vunpack.c.l.b16 %v89
  %v410 = vunpack.c.l.b16 %v90
  %v411 = vunpack.c.l.b16 %v91
  %v412 = vunpack.c.l.b16 %v92
  %v413 = vunpack.c.l.b16 %v93
  %v414 = vunpack.c.l.b16 %v94
  %v415 = vunpack.c.l.b16 %v95
  %v416 = vunpack.c.l.b16 %v96
  %v417 = vunpack.c.l.b16 %v97
  %v418 = vunpack.c.l.b16 %v98
  %v419 = vunpack.c.l.b16 %v99
  %v420 = vunpack.c.l.b16 %v100
  %v421 = vunpack.c.l.b16 %v101
  %v422 = vunpack.c.l.b16 %v102
  %v423 = vunpack.c.l.b16 %v103
  %v424 = vunpack.c.l.b16 %v104
  %v425 = vunpack.c.l.b16 %v105
  %v426 = vunpack.c.l.b16 %v106
  %v427 = vunpack.c.l.b16 %v107
  %v428 = vunpack.c.l.b16 %v108
  %v429 = vunpack.c.l.b16 %v109
  %v430 = vunpack.c.l.b16 %v110
  %v431 = vunpack.c.l.b16 %v111
  %v432 = vunpack.c.l.b16 %v112
  %v433 = vunpack.c.l.b16 %v113
  %v434 = vunpack.c.l.b16 %v114
  %v435 = vunpack.c.l.b16 %v115
  %v436 = vunpack.c.l.b16 %v116
  %v437 = vunpack.c.l.b16 %v117
  %v438 = vunpack.c.l.b16 %v118
  %v439 = vunpack.c.l.b16 %v119
  %v440 = vunpack.c.l.b16 %v120
  %v441 = vunpack.c.l.b16 %v121
  %v442 = vunpack.c.l.b16 %v122
  %v443 = vunpack.c.l.b16 %v123
  %v444 = vunpack.c.l.b16 %v124
  %v445 = vunpack.c.l.b16 %v125
  %v446 = vunpack.c.l.b16 %v126
  %v447 = vunpack.c.l.b16 %v127
  %v448 = vunpack.c.l.b16 %v128
  %v449 = vunpack.c.l.b16 %v129
  %v450 = vunpack.c.l.b16 %v130
  %v451 = vunpack.c.l.b16 %v131
  %v452 = vunpack.c.l.b16 %v132
  %v453 = vunpack.c.l.b16 %v133
  %v454 = vunpack.c.l.b16 %v134
  %v455 = vunpack.c.l.b16 %v135
  %v456 = vunpack.c.l.b16 %v136
  %v457 = vunpack.c.l.b16 %v137
  %v458 = vunpack.c.l.b16 %v138
  %v459 = vunpack.c.l.b16 %v139
  %v460 = vunpack.c.l.b16 %v140
  %v461 = vunpack.c.l.b16 %v141
  %v462 = vunpack.c.l.b16 %v142
  %v463 = vunpack.c.l.b16 %v143
  %v464 = vunpack.c.l.b16 %v144
  %v465 = vunpack.c.l.b16 %v145
  %v466 = vunpack.c.l.b16 %v146
  %v467 = vunpack.c.l.b16 %v147
  %v468 = vunpack.c.l.b16 %v148
  %v469 = vunpack.c.l.b16 %v149
  %v470 = vunpack.c.l.b16 %v150
  %v471 = vunpack.c.l.b16 %v151
  %v472 = vunpack.c.l.b16 %v152
  %v473 = vunpack.c.l.b16 %v153
  %v474 = vunpack.c.l.b16 %v154
  %v475 = vunpack.c.l.b16 %v155
  %v476 = vunpack.c.l.b16 %v156
  %v477 = vunpack.c.l.b16 %v157
  %v478 = vunpack.c.l.b16 %v158
  %v479 = vunpack.c.l.b16 %v159
  %v480 = vunpack.c.l.b16 %v160
  %v481 = vunpack.c.l.b16 %v161
  %v482 = vunpack.c.l.b16 %v162
  %v483 = vunpack.c.l.b16 %v163
  %v484 = vunpack.c.l.b16 %v164
  %v485 = vunpack.c.l.b16 %v165
  %v486 = vunpack.c.l.b16 %v166
  %v487 = vpack.c.b16 %v344, %v343
  %v488 = vpack.c.b16 %v346, %v345
  %v489 = vpack.c.b16 %v348, %v347
  %v490 = vpack.c.b16 %v350, %v349
  %v491 = vpack.c.b16 %v352, %v351
  %v492 = vpack.c.b16 %v354, %v353
  %v493 = vpack.c.b16 %v356, %v355
  %v494 = vpack.c.b16 %v358, %v357
  %v495 = vpack.c.b16 %v360, %v359
  %v496 = vpack.c.b16 %v362, %v361
  %v497 = vpack.c.b16 %v364, %v363
  %v498 = vpack.c.b16 %v366, %v365
  %v499 = vpack.c.b16 %v368, %v367
  %v500 = vpack.c.b16 %v370, %v369
  %v501 = vpack.c.b16 %v372, %v371
  %v502 = vpack.c.b16 %v374, %v373
  %v503 = vpack.c.b16 %v376, %v375
  %v504 = vpack.c.b16 %v378, %v377
  %v505 = vpack.c.b16 %v380, %v379
  %v506 = vpack.c.b16 %v382, %v381
  %v507 = vpack.c.b16 %v384, %v383
  %v508 = vpack.c.b16 %v386, %v385
  %v509 = vpack.c.b16 %v388, %v387
  %v510 = vpack.c.b16 %v390, %v389
  %v511 = vpack.c.b16 %v392, %v391
  %v512 = vpack.c.b16 %v394, %v393
  %v513 = vpack.c.b16 %v396, %v395
  %v514 = vpack.c.b16 %v398, %v397
  %v515 = vpack.c.b16 %v400, %v399
  %v516 = vpack.c.b16 %v402, %v401
  %v517 = vpack.c.b16 %v404, %v403
  %v518 = vpack.c.b16 %v406, %v405
  %v519 = vpack.c.b16 %v408, %v407
  %v520 = vpack.c.b16 %v410, %v409
  %v521 = vpack.c.b16 %v412, %v411
  %v522 = vpack.c.b16 %v414, %v413
  %v523 = vpack.c.b16 %v416, %v415
  %v524 = vpack.c.b16 %v418, %v417
  %v525 = vpack.c.b16 %v420, %v419
  %v526 = vpack.c.b16 %v422, %v421
  %v527 = vpack.c.b16 %v424, %v423
  %v528 = vpack.c.b16 %v426, %v425
  %v529 = vpack.c.b16 %v428, %v427
  %v530 = vpack.c.b16 %v430, %v429
  %v531 = vpack.c.b16 %v432, %v431
  %v532 = vpack.c.b16 %v434, %v433
  %v533 = vpack.c.b16 %v436, %v435
  %v534 = vpack.c.b16 %v438, %v437
  %v535 = vpack.c.b16 %v440, %v439
  %v536 = vpack.c.b16 %v442, %v441
  %v537 = vpack.c.b16 %v444, %v443
  %v538 = vpack.c.b16 %v446, %v445
  %v539 = vpack.c.b16 %v448, %v447
  %v540 = vpack.c.b16 %v450, %v449
  %v541 = vpack.c.b16 %v452, %v451
  %v542 = vpack.c.b16 %v454, %v453
  %v543 = vpack.c.b16 %v456, %v455
  %v544 = vpack.c.b16 %v458, %v457
  %v545 = vpack.c.b16 %v460, %v459
  %v546 = vpack.c.b16 %v462, %v461
  %v547 = vpack.c.b16 %v464, %v463
  %v548 = vpack.c.b16 %v466, %v465
  %v549 = vpack.c.b16 %v468, %v467
  %v550 = vpack.c.b16 %v470, %v469
  %v551 = vpack.c.b16 %v472, %v471
  %v552 = vpack.c.b16 %v474, %v473
  %v553 = vpack.c.b16 %v476, %v475
  %v554 = vpack.c.b16 %v478, %v477
  %v555 = vpack.c.b16 %v480, %v479
  %v556 = vpack.c.b16 %v482, %v481
  %v557 = vpack.c.b16 %v484, %v483
  %v558 = vpack.c.b16 %v486, %v485
  %631 = vmatprep.subr.bf16.mxu0 0
  %632 = vmatpush1.bf16.msra.mxu0 %v494
  %633 = vmatprep.subr.bf16.mxu0 0
  %634 = vmatpush1.bf16.msra.mxu0 %v493
  %635 = vmatprep.subr.bf16.mxu0 0
  %636 = vmatpush1.bf16.msra.mxu0 %v492
  %637 = vmatprep.subr.bf16.mxu0 0
  %638 = vmatpush1.bf16.msra.mxu0 %v491
  %639 = vmatprep.subr.bf16.mxu0 0
  %640 = vmatpush1.bf16.msra.mxu0 %v490
  %641 = vmatprep.subr.bf16.mxu0 0
  %642 = vmatpush1.bf16.msra.mxu0 %v489
  %643 = vmatprep.subr.bf16.mxu0 0
  %644 = vmatpush1.bf16.msra.mxu0 %v488
  %645 = vmatprep.subr.bf16.mxu0 0
  %646 = vmatpush1.bf16.msra.mxu0 %v487
  %647 = vmatprep.subr.bf16.mxu0 0
  %648 = vmatpush2.bf16.msra.mxu0 %v502
  %649 = vmatprep.subr.bf16.mxu0 0
  %650 = vmatpush2.bf16.msra.mxu0 %v501
  %651 = vmatprep.subr.bf16.mxu0 0
  %652 = vmatpush2.bf16.msra.mxu0 %v500
  %653 = vmatprep.subr.bf16.mxu0 0
  %654 = vmatpush2.bf16.msra.mxu0 %v499
  %655 = vmatprep.subr.bf16.mxu0 0
  %656 = vmatpush2.bf16.msra.mxu0 %v498
  %657 = vmatprep.subr.bf16.mxu0 0
  %658 = vmatpush2.bf16.msra.mxu0 %v497
  %659 = vmatprep.subr.bf16.mxu0 0
  %660 = vmatpush2.bf16.msra.mxu0 %v496
  %661 = vmatprep.subr.bf16.mxu0 0
  %662 = vmatpush2.bf16.msra.mxu0 %v495
  %663 = vmatprep.mubr.bf16.mxu0 %v182
  %664 = vmatmul.mubr.bf16.gmra.mxu0 %v181
  %v665 = vpop.f32.mrf.mxu0
  %v666 = vadd.f32 0.0, %v665
  %v667 = vpop.f32.mrf.mxu0
  %v668 = vpop.f32.mrf.mxu0
  %v669 = vpop.f32.mrf.mxu0
  %670 = vdwg.mxu0
  %671 = vmatprep.subr.bf16.mxu0 0
  %672 = vmatpush1.bf16.msra.mxu0 %v510
  %673 = vmatprep.subr.bf16.mxu0 0
  %674 = vmatpush1.bf16.msra.mxu0 %v509
  %675 = vmatprep.subr.bf16.mxu0 0
  %676 = vmatpush1.bf16.msra.mxu0 %v508
  %677 = vmatprep.subr.bf16.mxu0 0
  %678 = vmatpush1.bf16.msra.mxu0 %v507
  %679 = vmatprep.subr.bf16.mxu0 0
  %680 = vmatpush1.bf16.msra.mxu0 %v506
  %681 = vmatprep.subr.bf16.mxu0 0
  %682 = vmatpush1.bf16.msra.mxu0 %v505
  %683 = vmatprep.subr.bf16.mxu0 0
  %684 = vmatpush1.bf16.msra.mxu0 %v504
  %685 = vmatprep.subr.bf16.mxu0 0
  %686 = vmatpush1.bf16.msra.mxu0 %v503
  %687 = vmatprep.subr.bf16.mxu0 0
  %688 = vmatpush2.bf16.msra.mxu0 %v518
  %689 = vmatprep.subr.bf16.mxu0 0
  %690 = vmatpush2.bf16.msra.mxu0 %v517
  %691 = vmatprep.subr.bf16.mxu0 0
  %692 = vmatpush2.bf16.msra.mxu0 %v516
  %693 = vmatprep.subr.bf16.mxu0 0
  %694 = vmatpush2.bf16.msra.mxu0 %v515
  %695 = vmatprep.subr.bf16.mxu0 0
  %696 = vmatpush2.bf16.msra.mxu0 %v514
  %697 = vmatprep.subr.bf16.mxu0 0
  %698 = vmatpush2.bf16.msra.mxu0 %v513
  %699 = vmatprep.subr.bf16.mxu0 0
  %700 = vmatpush2.bf16.msra.mxu0 %v512
  %701 = vmatprep.subr.bf16.mxu0 0
  %702 = vmatpush2.bf16.msra.mxu0 %v511
  %703 = vmatprep.mubr.bf16.mxu0 %v184
  %704 = vmatmul.mubr.bf16.gmra.mxu0 %v183
  %v705 = vpop.f32.mrf.mxu0
  %v706 = vadd.f32 %v666, %v705
  %v707 = vpop.f32.mrf.mxu0
  %v708 = vpop.f32.mrf.mxu0
  %v709 = vpop.f32.mrf.mxu0
  %710 = vdwg.mxu0
  %711 = vmatprep.subr.bf16.mxu0 0
  %712 = vmatpush1.bf16.msra.mxu0 %v526
  %713 = vmatprep.subr.bf16.mxu0 0
  %714 = vmatpush1.bf16.msra.mxu0 %v525
  %715 = vmatprep.subr.bf16.mxu0 0
  %716 = vmatpush1.bf16.msra.mxu0 %v524
  %717 = vmatprep.subr.bf16.mxu0 0
  %718 = vmatpush1.bf16.msra.mxu0 %v523
  %719 = vmatprep.subr.bf16.mxu0 0
  %720 = vmatpush1.bf16.msra.mxu0 %v522
  %721 = vmatprep.subr.bf16.mxu0 0
  %722 = vmatpush1.bf16.msra.mxu0 %v521
  %723 = vmatprep.subr.bf16.mxu0 0
  %724 = vmatpush1.bf16.msra.mxu0 %v520
  %725 = vmatprep.subr.bf16.mxu0 0
  %726 = vmatpush1.bf16.msra.mxu0 %v519
  %727 = vmatprep.subr.bf16.mxu0 0
  %728 = vmatpush2.bf16.msra.mxu0 %v534
  %729 = vmatprep.subr.bf16.mxu0 0
  %730 = vmatpush2.bf16.msra.mxu0 %v533
  %731 = vmatprep.subr.bf16.mxu0 0
  %732 = vmatpush2.bf16.msra.mxu0 %v532
  %733 = vmatprep.subr.bf16.mxu0 0
  %734 = vmatpush2.bf16.msra.mxu0 %v531
  %735 = vmatprep.subr.bf16.mxu0 0
  %736 = vmatpush2.bf16.msra.mxu0 %v530
  %737 = vmatprep.subr.bf16.mxu0 0
  %738 = vmatpush2.bf16.msra.mxu0 %v529
  %739 = vmatprep.subr.bf16.mxu0 0
  %740 = vmatpush2.bf16.msra.mxu0 %v528
  %741 = vmatprep.subr.bf16.mxu0 0
  %742 = vmatpush2.bf16.msra.mxu0 %v527
  %743 = vmatprep.mubr.bf16.mxu0 %v186
  %744 = vmatmul.mubr.bf16.gmra.mxu0 %v185
  %v745 = vpop.f32.mrf.mxu0
  %v746 = vadd.f32 %v706, %v745
  %v747 = vpop.f32.mrf.mxu0
  %v748 = vpop.f32.mrf.mxu0
  %v749 = vpop.f32.mrf.mxu0
  %750 = vdwg.mxu0
  %751 = vmatprep.subr.bf16.mxu0 0
  %752 = vmatpush1.bf16.msra.mxu0 %v542
  %753 = vmatprep.subr.bf16.mxu0 0
  %754 = vmatpush1.bf16.msra.mxu0 %v541
  %755 = vmatprep.subr.bf16.mxu0 0
  %756 = vmatpush1.bf16.msra.mxu0 %v540
  %757 = vmatprep.subr.bf16.mxu0 0
  %758 = vmatpush1.bf16.msra.mxu0 %v539
  %759 = vmatprep.subr.bf16.mxu0 0
  %760 = vmatpush1.bf16.msra.mxu0 %v538
  %761 = vmatprep.subr.bf16.mxu0 0
  %762 = vmatpush1.bf16.msra.mxu0 %v537
  %763 = vmatprep.subr.bf16.mxu0 0
  %764 = vmatpush1.bf16.msra.mxu0 %v536
  %765 = vmatprep.subr.bf16.mxu0 0
  %766 = vmatpush1.bf16.msra.mxu0 %v535
  %767 = vmatprep.subr.bf16.mxu0 0
  %768 = vmatpush2.bf16.msra.mxu0 %v550
  %769 = vmatprep.subr.bf16.mxu0 0
  %770 = vmatpush2.bf16.msra.mxu0 %v549
  %771 = vmatprep.subr.bf16.mxu0 0
  %772 = vmatpush2.bf16.msra.mxu0 %v548
  %773 = vmatprep.subr.bf16.mxu0 0
  %774 = vmatpush2.bf16.msra.mxu0 %v547
  %775 = vmatprep.subr.bf16.mxu0 0
  %776 = vmatpush2.bf16.msra.mxu0 %v546
  %777 = vmatprep.subr.bf16.mxu0 0
  %778 = vmatpush2.bf16.msra.mxu0 %v545
  %779 = vmatprep.subr.bf16.mxu0 0
  %780 = vmatpush2.bf16.msra.mxu0 %v544
  %781 = vmatprep.subr.bf16.mxu0 0
  %782 = vmatpush2.bf16.msra.mxu0 %v543
  %783 = vmatprep.mubr.bf16.mxu0 %v188
  %784 = vmatmul.mubr.bf16.gmra.mxu0 %v187
  %v785 = vpop.f32.mrf.mxu0
  %v786 = vadd.f32 %v746, %v785
  %v787 = vpop.f32.mrf.mxu0
  %v788 = vpop.f32.mrf.mxu0
  %v789 = vpop.f32.mrf.mxu0
  %790 = vdwg.mxu0
  %791 = vmatprep.subr.bf16.mxu0 0
  %792 = vmatpush1.bf16.msra.mxu0 %v558
  %793 = vmatprep.subr.bf16.mxu0 0
  %794 = vmatpush1.bf16.msra.mxu0 %v557
  %795 = vmatprep.subr.bf16.mxu0 0
  %796 = vmatpush1.bf16.msra.mxu0 %v556
  %797 = vmatprep.subr.bf16.mxu0 0
  %798 = vmatpush1.bf16.msra.mxu0 %v555
  %799 = vmatprep.subr.bf16.mxu0 0
  %800 = vmatpush1.bf16.msra.mxu0 %v554
  %801 = vmatprep.subr.bf16.mxu0 0
  %802 = vmatpush1.bf16.msra.mxu0 %v553
  %803 = vmatprep.subr.bf16.mxu0 0
  %804 = vmatpush1.bf16.msra.mxu0 %v552
  %805 = vmatprep.subr.bf16.mxu0 0
  %806 = vmatpush1.bf16.msra.mxu0 %v551
  %807 = vmatprep.subr.bf16.mxu0 0
  %808 = vmatpush2.bf16.msra.mxu0 0
  %809 = vmatprep.subr.bf16.mxu0 0
  %810 = vmatpush2.bf16.msra.mxu0 0
  %811 = vmatprep.subr.bf16.mxu0 0
  %812 = vmatpush2.bf16.msra.mxu0 0
  %813 = vmatprep.subr.bf16.mxu0 0
  %814 = vmatpush2.bf16.msra.mxu0 0
  %815 = vmatprep.subr.bf16.mxu0 0
  %816 = vmatpush2.bf16.msra.mxu0 0
  %817 = vmatprep.subr.bf16.mxu0 0
  %818 = vmatpush2.bf16.msra.mxu0 0
  %819 = vmatprep.subr.bf16.mxu0 0
  %820 = vmatpush2.bf16.msra.mxu0 0
  %821 = vmatprep.subr.bf16.mxu0 0
  %822 = vmatpush2.bf16.msra.mxu0 0
  %823 = vmatprep.mubr.bf16.mxu0 0
  %824 = vmatmul.mubr.bf16.gmra.mxu0 %v189
  %v825 = vpop.f32.mrf.mxu0
  %v826 = vadd.f32 %v786, %v825
  %v827 = vpop.f32.mrf.mxu0
  %v828 = vpop.f32.mrf.mxu0
  %v829 = vpop.f32.mrf.mxu0
  %830 = vdwg.mxu0
  %v831 = vld [vmem:[%s2] sm:$0x1]
  %v833 = vlaneseq
  %v834 = vshrl.u32 %v833, 7
  %v835 = vsub.s32 0, %v834
  %v836 = vrot.slane %v831, %v835
  %v838 = vmul.f32 %v826, %v836
  %v839 = vld [vmem:[%s3] sm:$0x1]
  %v841 = vlaneseq
  %v842 = vshrl.u32 %v841, 7
  %v843 = vsub.s32 0, %v842
  %v844 = vrot.slane %v839, %v843
  %v846 = vadd.f32 %v838, %v844
  %v847 = vmax.f32 %v846, 0.0
  %v848 = vpack.c.bf16 %v847, %v847
  %849 = vst [vmem:[%s4] sm:$0xf] %v848
  // Predicated region
  $region18: #{deeplab_forward.22} parent=0 // pred_check
    _
  $region19: #{deeplab_forward.22} parent=0 // pred_check_branch
    %851 = sbr.rel (0) target = $region21
  $region20: #{deeplab_forward.22} parent=0 // pred_region
    _
  $region21: #{deeplab_forward.22} parent=0 // pred_fallthru
    _
  // Predicated region
  $region22: #{deeplab_forward.22} parent=0 // pred_check
    _
  $region23: #{deeplab_forward.22} parent=0 // pred_check_branch
    %853 = sbr.rel (0) target = $region25
  $region24: #{deeplab_forward.22} parent=0 // pred_region
    _
  $region25: #{deeplab_forward.22} parent=0 // pred_fallthru
    _

// kernel: deeplab_forward.20
$region0: #{deeplab_forward.20}
  #allocation0 [shape = 'u32[]', space=smem, size = 0x4, offset = 0x4, fixed_abs, tag = 'smem constant byte address 0x4 - core index']
  #allocation1 [shape = 'u32[144,128]{1,0:T(1,128)}', space=vmem, size = 0x12000, scoped, tag = 'internal scratch']
  %s0 = inlined_call_operand.vmem [shape: bf16[8,640], index: 0, kind: input, shape index: {}]
  %s1 = inlined_call_operand.vmem [shape: bf16[640,128], index: 1, kind: input, shape index: {}]
  %s2 = inlined_call_operand.vmem [shape: f32[1,128], index: 2, kind: input, shape index: {}]
  %s3 = inlined_call_operand.vmem [shape: f32[1,128], index: 3, kind: input, shape index: {}]
  %s4 = inlined_call_operand.vmem [shape: bf16[8,128], index: 4, kind: output, shape index: {}]
  %s5 = sld [smem:[#allocation0]]
  $region26: #{deeplab_forward.20} parent=0
    _
  %s7 = ssub.s32 1, %s5
  %s8 = scalar_select 0, %s7, %s5
  // Predicated region
  $region2: #{deeplab_forward.20} parent=0 // pred_check
    _
  $region3: #{deeplab_forward.20} parent=0 // pred_check_branch
    %10 = sbr.rel (0) target = $region5
  $region4: #{deeplab_forward.20} parent=0 // pred_region
    _
  $region5: #{deeplab_forward.20} parent=0 // pred_fallthru
    _
  // Predicated region
  $region6: #{deeplab_forward.20} parent=0 // pred_check
    _
  $region7: #{deeplab_forward.20} parent=0 // pred_check_branch
    %12 = sbr.rel (0) target = $region9
  $region8: #{deeplab_forward.20} parent=0 // pred_region
    _
  $region9: #{deeplab_forward.20} parent=0 // pred_fallthru
    _
  // Predicated region
  $region10: #{deeplab_forward.20} parent=0 // pred_check
    _
  $region11: #{deeplab_forward.20} parent=0 // pred_check_branch
    %14 = sbr.rel (0) target = $region13
  $region12: #{deeplab_forward.20} parent=0 // pred_region
    _
  $region13: #{deeplab_forward.20} parent=0 // pred_fallthru
    _
  // Predicated region
  $region14: #{deeplab_forward.20} parent=0 // pred_check
    _
  $region15: #{deeplab_forward.20} parent=0 // pred_check_branch
    %16 = sbr.rel (0) target = $region17
  $region16: #{deeplab_forward.20} parent=0 // pred_region
    _
  $region17: #{deeplab_forward.20} parent=0 // pred_fallthru
    _
  %v18 = vld [vmem:[%s0] sm:$0xff]
  %v19 = vld [vmem:[%s0 + $0x8] sm:$0xff]
  %v20 = vld [vmem:[%s0 + $0x10] sm:$0xf]
  %v21 = vld [vmem:[%s1] sm:$0xf]
  %v22 = vld [vmem:[%s1 + $0x4] sm:$0xf]
  %v23 = vld [vmem:[%s1 + $0x8] sm:$0xf]
  %v24 = vld [vmem:[%s1 + $0xc] sm:$0xf]
  %v25 = vld [vmem:[%s1 + $0x10] sm:$0xf]
  %v26 = vld [vmem:[%s1 + $0x14] sm:$0xf]
  %v27 = vld [vmem:[%s1 + $0x18] sm:$0xf]
  %v28 = vld [vmem:[%s1 + $0x1c] sm:$0xf]
  %v29 = vld [vmem:[%s1 + $0x20] sm:$0xf]
  %v30 = vld [vmem:[%s1 + $0x24] sm:$0xf]
  %v31 = vld [vmem:[%s1 + $0x28] sm:$0xf]
  %v32 = vld [vmem:[%s1 + $0x2c] sm:$0xf]
  %v33 = vld [vmem:[%s1 + $0x30] sm:$0xf]
  %v34 = vld [vmem:[%s1 + $0x34] sm:$0xf]
  %v35 = vld [vmem:[%s1 + $0x38] sm:$0xf]
  %v36 = vld [vmem:[%s1 + $0x3c] sm:$0xf]
  %v37 = vld [vmem:[%s1 + $0x40] sm:$0xf]
  %v38 = vld [vmem:[%s1 + $0x44] sm:$0xf]
  %v39 = vld [vmem:[%s1 + $0x48] sm:$0xf]
  %v40 = vld [vmem:[%s1 + $0x4c] sm:$0xf]
  %v41 = vld [vmem:[%s1 + $0x50] sm:$0xf]
  %v42 = vld [vmem:[%s1 + $0x54] sm:$0xf]
  %v43 = vld [vmem:[%s1 + $0x58] sm:$0xf]
  %v44 = vld [vmem:[%s1 + $0x5c] sm:$0xf]
  %v45 = vld [vmem:[%s1 + $0x60] sm:$0xf]
  %v46 = vld [vmem:[%s1 + $0x64] sm:$0xf]
  %v47 = vld [vmem:[%s1 + $0x68] sm:$0xf]
  %v48 = vld [vmem:[%s1 + $0x6c] sm:$0xf]
  %v49 = vld [vmem:[%s1 + $0x70] sm:$0xf]
  %v50 = vld [vmem:[%s1 + $0x74] sm:$0xf]
  %v51 = vld [vmem:[%s1 + $0x78] sm:$0xf]
  %v52 = vld [vmem:[%s1 + $0x7c] sm:$0xf]
  %v53 = vld [vmem:[%s1 + $0x80] sm:$0xf]
  %v54 = vld [vmem:[%s1 + $0x84] sm:$0xf]
  %v55 = vld [vmem:[%s1 + $0x88] sm:$0xf]
  %v56 = vld [vmem:[%s1 + $0x8c] sm:$0xf]
  %v57 = vld [vmem:[%s1 + $0x90] sm:$0xf]
  %v58 = vld [vmem:[%s1 + $0x94] sm:$0xf]
  %v59 = vld [vmem:[%s1 + $0x98] sm:$0xf]
  %v60 = vld [vmem:[%s1 + $0x9c] sm:$0xf]
  %v61 = vld [vmem:[%s1 + $0xa0] sm:$0xf]
  %v62 = vld [vmem:[%s1 + $0xa4] sm:$0xf]
  %v63 = vld [vmem:[%s1 + $0xa8] sm:$0xf]
  %v64 = vld [vmem:[%s1 + $0xac] sm:$0xf]
  %v65 = vld [vmem:[%s1 + $0xb0] sm:$0xf]
  %v66 = vld [vmem:[%s1 + $0xb4] sm:$0xf]
  %v67 = vld [vmem:[%s1 + $0xb8] sm:$0xf]
  %v68 = vld [vmem:[%s1 + $0xbc] sm:$0xf]
  %v69 = vld [vmem:[%s1 + $0xc0] sm:$0xf]
  %v70 = vld [vmem:[%s1 + $0xc4] sm:$0xf]
  %v71 = vld [vmem:[%s1 + $0xc8] sm:$0xf]
  %v72 = vld [vmem:[%s1 + $0xcc] sm:$0xf]
  %v73 = vld [vmem:[%s1 + $0xd0] sm:$0xf]
  %v74 = vld [vmem:[%s1 + $0xd4] sm:$0xf]
  %v75 = vld [vmem:[%s1 + $0xd8] sm:$0xf]
  %v76 = vld [vmem:[%s1 + $0xdc] sm:$0xf]
  %v77 = vld [vmem:[%s1 + $0xe0] sm:$0xf]
  %v78 = vld [vmem:[%s1 + $0xe4] sm:$0xf]
  %v79 = vld [vmem:[%s1 + $0xe8] sm:$0xf]
  %v80 = vld [vmem:[%s1 + $0xec] sm:$0xf]
  %v81 = vld [vmem:[%s1 + $0xf0] sm:$0xf]
  %v82 = vld [vmem:[%s1 + $0xf4] sm:$0xf]
  %v83 = vld [vmem:[%s1 + $0xf8] sm:$0xf]
  %v84 = vld [vmem:[%s1 + $0xfc] sm:$0xf]
  %v85 = vld [vmem:[%s1 + $0x100] sm:$0xf]
  %v86 = vld [vmem:[%s1 + $0x104] sm:$0xf]
  %v87 = vld [vmem:[%s1 + $0x108] sm:$0xf]
  %v88 = vld [vmem:[%s1 + $0x10c] sm:$0xf]
  %v89 = vld [vmem:[%s1 + $0x110] sm:$0xf]
  %v90 = vld [vmem:[%s1 + $0x114] sm:$0xf]
  %v91 = vld [vmem:[%s1 + $0x118] sm:$0xf]
  %v92 = vld [vmem:[%s1 + $0x11c] sm:$0xf]
  %v93 = vld [vmem:[%s1 + $0x120] sm:$0xf]
  %v94 = vld [vmem:[%s1 + $0x124] sm:$0xf]
  %v95 = vld [vmem:[%s1 + $0x128] sm:$0xf]
  %v96 = vld [vmem:[%s1 + $0x12c] sm:$0xf]
  %v97 = vld [vmem:[%s1 + $0x130] sm:$0xf]
  %v98 = vld [vmem:[%s1 + $0x134] sm:$0xf]
  %v99 = vld [vmem:[%s1 + $0x138] sm:$0xf]
  %v100 = vld [vmem:[%s1 + $0x13c] sm:$0xf]
  %v104 = vunpack.c.l.b16 %v18
  %v105 = vunpack.c.h.b16 %v18
  %v106 = vunpack.c.l.b16 %v19
  %v107 = vunpack.c.h.b16 %v19
  %v108 = vunpack.c.l.b16 %v20
  %v109 = vpack.c.b16 %v104, %v104
  %v110 = vpack.c.b16 %v105, %v105
  %v111 = vpack.c.b16 %v106, %v106
  %v112 = vpack.c.b16 %v107, %v107
  %v113 = vpack.c.b16 %v108, %v108
  %v199 = vunpack.c.l.b16 %v21
  %v200 = vunpack.c.l.b16 %v22
  %v201 = vunpack.c.l.b16 %v23
  %v202 = vunpack.c.l.b16 %v24
  %v203 = vunpack.c.l.b16 %v25
  %v204 = vunpack.c.l.b16 %v26
  %v205 = vunpack.c.l.b16 %v27
  %v206 = vunpack.c.l.b16 %v28
  %v207 = vunpack.c.l.b16 %v29
  %v208 = vunpack.c.l.b16 %v30
  %v209 = vunpack.c.l.b16 %v31
  %v210 = vunpack.c.l.b16 %v32
  %v211 = vunpack.c.l.b16 %v33
  %v212 = vunpack.c.l.b16 %v34
  %v213 = vunpack.c.l.b16 %v35
  %v214 = vunpack.c.l.b16 %v36
  %v215 = vunpack.c.l.b16 %v37
  %v216 = vunpack.c.l.b16 %v38
  %v217 = vunpack.c.l.b16 %v39
  %v218 = vunpack.c.l.b16 %v40
  %v219 = vunpack.c.l.b16 %v41
  %v220 = vunpack.c.l.b16 %v42
  %v221 = vunpack.c.l.b16 %v43
  %v222 = vunpack.c.l.b16 %v44
  %v223 = vunpack.c.l.b16 %v45
  %v224 = vunpack.c.l.b16 %v46
  %v225 = vunpack.c.l.b16 %v47
  %v226 = vunpack.c.l.b16 %v48
  %v227 = vunpack.c.l.b16 %v49
  %v228 = vunpack.c.l.b16 %v50
  %v229 = vunpack.c.l.b16 %v51
  %v230 = vunpack.c.l.b16 %v52
  %v231 = vunpack.c.l.b16 %v53
  %v232 = vunpack.c.l.b16 %v54
  %v233 = vunpack.c.l.b16 %v55
  %v234 = vunpack.c.l.b16 %v56
  %v235 = vunpack.c.l.b16 %v57
  %v236 = vunpack.c.l.b16 %v58
  %v237 = vunpack.c.l.b16 %v59
  %v238 = vunpack.c.l.b16 %v60
  %v239 = vunpack.c.l.b16 %v61
  %v240 = vunpack.c.l.b16 %v62
  %v241 = vunpack.c.l.b16 %v63
  %v242 = vunpack.c.l.b16 %v64
  %v243 = vunpack.c.l.b16 %v65
  %v244 = vunpack.c.l.b16 %v66
  %v245 = vunpack.c.l.b16 %v67
  %v246 = vunpack.c.l.b16 %v68
  %v247 = vunpack.c.l.b16 %v69
  %v248 = vunpack.c.l.b16 %v70
  %v249 = vunpack.c.l.b16 %v71
  %v250 = vunpack.c.l.b16 %v72
  %v251 = vunpack.c.l.b16 %v73
  %v252 = vunpack.c.l.b16 %v74
  %v253 = vunpack.c.l.b16 %v75
  %v254 = vunpack.c.l.b16 %v76
  %v255 = vunpack.c.l.b16 %v77
  %v256 = vunpack.c.l.b16 %v78
  %v257 = vunpack.c.l.b16 %v79
  %v258 = vunpack.c.l.b16 %v80
  %v259 = vunpack.c.l.b16 %v81
  %v260 = vunpack.c.l.b16 %v82
  %v261 = vunpack.c.l.b16 %v83
  %v262 = vunpack.c.l.b16 %v84
  %v263 = vunpack.c.l.b16 %v85
  %v264 = vunpack.c.l.b16 %v86
  %v265 = vunpack.c.l.b16 %v87
  %v266 = vunpack.c.l.b16 %v88
  %v267 = vunpack.c.l.b16 %v89
  %v268 = vunpack.c.l.b16 %v90
  %v269 = vunpack.c.l.b16 %v91
  %v270 = vunpack.c.l.b16 %v92
  %v271 = vunpack.c.l.b16 %v93
  %v272 = vunpack.c.l.b16 %v94
  %v273 = vunpack.c.l.b16 %v95
  %v274 = vunpack.c.l.b16 %v96
  %v275 = vunpack.c.l.b16 %v97
  %v276 = vunpack.c.l.b16 %v98
  %v277 = vunpack.c.l.b16 %v99
  %v278 = vunpack.c.l.b16 %v100
  %v279 = vpack.c.b16 %v200, %v199
  %v280 = vpack.c.b16 %v202, %v201
  %v281 = vpack.c.b16 %v204, %v203
  %v282 = vpack.c.b16 %v206, %v205
  %v283 = vpack.c.b16 %v208, %v207
  %v284 = vpack.c.b16 %v210, %v209
  %v285 = vpack.c.b16 %v212, %v211
  %v286 = vpack.c.b16 %v214, %v213
  %v287 = vpack.c.b16 %v216, %v215
  %v288 = vpack.c.b16 %v218, %v217
  %v289 = vpack.c.b16 %v220, %v219
  %v290 = vpack.c.b16 %v222, %v221
  %v291 = vpack.c.b16 %v224, %v223
  %v292 = vpack.c.b16 %v226, %v225
  %v293 = vpack.c.b16 %v228, %v227
  %v294 = vpack.c.b16 %v230, %v229
  %v295 = vpack.c.b16 %v232, %v231
  %v296 = vpack.c.b16 %v234, %v233
  %v297 = vpack.c.b16 %v236, %v235
  %v298 = vpack.c.b16 %v238, %v237
  %v299 = vpack.c.b16 %v240, %v239
  %v300 = vpack.c.b16 %v242, %v241
  %v301 = vpack.c.b16 %v244, %v243
  %v302 = vpack.c.b16 %v246, %v245
  %v303 = vpack.c.b16 %v248, %v247
  %v304 = vpack.c.b16 %v250, %v249
  %v305 = vpack.c.b16 %v252, %v251
  %v306 = vpack.c.b16 %v254, %v253
  %v307 = vpack.c.b16 %v256, %v255
  %v308 = vpack.c.b16 %v258, %v257
  %v309 = vpack.c.b16 %v260, %v259
  %v310 = vpack.c.b16 %v262, %v261
  %v311 = vpack.c.b16 %v264, %v263
  %v312 = vpack.c.b16 %v266, %v265
  %v313 = vpack.c.b16 %v268, %v267
  %v314 = vpack.c.b16 %v270, %v269
  %v315 = vpack.c.b16 %v272, %v271
  %v316 = vpack.c.b16 %v274, %v273
  %v317 = vpack.c.b16 %v276, %v275
  %v318 = vpack.c.b16 %v278, %v277
  %359 = vmatprep.subr.bf16.mxu0 0
  %360 = vmatpush1.bf16.msra.mxu0 %v286
  %361 = vmatprep.subr.bf16.mxu0 0
  %362 = vmatpush1.bf16.msra.mxu0 %v285
  %363 = vmatprep.subr.bf16.mxu0 0
  %364 = vmatpush1.bf16.msra.mxu0 %v284
  %365 = vmatprep.subr.bf16.mxu0 0
  %366 = vmatpush1.bf16.msra.mxu0 %v283
  %367 = vmatprep.subr.bf16.mxu0 0
  %368 = vmatpush1.bf16.msra.mxu0 %v282
  %369 = vmatprep.subr.bf16.mxu0 0
  %370 = vmatpush1.bf16.msra.mxu0 %v281
  %371 = vmatprep.subr.bf16.mxu0 0
  %372 = vmatpush1.bf16.msra.mxu0 %v280
  %373 = vmatprep.subr.bf16.mxu0 0
  %374 = vmatpush1.bf16.msra.mxu0 %v279
  %375 = vmatprep.subr.bf16.mxu0 0
  %376 = vmatpush2.bf16.msra.mxu0 %v294
  %377 = vmatprep.subr.bf16.mxu0 0
  %378 = vmatpush2.bf16.msra.mxu0 %v293
  %379 = vmatprep.subr.bf16.mxu0 0
  %380 = vmatpush2.bf16.msra.mxu0 %v292
  %381 = vmatprep.subr.bf16.mxu0 0
  %382 = vmatpush2.bf16.msra.mxu0 %v291
  %383 = vmatprep.subr.bf16.mxu0 0
  %384 = vmatpush2.bf16.msra.mxu0 %v290
  %385 = vmatprep.subr.bf16.mxu0 0
  %386 = vmatpush2.bf16.msra.mxu0 %v289
  %387 = vmatprep.subr.bf16.mxu0 0
  %388 = vmatpush2.bf16.msra.mxu0 %v288
  %389 = vmatprep.subr.bf16.mxu0 0
  %390 = vmatpush2.bf16.msra.mxu0 %v287
  %391 = vmatprep.mubr.bf16.mxu0 %v110
  %392 = vmatmul.mubr.bf16.gmra.mxu0 %v109
  %v393 = vpop.f32.mrf.mxu0
  %v394 = vadd.f32 0.0, %v393
  %v395 = vpop.f32.mrf.mxu0
  %v396 = vpop.f32.mrf.mxu0
  %v397 = vpop.f32.mrf.mxu0
  %398 = vdwg.mxu0
  %399 = vmatprep.subr.bf16.mxu0 0
  %400 = vmatpush1.bf16.msra.mxu0 %v302
  %401 = vmatprep.subr.bf16.mxu0 0
  %402 = vmatpush1.bf16.msra.mxu0 %v301
  %403 = vmatprep.subr.bf16.mxu0 0
  %404 = vmatpush1.bf16.msra.mxu0 %v300
  %405 = vmatprep.subr.bf16.mxu0 0
  %406 = vmatpush1.bf16.msra.mxu0 %v299
  %407 = vmatprep.subr.bf16.mxu0 0
  %408 = vmatpush1.bf16.msra.mxu0 %v298
  %409 = vmatprep.subr.bf16.mxu0 0
  %410 = vmatpush1.bf16.msra.mxu0 %v297
  %411 = vmatprep.subr.bf16.mxu0 0
  %412 = vmatpush1.bf16.msra.mxu0 %v296
  %413 = vmatprep.subr.bf16.mxu0 0
  %414 = vmatpush1.bf16.msra.mxu0 %v295
  %415 = vmatprep.subr.bf16.mxu0 0
  %416 = vmatpush2.bf16.msra.mxu0 %v310
  %417 = vmatprep.subr.bf16.mxu0 0
  %418 = vmatpush2.bf16.msra.mxu0 %v309
  %419 = vmatprep.subr.bf16.mxu0 0
  %420 = vmatpush2.bf16.msra.mxu0 %v308
  %421 = vmatprep.subr.bf16.mxu0 0
  %422 = vmatpush2.bf16.msra.mxu0 %v307
  %423 = vmatprep.subr.bf16.mxu0 0
  %424 = vmatpush2.bf16.msra.mxu0 %v306
  %425 = vmatprep.subr.bf16.mxu0 0
  %426 = vmatpush2.bf16.msra.mxu0 %v305
  %427 = vmatprep.subr.bf16.mxu0 0
  %428 = vmatpush2.bf16.msra.mxu0 %v304
  %429 = vmatprep.subr.bf16.mxu0 0
  %430 = vmatpush2.bf16.msra.mxu0 %v303
  %431 = vmatprep.mubr.bf16.mxu0 %v112
  %432 = vmatmul.mubr.bf16.gmra.mxu0 %v111
  %v433 = vpop.f32.mrf.mxu0
  %v434 = vadd.f32 %v394, %v433
  %v435 = vpop.f32.mrf.mxu0
  %v436 = vpop.f32.mrf.mxu0
  %v437 = vpop.f32.mrf.mxu0
  %438 = vdwg.mxu0
  %439 = vmatprep.subr.bf16.mxu0 0
  %440 = vmatpush1.bf16.msra.mxu0 %v318
  %441 = vmatprep.subr.bf16.mxu0 0
  %442 = vmatpush1.bf16.msra.mxu0 %v317
  %443 = vmatprep.subr.bf16.mxu0 0
  %444 = vmatpush1.bf16.msra.mxu0 %v316
  %445 = vmatprep.subr.bf16.mxu0 0
  %446 = vmatpush1.bf16.msra.mxu0 %v315
  %447 = vmatprep.subr.bf16.mxu0 0
  %448 = vmatpush1.bf16.msra.mxu0 %v314
  %449 = vmatprep.subr.bf16.mxu0 0
  %450 = vmatpush1.bf16.msra.mxu0 %v313
  %451 = vmatprep.subr.bf16.mxu0 0
  %452 = vmatpush1.bf16.msra.mxu0 %v312
  %453 = vmatprep.subr.bf16.mxu0 0
  %454 = vmatpush1.bf16.msra.mxu0 %v311
  %455 = vmatprep.subr.bf16.mxu0 0
  %456 = vmatpush2.bf16.msra.mxu0 0
  %457 = vmatprep.subr.bf16.mxu0 0
  %458 = vmatpush2.bf16.msra.mxu0 0
  %459 = vmatprep.subr.bf16.mxu0 0
  %460 = vmatpush2.bf16.msra.mxu0 0
  %461 = vmatprep.subr.bf16.mxu0 0
  %462 = vmatpush2.bf16.msra.mxu0 0
  %463 = vmatprep.subr.bf16.mxu0 0
  %464 = vmatpush2.bf16.msra.mxu0 0
  %465 = vmatprep.subr.bf16.mxu0 0
  %466 = vmatpush2.bf16.msra.mxu0 0
  %467 = vmatprep.subr.bf16.mxu0 0
  %468 = vmatpush2.bf16.msra.mxu0 0
  %469 = vmatprep.subr.bf16.mxu0 0
  %470 = vmatpush2.bf16.msra.mxu0 0
  %471 = vmatprep.mubr.bf16.mxu0 0
  %472 = vmatmul.mubr.bf16.gmra.mxu0 %v113
  %v473 = vpop.f32.mrf.mxu0
  %v474 = vadd.f32 %v434, %v473
  %v475 = vpop.f32.mrf.mxu0
  %v476 = vpop.f32.mrf.mxu0
  %v477 = vpop.f32.mrf.mxu0
  %478 = vdwg.mxu0
  %v479 = vld [vmem:[%s2] sm:$0x1]
  %v481 = vlaneseq
  %v482 = vshrl.u32 %v481, 7
  %v483 = vsub.s32 0, %v482
  %v484 = vrot.slane %v479, %v483
  %v486 = vmul.f32 %v474, %v484
  %v487 = vld [vmem:[%s3] sm:$0x1]
  %v489 = vlaneseq
  %v490 = vshrl.u32 %v489, 7
  %v491 = vsub.s32 0, %v490
  %v492 = vrot.slane %v487, %v491
  %v494 = vadd.f32 %v486, %v492
  %v495 = vmax.f32 %v494, 0.0
  %v496 = vpack.c.bf16 %v495, %v495
  %497 = vst [vmem:[%s4] sm:$0xf] %v496
  // Predicated region
  $region18: #{deeplab_forward.20} parent=0 // pred_check
    _
  $region19: #{deeplab_forward.20} parent=0 // pred_check_branch
    %499 = sbr.rel (0) target = $region21
  $region20: #{deeplab_forward.20} parent=0 // pred_region
    _
  $region21: #{deeplab_forward.20} parent=0 // pred_fallthru
    _
  // Predicated region
  $region22: #{deeplab_forward.20} parent=0 // pred_check
    _
  $region23: #{deeplab_forward.20} parent=0 // pred_check_branch
    %501 = sbr.rel (0) target = $region25
  $region24: #{deeplab_forward.20} parent=0 // pred_region
    _
  $region25: #{deeplab_forward.20} parent=0 // pred_fallthru
    _

// kernel: deeplab_forward.26
$region0: #{deeplab_forward.26}
  #allocation0 [shape = 'u32[]', space=smem, size = 0x4, offset = 0x4, fixed_abs, tag = 'smem constant byte address 0x4 - core index']
  #allocation1 [shape = 'u32[144,128]{1,0:T(1,128)}', space=vmem, size = 0x12000, scoped, tag = 'internal scratch']
  %s0 = inlined_call_operand.vmem [shape: bf16[32,128], index: 0, kind: input, shape index: {}]
  %s1 = inlined_call_operand.vmem [shape: bf16[128,256], index: 1, kind: input, shape index: {}]
  %s2 = inlined_call_operand.vmem [shape: f32[1,256], index: 2, kind: input, shape index: {}]
  %s3 = inlined_call_operand.vmem [shape: f32[1,256], index: 3, kind: input, shape index: {}]
  %s4 = inlined_call_operand.vmem [shape: bf16[32,256], index: 4, kind: output, shape index: {}]
  %s5 = sld [smem:[#allocation0]]
  $region127: #{deeplab_forward.26} parent=0
    _
  %s7 = ssub.s32 1, %s5
  %s8 = scalar_select 0, %s7, %s5
  $region1: #{deeplab_forward.26} parent=0
    #allocation2 [shape = 'u8[65536]{0}', space=vmem, size = 0x10000, scoped, tag = 'input window, operand 1']
    #allocation3 [shape = 'u8[16384]{0}', space=vmem, size = 0x4000, scoped, tag = 'output window, operand 0']
    loop: start=0, step=1, limit=4
    $region2: #{deeplab_forward.26} parent=1 // loop_pre_header
      _
    $region3: #{deeplab_forward.26} parent=1 // loop_header
      %s10 = sphi 0, %s14
      %p11 = scmp.ge.s32.totalorder %s10, 4
      %s17 = sphi 0, %s29
      %s18 = sphi 0, %s25
      %s19 = sphi 0, %s17
      %s20 = sphi 0, %s18
      %s21 = sphi 0, %s19
      %s22 = sphi 0, %s20
      %s32 = sphi 0, %s34
      %s35 = sphi 0, %s32
      %s36 = sphi 0, %s35
      %s52 = sphi 0, %s36
      %s58 = sphi 0, %s60
      %s61 = sphi 0, %s58
      %s62 = sphi 0, %s61
      %s78 = sphi 0, %s62
      %s84 = sphi 0, %s86
      %s87 = sphi 0, %s84
      %s88 = sphi 0, %s87
      %s104 = sphi 0, %s88
      %s110 = sphi 0, %s112
      %s113 = sphi 0, %s110
      %s114 = sphi 0, %s113
      %s130 = sphi 0, %s114
      %s138 = sphi 0, %s140
      %s141 = sphi 0, %s138
      %s142 = sphi 0, %s141
      %s158 = sphi 0, %s142
    $region4: #{deeplab_forward.26} parent=1 // loop_header_branch
      %13 = sbr.rel (%p11) target = $region8
    $region5: #{deeplab_forward.26} parent=1 // loop_body
      %s15 = ssub.s32 %s10, 1
      %s16 = ssub.s32 %s10, 2
      %s23 = sadd.s32 1, %s18
      %p24 = scmp.ge.s32.totalorder %s23, 2
      %s25 = scalar_select %p24, 0, %s23
      %s26 = sadd.s32 1, %s17
      %s27 = scalar_select %p24, %s26, %s17
      %p28 = scmp.ge.s32.totalorder %s27, 1
      %s29 = scalar_select %p28, 0, %s27
      %s30 = ssub.s32 %s17, %s29
      %p31 = scmp.eq.s32.totalorder %s30, 0
      %s33 = sadd.s32 %s32, 1
      %s34 = scalar_select %p31, %s32, %s33
      %p37 = pneg %p31
      %p38 = scmp.eq.s32.totalorder %s10, 1
      %p39 = por %p37, %p38
      %p40 = scmp.ne.s32.totalorder %s32, %s35
      %p41 = scmp.eq.s32.totalorder %s10, 0
      %p42 = por %p40, %p41
      %p43 = scmp.ne.s32.totalorder %s32, %s35
      %p44 = scmp.eq.s32.totalorder %s15, 1
      %p45 = por %p43, %p44
      %p46 = scmp.ne.s32.totalorder %s35, %s36
      %p47 = scmp.eq.s32.totalorder %s15, 0
      %p48 = por %p46, %p47
      %p49 = scmp.ne.s32.totalorder %s35, %s36
      %p50 = scmp.eq.s32.totalorder %s16, 1
      %p51 = por %p49, %p50
      %p53 = scmp.ne.s32.totalorder %s36, %s52
      %p54 = scmp.eq.s32.totalorder %s16, 0
      %p55 = por %p53, %p54
      %s56 = ssub.s32 %s18, %s25
      %p57 = scmp.eq.s32.totalorder %s56, 0
      %s59 = sadd.s32 %s58, 1
      %s60 = scalar_select %p57, %s58, %s59
      %p63 = pneg %p57
      %p64 = scmp.eq.s32.totalorder %s10, 1
      %p65 = por %p63, %p64
      %p66 = scmp.ne.s32.totalorder %s58, %s61
      %p67 = scmp.eq.s32.totalorder %s10, 0
      %p68 = por %p66, %p67
      %p69 = scmp.ne.s32.totalorder %s58, %s61
      %p70 = scmp.eq.s32.totalorder %s15, 1
      %p71 = por %p69, %p70
      %p72 = scmp.ne.s32.totalorder %s61, %s62
      %p73 = scmp.eq.s32.totalorder %s15, 0
      %p74 = por %p72, %p73
      %p75 = scmp.ne.s32.totalorder %s61, %s62
      %p76 = scmp.eq.s32.totalorder %s16, 1
      %p77 = por %p75, %p76
      %p79 = scmp.ne.s32.totalorder %s62, %s78
      %p80 = scmp.eq.s32.totalorder %s16, 0
      %p81 = por %p79, %p80
      %s82 = ssub.s32 %s18, %s25
      %p83 = scmp.eq.s32.totalorder %s82, 0
      %s85 = sadd.s32 %s84, 1
      %s86 = scalar_select %p83, %s84, %s85
      %p89 = pneg %p83
      %p90 = scmp.eq.s32.totalorder %s10, 1
      %p91 = por %p89, %p90
      %p92 = scmp.ne.s32.totalorder %s84, %s87
      %p93 = scmp.eq.s32.totalorder %s10, 0
      %p94 = por %p92, %p93
      %p95 = scmp.ne.s32.totalorder %s84, %s87
      %p96 = scmp.eq.s32.totalorder %s15, 1
      %p97 = por %p95, %p96
      %p98 = scmp.ne.s32.totalorder %s87, %s88
      %p99 = scmp.eq.s32.totalorder %s15, 0
      %p100 = por %p98, %p99
      %p101 = scmp.ne.s32.totalorder %s87, %s88
      %p102 = scmp.eq.s32.totalorder %s16, 1
      %p103 = por %p101, %p102
      %p105 = scmp.ne.s32.totalorder %s88, %s104
      %p106 = scmp.eq.s32.totalorder %s16, 0
      %p107 = por %p105, %p106
      %s108 = ssub.s32 %s18, %s25
      %p109 = scmp.eq.s32.totalorder %s108, 0
      %s111 = sadd.s32 %s110, 1
      %s112 = scalar_select %p109, %s110, %s111
      %p115 = pneg %p109
      %p116 = scmp.eq.s32.totalorder %s10, 1
      %p117 = por %p115, %p116
      %p118 = scmp.ne.s32.totalorder %s110, %s113
      %p119 = scmp.eq.s32.totalorder %s10, 0
      %p120 = por %p118, %p119
      %p121 = scmp.ne.s32.totalorder %s110, %s113
      %p122 = scmp.eq.s32.totalorder %s15, 1
      %p123 = por %p121, %p122
      %p124 = scmp.ne.s32.totalorder %s113, %s114
      %p125 = scmp.eq.s32.totalorder %s15, 0
      %p126 = por %p124, %p125
      %p127 = scmp.ne.s32.totalorder %s113, %s114
      %p128 = scmp.eq.s32.totalorder %s16, 1
      %p129 = por %p127, %p128
      %p131 = scmp.ne.s32.totalorder %s114, %s130
      %p132 = scmp.eq.s32.totalorder %s16, 0
      %p133 = por %p131, %p132
      %s134 = ssub.s32 %s17, %s29
      %s135 = ssub.s32 %s18, %s25
      %s136 = sor.u32 %s134, %s135
      %p137 = scmp.eq.s32.totalorder %s136, 0
      %s139 = sadd.s32 %s138, 1
      %s140 = scalar_select %p137, %s138, %s139
      %p143 = pneg %p137
      %p144 = scmp.eq.s32.totalorder %s10, 1
      %p145 = por %p143, %p144
      %p146 = scmp.ne.s32.totalorder %s138, %s141
      %p147 = scmp.eq.s32.totalorder %s10, 0
      %p148 = por %p146, %p147
      %p149 = scmp.ne.s32.totalorder %s138, %s141
      %p150 = scmp.eq.s32.totalorder %s15, 1
      %p151 = por %p149, %p150
      %p152 = scmp.ne.s32.totalorder %s141, %s142
      %p153 = scmp.eq.s32.totalorder %s15, 0
      %p154 = por %p152, %p153
      %p155 = scmp.ne.s32.totalorder %s141, %s142
      %p156 = scmp.eq.s32.totalorder %s16, 1
      %p157 = por %p155, %p156
      %p159 = scmp.ne.s32.totalorder %s142, %s158
      %p160 = scmp.eq.s32.totalorder %s16, 0
      %p161 = por %p159, %p160
      %p162 = scmp.le.s32.totalorder 1, %s10
      %p163 = scmp.lt.s32.totalorder %s10, 3
      %p164 = pnand %p162, %p163
      %p165 = pneg %p164
      // Predicated region
      $region9: #{deeplab_forward.26} parent=5 // pred_check
        _
      $region10: #{deeplab_forward.26} parent=5 // pred_check_branch
        %167 = sbr.rel (%p164) target = $region12
      $region11: #{deeplab_forward.26} parent=5 // pred_region
        %s168 = ssub.s32 %s10, 1
        // Predicated region
        $region13: #{deeplab_forward.26} parent=11 // pred_check
          %p169 = pneg %p48
        $region14: #{deeplab_forward.26} parent=11 // pred_check_branch
          %171 = sbr.rel (%p169) target = $region16
        $region15: #{deeplab_forward.26} parent=11 // pred_region
          %s172 = smul.u32 4, %s19
          %p173 = scmp.lt.s32.totalorder %s172, 3
          %s174 = scalar_select %p173, %s172, 3
          %s175 = smul.addr %s174, 4
          %s176 = scalar_lea.vmem %s0, %s175
          %s177 = smul.u32 4, %s19
        $region16: #{deeplab_forward.26} parent=11 // pred_fallthru
          _
      $region12: #{deeplab_forward.26} parent=5 // pred_fallthru
        _
      %p178 = scmp.lt.s32.totalorder %s10, 2
      // Predicated region
      $region17: #{deeplab_forward.26} parent=5 // pred_check
        %p179 = pneg %p178
      $region18: #{deeplab_forward.26} parent=5 // pred_check_branch
        %181 = sbr.rel (%p179) target = $region20
      $region19: #{deeplab_forward.26} parent=5 // pred_region
        // Predicated region
        $region21: #{deeplab_forward.26} parent=19 // pred_check
          %p182 = pneg %p68
        $region22: #{deeplab_forward.26} parent=19 // pred_check_branch
          %184 = sbr.rel (%p182) target = $region24
        $region23: #{deeplab_forward.26} parent=19 // pred_region
          %s185 = sand.u32 %s58, 1
          %s186 = sand.u32 %s58, 1
          %s187 = smul.addr %s186, 64
          %s188 = scalar_lea.vmem [#allocation2], %s187
          %s189 = smul.addr %s18, 4
          %s190 = scalar_lea.vmem %s1, %s189
          // Predicated region
          $region25: #{deeplab_forward.26} parent=23 // pred_check
            _
          $region26: #{deeplab_forward.26} parent=23 // pred_check_branch
            %192 = sbr.rel (0) target = $region28
          $region27: #{deeplab_forward.26} parent=23 // pred_region
            // Predicated region
            $region29: #{deeplab_forward.26} parent=27 // pred_check
              _
            $region30: #{deeplab_forward.26} parent=27 // pred_check_branch
              %194 = sbr.rel target = $region32
            $region31: #{deeplab_forward.26} parent=27 // pred_region
              // Predicated region
              $region44: #{deeplab_forward.26} parent=31 // pred_check
                _
              $region45: #{deeplab_forward.26} parent=31 // pred_check_branch
                %240 = sbr.rel (0) target = $region47
              $region46: #{deeplab_forward.26} parent=31 // pred_region
                loop: start=0, step=1, limit=1
                $region48: #{deeplab_forward.26} parent=46 // loop_pre_header
                  _
                $region49: #{deeplab_forward.26} parent=46 // loop_header
                  %s242 = sphi 0, %s246
                  %p243 = scmp.ge.s32.totalorder %s242, 1
                  %s247 = sphi %s190, %s190
                  %s248 = sphi %s188, %s188
                $region50: #{deeplab_forward.26} parent=46 // loop_header_branch
                  %245 = sbr.rel (%p243) target = $region54
                $region51: #{deeplab_forward.26} parent=46 // loop_body
                  _
                $region52: #{deeplab_forward.26} parent=46 // loop_footer
                  %s246 = sadd.s32 1, %s242
                $region53: #{deeplab_forward.26} parent=46 // loop_footer_branch
                  %241 = sbr.rel target = $region49
                $region54: #{deeplab_forward.26} parent=46 // loop_exit
                  _
                %s250 = ssub.s32 16, 1
                loop: start=0, step=1, limit=1
                $region55: #{deeplab_forward.26} parent=46 // loop_pre_header
                  _
                $region56: #{deeplab_forward.26} parent=46 // loop_header
                  %s252 = sphi 0, %s256
                  %p253 = scmp.ge.s32.totalorder %s252, 1
                  %s257 = sphi %s190, %s190
                  %s258 = sphi %s188, %s188
                $region57: #{deeplab_forward.26} parent=46 // loop_header_branch
                  %255 = sbr.rel (%p253) target = $region61
                $region58: #{deeplab_forward.26} parent=46 // loop_body
                  %v259 = vld [vmem:[%s257] sm:%s250]
                  %260 = vst [vmem:[%s258] sm:%s250] %v259
                  %v261 = vld [vmem:[%s257 + $0x8] sm:%s250]
                  %262 = vst [vmem:[%s258 + $0x4] sm:%s250] %v261
                  %v263 = vld [vmem:[%s257 + $0x10] sm:%s250]
                  %264 = vst [vmem:[%s258 + $0x8] sm:%s250] %v263
                  %v265 = vld [vmem:[%s257 + $0x18] sm:%s250]
                  %266 = vst [vmem:[%s258 + $0xc] sm:%s250] %v265
                  %v267 = vld [vmem:[%s257 + $0x20] sm:%s250]
                  %268 = vst [vmem:[%s258 + $0x10] sm:%s250] %v267
                  %v269 = vld [vmem:[%s257 + $0x28] sm:%s250]
                  %270 = vst [vmem:[%s258 + $0x14] sm:%s250] %v269
                  %v271 = vld [vmem:[%s257 + $0x30] sm:%s250]
                  %272 = vst [vmem:[%s258 + $0x18] sm:%s250] %v271
                  %v273 = vld [vmem:[%s257 + $0x38] sm:%s250]
                  %274 = vst [vmem:[%s258 + $0x1c] sm:%s250] %v273
                  %v275 = vld [vmem:[%s257 + $0x40] sm:%s250]
                  %276 = vst [vmem:[%s258 + $0x20] sm:%s250] %v275
                  %v277 = vld [vmem:[%s257 + $0x48] sm:%s250]
                  %278 = vst [vmem:[%s258 + $0x24] sm:%s250] %v277
                  %v279 = vld [vmem:[%s257 + $0x50] sm:%s250]
                  %280 = vst [vmem:[%s258 + $0x28] sm:%s250] %v279
                  %v281 = vld [vmem:[%s257 + $0x58] sm:%s250]
                  %282 = vst [vmem:[%s258 + $0x2c] sm:%s250] %v281
                  %v283 = vld [vmem:[%s257 + $0x60] sm:%s250]
                  %284 = vst [vmem:[%s258 + $0x30] sm:%s250] %v283
                  %v285 = vld [vmem:[%s257 + $0x68] sm:%s250]
                  %286 = vst [vmem:[%s258 + $0x34] sm:%s250] %v285
                  %v287 = vld [vmem:[%s257 + $0x70] sm:%s250]
                  %288 = vst [vmem:[%s258 + $0x38] sm:%s250] %v287
                  %v289 = vld [vmem:[%s257 + $0x78] sm:%s250]
                  %290 = vst [vmem:[%s258 + $0x3c] sm:%s250] %v289
                $region59: #{deeplab_forward.26} parent=46 // loop_footer
                  %s256 = sadd.s32 1, %s252
                $region60: #{deeplab_forward.26} parent=46 // loop_footer_branch
                  %251 = sbr.rel target = $region56
                $region61: #{deeplab_forward.26} parent=46 // loop_exit
                  _
              $region47: #{deeplab_forward.26} parent=31 // pred_fallthru
                _
            $region32: #{deeplab_forward.26} parent=27 // pred_fallthru
              _
            // Predicated region
            $region33: #{deeplab_forward.26} parent=27 // pred_check
              _
            $region34: #{deeplab_forward.26} parent=27 // pred_check_branch
              %196 = sbr.rel (0) target = $region36
            $region35: #{deeplab_forward.26} parent=27 // pred_region
              %s198 = ssub.s32 16, 1
              loop: start=0, step=1, limit=1
              $region37: #{deeplab_forward.26} parent=35 // loop_pre_header
                _
              $region38: #{deeplab_forward.26} parent=35 // loop_header
                %s200 = sphi 0, %s204
                %p201 = scmp.ge.s32.totalorder %s200, 1
                %s205 = sphi %s190, %s190
                %s206 = sphi %s188, %s188
              $region39: #{deeplab_forward.26} parent=35 // loop_header_branch
                %203 = sbr.rel (%p201) target = $region43
              $region40: #{deeplab_forward.26} parent=35 // loop_body
                %v207 = vld [vmem:[%s205] sm:%s198]
                %208 = vst [vmem:[%s206] sm:%s198] %v207
                %v209 = vld [vmem:[%s205 + $0x8] sm:%s198]
                %210 = vst [vmem:[%s206 + $0x4] sm:%s198] %v209
                %v211 = vld [vmem:[%s205 + $0x10] sm:%s198]
                %212 = vst [vmem:[%s206 + $0x8] sm:%s198] %v211
                %v213 = vld [vmem:[%s205 + $0x18] sm:%s198]
                %214 = vst [vmem:[%s206 + $0xc] sm:%s198] %v213
                %v215 = vld [vmem:[%s205 + $0x20] sm:%s198]
                %216 = vst [vmem:[%s206 + $0x10] sm:%s198] %v215
                %v217 = vld [vmem:[%s205 + $0x28] sm:%s198]
                %218 = vst [vmem:[%s206 + $0x14] sm:%s198] %v217
                %v219 = vld [vmem:[%s205 + $0x30] sm:%s198]
                %220 = vst [vmem:[%s206 + $0x18] sm:%s198] %v219
                %v221 = vld [vmem:[%s205 + $0x38] sm:%s198]
                %222 = vst [vmem:[%s206 + $0x1c] sm:%s198] %v221
                %v223 = vld [vmem:[%s205 + $0x40] sm:%s198]
                %224 = vst [vmem:[%s206 + $0x20] sm:%s198] %v223
                %v225 = vld [vmem:[%s205 + $0x48] sm:%s198]
                %226 = vst [vmem:[%s206 + $0x24] sm:%s198] %v225
                %v227 = vld [vmem:[%s205 + $0x50] sm:%s198]
                %228 = vst [vmem:[%s206 + $0x28] sm:%s198] %v227
                %v229 = vld [vmem:[%s205 + $0x58] sm:%s198]
                %230 = vst [vmem:[%s206 + $0x2c] sm:%s198] %v229
                %v231 = vld [vmem:[%s205 + $0x60] sm:%s198]
                %232 = vst [vmem:[%s206 + $0x30] sm:%s198] %v231
                %v233 = vld [vmem:[%s205 + $0x68] sm:%s198]
                %234 = vst [vmem:[%s206 + $0x34] sm:%s198] %v233
                %v235 = vld [vmem:[%s205 + $0x70] sm:%s198]
                %236 = vst [vmem:[%s206 + $0x38] sm:%s198] %v235
                %v237 = vld [vmem:[%s205 + $0x78] sm:%s198]
                %238 = vst [vmem:[%s206 + $0x3c] sm:%s198] %v237
              $region41: #{deeplab_forward.26} parent=35 // loop_footer
                %s204 = sadd.s32 1, %s200
              $region42: #{deeplab_forward.26} parent=35 // loop_footer_branch
                %199 = sbr.rel target = $region38
              $region43: #{deeplab_forward.26} parent=35 // loop_exit
                _
            $region36: #{deeplab_forward.26} parent=27 // pred_fallthru
              _
          $region28: #{deeplab_forward.26} parent=23 // pred_fallthru
            _
          %291 = vnop
        $region24: #{deeplab_forward.26} parent=19 // pred_fallthru
          _
        // Predicated region
        $region62: #{deeplab_forward.26} parent=19 // pred_check
          %p292 = pneg %p94
        $region63: #{deeplab_forward.26} parent=19 // pred_check_branch
          %294 = sbr.rel (%p292) target = $region65
        $region64: #{deeplab_forward.26} parent=19 // pred_region
          %p295 = scmp.lt.s32.totalorder %s18, 1
          %s296 = scalar_select %p295, %s18, 1
          %s297 = scalar_lea.vmem %s2, %s296
        $region65: #{deeplab_forward.26} parent=19 // pred_fallthru
          _
        // Predicated region
        $region66: #{deeplab_forward.26} parent=19 // pred_check
          %p298 = pneg %p120
        $region67: #{deeplab_forward.26} parent=19 // pred_check_branch
          %300 = sbr.rel (%p298) target = $region69
        $region68: #{deeplab_forward.26} parent=19 // pred_region
          %p301 = scmp.lt.s32.totalorder %s18, 1
          %s302 = scalar_select %p301, %s18, 1
          %s303 = scalar_lea.vmem %s3, %s302
        $region69: #{deeplab_forward.26} parent=19 // pred_fallthru
          _
      $region20: #{deeplab_forward.26} parent=5 // pred_fallthru
        _
      %p304 = scmp.le.s32.totalorder 1, %s10
      %p305 = scmp.lt.s32.totalorder %s10, 3
      %p306 = pnand %p304, %p305
      %p307 = pneg %p306
      // Predicated region
      $region70: #{deeplab_forward.26} parent=5 // pred_check
        _
      $region71: #{deeplab_forward.26} parent=5 // pred_check_branch
        %309 = sbr.rel (%p306) target = $region73
      $region72: #{deeplab_forward.26} parent=5 // pred_region
        %s310 = ssub.s32 %s10, 1
        %s311 = sand.u32 %s61, 1
        %s312 = sand.u32 %s61, 1
        %s313 = smul.addr %s312, 64
        %s314 = scalar_lea.vmem [#allocation2], %s313
        // Predicated region
        $region74: #{deeplab_forward.26} parent=72 // pred_check
          %p315 = pneg %p74
        $region75: #{deeplab_forward.26} parent=72 // pred_check_branch
          %317 = sbr.rel (%p315) target = $region77
        $region76: #{deeplab_forward.26} parent=72 // pred_region
          _
        $region77: #{deeplab_forward.26} parent=72 // pred_fallthru
          _
        %s318 = smul.u32 4, %s19
        %p319 = scmp.lt.s32.totalorder %s318, 3
        %s320 = scalar_select %p319, %s318, 3
        %s321 = smul.addr %s320, 4
        %s322 = scalar_lea.vmem %s0, %s321
        %p323 = pneg %p48
        %p324 = pneg %p45
        %s325 = sand.u32 %s61, 1
        %s326 = sand.u32 %s61, 1
        %s327 = smul.addr %s326, 64
        %s328 = scalar_lea.vmem [#allocation2], %s327
        %p329 = pneg %p74
        %p330 = pneg %p71
        %p331 = scmp.lt.s32.totalorder %s20, 1
        %s332 = scalar_select %p331, %s20, 1
        %s333 = scalar_lea.vmem %s2, %s332
        %p334 = pneg %p100
        %p335 = pneg %p97
        %p336 = scmp.lt.s32.totalorder %s20, 1
        %s337 = scalar_select %p336, %s20, 1
        %s338 = scalar_lea.vmem %s3, %s337
        %p339 = pneg %p126
        %p340 = pneg %p123
        %p341 = pneg %p154
        %p342 = pneg %p151
        %s343 = sand.u32 %s141, 1
        %s344 = sand.u32 %s141, 1
        %s345 = smul.addr %s344, 16
        %s346 = scalar_lea.vmem [#allocation3], %s345
        %s347 = smul.u32 4, %s19
        %p348 = scmp.lt.s32.totalorder %s347, 3
        %s349 = scalar_select %p348, %s347, 3
        %s350 = smul.addr %s349, 4
        %s351 = scalar_lea.vmem %s0, %s350
        %s352 = smul.u32 4, %s19
        %p353 = scmp.lt.s32.totalorder %s20, 1
        %s354 = scalar_select %p353, %s20, 1
        %s355 = scalar_lea.vmem %s2, %s354
        %p356 = scmp.lt.s32.totalorder %s20, 1
        %s357 = scalar_select %p356, %s20, 1
        %s358 = scalar_lea.vmem %s3, %s357
        %s359 = smul.u32 4, %s19
        %v361 = vld [vmem:[%s351] sm:$0xf]
        %v362 = vld [vmem:[%s351 + $0x4] sm:$0xf]
        %v363 = vld [vmem:[%s351 + $0x8] sm:$0xf]
        %v364 = vld [vmem:[%s351 + $0xc] sm:$0xf]
        %v365 = vld [vmem:[%s314] sm:$0xf]
        %v366 = vld [vmem:[%s314 + $0x4] sm:$0xf]
        %v367 = vld [vmem:[%s314 + $0x8] sm:$0xf]
        %v368 = vld [vmem:[%s314 + $0xc] sm:$0xf]
        %v369 = vld [vmem:[%s314 + $0x10] sm:$0xf]
        %v370 = vld [vmem:[%s314 + $0x14] sm:$0xf]
        %v371 = vld [vmem:[%s314 + $0x18] sm:$0xf]
        %v372 = vld [vmem:[%s314 + $0x1c] sm:$0xf]
        %v373 = vld [vmem:[%s314 + $0x20] sm:$0xf]
        %v374 = vld [vmem:[%s314 + $0x24] sm:$0xf]
        %v375 = vld [vmem:[%s314 + $0x28] sm:$0xf]
        %v376 = vld [vmem:[%s314 + $0x2c] sm:$0xf]
        %v377 = vld [vmem:[%s314 + $0x30] sm:$0xf]
        %v378 = vld [vmem:[%s314 + $0x34] sm:$0xf]
        %v379 = vld [vmem:[%s314 + $0x38] sm:$0xf]
        %v380 = vld [vmem:[%s314 + $0x3c] sm:$0xf]
        %v385 = vunpack.c.l.b16 %v361
        %v386 = vunpack.c.l.b16 %v362
        %v387 = vunpack.c.l.b16 %v363
        %v388 = vunpack.c.l.b16 %v364
        %v389 = vpack.c.b16 %v386, %v385
        %v390 = vpack.c.b16 %v388, %v387
        %v409 = vunpack.c.l.b16 %v365
        %v410 = vunpack.c.l.b16 %v366
        %v411 = vunpack.c.l.b16 %v367
        %v412 = vunpack.c.l.b16 %v368
        %v413 = vunpack.c.l.b16 %v369
        %v414 = vunpack.c.l.b16 %v370
        %v415 = vunpack.c.l.b16 %v371
        %v416 = vunpack.c.l.b16 %v372
        %v417 = vunpack.c.l.b16 %v373
        %v418 = vunpack.c.l.b16 %v374
        %v419 = vunpack.c.l.b16 %v375
        %v420 = vunpack.c.l.b16 %v376
        %v421 = vunpack.c.l.b16 %v377
        %v422 = vunpack.c.l.b16 %v378
        %v423 = vunpack.c.l.b16 %v379
        %v424 = vunpack.c.l.b16 %v380
        %v425 = vpack.c.b16 %v410, %v409
        %v426 = vpack.c.b16 %v412, %v411
        %v427 = vpack.c.b16 %v414, %v413
        %v428 = vpack.c.b16 %v416, %v415
        %v429 = vpack.c.b16 %v418, %v417
        %v430 = vpack.c.b16 %v420, %v419
        %v431 = vpack.c.b16 %v422, %v421
        %v432 = vpack.c.b16 %v424, %v423
        %441 = vmatprep.subr.bf16.mxu0 0
        %442 = vmatpush1.bf16.msra.mxu0 %v432
        %443 = vmatprep.subr.bf16.mxu0 0
        %444 = vmatpush1.bf16.msra.mxu0 %v431
        %445 = vmatprep.subr.bf16.mxu0 0
        %446 = vmatpush1.bf16.msra.mxu0 %v430
        %447 = vmatprep.subr.bf16.mxu0 0
        %448 = vmatpush1.bf16.msra.mxu0 %v429
        %449 = vmatprep.subr.bf16.mxu0 0
        %450 = vmatpush1.bf16.msra.mxu0 %v428
        %451 = vmatprep.subr.bf16.mxu0 0
        %452 = vmatpush1.bf16.msra.mxu0 %v427
        %453 = vmatprep.subr.bf16.mxu0 0
        %454 = vmatpush1.bf16.msra.mxu0 %v426
        %455 = vmatprep.subr.bf16.mxu0 0
        %456 = vmatpush1.bf16.msra.mxu0 %v425
        %457 = vmatprep.subr.bf16.mxu0 0
        %458 = vmatpush2.bf16.msra.mxu0 0
        %459 = vmatprep.subr.bf16.mxu0 0
        %460 = vmatpush2.bf16.msra.mxu0 0
        %461 = vmatprep.subr.bf16.mxu0 0
        %462 = vmatpush2.bf16.msra.mxu0 0
        %463 = vmatprep.subr.bf16.mxu0 0
        %464 = vmatpush2.bf16.msra.mxu0 0
        %465 = vmatprep.subr.bf16.mxu0 0
        %466 = vmatpush2.bf16.msra.mxu0 0
        %467 = vmatprep.subr.bf16.mxu0 0
        %468 = vmatpush2.bf16.msra.mxu0 0
        %469 = vmatprep.subr.bf16.mxu0 0
        %470 = vmatpush2.bf16.msra.mxu0 0
        %471 = vmatprep.subr.bf16.mxu0 0
        %472 = vmatpush2.bf16.msra.mxu0 0
        %473 = vmatprep.mubr.bf16.mxu0 0
        %474 = vmatmul.mubr.bf16.gmra.mxu0 %v389
        %v475 = vpop.f32.mrf.mxu0
        %v476 = vadd.f32 0.0, %v475
        %v477 = vpop.f32.mrf.mxu0
        %v478 = vpop.f32.mrf.mxu0
        %v479 = vadd.f32 0.0, %v478
        %v480 = vpop.f32.mrf.mxu0
        %481 = vmatprep.mubr.bf16.mxu0 0
        %482 = vmatmul.mubr.bf16.gmra.mxu0 %v390
        %v483 = vpop.f32.mrf.mxu0
        %v484 = vadd.f32 0.0, %v483
        %v485 = vpop.f32.mrf.mxu0
        %v486 = vpop.f32.mrf.mxu0
        %v487 = vadd.f32 0.0, %v486
        %v488 = vpop.f32.mrf.mxu0
        %489 = vdwg.mxu0
        %v490 = vld [vmem:[%s355] sm:$0x1]
        %v492 = vlaneseq
        %v493 = vshrl.u32 %v492, 7
        %v494 = vsub.s32 0, %v493
        %v495 = vrot.slane %v490, %v494
        %v497 = vmul.f32 %v476, %v495
        %v498 = vmul.f32 %v479, %v495
        %v499 = vmul.f32 %v484, %v495
        %v500 = vmul.f32 %v487, %v495
        %v501 = vld [vmem:[%s358] sm:$0x1]
        %v503 = vlaneseq
        %v504 = vshrl.u32 %v503, 7
        %v505 = vsub.s32 0, %v504
        %v506 = vrot.slane %v501, %v505
        %v508 = vadd.f32 %v497, %v506
        %v509 = vadd.f32 %v498, %v506
        %v510 = vadd.f32 %v499, %v506
        %v511 = vadd.f32 %v500, %v506
        %v512 = vpack.c.bf16 %v509, %v508
        %v513 = vpack.c.bf16 %v511, %v510
        %v516 = vunpack.c.l.b16 %v512
        %v517 = vunpack.c.h.b16 %v512
        %v518 = vunpack.c.l.b16 %v513
        %v519 = vunpack.c.h.b16 %v513
        %v520 = vpack.c.b16 %v516, %v516
        %v521 = vpack.c.b16 %v517, %v517
        %v522 = vpack.c.b16 %v518, %v518
        %v523 = vpack.c.b16 %v519, %v519
        %528 = vst [vmem:[%s346] sm:$0xf] %v520
        %529 = vst [vmem:[%s346 + $0x4] sm:$0xf] %v521
        %530 = vst [vmem:[%s346 + $0x8] sm:$0xf] %v522
        %531 = vst [vmem:[%s346 + $0xc] sm:$0xf] %v523
        %s532 = sand.u32 %s141, 1
        %s533 = sand.u32 %s141, 1
        %s534 = smul.addr %s533, 16
        %s535 = scalar_lea.vmem [#allocation3], %s534
        // Predicated region
        $region78: #{deeplab_forward.26} parent=72 // pred_check
          %p536 = pneg %p151
        $region79: #{deeplab_forward.26} parent=72 // pred_check_branch
          %538 = sbr.rel (%p536) target = $region81
        $region80: #{deeplab_forward.26} parent=72 // pred_region
          %s539 = smul.u32 4, %s19
          %s540 = smul.addr %s539, 2
          %s541 = sadd.s32 %s20, %s540
          %s542 = smul.addr %s541, 4
          %s543 = scalar_lea.vmem %s4, %s542
          // Predicated region
          $region82: #{deeplab_forward.26} parent=80 // pred_check
            _
          $region83: #{deeplab_forward.26} parent=80 // pred_check_branch
            %545 = sbr.rel (0) target = $region85
          $region84: #{deeplab_forward.26} parent=80 // pred_region
            // Predicated region
            $region86: #{deeplab_forward.26} parent=84 // pred_check
              _
            $region87: #{deeplab_forward.26} parent=84 // pred_check_branch
              %547 = sbr.rel target = $region89
            $region88: #{deeplab_forward.26} parent=84 // pred_region
              // Predicated region
              $region101: #{deeplab_forward.26} parent=88 // pred_check
                _
              $region102: #{deeplab_forward.26} parent=88 // pred_check_branch
                %569 = sbr.rel (0) target = $region104
              $region103: #{deeplab_forward.26} parent=88 // pred_region
                loop: start=0, step=1, limit=1
                $region105: #{deeplab_forward.26} parent=103 // loop_pre_header
                  _
                $region106: #{deeplab_forward.26} parent=103 // loop_header
                  %s571 = sphi 0, %s575
                  %p572 = scmp.ge.s32.totalorder %s571, 1
                  %s576 = sphi %s535, %s535
                  %s577 = sphi %s543, %s543
                $region107: #{deeplab_forward.26} parent=103 // loop_header_branch
                  %574 = sbr.rel (%p572) target = $region111
                $region108: #{deeplab_forward.26} parent=103 // loop_body
                  _
                $region109: #{deeplab_forward.26} parent=103 // loop_footer
                  %s575 = sadd.s32 1, %s571
                $region110: #{deeplab_forward.26} parent=103 // loop_footer_branch
                  %570 = sbr.rel target = $region106
                $region111: #{deeplab_forward.26} parent=103 // loop_exit
                  _
                %s579 = ssub.s32 16, 1
                loop: start=0, step=1, limit=1
                $region112: #{deeplab_forward.26} parent=103 // loop_pre_header
                  _
                $region113: #{deeplab_forward.26} parent=103 // loop_header
                  %s581 = sphi 0, %s585
                  %p582 = scmp.ge.s32.totalorder %s581, 1
                  %s586 = sphi %s535, %s535
                  %s587 = sphi %s543, %s543
                $region114: #{deeplab_forward.26} parent=103 // loop_header_branch
                  %584 = sbr.rel (%p582) target = $region118
                $region115: #{deeplab_forward.26} parent=103 // loop_body
                  %v588 = vld [vmem:[%s586] sm:%s579]
                  %589 = vst [vmem:[%s587] sm:%s579] %v588
                  %v590 = vld [vmem:[%s586 + $0x4] sm:%s579]
                  %591 = vst [vmem:[%s587 + $0x8] sm:%s579] %v590
                  %v592 = vld [vmem:[%s586 + $0x8] sm:%s579]
                  %593 = vst [vmem:[%s587 + $0x10] sm:%s579] %v592
                  %v594 = vld [vmem:[%s586 + $0xc] sm:%s579]
                  %595 = vst [vmem:[%s587 + $0x18] sm:%s579] %v594
                $region116: #{deeplab_forward.26} parent=103 // loop_footer
                  %s585 = sadd.s32 1, %s581
                $region117: #{deeplab_forward.26} parent=103 // loop_footer_branch
                  %580 = sbr.rel target = $region113
                $region118: #{deeplab_forward.26} parent=103 // loop_exit
                  _
              $region104: #{deeplab_forward.26} parent=88 // pred_fallthru
                _
            $region89: #{deeplab_forward.26} parent=84 // pred_fallthru
              _
            // Predicated region
            $region90: #{deeplab_forward.26} parent=84 // pred_check
              _
            $region91: #{deeplab_forward.26} parent=84 // pred_check_branch
              %549 = sbr.rel (0) target = $region93
            $region92: #{deeplab_forward.26} parent=84 // pred_region
              %s551 = ssub.s32 16, 1
              loop: start=0, step=1, limit=1
              $region94: #{deeplab_forward.26} parent=92 // loop_pre_header
                _
              $region95: #{deeplab_forward.26} parent=92 // loop_header
                %s553 = sphi 0, %s557
                %p554 = scmp.ge.s32.totalorder %s553, 1
                %s558 = sphi %s535, %s535
                %s559 = sphi %s543, %s543
              $region96: #{deeplab_forward.26} parent=92 // loop_header_branch
                %556 = sbr.rel (%p554) target = $region100
              $region97: #{deeplab_forward.26} parent=92 // loop_body
                %v560 = vld [vmem:[%s558] sm:%s551]
                %561 = vst [vmem:[%s559] sm:%s551] %v560
                %v562 = vld [vmem:[%s558 + $0x4] sm:%s551]
                %563 = vst [vmem:[%s559 + $0x8] sm:%s551] %v562
                %v564 = vld [vmem:[%s558 + $0x8] sm:%s551]
                %565 = vst [vmem:[%s559 + $0x10] sm:%s551] %v564
                %v566 = vld [vmem:[%s558 + $0xc] sm:%s551]
                %567 = vst [vmem:[%s559 + $0x18] sm:%s551] %v566
              $region98: #{deeplab_forward.26} parent=92 // loop_footer
                %s557 = sadd.s32 1, %s553
              $region99: #{deeplab_forward.26} parent=92 // loop_footer_branch
                %552 = sbr.rel target = $region95
              $region100: #{deeplab_forward.26} parent=92 // loop_exit
                _
            $region93: #{deeplab_forward.26} parent=84 // pred_fallthru
              _
          $region85: #{deeplab_forward.26} parent=80 // pred_fallthru
            _
          %596 = vnop
        $region81: #{deeplab_forward.26} parent=72 // pred_fallthru
          _
      $region73: #{deeplab_forward.26} parent=5 // pred_fallthru
        _
      %p597 = scmp.le.s32.totalorder 2, %s10
      // Predicated region
      $region119: #{deeplab_forward.26} parent=5 // pred_check
        %p598 = pneg %p597
      $region120: #{deeplab_forward.26} parent=5 // pred_check_branch
        %600 = sbr.rel (%p598) target = $region122
      $region121: #{deeplab_forward.26} parent=5 // pred_region
        %s601 = ssub.s32 %s10, 2
        // Predicated region
        $region123: #{deeplab_forward.26} parent=121 // pred_check
          %p602 = pneg %p157
        $region124: #{deeplab_forward.26} parent=121 // pred_check_branch
          %604 = sbr.rel (%p602) target = $region126
        $region125: #{deeplab_forward.26} parent=121 // pred_region
          %s605 = sand.u32 %s142, 1
          %s606 = sand.u32 %s142, 1
          %s607 = smul.addr %s606, 16
          %s608 = scalar_lea.vmem [#allocation3], %s607
        $region126: #{deeplab_forward.26} parent=121 // pred_fallthru
          _
      $region122: #{deeplab_forward.26} parent=5 // pred_fallthru
        _
    $region6: #{deeplab_forward.26} parent=1 // loop_footer
      %s14 = sadd.s32 1, %s10
    $region7: #{deeplab_forward.26} parent=1 // loop_footer_branch
      %9 = sbr.rel target = $region3
    $region8: #{deeplab_forward.26} parent=1 // loop_exit
      _

// kernel: deeplab_forward.27
$region0: #{deeplab_forward.27}
  #allocation0 [shape = 'u32[]', space=smem, size = 0x4, offset = 0x4, fixed_abs, tag = 'smem constant byte address 0x4 - core index']
  #allocation1 [shape = 'u32[144,128]{1,0:T(1,128)}', space=vmem, size = 0x12000, scoped, tag = 'internal scratch']
  %s0 = inlined_call_operand.vmem [shape: bf16[512,128], index: 0, kind: input, shape index: {}]
  %s1 = inlined_call_operand.vmem [shape: bf16[128,128], index: 1, kind: input, shape index: {}]
  %s2 = inlined_call_operand.vmem [shape: f32[1,128], index: 2, kind: input, shape index: {}]
  %s3 = inlined_call_operand.vmem [shape: f32[1,128], index: 3, kind: input, shape index: {}]
  %s4 = inlined_call_operand.vmem [shape: bf16[512,128], index: 4, kind: output, shape index: {}]
  %s5 = sld [smem:[#allocation0]]
  $region49: #{deeplab_forward.27} parent=0
    _
  %s7 = ssub.s32 1, %s5
  %s8 = scalar_select 0, %s7, %s5
  loop: start=0, step=1, limit=4
  $region2: #{deeplab_forward.27} parent=0 // loop_pre_header
    _
  $region3: #{deeplab_forward.27} parent=0 // loop_header
    %s10 = sphi 0, %s14
    %p11 = scmp.ge.s32.totalorder %s10, 4
    %s17 = sphi 0, %s29
    %s18 = sphi 0, %s25
    %s19 = sphi 0, %s17
    %s20 = sphi 0, %s18
    %s21 = sphi 0, %s19
    %s22 = sphi 0, %s20
    %s32 = sphi 0, %s34
    %s35 = sphi 0, %s32
    %s36 = sphi 0, %s35
    %s52 = sphi 0, %s36
    %s58 = sphi 0, %s60
    %s61 = sphi 0, %s58
    %s62 = sphi 0, %s61
    %s78 = sphi 0, %s62
    %s84 = sphi 0, %s86
    %s87 = sphi 0, %s84
    %s88 = sphi 0, %s87
    %s104 = sphi 0, %s88
    %s110 = sphi 0, %s112
    %s113 = sphi 0, %s110
    %s114 = sphi 0, %s113
    %s130 = sphi 0, %s114
    %s138 = sphi 0, %s140
    %s141 = sphi 0, %s138
    %s142 = sphi 0, %s141
    %s158 = sphi 0, %s142
  $region4: #{deeplab_forward.27} parent=0 // loop_header_branch
    %13 = sbr.rel (%p11) target = $region8
  $region5: #{deeplab_forward.27} parent=0 // loop_body
    %s15 = ssub.s32 %s10, 1
    %s16 = ssub.s32 %s10, 2
    %s23 = sadd.s32 1, %s18
    %p24 = scmp.ge.s32.totalorder %s23, 1
    %s25 = scalar_select %p24, 0, %s23
    %s26 = sadd.s32 1, %s17
    %s27 = scalar_select %p24, %s26, %s17
    %p28 = scmp.ge.s32.totalorder %s27, 2
    %s29 = scalar_select %p28, 0, %s27
    %s30 = ssub.s32 %s17, %s29
    %p31 = scmp.eq.s32.totalorder %s30, 0
    %s33 = sadd.s32 %s32, 1
    %s34 = scalar_select %p31, %s32, %s33
    %p37 = pneg %p31
    %p38 = scmp.eq.s32.totalorder %s10, 1
    %p39 = por %p37, %p38
    %p40 = scmp.ne.s32.totalorder %s32, %s35
    %p41 = scmp.eq.s32.totalorder %s10, 0
    %p42 = por %p40, %p41
    %p43 = scmp.ne.s32.totalorder %s32, %s35
    %p44 = scmp.eq.s32.totalorder %s15, 1
    %p45 = por %p43, %p44
    %p46 = scmp.ne.s32.totalorder %s35, %s36
    %p47 = scmp.eq.s32.totalorder %s15, 0
    %p48 = por %p46, %p47
    %p49 = scmp.ne.s32.totalorder %s35, %s36
    %p50 = scmp.eq.s32.totalorder %s16, 1
    %p51 = por %p49, %p50
    %p53 = scmp.ne.s32.totalorder %s36, %s52
    %p54 = scmp.eq.s32.totalorder %s16, 0
    %p55 = por %p53, %p54
    %s56 = ssub.s32 %s18, %s25
    %p57 = scmp.eq.s32.totalorder %s56, 0
    %s59 = sadd.s32 %s58, 1
    %s60 = scalar_select %p57, %s58, %s59
    %p63 = pneg %p57
    %p64 = scmp.eq.s32.totalorder %s10, 1
    %p65 = por %p63, %p64
    %p66 = scmp.ne.s32.totalorder %s58, %s61
    %p67 = scmp.eq.s32.totalorder %s10, 0
    %p68 = por %p66, %p67
    %p69 = scmp.ne.s32.totalorder %s58, %s61
    %p70 = scmp.eq.s32.totalorder %s15, 1
    %p71 = por %p69, %p70
    %p72 = scmp.ne.s32.totalorder %s61, %s62
    %p73 = scmp.eq.s32.totalorder %s15, 0
    %p74 = por %p72, %p73
    %p75 = scmp.ne.s32.totalorder %s61, %s62
    %p76 = scmp.eq.s32.totalorder %s16, 1
    %p77 = por %p75, %p76
    %p79 = scmp.ne.s32.totalorder %s62, %s78
    %p80 = scmp.eq.s32.totalorder %s16, 0
    %p81 = por %p79, %p80
    %s82 = ssub.s32 %s18, %s25
    %p83 = scmp.eq.s32.totalorder %s82, 0
    %s85 = sadd.s32 %s84, 1
    %s86 = scalar_select %p83, %s84, %s85
    %p89 = pneg %p83
    %p90 = scmp.eq.s32.totalorder %s10, 1
    %p91 = por %p89, %p90
    %p92 = scmp.ne.s32.totalorder %s84, %s87
    %p93 = scmp.eq.s32.totalorder %s10, 0
    %p94 = por %p92, %p93
    %p95 = scmp.ne.s32.totalorder %s84, %s87
    %p96 = scmp.eq.s32.totalorder %s15, 1
    %p97 = por %p95, %p96
    %p98 = scmp.ne.s32.totalorder %s87, %s88
    %p99 = scmp.eq.s32.totalorder %s15, 0
    %p100 = por %p98, %p99
    %p101 = scmp.ne.s32.totalorder %s87, %s88
    %p102 = scmp.eq.s32.totalorder %s16, 1
    %p103 = por %p101, %p102
    %p105 = scmp.ne.s32.totalorder %s88, %s104
    %p106 = scmp.eq.s32.totalorder %s16, 0
    %p107 = por %p105, %p106
    %s108 = ssub.s32 %s18, %s25
    %p109 = scmp.eq.s32.totalorder %s108, 0
    %s111 = sadd.s32 %s110, 1
    %s112 = scalar_select %p109, %s110, %s111
    %p115 = pneg %p109
    %p116 = scmp.eq.s32.totalorder %s10, 1
    %p117 = por %p115, %p116
    %p118 = scmp.ne.s32.totalorder %s110, %s113
    %p119 = scmp.eq.s32.totalorder %s10, 0
    %p120 = por %p118, %p119
    %p121 = scmp.ne.s32.totalorder %s110, %s113
    %p122 = scmp.eq.s32.totalorder %s15, 1
    %p123 = por %p121, %p122
    %p124 = scmp.ne.s32.totalorder %s113, %s114
    %p125 = scmp.eq.s32.totalorder %s15, 0
    %p126 = por %p124, %p125
    %p127 = scmp.ne.s32.totalorder %s113, %s114
    %p128 = scmp.eq.s32.totalorder %s16, 1
    %p129 = por %p127, %p128
    %p131 = scmp.ne.s32.totalorder %s114, %s130
    %p132 = scmp.eq.s32.totalorder %s16, 0
    %p133 = por %p131, %p132
    %s134 = ssub.s32 %s17, %s29
    %s135 = ssub.s32 %s18, %s25
    %s136 = sor.u32 %s134, %s135
    %p137 = scmp.eq.s32.totalorder %s136, 0
    %s139 = sadd.s32 %s138, 1
    %s140 = scalar_select %p137, %s138, %s139
    %p143 = pneg %p137
    %p144 = scmp.eq.s32.totalorder %s10, 1
    %p145 = por %p143, %p144
    %p146 = scmp.ne.s32.totalorder %s138, %s141
    %p147 = scmp.eq.s32.totalorder %s10, 0
    %p148 = por %p146, %p147
    %p149 = scmp.ne.s32.totalorder %s138, %s141
    %p150 = scmp.eq.s32.totalorder %s15, 1
    %p151 = por %p149, %p150
    %p152 = scmp.ne.s32.totalorder %s141, %s142
    %p153 = scmp.eq.s32.totalorder %s15, 0
    %p154 = por %p152, %p153
    %p155 = scmp.ne.s32.totalorder %s141, %s142
    %p156 = scmp.eq.s32.totalorder %s16, 1
    %p157 = por %p155, %p156
    %p159 = scmp.ne.s32.totalorder %s142, %s158
    %p160 = scmp.eq.s32.totalorder %s16, 0
    %p161 = por %p159, %p160
    %p162 = scmp.le.s32.totalorder 1, %s10
    %p163 = scmp.lt.s32.totalorder %s10, 3
    %p164 = pnand %p162, %p163
    %p165 = pneg %p164
    // Predicated region
    $region9: #{deeplab_forward.27} parent=5 // pred_check
      _
    $region10: #{deeplab_forward.27} parent=5 // pred_check_branch
      %167 = sbr.rel (%p164) target = $region12
    $region11: #{deeplab_forward.27} parent=5 // pred_region
      %s168 = ssub.s32 %s10, 1
      // Predicated region
      $region13: #{deeplab_forward.27} parent=11 // pred_check
        %p169 = pneg %p74
      $region14: #{deeplab_forward.27} parent=11 // pred_check_branch
        %171 = sbr.rel (%p169) target = $region16
      $region15: #{deeplab_forward.27} parent=11 // pred_region
        %p172 = scmp.lt.s32.totalorder %s20, 0
        %s173 = scalar_select %p172, %s20, 0
        %s174 = smul.addr %s173, 4
        %s175 = scalar_lea.vmem %s1, %s174
      $region16: #{deeplab_forward.27} parent=11 // pred_fallthru
        _
      // Predicated region
      $region17: #{deeplab_forward.27} parent=11 // pred_check
        %p176 = pneg %p100
      $region18: #{deeplab_forward.27} parent=11 // pred_check_branch
        %178 = sbr.rel (%p176) target = $region20
      $region19: #{deeplab_forward.27} parent=11 // pred_region
        %p179 = scmp.lt.s32.totalorder %s20, 0
        %s180 = scalar_select %p179, %s20, 0
        %s181 = scalar_lea.vmem %s2, %s180
      $region20: #{deeplab_forward.27} parent=11 // pred_fallthru
        _
      // Predicated region
      $region21: #{deeplab_forward.27} parent=11 // pred_check
        %p182 = pneg %p126
      $region22: #{deeplab_forward.27} parent=11 // pred_check_branch
        %184 = sbr.rel (%p182) target = $region24
      $region23: #{deeplab_forward.27} parent=11 // pred_region
        %p185 = scmp.lt.s32.totalorder %s20, 0
        %s186 = scalar_select %p185, %s20, 0
        %s187 = scalar_lea.vmem %s3, %s186
      $region24: #{deeplab_forward.27} parent=11 // pred_fallthru
        _
    $region12: #{deeplab_forward.27} parent=5 // pred_fallthru
      _
    %p188 = scmp.lt.s32.totalorder %s10, 2
    // Predicated region
    $region25: #{deeplab_forward.27} parent=5 // pred_check
      %p189 = pneg %p188
    $region26: #{deeplab_forward.27} parent=5 // pred_check_branch
      %191 = sbr.rel (%p189) target = $region28
    $region27: #{deeplab_forward.27} parent=5 // pred_region
      // Predicated region
      $region29: #{deeplab_forward.27} parent=27 // pred_check
        %p192 = pneg %p42
      $region30: #{deeplab_forward.27} parent=27 // pred_check_branch
        %194 = sbr.rel (%p192) target = $region32
      $region31: #{deeplab_forward.27} parent=27 // pred_region
        %s195 = smul.u32 32, %s17
        %p196 = scmp.lt.s32.totalorder %s195, 63
        %s197 = scalar_select %p196, %s195, 63
        %s198 = smul.addr %s197, 4
        %s199 = scalar_lea.vmem %s0, %s198
        %s200 = smul.u32 32, %s17
      $region32: #{deeplab_forward.27} parent=27 // pred_fallthru
        _
    $region28: #{deeplab_forward.27} parent=5 // pred_fallthru
      _
    %p201 = scmp.le.s32.totalorder 1, %s10
    %p202 = scmp.lt.s32.totalorder %s10, 3
    %p203 = pnand %p201, %p202
    %p204 = pneg %p203
    // Predicated region
    $region33: #{deeplab_forward.27} parent=5 // pred_check
      _
    $region34: #{deeplab_forward.27} parent=5 // pred_check_branch
      %206 = sbr.rel (%p203) target = $region36
    $region35: #{deeplab_forward.27} parent=5 // pred_region
      %s207 = ssub.s32 %s10, 1
      %s208 = smul.u32 32, %s19
      %p209 = scmp.lt.s32.totalorder %s208, 63
      %s210 = scalar_select %p209, %s208, 63
      %s211 = smul.addr %s210, 4
      %s212 = scalar_lea.vmem %s0, %s211
      %p213 = pneg %p48
      %p214 = pneg %p45
      %p215 = scmp.lt.s32.totalorder %s20, 0
      %s216 = scalar_select %p215, %s20, 0
      %s217 = smul.addr %s216, 4
      %s218 = scalar_lea.vmem %s1, %s217
      %p219 = pneg %p74
      %p220 = pneg %p71
      %p221 = scmp.lt.s32.totalorder %s20, 0
      %s222 = scalar_select %p221, %s20, 0
      %s223 = scalar_lea.vmem %s2, %s222
      %p224 = pneg %p100
      %p225 = pneg %p97
      %p226 = scmp.lt.s32.totalorder %s20, 0
      %s227 = scalar_select %p226, %s20, 0
      %s228 = scalar_lea.vmem %s3, %s227
      %p229 = pneg %p126
      %p230 = pneg %p123
      %p231 = pneg %p154
      %p232 = pneg %p151
      %s233 = smul.u32 32, %s19
      %p234 = scmp.lt.s32.totalorder %s233, 63
      %s235 = scalar_select %p234, %s233, 63
      %p236 = scmp.lt.s32.totalorder %s20, 0
      %s237 = scalar_select %p236, %s20, 0
      %s238 = sadd.s32 %s237, %s235
      %s239 = smul.addr %s238, 4
      %s240 = scalar_lea.vmem %s4, %s239
      %s241 = smul.u32 32, %s19
      %p242 = scmp.lt.s32.totalorder %s241, 63
      %s243 = scalar_select %p242, %s241, 63
      %s244 = smul.addr %s243, 4
      %s245 = scalar_lea.vmem %s0, %s244
      %s246 = smul.u32 32, %s19
      %p247 = scmp.lt.s32.totalorder %s20, 0
      %s248 = scalar_select %p247, %s20, 0
      %s249 = smul.addr %s248, 4
      %s250 = scalar_lea.vmem %s1, %s249
      %p251 = scmp.lt.s32.totalorder %s20, 0
      %s252 = scalar_select %p251, %s20, 0
      %s253 = scalar_lea.vmem %s2, %s252
      %p254 = scmp.lt.s32.totalorder %s20, 0
      %s255 = scalar_select %p254, %s20, 0
      %s256 = scalar_lea.vmem %s3, %s255
      %s257 = smul.u32 32, %s19
      %p258 = scmp.lt.s32.totalorder %s257, 63
      %s259 = scalar_select %p258, %s257, 63
      %p260 = scmp.lt.s32.totalorder %s20, 0
      %s261 = scalar_select %p260, %s20, 0
      %s262 = sadd.s32 %s261, %s259
      %s263 = smul.addr %s262, 4
      %s264 = scalar_lea.vmem %s4, %s263
      %s265 = smul.u32 32, %s19
      %v267 = vld [vmem:[%s245] sm:$0xf]
      %v268 = vld [vmem:[%s245 + $0x4] sm:$0xf]
      %v269 = vld [vmem:[%s245 + $0x8] sm:$0xf]
      %v270 = vld [vmem:[%s245 + $0xc] sm:$0xf]
      %v271 = vld [vmem:[%s245 + $0x10] sm:$0xf]
      %v272 = vld [vmem:[%s245 + $0x14] sm:$0xf]
      %v273 = vld [vmem:[%s245 + $0x18] sm:$0xf]
      %v274 = vld [vmem:[%s245 + $0x1c] sm:$0xf]
      %v275 = vld [vmem:[%s245 + $0x20] sm:$0xf]
      %v276 = vld [vmem:[%s245 + $0x24] sm:$0xf]
      %v277 = vld [vmem:[%s245 + $0x28] sm:$0xf]
      %v278 = vld [vmem:[%s245 + $0x2c] sm:$0xf]
      %v279 = vld [vmem:[%s245 + $0x30] sm:$0xf]
      %v280 = vld [vmem:[%s245 + $0x34] sm:$0xf]
      %v281 = vld [vmem:[%s245 + $0x38] sm:$0xf]
      %v282 = vld [vmem:[%s245 + $0x3c] sm:$0xf]
      %v283 = vld [vmem:[%s245 + $0x40] sm:$0xf]
      %v284 = vld [vmem:[%s245 + $0x44] sm:$0xf]
      %v285 = vld [vmem:[%s245 + $0x48] sm:$0xf]
      %v286 = vld [vmem:[%s245 + $0x4c] sm:$0xf]
      %v287 = vld [vmem:[%s245 + $0x50] sm:$0xf]
      %v288 = vld [vmem:[%s245 + $0x54] sm:$0xf]
      %v289 = vld [vmem:[%s245 + $0x58] sm:$0xf]
      %v290 = vld [vmem:[%s245 + $0x5c] sm:$0xf]
      %v291 = vld [vmem:[%s245 + $0x60] sm:$0xf]
      %v292 = vld [vmem:[%s245 + $0x64] sm:$0xf]
      %v293 = vld [vmem:[%s245 + $0x68] sm:$0xf]
      %v294 = vld [vmem:[%s245 + $0x6c] sm:$0xf]
      %v295 = vld [vmem:[%s245 + $0x70] sm:$0xf]
      %v296 = vld [vmem:[%s245 + $0x74] sm:$0xf]
      %v297 = vld [vmem:[%s245 + $0x78] sm:$0xf]
      %v298 = vld [vmem:[%s245 + $0x7c] sm:$0xf]
      %v299 = vld [vmem:[%s250] sm:$0xf]
      %v300 = vld [vmem:[%s250 + $0x4] sm:$0xf]
      %v301 = vld [vmem:[%s250 + $0x8] sm:$0xf]
      %v302 = vld [vmem:[%s250 + $0xc] sm:$0xf]
      %v303 = vld [vmem:[%s250 + $0x10] sm:$0xf]
      %v304 = vld [vmem:[%s250 + $0x14] sm:$0xf]
      %v305 = vld [vmem:[%s250 + $0x18] sm:$0xf]
      %v306 = vld [vmem:[%s250 + $0x1c] sm:$0xf]
      %v307 = vld [vmem:[%s250 + $0x20] sm:$0xf]
      %v308 = vld [vmem:[%s250 + $0x24] sm:$0xf]
      %v309 = vld [vmem:[%s250 + $0x28] sm:$0xf]
      %v310 = vld [vmem:[%s250 + $0x2c] sm:$0xf]
      %v311 = vld [vmem:[%s250 + $0x30] sm:$0xf]
      %v312 = vld [vmem:[%s250 + $0x34] sm:$0xf]
      %v313 = vld [vmem:[%s250 + $0x38] sm:$0xf]
      %v314 = vld [vmem:[%s250 + $0x3c] sm:$0xf]
      %v347 = vunpack.c.l.b16 %v267
      %v348 = vunpack.c.l.b16 %v268
      %v349 = vunpack.c.l.b16 %v269
      %v350 = vunpack.c.l.b16 %v270
      %v351 = vunpack.c.l.b16 %v271
      %v352 = vunpack.c.l.b16 %v272
      %v353 = vunpack.c.l.b16 %v273
      %v354 = vunpack.c.l.b16 %v274
      %v355 = vunpack.c.l.b16 %v275
      %v356 = vunpack.c.l.b16 %v276
      %v357 = vunpack.c.l.b16 %v277
      %v358 = vunpack.c.l.b16 %v278
      %v359 = vunpack.c.l.b16 %v279
      %v360 = vunpack.c.l.b16 %v280
      %v361 = vunpack.c.l.b16 %v281
      %v362 = vunpack.c.l.b16 %v282
      %v363 = vunpack.c.l.b16 %v283
      %v364 = vunpack.c.l.b16 %v284
      %v365 = vunpack.c.l.b16 %v285
      %v366 = vunpack.c.l.b16 %v286
      %v367 = vunpack.c.l.b16 %v287
      %v368 = vunpack.c.l.b16 %v288
      %v369 = vunpack.c.l.b16 %v289
      %v370 = vunpack.c.l.b16 %v290
      %v371 = vunpack.c.l.b16 %v291
      %v372 = vunpack.c.l.b16 %v292
      %v373 = vunpack.c.l.b16 %v293
      %v374 = vunpack.c.l.b16 %v294
      %v375 = vunpack.c.l.b16 %v295
      %v376 = vunpack.c.l.b16 %v296
      %v377 = vunpack.c.l.b16 %v297
      %v378 = vunpack.c.l.b16 %v298
      %v379 = vpack.c.b16 %v348, %v347
      %v380 = vpack.c.b16 %v350, %v349
      %v381 = vpack.c.b16 %v352, %v351
      %v382 = vpack.c.b16 %v354, %v353
      %v383 = vpack.c.b16 %v356, %v355
      %v384 = vpack.c.b16 %v358, %v357
      %v385 = vpack.c.b16 %v360, %v359
      %v386 = vpack.c.b16 %v362, %v361
      %v387 = vpack.c.b16 %v364, %v363
      %v388 = vpack.c.b16 %v366, %v365
      %v389 = vpack.c.b16 %v368, %v367
      %v390 = vpack.c.b16 %v370, %v369
      %v391 = vpack.c.b16 %v372, %v371
      %v392 = vpack.c.b16 %v374, %v373
      %v393 = vpack.c.b16 %v376, %v375
      %v394 = vpack.c.b16 %v378, %v377
      %v427 = vunpack.c.l.b16 %v299
      %v428 = vunpack.c.l.b16 %v300
      %v429 = vunpack.c.l.b16 %v301
      %v430 = vunpack.c.l.b16 %v302
      %v431 = vunpack.c.l.b16 %v303
      %v432 = vunpack.c.l.b16 %v304
      %v433 = vunpack.c.l.b16 %v305
      %v434 = vunpack.c.l.b16 %v306
      %v435 = vunpack.c.l.b16 %v307
      %v436 = vunpack.c.l.b16 %v308
      %v437 = vunpack.c.l.b16 %v309
      %v438 = vunpack.c.l.b16 %v310
      %v439 = vunpack.c.l.b16 %v311
      %v440 = vunpack.c.l.b16 %v312
      %v441 = vunpack.c.l.b16 %v313
      %v442 = vunpack.c.l.b16 %v314
      %v443 = vpack.c.b16 %v428, %v427
      %v444 = vpack.c.b16 %v430, %v429
      %v445 = vpack.c.b16 %v432, %v431
      %v446 = vpack.c.b16 %v434, %v433
      %v447 = vpack.c.b16 %v436, %v435
      %v448 = vpack.c.b16 %v438, %v437
      %v449 = vpack.c.b16 %v440, %v439
      %v450 = vpack.c.b16 %v442, %v441
      %459 = vmatprep.subr.bf16.mxu0 0
      %460 = vmatpush1.bf16.msra.mxu0 %v450
      %461 = vmatprep.subr.bf16.mxu0 0
      %462 = vmatpush1.bf16.msra.mxu0 %v449
      %463 = vmatprep.subr.bf16.mxu0 0
      %464 = vmatpush1.bf16.msra.mxu0 %v448
      %465 = vmatprep.subr.bf16.mxu0 0
      %466 = vmatpush1.bf16.msra.mxu0 %v447
      %467 = vmatprep.subr.bf16.mxu0 0
      %468 = vmatpush1.bf16.msra.mxu0 %v446
      %469 = vmatprep.subr.bf16.mxu0 0
      %470 = vmatpush1.bf16.msra.mxu0 %v445
      %471 = vmatprep.subr.bf16.mxu0 0
      %472 = vmatpush1.bf16.msra.mxu0 %v444
      %473 = vmatprep.subr.bf16.mxu0 0
      %474 = vmatpush1.bf16.msra.mxu0 %v443
      %475 = vmatprep.subr.bf16.mxu0 0
      %476 = vmatpush2.bf16.msra.mxu0 0
      %477 = vmatprep.subr.bf16.mxu0 0
      %478 = vmatpush2.bf16.msra.mxu0 0
      %479 = vmatprep.subr.bf16.mxu0 0
      %480 = vmatpush2.bf16.msra.mxu0 0
      %481 = vmatprep.subr.bf16.mxu0 0
      %482 = vmatpush2.bf16.msra.mxu0 0
      %483 = vmatprep.subr.bf16.mxu0 0
      %484 = vmatpush2.bf16.msra.mxu0 0
      %485 = vmatprep.subr.bf16.mxu0 0
      %486 = vmatpush2.bf16.msra.mxu0 0
      %487 = vmatprep.subr.bf16.mxu0 0
      %488 = vmatpush2.bf16.msra.mxu0 0
      %489 = vmatprep.subr.bf16.mxu0 0
      %490 = vmatpush2.bf16.msra.mxu0 0
      %491 = vmatprep.mubr.bf16.mxu0 0
      %492 = vmatmul.mubr.bf16.gmra.mxu0 %v379
      %v493 = vpop.f32.mrf.mxu0
      %v494 = vadd.f32 0.0, %v493
      %v495 = vpop.f32.mrf.mxu0
      %v496 = vpop.f32.mrf.mxu0
      %v497 = vadd.f32 0.0, %v496
      %v498 = vpop.f32.mrf.mxu0
      %499 = vmatprep.mubr.bf16.mxu0 0
      %500 = vmatmul.mubr.bf16.gmra.mxu0 %v380
      %v501 = vpop.f32.mrf.mxu0
      %v502 = vadd.f32 0.0, %v501
      %v503 = vpop.f32.mrf.mxu0
      %v504 = vpop.f32.mrf.mxu0
      %v505 = vadd.f32 0.0, %v504
      %v506 = vpop.f32.mrf.mxu0
      %507 = vmatprep.mubr.bf16.mxu0 0
      %508 = vmatmul.mubr.bf16.gmra.mxu0 %v381
      %v509 = vpop.f32.mrf.mxu0
      %v510 = vadd.f32 0.0, %v509
      %v511 = vpop.f32.mrf.mxu0
      %v512 = vpop.f32.mrf.mxu0
      %v513 = vadd.f32 0.0, %v512
      %v514 = vpop.f32.mrf.mxu0
      %515 = vmatprep.mubr.bf16.mxu0 0
      %516 = vmatmul.mubr.bf16.gmra.mxu0 %v382
      %v517 = vpop.f32.mrf.mxu0
      %v518 = vadd.f32 0.0, %v517
      %v519 = vpop.f32.mrf.mxu0
      %v520 = vpop.f32.mrf.mxu0
      %v521 = vadd.f32 0.0, %v520
      %v522 = vpop.f32.mrf.mxu0
      %523 = vmatprep.mubr.bf16.mxu0 0
      %524 = vmatmul.mubr.bf16.gmra.mxu0 %v383
      %v525 = vpop.f32.mrf.mxu0
      %v526 = vadd.f32 0.0, %v525
      %v527 = vpop.f32.mrf.mxu0
      %v528 = vpop.f32.mrf.mxu0
      %v529 = vadd.f32 0.0, %v528
      %v530 = vpop.f32.mrf.mxu0
      %531 = vmatprep.mubr.bf16.mxu0 0
      %532 = vmatmul.mubr.bf16.gmra.mxu0 %v384
      %v533 = vpop.f32.mrf.mxu0
      %v534 = vadd.f32 0.0, %v533
      %v535 = vpop.f32.mrf.mxu0
      %v536 = vpop.f32.mrf.mxu0
      %v537 = vadd.f32 0.0, %v536
      %v538 = vpop.f32.mrf.mxu0
      %539 = vmatprep.mubr.bf16.mxu0 0
      %540 = vmatmul.mubr.bf16.gmra.mxu0 %v385
      %v541 = vpop.f32.mrf.mxu0
      %v542 = vadd.f32 0.0, %v541
      %v543 = vpop.f32.mrf.mxu0
      %v544 = vpop.f32.mrf.mxu0
      %v545 = vadd.f32 0.0, %v544
      %v546 = vpop.f32.mrf.mxu0
      %547 = vmatprep.mubr.bf16.mxu0 0
      %548 = vmatmul.mubr.bf16.gmra.mxu0 %v386
      %v549 = vpop.f32.mrf.mxu0
      %v550 = vadd.f32 0.0, %v549
      %v551 = vpop.f32.mrf.mxu0
      %v552 = vpop.f32.mrf.mxu0
      %v553 = vadd.f32 0.0, %v552
      %v554 = vpop.f32.mrf.mxu0
      %555 = vmatprep.mubr.bf16.mxu0 0
      %556 = vmatmul.mubr.bf16.gmra.mxu0 %v387
      %v557 = vpop.f32.mrf.mxu0
      %v558 = vadd.f32 0.0, %v557
      %v559 = vpop.f32.mrf.mxu0
      %v560 = vpop.f32.mrf.mxu0
      %v561 = vadd.f32 0.0, %v560
      %v562 = vpop.f32.mrf.mxu0
      %563 = vmatprep.mubr.bf16.mxu0 0
      %564 = vmatmul.mubr.bf16.gmra.mxu0 %v388
      %v565 = vpop.f32.mrf.mxu0
      %v566 = vadd.f32 0.0, %v565
      %v567 = vpop.f32.mrf.mxu0
      %v568 = vpop.f32.mrf.mxu0
      %v569 = vadd.f32 0.0, %v568
      %v570 = vpop.f32.mrf.mxu0
      %571 = vmatprep.mubr.bf16.mxu0 0
      %572 = vmatmul.mubr.bf16.gmra.mxu0 %v389
      %v573 = vpop.f32.mrf.mxu0
      %v574 = vadd.f32 0.0, %v573
      %v575 = vpop.f32.mrf.mxu0
      %v576 = vpop.f32.mrf.mxu0
      %v577 = vadd.f32 0.0, %v576
      %v578 = vpop.f32.mrf.mxu0
      %579 = vmatprep.mubr.bf16.mxu0 0
      %580 = vmatmul.mubr.bf16.gmra.mxu0 %v390
      %v581 = vpop.f32.mrf.mxu0
      %v582 = vadd.f32 0.0, %v581
      %v583 = vpop.f32.mrf.mxu0
      %v584 = vpop.f32.mrf.mxu0
      %v585 = vadd.f32 0.0, %v584
      %v586 = vpop.f32.mrf.mxu0
      %587 = vmatprep.mubr.bf16.mxu0 0
      %588 = vmatmul.mubr.bf16.gmra.mxu0 %v391
      %v589 = vpop.f32.mrf.mxu0
      %v590 = vadd.f32 0.0, %v589
      %v591 = vpop.f32.mrf.mxu0
      %v592 = vpop.f32.mrf.mxu0
      %v593 = vadd.f32 0.0, %v592
      %v594 = vpop.f32.mrf.mxu0
      %595 = vmatprep.mubr.bf16.mxu0 0
      %596 = vmatmul.mubr.bf16.gmra.mxu0 %v392
      %v597 = vpop.f32.mrf.mxu0
      %v598 = vadd.f32 0.0, %v597
      %v599 = vpop.f32.mrf.mxu0
      %v600 = vpop.f32.mrf.mxu0
      %v601 = vadd.f32 0.0, %v600
      %v602 = vpop.f32.mrf.mxu0
      %603 = vmatprep.mubr.bf16.mxu0 0
      %604 = vmatmul.mubr.bf16.gmra.mxu0 %v393
      %v605 = vpop.f32.mrf.mxu0
      %v606 = vadd.f32 0.0, %v605
      %v607 = vpop.f32.mrf.mxu0
      %v608 = vpop.f32.mrf.mxu0
      %v609 = vadd.f32 0.0, %v608
      %v610 = vpop.f32.mrf.mxu0
      %611 = vmatprep.mubr.bf16.mxu0 0
      %612 = vmatmul.mubr.bf16.gmra.mxu0 %v394
      %v613 = vpop.f32.mrf.mxu0
      %v614 = vadd.f32 0.0, %v613
      %v615 = vpop.f32.mrf.mxu0
      %v616 = vpop.f32.mrf.mxu0
      %v617 = vadd.f32 0.0, %v616
      %v618 = vpop.f32.mrf.mxu0
      %619 = vdwg.mxu0
      %v620 = vld [vmem:[%s253] sm:$0x1]
      %v622 = vlaneseq
      %v623 = vshrl.u32 %v622, 7
      %v624 = vsub.s32 0, %v623
      %v625 = vrot.slane %v620, %v624
      %v627 = vmul.f32 %v494, %v625
      %v628 = vmul.f32 %v497, %v625
      %v629 = vmul.f32 %v502, %v625
      %v630 = vmul.f32 %v505, %v625
      %v631 = vmul.f32 %v510, %v625
      %v632 = vmul.f32 %v513, %v625
      %v633 = vmul.f32 %v518, %v625
      %v634 = vmul.f32 %v521, %v625
      %v635 = vmul.f32 %v526, %v625
      %v636 = vmul.f32 %v529, %v625
      %v637 = vmul.f32 %v534, %v625
      %v638 = vmul.f32 %v537, %v625
      %v639 = vmul.f32 %v542, %v625
      %v640 = vmul.f32 %v545, %v625
      %v641 = vmul.f32 %v550, %v625
      %v642 = vmul.f32 %v553, %v625
      %v643 = vmul.f32 %v558, %v625
      %v644 = vmul.f32 %v561, %v625
      %v645 = vmul.f32 %v566, %v625
      %v646 = vmul.f32 %v569, %v625
      %v647 = vmul.f32 %v574, %v625
      %v648 = vmul.f32 %v577, %v625
      %v649 = vmul.f32 %v582, %v625
      %v650 = vmul.f32 %v585, %v625
      %v651 = vmul.f32 %v590, %v625
      %v652 = vmul.f32 %v593, %v625
      %v653 = vmul.f32 %v598, %v625
      %v654 = vmul.f32 %v601, %v625
      %v655 = vmul.f32 %v606, %v625
      %v656 = vmul.f32 %v609, %v625
      %v657 = vmul.f32 %v614, %v625
      %v658 = vmul.f32 %v617, %v625
      %v659 = vld [vmem:[%s256] sm:$0x1]
      %v661 = vlaneseq
      %v662 = vshrl.u32 %v661, 7
      %v663 = vsub.s32 0, %v662
      %v664 = vrot.slane %v659, %v663
      %v666 = vadd.f32 %v627, %v664
      %v667 = vadd.f32 %v628, %v664
      %v668 = vadd.f32 %v629, %v664
      %v669 = vadd.f32 %v630, %v664
      %v670 = vadd.f32 %v631, %v664
      %v671 = vadd.f32 %v632, %v664
      %v672 = vadd.f32 %v633, %v664
      %v673 = vadd.f32 %v634, %v664
      %v674 = vadd.f32 %v635, %v664
      %v675 = vadd.f32 %v636, %v664
      %v676 = vadd.f32 %v637, %v664
      %v677 = vadd.f32 %v638, %v664
      %v678 = vadd.f32 %v639, %v664
      %v679 = vadd.f32 %v640, %v664
      %v680 = vadd.f32 %v641, %v664
      %v681 = vadd.f32 %v642, %v664
      %v682 = vadd.f32 %v643, %v664
      %v683 = vadd.f32 %v644, %v664
      %v684 = vadd.f32 %v645, %v664
      %v685 = vadd.f32 %v646, %v664
      %v686 = vadd.f32 %v647, %v664
      %v687 = vadd.f32 %v648, %v664
      %v688 = vadd.f32 %v649, %v664
      %v689 = vadd.f32 %v650, %v664
      %v690 = vadd.f32 %v651, %v664
      %v691 = vadd.f32 %v652, %v664
      %v692 = vadd.f32 %v653, %v664
      %v693 = vadd.f32 %v654, %v664
      %v694 = vadd.f32 %v655, %v664
      %v695 = vadd.f32 %v656, %v664
      %v696 = vadd.f32 %v657, %v664
      %v697 = vadd.f32 %v658, %v664
      %v698 = vmax.f32 %v666, 0.0
      %v699 = vmax.f32 %v667, 0.0
      %v700 = vmax.f32 %v668, 0.0
      %v701 = vmax.f32 %v669, 0.0
      %v702 = vmax.f32 %v670, 0.0
      %v703 = vmax.f32 %v671, 0.0
      %v704 = vmax.f32 %v672, 0.0
      %v705 = vmax.f32 %v673, 0.0
      %v706 = vmax.f32 %v674, 0.0
      %v707 = vmax.f32 %v675, 0.0
      %v708 = vmax.f32 %v676, 0.0
      %v709 = vmax.f32 %v677, 0.0
      %v710 = vmax.f32 %v678, 0.0
      %v711 = vmax.f32 %v679, 0.0
      %v712 = vmax.f32 %v680, 0.0
      %v713 = vmax.f32 %v681, 0.0
      %v714 = vmax.f32 %v682, 0.0
      %v715 = vmax.f32 %v683, 0.0
      %v716 = vmax.f32 %v684, 0.0
      %v717 = vmax.f32 %v685, 0.0
      %v718 = vmax.f32 %v686, 0.0
      %v719 = vmax.f32 %v687, 0.0
      %v720 = vmax.f32 %v688, 0.0
      %v721 = vmax.f32 %v689, 0.0
      %v722 = vmax.f32 %v690, 0.0
      %v723 = vmax.f32 %v691, 0.0
      %v724 = vmax.f32 %v692, 0.0
      %v725 = vmax.f32 %v693, 0.0
      %v726 = vmax.f32 %v694, 0.0
      %v727 = vmax.f32 %v695, 0.0
      %v728 = vmax.f32 %v696, 0.0
      %v729 = vmax.f32 %v697, 0.0
      %v730 = vpack.c.bf16 %v699, %v698
      %v731 = vpack.c.bf16 %v701, %v700
      %v732 = vpack.c.bf16 %v703, %v702
      %v733 = vpack.c.bf16 %v705, %v704
      %v734 = vpack.c.bf16 %v707, %v706
      %v735 = vpack.c.bf16 %v709, %v708
      %v736 = vpack.c.bf16 %v711, %v710
      %v737 = vpack.c.bf16 %v713, %v712
      %v738 = vpack.c.bf16 %v715, %v714
      %v739 = vpack.c.bf16 %v717, %v716
      %v740 = vpack.c.bf16 %v719, %v718
      %v741 = vpack.c.bf16 %v721, %v720
      %v742 = vpack.c.bf16 %v723, %v722
      %v743 = vpack.c.bf16 %v725, %v724
      %v744 = vpack.c.bf16 %v727, %v726
      %v745 = vpack.c.bf16 %v729, %v728
      %v762 = vunpack.c.l.b16 %v730
      %v763 = vunpack.c.h.b16 %v730
      %v764 = vunpack.c.l.b16 %v731
      %v765 = vunpack.c.h.b16 %v731
      %v766 = vunpack.c.l.b16 %v732
      %v767 = vunpack.c.h.b16 %v732
      %v768 = vunpack.c.l.b16 %v733
      %v769 = vunpack.c.h.b16 %v733
      %v770 = vunpack.c.l.b16 %v734
      %v771 = vunpack.c.h.b16 %v734
      %v772 = vunpack.c.l.b16 %v735
      %v773 = vunpack.c.h.b16 %v735
      %v774 = vunpack.c.l.b16 %v736
      %v775 = vunpack.c.h.b16 %v736
      %v776 = vunpack.c.l.b16 %v737
      %v777 = vunpack.c.h.b16 %v737
      %v778 = vunpack.c.l.b16 %v738
      %v779 = vunpack.c.h.b16 %v738
      %v780 = vunpack.c.l.b16 %v739
      %v781 = vunpack.c.h.b16 %v739
      %v782 = vunpack.c.l.b16 %v740
      %v783 = vunpack.c.h.b16 %v740
      %v784 = vunpack.c.l.b16 %v741
      %v785 = vunpack.c.h.b16 %v741
      %v786 = vunpack.c.l.b16 %v742
      %v787 = vunpack.c.h.b16 %v742
      %v788 = vunpack.c.l.b16 %v743
      %v789 = vunpack.c.h.b16 %v743
      %v790 = vunpack.c.l.b16 %v744
      %v791 = vunpack.c.h.b16 %v744
      %v792 = vunpack.c.l.b16 %v745
      %v793 = vunpack.c.h.b16 %v745
      %v794 = vpack.c.b16 %v762, %v762
      %v795 = vpack.c.b16 %v763, %v763
      %v796 = vpack.c.b16 %v764, %v764
      %v797 = vpack.c.b16 %v765, %v765
      %v798 = vpack.c.b16 %v766, %v766
      %v799 = vpack.c.b16 %v767, %v767
      %v800 = vpack.c.b16 %v768, %v768
      %v801 = vpack.c.b16 %v769, %v769
      %v802 = vpack.c.b16 %v770, %v770
      %v803 = vpack.c.b16 %v771, %v771
      %v804 = vpack.c.b16 %v772, %v772
      %v805 = vpack.c.b16 %v773, %v773
      %v806 = vpack.c.b16 %v774, %v774
      %v807 = vpack.c.b16 %v775, %v775
      %v808 = vpack.c.b16 %v776, %v776
      %v809 = vpack.c.b16 %v777, %v777
      %v810 = vpack.c.b16 %v778, %v778
      %v811 = vpack.c.b16 %v779, %v779
      %v812 = vpack.c.b16 %v780, %v780
      %v813 = vpack.c.b16 %v781, %v781
      %v814 = vpack.c.b16 %v782, %v782
      %v815 = vpack.c.b16 %v783, %v783
      %v816 = vpack.c.b16 %v784, %v784
      %v817 = vpack.c.b16 %v785, %v785
      %v818 = vpack.c.b16 %v786, %v786
      %v819 = vpack.c.b16 %v787, %v787
      %v820 = vpack.c.b16 %v788, %v788
      %v821 = vpack.c.b16 %v789, %v789
      %v822 = vpack.c.b16 %v790, %v790
      %v823 = vpack.c.b16 %v791, %v791
      %v824 = vpack.c.b16 %v792, %v792
      %v825 = vpack.c.b16 %v793, %v793
      %858 = vst [vmem:[%s264] sm:$0xf] %v794
      %859 = vst [vmem:[%s264 + $0x4] sm:$0xf] %v795
      %860 = vst [vmem:[%s264 + $0x8] sm:$0xf] %v796
      %861 = vst [vmem:[%s264 + $0xc] sm:$0xf] %v797
      %862 = vst [vmem:[%s264 + $0x10] sm:$0xf] %v798
      %863 = vst [vmem:[%s264 + $0x14] sm:$0xf] %v799
      %864 = vst [vmem:[%s264 + $0x18] sm:$0xf] %v800
      %865 = vst [vmem:[%s264 + $0x1c] sm:$0xf] %v801
      %866 = vst [vmem:[%s264 + $0x20] sm:$0xf] %v802
      %867 = vst [vmem:[%s264 + $0x24] sm:$0xf] %v803
      %868 = vst [vmem:[%s264 + $0x28] sm:$0xf] %v804
      %869 = vst [vmem:[%s264 + $0x2c] sm:$0xf] %v805
      %870 = vst [vmem:[%s264 + $0x30] sm:$0xf] %v806
      %871 = vst [vmem:[%s264 + $0x34] sm:$0xf] %v807
      %872 = vst [vmem:[%s264 + $0x38] sm:$0xf] %v808
      %873 = vst [vmem:[%s264 + $0x3c] sm:$0xf] %v809
      %874 = vst [vmem:[%s264 + $0x40] sm:$0xf] %v810
      %875 = vst [vmem:[%s264 + $0x44] sm:$0xf] %v811
      %876 = vst [vmem:[%s264 + $0x48] sm:$0xf] %v812
      %877 = vst [vmem:[%s264 + $0x4c] sm:$0xf] %v813
      %878 = vst [vmem:[%s264 + $0x50] sm:$0xf] %v814
      %879 = vst [vmem:[%s264 + $0x54] sm:$0xf] %v815
      %880 = vst [vmem:[%s264 + $0x58] sm:$0xf] %v816
      %881 = vst [vmem:[%s264 + $0x5c] sm:$0xf] %v817
      %882 = vst [vmem:[%s264 + $0x60] sm:$0xf] %v818
      %883 = vst [vmem:[%s264 + $0x64] sm:$0xf] %v819
      %884 = vst [vmem:[%s264 + $0x68] sm:$0xf] %v820
      %885 = vst [vmem:[%s264 + $0x6c] sm:$0xf] %v821
      %886 = vst [vmem:[%s264 + $0x70] sm:$0xf] %v822
      %887 = vst [vmem:[%s264 + $0x74] sm:$0xf] %v823
      %888 = vst [vmem:[%s264 + $0x78] sm:$0xf] %v824
      %889 = vst [vmem:[%s264 + $0x7c] sm:$0xf] %v825
      %s890 = smul.u32 32, %s19
      %p891 = scmp.lt.s32.totalorder %s890, 63
      %s892 = scalar_select %p891, %s890, 63
      %p893 = scmp.lt.s32.totalorder %s20, 0
      %s894 = scalar_select %p893, %s20, 0
      %s895 = sadd.s32 %s894, %s892
      %s896 = smul.addr %s895, 4
      %s897 = scalar_lea.vmem %s4, %s896
      // Predicated region
      $region37: #{deeplab_forward.27} parent=35 // pred_check
        %p898 = pneg %p151
      $region38: #{deeplab_forward.27} parent=35 // pred_check_branch
        %900 = sbr.rel (%p898) target = $region40
      $region39: #{deeplab_forward.27} parent=35 // pred_region
        %s901 = smul.u32 32, %s19
      $region40: #{deeplab_forward.27} parent=35 // pred_fallthru
        _
    $region36: #{deeplab_forward.27} parent=5 // pred_fallthru
      _
    %p902 = scmp.le.s32.totalorder 2, %s10
    // Predicated region
    $region41: #{deeplab_forward.27} parent=5 // pred_check
      %p903 = pneg %p902
    $region42: #{deeplab_forward.27} parent=5 // pred_check_branch
      %905 = sbr.rel (%p903) target = $region44
    $region43: #{deeplab_forward.27} parent=5 // pred_region
      %s906 = ssub.s32 %s10, 2
      // Predicated region
      $region45: #{deeplab_forward.27} parent=43 // pred_check
        %p907 = pneg %p157
      $region46: #{deeplab_forward.27} parent=43 // pred_check_branch
        %909 = sbr.rel (%p907) target = $region48
      $region47: #{deeplab_forward.27} parent=43 // pred_region
        %s910 = smul.u32 32, %s21
        %p911 = scmp.lt.s32.totalorder %s910, 63
        %s912 = scalar_select %p911, %s910, 63
        %p913 = scmp.lt.s32.totalorder %s22, 0
        %s914 = scalar_select %p913, %s22, 0
        %s915 = sadd.s32 %s914, %s912
        %s916 = smul.addr %s915, 4
        %s917 = scalar_lea.vmem %s4, %s916
      $region48: #{deeplab_forward.27} parent=43 // pred_fallthru
        _
    $region44: #{deeplab_forward.27} parent=5 // pred_fallthru
      _
  $region6: #{deeplab_forward.27} parent=0 // loop_footer
    %s14 = sadd.s32 1, %s10
  $region7: #{deeplab_forward.27} parent=0 // loop_footer_branch
    %9 = sbr.rel target = $region3
  $region8: #{deeplab_forward.27} parent=0 // loop_exit
    _

// kernel: deeplab_forward.28
$region0: #{deeplab_forward.28}
  #allocation0 [shape = 'u32[]', space=smem, size = 0x4, offset = 0x4, fixed_abs, tag = 'smem constant byte address 0x4 - core index']
  #allocation1 [shape = 'u32[144,128]{1,0:T(1,128)}', space=vmem, size = 0x12000, scoped, tag = 'internal scratch']
  %s0 = inlined_call_operand.vmem [shape: bf16[512,384], index: 0, kind: input, shape index: {}]
  %s1 = inlined_call_operand.vmem [shape: bf16[384,128], index: 1, kind: input, shape index: {}]
  %s2 = inlined_call_operand.vmem [shape: f32[1,128], index: 2, kind: input, shape index: {}]
  %s3 = inlined_call_operand.vmem [shape: f32[1,128], index: 3, kind: input, shape index: {}]
  %s4 = inlined_call_operand.vmem [shape: bf16[512,128], index: 4, kind: output, shape index: {}]
  %s5 = sld [smem:[#allocation0]]
  $region49: #{deeplab_forward.28} parent=0
    _
  %s7 = ssub.s32 1, %s5
  %s8 = scalar_select 0, %s7, %s5
  loop: start=0, step=1, limit=4
  $region2: #{deeplab_forward.28} parent=0 // loop_pre_header
    _
  $region3: #{deeplab_forward.28} parent=0 // loop_header
    %s10 = sphi 0, %s14
    %p11 = scmp.ge.s32.totalorder %s10, 4
    %s17 = sphi 0, %s29
    %s18 = sphi 0, %s25
    %s19 = sphi 0, %s17
    %s20 = sphi 0, %s18
    %s21 = sphi 0, %s19
    %s22 = sphi 0, %s20
    %s32 = sphi 0, %s34
    %s35 = sphi 0, %s32
    %s36 = sphi 0, %s35
    %s52 = sphi 0, %s36
    %s58 = sphi 0, %s60
    %s61 = sphi 0, %s58
    %s62 = sphi 0, %s61
    %s78 = sphi 0, %s62
    %s84 = sphi 0, %s86
    %s87 = sphi 0, %s84
    %s88 = sphi 0, %s87
    %s104 = sphi 0, %s88
    %s110 = sphi 0, %s112
    %s113 = sphi 0, %s110
    %s114 = sphi 0, %s113
    %s130 = sphi 0, %s114
    %s138 = sphi 0, %s140
    %s141 = sphi 0, %s138
    %s142 = sphi 0, %s141
    %s158 = sphi 0, %s142
  $region4: #{deeplab_forward.28} parent=0 // loop_header_branch
    %13 = sbr.rel (%p11) target = $region8
  $region5: #{deeplab_forward.28} parent=0 // loop_body
    %s15 = ssub.s32 %s10, 1
    %s16 = ssub.s32 %s10, 2
    %s23 = sadd.s32 1, %s18
    %p24 = scmp.ge.s32.totalorder %s23, 1
    %s25 = scalar_select %p24, 0, %s23
    %s26 = sadd.s32 1, %s17
    %s27 = scalar_select %p24, %s26, %s17
    %p28 = scmp.ge.s32.totalorder %s27, 2
    %s29 = scalar_select %p28, 0, %s27
    %s30 = ssub.s32 %s17, %s29
    %p31 = scmp.eq.s32.totalorder %s30, 0
    %s33 = sadd.s32 %s32, 1
    %s34 = scalar_select %p31, %s32, %s33
    %p37 = pneg %p31
    %p38 = scmp.eq.s32.totalorder %s10, 1
    %p39 = por %p37, %p38
    %p40 = scmp.ne.s32.totalorder %s32, %s35
    %p41 = scmp.eq.s32.totalorder %s10, 0
    %p42 = por %p40, %p41
    %p43 = scmp.ne.s32.totalorder %s32, %s35
    %p44 = scmp.eq.s32.totalorder %s15, 1
    %p45 = por %p43, %p44
    %p46 = scmp.ne.s32.totalorder %s35, %s36
    %p47 = scmp.eq.s32.totalorder %s15, 0
    %p48 = por %p46, %p47
    %p49 = scmp.ne.s32.totalorder %s35, %s36
    %p50 = scmp.eq.s32.totalorder %s16, 1
    %p51 = por %p49, %p50
    %p53 = scmp.ne.s32.totalorder %s36, %s52
    %p54 = scmp.eq.s32.totalorder %s16, 0
    %p55 = por %p53, %p54
    %s56 = ssub.s32 %s18, %s25
    %p57 = scmp.eq.s32.totalorder %s56, 0
    %s59 = sadd.s32 %s58, 1
    %s60 = scalar_select %p57, %s58, %s59
    %p63 = pneg %p57
    %p64 = scmp.eq.s32.totalorder %s10, 1
    %p65 = por %p63, %p64
    %p66 = scmp.ne.s32.totalorder %s58, %s61
    %p67 = scmp.eq.s32.totalorder %s10, 0
    %p68 = por %p66, %p67
    %p69 = scmp.ne.s32.totalorder %s58, %s61
    %p70 = scmp.eq.s32.totalorder %s15, 1
    %p71 = por %p69, %p70
    %p72 = scmp.ne.s32.totalorder %s61, %s62
    %p73 = scmp.eq.s32.totalorder %s15, 0
    %p74 = por %p72, %p73
    %p75 = scmp.ne.s32.totalorder %s61, %s62
    %p76 = scmp.eq.s32.totalorder %s16, 1
    %p77 = por %p75, %p76
    %p79 = scmp.ne.s32.totalorder %s62, %s78
    %p80 = scmp.eq.s32.totalorder %s16, 0
    %p81 = por %p79, %p80
    %s82 = ssub.s32 %s18, %s25
    %p83 = scmp.eq.s32.totalorder %s82, 0
    %s85 = sadd.s32 %s84, 1
    %s86 = scalar_select %p83, %s84, %s85
    %p89 = pneg %p83
    %p90 = scmp.eq.s32.totalorder %s10, 1
    %p91 = por %p89, %p90
    %p92 = scmp.ne.s32.totalorder %s84, %s87
    %p93 = scmp.eq.s32.totalorder %s10, 0
    %p94 = por %p92, %p93
    %p95 = scmp.ne.s32.totalorder %s84, %s87
    %p96 = scmp.eq.s32.totalorder %s15, 1
    %p97 = por %p95, %p96
    %p98 = scmp.ne.s32.totalorder %s87, %s88
    %p99 = scmp.eq.s32.totalorder %s15, 0
    %p100 = por %p98, %p99
    %p101 = scmp.ne.s32.totalorder %s87, %s88
    %p102 = scmp.eq.s32.totalorder %s16, 1
    %p103 = por %p101, %p102
    %p105 = scmp.ne.s32.totalorder %s88, %s104
    %p106 = scmp.eq.s32.totalorder %s16, 0
    %p107 = por %p105, %p106
    %s108 = ssub.s32 %s18, %s25
    %p109 = scmp.eq.s32.totalorder %s108, 0
    %s111 = sadd.s32 %s110, 1
    %s112 = scalar_select %p109, %s110, %s111
    %p115 = pneg %p109
    %p116 = scmp.eq.s32.totalorder %s10, 1
    %p117 = por %p115, %p116
    %p118 = scmp.ne.s32.totalorder %s110, %s113
    %p119 = scmp.eq.s32.totalorder %s10, 0
    %p120 = por %p118, %p119
    %p121 = scmp.ne.s32.totalorder %s110, %s113
    %p122 = scmp.eq.s32.totalorder %s15, 1
    %p123 = por %p121, %p122
    %p124 = scmp.ne.s32.totalorder %s113, %s114
    %p125 = scmp.eq.s32.totalorder %s15, 0
    %p126 = por %p124, %p125
    %p127 = scmp.ne.s32.totalorder %s113, %s114
    %p128 = scmp.eq.s32.totalorder %s16, 1
    %p129 = por %p127, %p128
    %p131 = scmp.ne.s32.totalorder %s114, %s130
    %p132 = scmp.eq.s32.totalorder %s16, 0
    %p133 = por %p131, %p132
    %s134 = ssub.s32 %s17, %s29
    %s135 = ssub.s32 %s18, %s25
    %s136 = sor.u32 %s134, %s135
    %p137 = scmp.eq.s32.totalorder %s136, 0
    %s139 = sadd.s32 %s138, 1
    %s140 = scalar_select %p137, %s138, %s139
    %p143 = pneg %p137
    %p144 = scmp.eq.s32.totalorder %s10, 1
    %p145 = por %p143, %p144
    %p146 = scmp.ne.s32.totalorder %s138, %s141
    %p147 = scmp.eq.s32.totalorder %s10, 0
    %p148 = por %p146, %p147
    %p149 = scmp.ne.s32.totalorder %s138, %s141
    %p150 = scmp.eq.s32.totalorder %s15, 1
    %p151 = por %p149, %p150
    %p152 = scmp.ne.s32.totalorder %s141, %s142
    %p153 = scmp.eq.s32.totalorder %s15, 0
    %p154 = por %p152, %p153
    %p155 = scmp.ne.s32.totalorder %s141, %s142
    %p156 = scmp.eq.s32.totalorder %s16, 1
    %p157 = por %p155, %p156
    %p159 = scmp.ne.s32.totalorder %s142, %s158
    %p160 = scmp.eq.s32.totalorder %s16, 0
    %p161 = por %p159, %p160
    %p162 = scmp.le.s32.totalorder 1, %s10
    %p163 = scmp.lt.s32.totalorder %s10, 3
    %p164 = pnand %p162, %p163
    %p165 = pneg %p164
    // Predicated region
    $region9: #{deeplab_forward.28} parent=5 // pred_check
      _
    $region10: #{deeplab_forward.28} parent=5 // pred_check_branch
      %167 = sbr.rel (%p164) target = $region12
    $region11: #{deeplab_forward.28} parent=5 // pred_region
      %s168 = ssub.s32 %s10, 1
      // Predicated region
      $region13: #{deeplab_forward.28} parent=11 // pred_check
        %p169 = pneg %p74
      $region14: #{deeplab_forward.28} parent=11 // pred_check_branch
        %171 = sbr.rel (%p169) target = $region16
      $region15: #{deeplab_forward.28} parent=11 // pred_region
        %p172 = scmp.lt.s32.totalorder %s20, 0
        %s173 = scalar_select %p172, %s20, 0
        %s174 = smul.addr %s173, 4
        %s175 = scalar_lea.vmem %s1, %s174
      $region16: #{deeplab_forward.28} parent=11 // pred_fallthru
        _
      // Predicated region
      $region17: #{deeplab_forward.28} parent=11 // pred_check
        %p176 = pneg %p100
      $region18: #{deeplab_forward.28} parent=11 // pred_check_branch
        %178 = sbr.rel (%p176) target = $region20
      $region19: #{deeplab_forward.28} parent=11 // pred_region
        %p179 = scmp.lt.s32.totalorder %s20, 0
        %s180 = scalar_select %p179, %s20, 0
        %s181 = scalar_lea.vmem %s2, %s180
      $region20: #{deeplab_forward.28} parent=11 // pred_fallthru
        _
      // Predicated region
      $region21: #{deeplab_forward.28} parent=11 // pred_check
        %p182 = pneg %p126
      $region22: #{deeplab_forward.28} parent=11 // pred_check_branch
        %184 = sbr.rel (%p182) target = $region24
      $region23: #{deeplab_forward.28} parent=11 // pred_region
        %p185 = scmp.lt.s32.totalorder %s20, 0
        %s186 = scalar_select %p185, %s20, 0
        %s187 = scalar_lea.vmem %s3, %s186
      $region24: #{deeplab_forward.28} parent=11 // pred_fallthru
        _
    $region12: #{deeplab_forward.28} parent=5 // pred_fallthru
      _
    %p188 = scmp.lt.s32.totalorder %s10, 2
    // Predicated region
    $region25: #{deeplab_forward.28} parent=5 // pred_check
      %p189 = pneg %p188
    $region26: #{deeplab_forward.28} parent=5 // pred_check_branch
      %191 = sbr.rel (%p189) target = $region28
    $region27: #{deeplab_forward.28} parent=5 // pred_region
      // Predicated region
      $region29: #{deeplab_forward.28} parent=27 // pred_check
        %p192 = pneg %p42
      $region30: #{deeplab_forward.28} parent=27 // pred_check_branch
        %194 = sbr.rel (%p192) target = $region32
      $region31: #{deeplab_forward.28} parent=27 // pred_region
        %s195 = smul.u32 32, %s17
        %p196 = scmp.lt.s32.totalorder %s195, 63
        %s197 = scalar_select %p196, %s195, 63
        %s198 = smul.addr %s197, 3
        %s199 = smul.addr %s198, 4
        %s200 = scalar_lea.vmem %s0, %s199
        %s201 = smul.u32 32, %s17
      $region32: #{deeplab_forward.28} parent=27 // pred_fallthru
        _
    $region28: #{deeplab_forward.28} parent=5 // pred_fallthru
      _
    %p202 = scmp.le.s32.totalorder 1, %s10
    %p203 = scmp.lt.s32.totalorder %s10, 3
    %p204 = pnand %p202, %p203
    %p205 = pneg %p204
    // Predicated region
    $region33: #{deeplab_forward.28} parent=5 // pred_check
      _
    $region34: #{deeplab_forward.28} parent=5 // pred_check_branch
      %207 = sbr.rel (%p204) target = $region36
    $region35: #{deeplab_forward.28} parent=5 // pred_region
      %s208 = ssub.s32 %s10, 1
      %s209 = smul.u32 32, %s19
      %p210 = scmp.lt.s32.totalorder %s209, 63
      %s211 = scalar_select %p210, %s209, 63
      %s212 = smul.addr %s211, 3
      %s213 = smul.addr %s212, 4
      %s214 = scalar_lea.vmem %s0, %s213
      %p215 = pneg %p48
      %p216 = pneg %p45
      %p217 = scmp.lt.s32.totalorder %s20, 0
      %s218 = scalar_select %p217, %s20, 0
      %s219 = smul.addr %s218, 4
      %s220 = scalar_lea.vmem %s1, %s219
      %p221 = pneg %p74
      %p222 = pneg %p71
      %p223 = scmp.lt.s32.totalorder %s20, 0
      %s224 = scalar_select %p223, %s20, 0
      %s225 = scalar_lea.vmem %s2, %s224
      %p226 = pneg %p100
      %p227 = pneg %p97
      %p228 = scmp.lt.s32.totalorder %s20, 0
      %s229 = scalar_select %p228, %s20, 0
      %s230 = scalar_lea.vmem %s3, %s229
      %p231 = pneg %p126
      %p232 = pneg %p123
      %p233 = pneg %p154
      %p234 = pneg %p151
      %s235 = smul.u32 32, %s19
      %p236 = scmp.lt.s32.totalorder %s235, 63
      %s237 = scalar_select %p236, %s235, 63
      %p238 = scmp.lt.s32.totalorder %s20, 0
      %s239 = scalar_select %p238, %s20, 0
      %s240 = sadd.s32 %s239, %s237
      %s241 = smul.addr %s240, 4
      %s242 = scalar_lea.vmem %s4, %s241
      %s243 = smul.u32 32, %s19
      %p244 = scmp.lt.s32.totalorder %s243, 63
      %s245 = scalar_select %p244, %s243, 63
      %s246 = smul.addr %s245, 3
      %s247 = smul.addr %s246, 4
      %s248 = scalar_lea.vmem %s0, %s247
      %s249 = smul.u32 32, %s19
      %p250 = scmp.lt.s32.totalorder %s20, 0
      %s251 = scalar_select %p250, %s20, 0
      %s252 = smul.addr %s251, 4
      %s253 = scalar_lea.vmem %s1, %s252
      %p254 = scmp.lt.s32.totalorder %s20, 0
      %s255 = scalar_select %p254, %s20, 0
      %s256 = scalar_lea.vmem %s2, %s255
      %p257 = scmp.lt.s32.totalorder %s20, 0
      %s258 = scalar_select %p257, %s20, 0
      %s259 = scalar_lea.vmem %s3, %s258
      %s260 = smul.u32 32, %s19
      %p261 = scmp.lt.s32.totalorder %s260, 63
      %s262 = scalar_select %p261, %s260, 63
      %p263 = scmp.lt.s32.totalorder %s20, 0
      %s264 = scalar_select %p263, %s20, 0
      %s265 = sadd.s32 %s264, %s262
      %s266 = smul.addr %s265, 4
      %s267 = scalar_lea.vmem %s4, %s266
      %s268 = smul.u32 32, %s19
      %v270 = vld [vmem:[%s248] sm:$0xff]
      %v271 = vld [vmem:[%s248 + $0x8] sm:$0xf]
      %v272 = vld [vmem:[%s248 + $0xc] sm:$0xff]
      %v273 = vld [vmem:[%s248 + $0x14] sm:$0xf]
      %v274 = vld [vmem:[%s248 + $0x18] sm:$0xff]
      %v275 = vld [vmem:[%s248 + $0x20] sm:$0xf]
      %v276 = vld [vmem:[%s248 + $0x24] sm:$0xff]
      %v277 = vld [vmem:[%s248 + $0x2c] sm:$0xf]
      %v278 = vld [vmem:[%s248 + $0x30] sm:$0xff]
      %v279 = vld [vmem:[%s248 + $0x38] sm:$0xf]
      %v280 = vld [vmem:[%s248 + $0x3c] sm:$0xff]
      %v281 = vld [vmem:[%s248 + $0x44] sm:$0xf]
      %v282 = vld [vmem:[%s248 + $0x48] sm:$0xff]
      %v283 = vld [vmem:[%s248 + $0x50] sm:$0xf]
      %v284 = vld [vmem:[%s248 + $0x54] sm:$0xff]
      %v285 = vld [vmem:[%s248 + $0x5c] sm:$0xf]
      %v286 = vld [vmem:[%s248 + $0x60] sm:$0xff]
      %v287 = vld [vmem:[%s248 + $0x68] sm:$0xf]
      %v288 = vld [vmem:[%s248 + $0x6c] sm:$0xff]
      %v289 = vld [vmem:[%s248 + $0x74] sm:$0xf]
      %v290 = vld [vmem:[%s248 + $0x78] sm:$0xff]
      %v291 = vld [vmem:[%s248 + $0x80] sm:$0xf]
      %v292 = vld [vmem:[%s248 + $0x84] sm:$0xff]
      %v293 = vld [vmem:[%s248 + $0x8c] sm:$0xf]
      %v294 = vld [vmem:[%s248 + $0x90] sm:$0xff]
      %v295 = vld [vmem:[%s248 + $0x98] sm:$0xf]
      %v296 = vld [vmem:[%s248 + $0x9c] sm:$0xff]
      %v297 = vld [vmem:[%s248 + $0xa4] sm:$0xf]
      %v298 = vld [vmem:[%s248 + $0xa8] sm:$0xff]
      %v299 = vld [vmem:[%s248 + $0xb0] sm:$0xf]
      %v300 = vld [vmem:[%s248 + $0xb4] sm:$0xff]
      %v301 = vld [vmem:[%s248 + $0xbc] sm:$0xf]
      %v302 = vld [vmem:[%s248 + $0xc0] sm:$0xff]
      %v303 = vld [vmem:[%s248 + $0xc8] sm:$0xf]
      %v304 = vld [vmem:[%s248 + $0xcc] sm:$0xff]
      %v305 = vld [vmem:[%s248 + $0xd4] sm:$0xf]
      %v306 = vld [vmem:[%s248 + $0xd8] sm:$0xff]
      %v307 = vld [vmem:[%s248 + $0xe0] sm:$0xf]
      %v308 = vld [vmem:[%s248 + $0xe4] sm:$0xff]
      %v309 = vld [vmem:[%s248 + $0xec] sm:$0xf]
      %v310 = vld [vmem:[%s248 + $0xf0] sm:$0xff]
      %v311 = vld [vmem:[%s248 + $0xf8] sm:$0xf]
      %v312 = vld [vmem:[%s248 + $0xfc] sm:$0xff]
      %v313 = vld [vmem:[%s248 + $0x104] sm:$0xf]
      %v314 = vld [vmem:[%s248 + $0x108] sm:$0xff]
      %v315 = vld [vmem:[%s248 + $0x110] sm:$0xf]
      %v316 = vld [vmem:[%s248 + $0x114] sm:$0xff]
      %v317 = vld [vmem:[%s248 + $0x11c] sm:$0xf]
      %v318 = vld [vmem:[%s248 + $0x120] sm:$0xff]
      %v319 = vld [vmem:[%s248 + $0x128] sm:$0xf]
      %v320 = vld [vmem:[%s248 + $0x12c] sm:$0xff]
      %v321 = vld [vmem:[%s248 + $0x134] sm:$0xf]
      %v322 = vld [vmem:[%s248 + $0x138] sm:$0xff]
      %v323 = vld [vmem:[%s248 + $0x140] sm:$0xf]
      %v324 = vld [vmem:[%s248 + $0x144] sm:$0xff]
      %v325 = vld [vmem:[%s248 + $0x14c] sm:$0xf]
      %v326 = vld [vmem:[%s248 + $0x150] sm:$0xff]
      %v327 = vld [vmem:[%s248 + $0x158] sm:$0xf]
      %v328 = vld [vmem:[%s248 + $0x15c] sm:$0xff]
      %v329 = vld [vmem:[%s248 + $0x164] sm:$0xf]
      %v330 = vld [vmem:[%s248 + $0x168] sm:$0xff]
      %v331 = vld [vmem:[%s248 + $0x170] sm:$0xf]
      %v332 = vld [vmem:[%s248 + $0x174] sm:$0xff]
      %v333 = vld [vmem:[%s248 + $0x17c] sm:$0xf]
      %v334 = vld [vmem:[%s253] sm:$0xf]
      %v335 = vld [vmem:[%s253 + $0x4] sm:$0xf]
      %v336 = vld [vmem:[%s253 + $0x8] sm:$0xf]
      %v337 = vld [vmem:[%s253 + $0xc] sm:$0xf]
      %v338 = vld [vmem:[%s253 + $0x10] sm:$0xf]
      %v339 = vld [vmem:[%s253 + $0x14] sm:$0xf]
      %v340 = vld [vmem:[%s253 + $0x18] sm:$0xf]
      %v341 = vld [vmem:[%s253 + $0x1c] sm:$0xf]
      %v342 = vld [vmem:[%s253 + $0x20] sm:$0xf]
      %v343 = vld [vmem:[%s253 + $0x24] sm:$0xf]
      %v344 = vld [vmem:[%s253 + $0x28] sm:$0xf]
      %v345 = vld [vmem:[%s253 + $0x2c] sm:$0xf]
      %v346 = vld [vmem:[%s253 + $0x30] sm:$0xf]
      %v347 = vld [vmem:[%s253 + $0x34] sm:$0xf]
      %v348 = vld [vmem:[%s253 + $0x38] sm:$0xf]
      %v349 = vld [vmem:[%s253 + $0x3c] sm:$0xf]
      %v350 = vld [vmem:[%s253 + $0x40] sm:$0xf]
      %v351 = vld [vmem:[%s253 + $0x44] sm:$0xf]
      %v352 = vld [vmem:[%s253 + $0x48] sm:$0xf]
      %v353 = vld [vmem:[%s253 + $0x4c] sm:$0xf]
      %v354 = vld [vmem:[%s253 + $0x50] sm:$0xf]
      %v355 = vld [vmem:[%s253 + $0x54] sm:$0xf]
      %v356 = vld [vmem:[%s253 + $0x58] sm:$0xf]
      %v357 = vld [vmem:[%s253 + $0x5c] sm:$0xf]
      %v358 = vld [vmem:[%s253 + $0x60] sm:$0xf]
      %v359 = vld [vmem:[%s253 + $0x64] sm:$0xf]
      %v360 = vld [vmem:[%s253 + $0x68] sm:$0xf]
      %v361 = vld [vmem:[%s253 + $0x6c] sm:$0xf]
      %v362 = vld [vmem:[%s253 + $0x70] sm:$0xf]
      %v363 = vld [vmem:[%s253 + $0x74] sm:$0xf]
      %v364 = vld [vmem:[%s253 + $0x78] sm:$0xf]
      %v365 = vld [vmem:[%s253 + $0x7c] sm:$0xf]
      %v366 = vld [vmem:[%s253 + $0x80] sm:$0xf]
      %v367 = vld [vmem:[%s253 + $0x84] sm:$0xf]
      %v368 = vld [vmem:[%s253 + $0x88] sm:$0xf]
      %v369 = vld [vmem:[%s253 + $0x8c] sm:$0xf]
      %v370 = vld [vmem:[%s253 + $0x90] sm:$0xf]
      %v371 = vld [vmem:[%s253 + $0x94] sm:$0xf]
      %v372 = vld [vmem:[%s253 + $0x98] sm:$0xf]
      %v373 = vld [vmem:[%s253 + $0x9c] sm:$0xf]
      %v374 = vld [vmem:[%s253 + $0xa0] sm:$0xf]
      %v375 = vld [vmem:[%s253 + $0xa4] sm:$0xf]
      %v376 = vld [vmem:[%s253 + $0xa8] sm:$0xf]
      %v377 = vld [vmem:[%s253 + $0xac] sm:$0xf]
      %v378 = vld [vmem:[%s253 + $0xb0] sm:$0xf]
      %v379 = vld [vmem:[%s253 + $0xb4] sm:$0xf]
      %v380 = vld [vmem:[%s253 + $0xb8] sm:$0xf]
      %v381 = vld [vmem:[%s253 + $0xbc] sm:$0xf]
      %v446 = vunpack.c.l.b16 %v270
      %v447 = vunpack.c.h.b16 %v270
      %v448 = vunpack.c.l.b16 %v271
      %v449 = vunpack.c.l.b16 %v272
      %v450 = vunpack.c.h.b16 %v272
      %v451 = vunpack.c.l.b16 %v273
      %v452 = vunpack.c.l.b16 %v274
      %v453 = vunpack.c.h.b16 %v274
      %v454 = vunpack.c.l.b16 %v275
      %v455 = vunpack.c.l.b16 %v276
      %v456 = vunpack.c.h.b16 %v276
      %v457 = vunpack.c.l.b16 %v277
      %v458 = vunpack.c.l.b16 %v278
      %v459 = vunpack.c.h.b16 %v278
      %v460 = vunpack.c.l.b16 %v279
      %v461 = vunpack.c.l.b16 %v280
      %v462 = vunpack.c.h.b16 %v280
      %v463 = vunpack.c.l.b16 %v281
      %v464 = vunpack.c.l.b16 %v282
      %v465 = vunpack.c.h.b16 %v282
      %v466 = vunpack.c.l.b16 %v283
      %v467 = vunpack.c.l.b16 %v284
      %v468 = vunpack.c.h.b16 %v284
      %v469 = vunpack.c.l.b16 %v285
      %v470 = vunpack.c.l.b16 %v286
      %v471 = vunpack.c.h.b16 %v286
      %v472 = vunpack.c.l.b16 %v287
      %v473 = vunpack.c.l.b16 %v288
      %v474 = vunpack.c.h.b16 %v288
      %v475 = vunpack.c.l.b16 %v289
      %v476 = vunpack.c.l.b16 %v290
      %v477 = vunpack.c.h.b16 %v290
      %v478 = vunpack.c.l.b16 %v291
      %v479 = vunpack.c.l.b16 %v292
      %v480 = vunpack.c.h.b16 %v292
      %v481 = vunpack.c.l.b16 %v293
      %v482 = vunpack.c.l.b16 %v294
      %v483 = vunpack.c.h.b16 %v294
      %v484 = vunpack.c.l.b16 %v295
      %v485 = vunpack.c.l.b16 %v296
      %v486 = vunpack.c.h.b16 %v296
      %v487 = vunpack.c.l.b16 %v297
      %v488 = vunpack.c.l.b16 %v298
      %v489 = vunpack.c.h.b16 %v298
      %v490 = vunpack.c.l.b16 %v299
      %v491 = vunpack.c.l.b16 %v300
      %v492 = vunpack.c.h.b16 %v300
      %v493 = vunpack.c.l.b16 %v301
      %v494 = vunpack.c.l.b16 %v302
      %v495 = vunpack.c.h.b16 %v302
      %v496 = vunpack.c.l.b16 %v303
      %v497 = vunpack.c.l.b16 %v304
      %v498 = vunpack.c.h.b16 %v304
      %v499 = vunpack.c.l.b16 %v305
      %v500 = vunpack.c.l.b16 %v306
      %v501 = vunpack.c.h.b16 %v306
      %v502 = vunpack.c.l.b16 %v307
      %v503 = vunpack.c.l.b16 %v308
      %v504 = vunpack.c.h.b16 %v308
      %v505 = vunpack.c.l.b16 %v309
      %v506 = vunpack.c.l.b16 %v310
      %v507 = vunpack.c.h.b16 %v310
      %v508 = vunpack.c.l.b16 %v311
      %v509 = vunpack.c.l.b16 %v312
      %v510 = vunpack.c.h.b16 %v312
      %v511 = vunpack.c.l.b16 %v313
      %v512 = vunpack.c.l.b16 %v314
      %v513 = vunpack.c.h.b16 %v314
      %v514 = vunpack.c.l.b16 %v315
      %v515 = vunpack.c.l.b16 %v316
      %v516 = vunpack.c.h.b16 %v316
      %v517 = vunpack.c.l.b16 %v317
      %v518 = vunpack.c.l.b16 %v318
      %v519 = vunpack.c.h.b16 %v318
      %v520 = vunpack.c.l.b16 %v319
      %v521 = vunpack.c.l.b16 %v320
      %v522 = vunpack.c.h.b16 %v320
      %v523 = vunpack.c.l.b16 %v321
      %v524 = vunpack.c.l.b16 %v322
      %v525 = vunpack.c.h.b16 %v322
      %v526 = vunpack.c.l.b16 %v323
      %v527 = vunpack.c.l.b16 %v324
      %v528 = vunpack.c.h.b16 %v324
      %v529 = vunpack.c.l.b16 %v325
      %v530 = vunpack.c.l.b16 %v326
      %v531 = vunpack.c.h.b16 %v326
      %v532 = vunpack.c.l.b16 %v327
      %v533 = vunpack.c.l.b16 %v328
      %v534 = vunpack.c.h.b16 %v328
      %v535 = vunpack.c.l.b16 %v329
      %v536 = vunpack.c.l.b16 %v330
      %v537 = vunpack.c.h.b16 %v330
      %v538 = vunpack.c.l.b16 %v331
      %v539 = vunpack.c.l.b16 %v332
      %v540 = vunpack.c.h.b16 %v332
      %v541 = vunpack.c.l.b16 %v333
      %v542 = vpack.c.b16 %v449, %v446
      %v543 = vpack.c.b16 %v450, %v447
      %v544 = vpack.c.b16 %v451, %v448
      %v545 = vpack.c.b16 %v455, %v452
      %v546 = vpack.c.b16 %v456, %v453
      %v547 = vpack.c.b16 %v457, %v454
      %v548 = vpack.c.b16 %v461, %v458
      %v549 = vpack.c.b16 %v462, %v459
      %v550 = vpack.c.b16 %v463, %v460
      %v551 = vpack.c.b16 %v467, %v464
      %v552 = vpack.c.b16 %v468, %v465
      %v553 = vpack.c.b16 %v469, %v466
      %v554 = vpack.c.b16 %v473, %v470
      %v555 = vpack.c.b16 %v474, %v471
      %v556 = vpack.c.b16 %v475, %v472
      %v557 = vpack.c.b16 %v479, %v476
      %v558 = vpack.c.b16 %v480, %v477
      %v559 = vpack.c.b16 %v481, %v478
      %v560 = vpack.c.b16 %v485, %v482
      %v561 = vpack.c.b16 %v486, %v483
      %v562 = vpack.c.b16 %v487, %v484
      %v563 = vpack.c.b16 %v491, %v488
      %v564 = vpack.c.b16 %v492, %v489
      %v565 = vpack.c.b16 %v493, %v490
      %v566 = vpack.c.b16 %v497, %v494
      %v567 = vpack.c.b16 %v498, %v495
      %v568 = vpack.c.b16 %v499, %v496
      %v569 = vpack.c.b16 %v503, %v500
      %v570 = vpack.c.b16 %v504, %v501
      %v571 = vpack.c.b16 %v505, %v502
      %v572 = vpack.c.b16 %v509, %v506
      %v573 = vpack.c.b16 %v510, %v507
      %v574 = vpack.c.b16 %v511, %v508
      %v575 = vpack.c.b16 %v515, %v512
      %v576 = vpack.c.b16 %v516, %v513
      %v577 = vpack.c.b16 %v517, %v514
      %v578 = vpack.c.b16 %v521, %v518
      %v579 = vpack.c.b16 %v522, %v519
      %v580 = vpack.c.b16 %v523, %v520
      %v581 = vpack.c.b16 %v527, %v524
      %v582 = vpack.c.b16 %v528, %v525
      %v583 = vpack.c.b16 %v529, %v526
      %v584 = vpack.c.b16 %v533, %v530
      %v585 = vpack.c.b16 %v534, %v531
      %v586 = vpack.c.b16 %v535, %v532
      %v587 = vpack.c.b16 %v539, %v536
      %v588 = vpack.c.b16 %v540, %v537
      %v589 = vpack.c.b16 %v541, %v538
      %v686 = vunpack.c.l.b16 %v334
      %v687 = vunpack.c.l.b16 %v335
      %v688 = vunpack.c.l.b16 %v336
      %v689 = vunpack.c.l.b16 %v337
      %v690 = vunpack.c.l.b16 %v338
      %v691 = vunpack.c.l.b16 %v339
      %v692 = vunpack.c.l.b16 %v340
      %v693 = vunpack.c.l.b16 %v341
      %v694 = vunpack.c.l.b16 %v342
      %v695 = vunpack.c.l.b16 %v343
      %v696 = vunpack.c.l.b16 %v344
      %v697 = vunpack.c.l.b16 %v345
      %v698 = vunpack.c.l.b16 %v346
      %v699 = vunpack.c.l.b16 %v347
      %v700 = vunpack.c.l.b16 %v348
      %v701 = vunpack.c.l.b16 %v349
      %v702 = vunpack.c.l.b16 %v350
      %v703 = vunpack.c.l.b16 %v351
      %v704 = vunpack.c.l.b16 %v352
      %v705 = vunpack.c.l.b16 %v353
      %v706 = vunpack.c.l.b16 %v354
      %v707 = vunpack.c.l.b16 %v355
      %v708 = vunpack.c.l.b16 %v356
      %v709 = vunpack.c.l.b16 %v357
      %v710 = vunpack.c.l.b16 %v358
      %v711 = vunpack.c.l.b16 %v359
      %v712 = vunpack.c.l.b16 %v360
      %v713 = vunpack.c.l.b16 %v361
      %v714 = vunpack.c.l.b16 %v362
      %v715 = vunpack.c.l.b16 %v363
      %v716 = vunpack.c.l.b16 %v364
      %v717 = vunpack.c.l.b16 %v365
      %v718 = vunpack.c.l.b16 %v366
      %v719 = vunpack.c.l.b16 %v367
      %v720 = vunpack.c.l.b16 %v368
      %v721 = vunpack.c.l.b16 %v369
      %v722 = vunpack.c.l.b16 %v370
      %v723 = vunpack.c.l.b16 %v371
      %v724 = vunpack.c.l.b16 %v372
      %v725 = vunpack.c.l.b16 %v373
      %v726 = vunpack.c.l.b16 %v374
      %v727 = vunpack.c.l.b16 %v375
      %v728 = vunpack.c.l.b16 %v376
      %v729 = vunpack.c.l.b16 %v377
      %v730 = vunpack.c.l.b16 %v378
      %v731 = vunpack.c.l.b16 %v379
      %v732 = vunpack.c.l.b16 %v380
      %v733 = vunpack.c.l.b16 %v381
      %v734 = vpack.c.b16 %v687, %v686
      %v735 = vpack.c.b16 %v689, %v688
      %v736 = vpack.c.b16 %v691, %v690
      %v737 = vpack.c.b16 %v693, %v692
      %v738 = vpack.c.b16 %v695, %v694
      %v739 = vpack.c.b16 %v697, %v696
      %v740 = vpack.c.b16 %v699, %v698
      %v741 = vpack.c.b16 %v701, %v700
      %v742 = vpack.c.b16 %v703, %v702
      %v743 = vpack.c.b16 %v705, %v704
      %v744 = vpack.c.b16 %v707, %v706
      %v745 = vpack.c.b16 %v709, %v708
      %v746 = vpack.c.b16 %v711, %v710
      %v747 = vpack.c.b16 %v713, %v712
      %v748 = vpack.c.b16 %v715, %v714
      %v749 = vpack.c.b16 %v717, %v716
      %v750 = vpack.c.b16 %v719, %v718
      %v751 = vpack.c.b16 %v721, %v720
      %v752 = vpack.c.b16 %v723, %v722
      %v753 = vpack.c.b16 %v725, %v724
      %v754 = vpack.c.b16 %v727, %v726
      %v755 = vpack.c.b16 %v729, %v728
      %v756 = vpack.c.b16 %v731, %v730
      %v757 = vpack.c.b16 %v733, %v732
      %782 = vmatprep.subr.bf16.mxu0 0
      %783 = vmatpush1.bf16.msra.mxu0 %v741
      %784 = vmatprep.subr.bf16.mxu0 0
      %785 = vmatpush1.bf16.msra.mxu0 %v740
      %786 = vmatprep.subr.bf16.mxu0 0
      %787 = vmatpush1.bf16.msra.mxu0 %v739
      %788 = vmatprep.subr.bf16.mxu0 0
      %789 = vmatpush1.bf16.msra.mxu0 %v738
      %790 = vmatprep.subr.bf16.mxu0 0
      %791 = vmatpush1.bf16.msra.mxu0 %v737
      %792 = vmatprep.subr.bf16.mxu0 0
      %793 = vmatpush1.bf16.msra.mxu0 %v736
      %794 = vmatprep.subr.bf16.mxu0 0
      %795 = vmatpush1.bf16.msra.mxu0 %v735
      %796 = vmatprep.subr.bf16.mxu0 0
      %797 = vmatpush1.bf16.msra.mxu0 %v734
      %798 = vmatprep.subr.bf16.mxu0 0
      %799 = vmatpush2.bf16.msra.mxu0 %v749
      %800 = vmatprep.subr.bf16.mxu0 0
      %801 = vmatpush2.bf16.msra.mxu0 %v748
      %802 = vmatprep.subr.bf16.mxu0 0
      %803 = vmatpush2.bf16.msra.mxu0 %v747
      %804 = vmatprep.subr.bf16.mxu0 0
      %805 = vmatpush2.bf16.msra.mxu0 %v746
      %806 = vmatprep.subr.bf16.mxu0 0
      %807 = vmatpush2.bf16.msra.mxu0 %v745
      %808 = vmatprep.subr.bf16.mxu0 0
      %809 = vmatpush2.bf16.msra.mxu0 %v744
      %810 = vmatprep.subr.bf16.mxu0 0
      %811 = vmatpush2.bf16.msra.mxu0 %v743
      %812 = vmatprep.subr.bf16.mxu0 0
      %813 = vmatpush2.bf16.msra.mxu0 %v742
      %814 = vmatprep.mubr.bf16.mxu0 %v543
      %815 = vmatmul.mubr.bf16.gmra.mxu0 %v542
      %v816 = vpop.f32.mrf.mxu0
      %v817 = vadd.f32 0.0, %v816
      %v818 = vpop.f32.mrf.mxu0
      %v819 = vpop.f32.mrf.mxu0
      %v820 = vadd.f32 0.0, %v819
      %v821 = vpop.f32.mrf.mxu0
      %822 = vmatprep.mubr.bf16.mxu0 %v546
      %823 = vmatmul.mubr.bf16.gmra.mxu0 %v545
      %v824 = vpop.f32.mrf.mxu0
      %v825 = vadd.f32 0.0, %v824
      %v826 = vpop.f32.mrf.mxu0
      %v827 = vpop.f32.mrf.mxu0
      %v828 = vadd.f32 0.0, %v827
      %v829 = vpop.f32.mrf.mxu0
      %830 = vmatprep.mubr.bf16.mxu0 %v549
      %831 = vmatmul.mubr.bf16.gmra.mxu0 %v548
      %v832 = vpop.f32.mrf.mxu0
      %v833 = vadd.f32 0.0, %v832
      %v834 = vpop.f32.mrf.mxu0
      %v835 = vpop.f32.mrf.mxu0
      %v836 = vadd.f32 0.0, %v835
      %v837 = vpop.f32.mrf.mxu0
      %838 = vmatprep.mubr.bf16.mxu0 %v552
      %839 = vmatmul.mubr.bf16.gmra.mxu0 %v551
      %v840 = vpop.f32.mrf.mxu0
      %v841 = vadd.f32 0.0, %v840
      %v842 = vpop.f32.mrf.mxu0
      %v843 = vpop.f32.mrf.mxu0
      %v844 = vadd.f32 0.0, %v843
      %v845 = vpop.f32.mrf.mxu0
      %846 = vmatprep.mubr.bf16.mxu0 %v555
      %847 = vmatmul.mubr.bf16.gmra.mxu0 %v554
      %v848 = vpop.f32.mrf.mxu0
      %v849 = vadd.f32 0.0, %v848
      %v850 = vpop.f32.mrf.mxu0
      %v851 = vpop.f32.mrf.mxu0
      %v852 = vadd.f32 0.0, %v851
      %v853 = vpop.f32.mrf.mxu0
      %854 = vmatprep.mubr.bf16.mxu0 %v558
      %855 = vmatmul.mubr.bf16.gmra.mxu0 %v557
      %v856 = vpop.f32.mrf.mxu0
      %v857 = vadd.f32 0.0, %v856
      %v858 = vpop.f32.mrf.mxu0
      %v859 = vpop.f32.mrf.mxu0
      %v860 = vadd.f32 0.0, %v859
      %v861 = vpop.f32.mrf.mxu0
      %862 = vmatprep.mubr.bf16.mxu0 %v561
      %863 = vmatmul.mubr.bf16.gmra.mxu0 %v560
      %v864 = vpop.f32.mrf.mxu0
      %v865 = vadd.f32 0.0, %v864
      %v866 = vpop.f32.mrf.mxu0
      %v867 = vpop.f32.mrf.mxu0
      %v868 = vadd.f32 0.0, %v867
      %v869 = vpop.f32.mrf.mxu0
      %870 = vmatprep.mubr.bf16.mxu0 %v564
      %871 = vmatmul.mubr.bf16.gmra.mxu0 %v563
      %v872 = vpop.f32.mrf.mxu0
      %v873 = vadd.f32 0.0, %v872
      %v874 = vpop.f32.mrf.mxu0
      %v875 = vpop.f32.mrf.mxu0
      %v876 = vadd.f32 0.0, %v875
      %v877 = vpop.f32.mrf.mxu0
      %878 = vmatprep.mubr.bf16.mxu0 %v567
      %879 = vmatmul.mubr.bf16.gmra.mxu0 %v566
      %v880 = vpop.f32.mrf.mxu0
      %v881 = vadd.f32 0.0, %v880
      %v882 = vpop.f32.mrf.mxu0
      %v883 = vpop.f32.mrf.mxu0
      %v884 = vadd.f32 0.0, %v883
      %v885 = vpop.f32.mrf.mxu0
      %886 = vmatprep.mubr.bf16.mxu0 %v570
      %887 = vmatmul.mubr.bf16.gmra.mxu0 %v569
      %v888 = vpop.f32.mrf.mxu0
      %v889 = vadd.f32 0.0, %v888
      %v890 = vpop.f32.mrf.mxu0
      %v891 = vpop.f32.mrf.mxu0
      %v892 = vadd.f32 0.0, %v891
      %v893 = vpop.f32.mrf.mxu0
      %894 = vmatprep.mubr.bf16.mxu0 %v573
      %895 = vmatmul.mubr.bf16.gmra.mxu0 %v572
      %v896 = vpop.f32.mrf.mxu0
      %v897 = vadd.f32 0.0, %v896
      %v898 = vpop.f32.mrf.mxu0
      %v899 = vpop.f32.mrf.mxu0
      %v900 = vadd.f32 0.0, %v899
      %v901 = vpop.f32.mrf.mxu0
      %902 = vmatprep.mubr.bf16.mxu0 %v576
      %903 = vmatmul.mubr.bf16.gmra.mxu0 %v575
      %v904 = vpop.f32.mrf.mxu0
      %v905 = vadd.f32 0.0, %v904
      %v906 = vpop.f32.mrf.mxu0
      %v907 = vpop.f32.mrf.mxu0
      %v908 = vadd.f32 0.0, %v907
      %v909 = vpop.f32.mrf.mxu0
      %910 = vmatprep.mubr.bf16.mxu0 %v579
      %911 = vmatmul.mubr.bf16.gmra.mxu0 %v578
      %v912 = vpop.f32.mrf.mxu0
      %v913 = vadd.f32 0.0, %v912
      %v914 = vpop.f32.mrf.mxu0
      %v915 = vpop.f32.mrf.mxu0
      %v916 = vadd.f32 0.0, %v915
      %v917 = vpop.f32.mrf.mxu0
      %918 = vmatprep.mubr.bf16.mxu0 %v582
      %919 = vmatmul.mubr.bf16.gmra.mxu0 %v581
      %v920 = vpop.f32.mrf.mxu0
      %v921 = vadd.f32 0.0, %v920
      %v922 = vpop.f32.mrf.mxu0
      %v923 = vpop.f32.mrf.mxu0
      %v924 = vadd.f32 0.0, %v923
      %v925 = vpop.f32.mrf.mxu0
      %926 = vmatprep.mubr.bf16.mxu0 %v585
      %927 = vmatmul.mubr.bf16.gmra.mxu0 %v584
      %v928 = vpop.f32.mrf.mxu0
      %v929 = vadd.f32 0.0, %v928
      %v930 = vpop.f32.mrf.mxu0
      %v931 = vpop.f32.mrf.mxu0
      %v932 = vadd.f32 0.0, %v931
      %v933 = vpop.f32.mrf.mxu0
      %934 = vmatprep.mubr.bf16.mxu0 %v588
      %935 = vmatmul.mubr.bf16.gmra.mxu0 %v587
      %v936 = vpop.f32.mrf.mxu0
      %v937 = vadd.f32 0.0, %v936
      %v938 = vpop.f32.mrf.mxu0
      %v939 = vpop.f32.mrf.mxu0
      %v940 = vadd.f32 0.0, %v939
      %v941 = vpop.f32.mrf.mxu0
      %942 = vdwg.mxu0
      %943 = vmatprep.subr.bf16.mxu0 0
      %944 = vmatpush1.bf16.msra.mxu0 %v757
      %945 = vmatprep.subr.bf16.mxu0 0
      %946 = vmatpush1.bf16.msra.mxu0 %v756
      %947 = vmatprep.subr.bf16.mxu0 0
      %948 = vmatpush1.bf16.msra.mxu0 %v755
      %949 = vmatprep.subr.bf16.mxu0 0
      %950 = vmatpush1.bf16.msra.mxu0 %v754
      %951 = vmatprep.subr.bf16.mxu0 0
      %952 = vmatpush1.bf16.msra.mxu0 %v753
      %953 = vmatprep.subr.bf16.mxu0 0
      %954 = vmatpush1.bf16.msra.mxu0 %v752
      %955 = vmatprep.subr.bf16.mxu0 0
      %956 = vmatpush1.bf16.msra.mxu0 %v751
      %957 = vmatprep.subr.bf16.mxu0 0
      %958 = vmatpush1.bf16.msra.mxu0 %v750
      %959 = vmatprep.subr.bf16.mxu0 0
      %960 = vmatpush2.bf16.msra.mxu0 0
      %961 = vmatprep.subr.bf16.mxu0 0
      %962 = vmatpush2.bf16.msra.mxu0 0
      %963 = vmatprep.subr.bf16.mxu0 0
      %964 = vmatpush2.bf16.msra.mxu0 0
      %965 = vmatprep.subr.bf16.mxu0 0
      %966 = vmatpush2.bf16.msra.mxu0 0
      %967 = vmatprep.subr.bf16.mxu0 0
      %968 = vmatpush2.bf16.msra.mxu0 0
      %969 = vmatprep.subr.bf16.mxu0 0
      %970 = vmatpush2.bf16.msra.mxu0 0
      %971 = vmatprep.subr.bf16.mxu0 0
      %972 = vmatpush2.bf16.msra.mxu0 0
      %973 = vmatprep.subr.bf16.mxu0 0
      %974 = vmatpush2.bf16.msra.mxu0 0
      %975 = vmatprep.mubr.bf16.mxu0 0
      %976 = vmatmul.mubr.bf16.gmra.mxu0 %v544
      %v977 = vpop.f32.mrf.mxu0
      %v978 = vadd.f32 %v817, %v977
      %v979 = vpop.f32.mrf.mxu0
      %v980 = vpop.f32.mrf.mxu0
      %v981 = vadd.f32 %v820, %v980
      %v982 = vpop.f32.mrf.mxu0
      %983 = vmatprep.mubr.bf16.mxu0 0
      %984 = vmatmul.mubr.bf16.gmra.mxu0 %v547
      %v985 = vpop.f32.mrf.mxu0
      %v986 = vadd.f32 %v825, %v985
      %v987 = vpop.f32.mrf.mxu0
      %v988 = vpop.f32.mrf.mxu0
      %v989 = vadd.f32 %v828, %v988
      %v990 = vpop.f32.mrf.mxu0
      %991 = vmatprep.mubr.bf16.mxu0 0
      %992 = vmatmul.mubr.bf16.gmra.mxu0 %v550
      %v993 = vpop.f32.mrf.mxu0
      %v994 = vadd.f32 %v833, %v993
      %v995 = vpop.f32.mrf.mxu0
      %v996 = vpop.f32.mrf.mxu0
      %v997 = vadd.f32 %v836, %v996
      %v998 = vpop.f32.mrf.mxu0
      %999 = vmatprep.mubr.bf16.mxu0 0
      %1000 = vmatmul.mubr.bf16.gmra.mxu0 %v553
      %v1001 = vpop.f32.mrf.mxu0
      %v1002 = vadd.f32 %v841, %v1001
      %v1003 = vpop.f32.mrf.mxu0
      %v1004 = vpop.f32.mrf.mxu0
      %v1005 = vadd.f32 %v844, %v1004
      %v1006 = vpop.f32.mrf.mxu0
      %1007 = vmatprep.mubr.bf16.mxu0 0
      %1008 = vmatmul.mubr.bf16.gmra.mxu0 %v556
      %v1009 = vpop.f32.mrf.mxu0
      %v1010 = vadd.f32 %v849, %v1009
      %v1011 = vpop.f32.mrf.mxu0
      %v1012 = vpop.f32.mrf.mxu0
      %v1013 = vadd.f32 %v852, %v1012
      %v1014 = vpop.f32.mrf.mxu0
      %1015 = vmatprep.mubr.bf16.mxu0 0
      %1016 = vmatmul.mubr.bf16.gmra.mxu0 %v559
      %v1017 = vpop.f32.mrf.mxu0
      %v1018 = vadd.f32 %v857, %v1017
      %v1019 = vpop.f32.mrf.mxu0
      %v1020 = vpop.f32.mrf.mxu0
      %v1021 = vadd.f32 %v860, %v1020
      %v1022 = vpop.f32.mrf.mxu0
      %1023 = vmatprep.mubr.bf16.mxu0 0
      %1024 = vmatmul.mubr.bf16.gmra.mxu0 %v562
      %v1025 = vpop.f32.mrf.mxu0
      %v1026 = vadd.f32 %v865, %v1025
      %v1027 = vpop.f32.mrf.mxu0
      %v1028 = vpop.f32.mrf.mxu0
      %v1029 = vadd.f32 %v868, %v1028
      %v1030 = vpop.f32.mrf.mxu0
      %1031 = vmatprep.mubr.bf16.mxu0 0
      %1032 = vmatmul.mubr.bf16.gmra.mxu0 %v565
      %v1033 = vpop.f32.mrf.mxu0
      %v1034 = vadd.f32 %v873, %v1033
      %v1035 = vpop.f32.mrf.mxu0
      %v1036 = vpop.f32.mrf.mxu0
      %v1037 = vadd.f32 %v876, %v1036
      %v1038 = vpop.f32.mrf.mxu0
      %1039 = vmatprep.mubr.bf16.mxu0 0
      %1040 = vmatmul.mubr.bf16.gmra.mxu0 %v568
      %v1041 = vpop.f32.mrf.mxu0
      %v1042 = vadd.f32 %v881, %v1041
      %v1043 = vpop.f32.mrf.mxu0
      %v1044 = vpop.f32.mrf.mxu0
      %v1045 = vadd.f32 %v884, %v1044
      %v1046 = vpop.f32.mrf.mxu0
      %1047 = vmatprep.mubr.bf16.mxu0 0
      %1048 = vmatmul.mubr.bf16.gmra.mxu0 %v571
      %v1049 = vpop.f32.mrf.mxu0
      %v1050 = vadd.f32 %v889, %v1049
      %v1051 = vpop.f32.mrf.mxu0
      %v1052 = vpop.f32.mrf.mxu0
      %v1053 = vadd.f32 %v892, %v1052
      %v1054 = vpop.f32.mrf.mxu0
      %1055 = vmatprep.mubr.bf16.mxu0 0
      %1056 = vmatmul.mubr.bf16.gmra.mxu0 %v574
      %v1057 = vpop.f32.mrf.mxu0
      %v1058 = vadd.f32 %v897, %v1057
      %v1059 = vpop.f32.mrf.mxu0
      %v1060 = vpop.f32.mrf.mxu0
      %v1061 = vadd.f32 %v900, %v1060
      %v1062 = vpop.f32.mrf.mxu0
      %1063 = vmatprep.mubr.bf16.mxu0 0
      %1064 = vmatmul.mubr.bf16.gmra.mxu0 %v577
      %v1065 = vpop.f32.mrf.mxu0
      %v1066 = vadd.f32 %v905, %v1065
      %v1067 = vpop.f32.mrf.mxu0
      %v1068 = vpop.f32.mrf.mxu0
      %v1069 = vadd.f32 %v908, %v1068
      %v1070 = vpop.f32.mrf.mxu0
      %1071 = vmatprep.mubr.bf16.mxu0 0
      %1072 = vmatmul.mubr.bf16.gmra.mxu0 %v580
      %v1073 = vpop.f32.mrf.mxu0
      %v1074 = vadd.f32 %v913, %v1073
      %v1075 = vpop.f32.mrf.mxu0
      %v1076 = vpop.f32.mrf.mxu0
      %v1077 = vadd.f32 %v916, %v1076
      %v1078 = vpop.f32.mrf.mxu0
      %1079 = vmatprep.mubr.bf16.mxu0 0
      %1080 = vmatmul.mubr.bf16.gmra.mxu0 %v583
      %v1081 = vpop.f32.mrf.mxu0
      %v1082 = vadd.f32 %v921, %v1081
      %v1083 = vpop.f32.mrf.mxu0
      %v1084 = vpop.f32.mrf.mxu0
      %v1085 = vadd.f32 %v924, %v1084
      %v1086 = vpop.f32.mrf.mxu0
      %1087 = vmatprep.mubr.bf16.mxu0 0
      %1088 = vmatmul.mubr.bf16.gmra.mxu0 %v586
      %v1089 = vpop.f32.mrf.mxu0
      %v1090 = vadd.f32 %v929, %v1089
      %v1091 = vpop.f32.mrf.mxu0
      %v1092 = vpop.f32.mrf.mxu0
      %v1093 = vadd.f32 %v932, %v1092
      %v1094 = vpop.f32.mrf.mxu0
      %1095 = vmatprep.mubr.bf16.mxu0 0
      %1096 = vmatmul.mubr.bf16.gmra.mxu0 %v589
      %v1097 = vpop.f32.mrf.mxu0
      %v1098 = vadd.f32 %v937, %v1097
      %v1099 = vpop.f32.mrf.mxu0
      %v1100 = vpop.f32.mrf.mxu0
      %v1101 = vadd.f32 %v940, %v1100
      %v1102 = vpop.f32.mrf.mxu0
      %1103 = vdwg.mxu0
      %v1104 = vld [vmem:[%s256] sm:$0x1]
      %v1106 = vlaneseq
      %v1107 = vshrl.u32 %v1106, 7
      %v1108 = vsub.s32 0, %v1107
      %v1109 = vrot.slane %v1104, %v1108
      %v1111 = vmul.f32 %v978, %v1109
      %v1112 = vmul.f32 %v981, %v1109
      %v1113 = vmul.f32 %v986, %v1109
      %v1114 = vmul.f32 %v989, %v1109
      %v1115 = vmul.f32 %v994, %v1109
      %v1116 = vmul.f32 %v997, %v1109
      %v1117 = vmul.f32 %v1002, %v1109
      %v1118 = vmul.f32 %v1005, %v1109
      %v1119 = vmul.f32 %v1010, %v1109
      %v1120 = vmul.f32 %v1013, %v1109
      %v1121 = vmul.f32 %v1018, %v1109
      %v1122 = vmul.f32 %v1021, %v1109
      %v1123 = vmul.f32 %v1026, %v1109
      %v1124 = vmul.f32 %v1029, %v1109
      %v1125 = vmul.f32 %v1034, %v1109
      %v1126 = vmul.f32 %v1037, %v1109
      %v1127 = vmul.f32 %v1042, %v1109
      %v1128 = vmul.f32 %v1045, %v1109
      %v1129 = vmul.f32 %v1050, %v1109
      %v1130 = vmul.f32 %v1053, %v1109
      %v1131 = vmul.f32 %v1058, %v1109
      %v1132 = vmul.f32 %v1061, %v1109
      %v1133 = vmul.f32 %v1066, %v1109
      %v1134 = vmul.f32 %v1069, %v1109
      %v1135 = vmul.f32 %v1074, %v1109
      %v1136 = vmul.f32 %v1077, %v1109
      %v1137 = vmul.f32 %v1082, %v1109
      %v1138 = vmul.f32 %v1085, %v1109
      %v1139 = vmul.f32 %v1090, %v1109
      %v1140 = vmul.f32 %v1093, %v1109
      %v1141 = vmul.f32 %v1098, %v1109
      %v1142 = vmul.f32 %v1101, %v1109
      %v1143 = vld [vmem:[%s259] sm:$0x1]
      %v1145 = vlaneseq
      %v1146 = vshrl.u32 %v1145, 7
      %v1147 = vsub.s32 0, %v1146
      %v1148 = vrot.slane %v1143, %v1147
      %v1150 = vadd.f32 %v1111, %v1148
      %v1151 = vadd.f32 %v1112, %v1148
      %v1152 = vadd.f32 %v1113, %v1148
      %v1153 = vadd.f32 %v1114, %v1148
      %v1154 = vadd.f32 %v1115, %v1148
      %v1155 = vadd.f32 %v1116, %v1148
      %v1156 = vadd.f32 %v1117, %v1148
      %v1157 = vadd.f32 %v1118, %v1148
      %v1158 = vadd.f32 %v1119, %v1148
      %v1159 = vadd.f32 %v1120, %v1148
      %v1160 = vadd.f32 %v1121, %v1148
      %v1161 = vadd.f32 %v1122, %v1148
      %v1162 = vadd.f32 %v1123, %v1148
      %v1163 = vadd.f32 %v1124, %v1148
      %v1164 = vadd.f32 %v1125, %v1148
      %v1165 = vadd.f32 %v1126, %v1148
      %v1166 = vadd.f32 %v1127, %v1148
      %v1167 = vadd.f32 %v1128, %v1148
      %v1168 = vadd.f32 %v1129, %v1148
      %v1169 = vadd.f32 %v1130, %v1148
      %v1170 = vadd.f32 %v1131, %v1148
      %v1171 = vadd.f32 %v1132, %v1148
      %v1172 = vadd.f32 %v1133, %v1148
      %v1173 = vadd.f32 %v1134, %v1148
      %v1174 = vadd.f32 %v1135, %v1148
      %v1175 = vadd.f32 %v1136, %v1148
      %v1176 = vadd.f32 %v1137, %v1148
      %v1177 = vadd.f32 %v1138, %v1148
      %v1178 = vadd.f32 %v1139, %v1148
      %v1179 = vadd.f32 %v1140, %v1148
      %v1180 = vadd.f32 %v1141, %v1148
      %v1181 = vadd.f32 %v1142, %v1148
      %v1182 = vmax.f32 %v1150, 0.0
      %v1183 = vmax.f32 %v1151, 0.0
      %v1184 = vmax.f32 %v1152, 0.0
      %v1185 = vmax.f32 %v1153, 0.0
      %v1186 = vmax.f32 %v1154, 0.0
      %v1187 = vmax.f32 %v1155, 0.0
      %v1188 = vmax.f32 %v1156, 0.0
      %v1189 = vmax.f32 %v1157, 0.0
      %v1190 = vmax.f32 %v1158, 0.0
      %v1191 = vmax.f32 %v1159, 0.0
      %v1192 = vmax.f32 %v1160, 0.0
      %v1193 = vmax.f32 %v1161, 0.0
      %v1194 = vmax.f32 %v1162, 0.0
      %v1195 = vmax.f32 %v1163, 0.0
      %v1196 = vmax.f32 %v1164, 0.0
      %v1197 = vmax.f32 %v1165, 0.0
      %v1198 = vmax.f32 %v1166, 0.0
      %v1199 = vmax.f32 %v1167, 0.0
      %v1200 = vmax.f32 %v1168, 0.0
      %v1201 = vmax.f32 %v1169, 0.0
      %v1202 = vmax.f32 %v1170, 0.0
      %v1203 = vmax.f32 %v1171, 0.0
      %v1204 = vmax.f32 %v1172, 0.0
      %v1205 = vmax.f32 %v1173, 0.0
      %v1206 = vmax.f32 %v1174, 0.0
      %v1207 = vmax.f32 %v1175, 0.0
      %v1208 = vmax.f32 %v1176, 0.0
      %v1209 = vmax.f32 %v1177, 0.0
      %v1210 = vmax.f32 %v1178, 0.0
      %v1211 = vmax.f32 %v1179, 0.0
      %v1212 = vmax.f32 %v1180, 0.0
      %v1213 = vmax.f32 %v1181, 0.0
      %v1214 = vpack.c.bf16 %v1183, %v1182
      %v1215 = vpack.c.bf16 %v1185, %v1184
      %v1216 = vpack.c.bf16 %v1187, %v1186
      %v1217 = vpack.c.bf16 %v1189, %v1188
      %v1218 = vpack.c.bf16 %v1191, %v1190
      %v1219 = vpack.c.bf16 %v1193, %v1192
      %v1220 = vpack.c.bf16 %v1195, %v1194
      %v1221 = vpack.c.bf16 %v1197, %v1196
      %v1222 = vpack.c.bf16 %v1199, %v1198
      %v1223 = vpack.c.bf16 %v1201, %v1200
      %v1224 = vpack.c.bf16 %v1203, %v1202
      %v1225 = vpack.c.bf16 %v1205, %v1204
      %v1226 = vpack.c.bf16 %v1207, %v1206
      %v1227 = vpack.c.bf16 %v1209, %v1208
      %v1228 = vpack.c.bf16 %v1211, %v1210
      %v1229 = vpack.c.bf16 %v1213, %v1212
      %v1246 = vunpack.c.l.b16 %v1214
      %v1247 = vunpack.c.h.b16 %v1214
      %v1248 = vunpack.c.l.b16 %v1215
      %v1249 = vunpack.c.h.b16 %v1215
      %v1250 = vunpack.c.l.b16 %v1216
      %v1251 = vunpack.c.h.b16 %v1216
      %v1252 = vunpack.c.l.b16 %v1217
      %v1253 = vunpack.c.h.b16 %v1217
      %v1254 = vunpack.c.l.b16 %v1218
      %v1255 = vunpack.c.h.b16 %v1218
      %v1256 = vunpack.c.l.b16 %v1219
      %v1257 = vunpack.c.h.b16 %v1219
      %v1258 = vunpack.c.l.b16 %v1220
      %v1259 = vunpack.c.h.b16 %v1220
      %v1260 = vunpack.c.l.b16 %v1221
      %v1261 = vunpack.c.h.b16 %v1221
      %v1262 = vunpack.c.l.b16 %v1222
      %v1263 = vunpack.c.h.b16 %v1222
      %v1264 = vunpack.c.l.b16 %v1223
      %v1265 = vunpack.c.h.b16 %v1223
      %v1266 = vunpack.c.l.b16 %v1224
      %v1267 = vunpack.c.h.b16 %v1224
      %v1268 = vunpack.c.l.b16 %v1225
      %v1269 = vunpack.c.h.b16 %v1225
      %v1270 = vunpack.c.l.b16 %v1226
      %v1271 = vunpack.c.h.b16 %v1226
      %v1272 = vunpack.c.l.b16 %v1227
      %v1273 = vunpack.c.h.b16 %v1227
      %v1274 = vunpack.c.l.b16 %v1228
      %v1275 = vunpack.c.h.b16 %v1228
      %v1276 = vunpack.c.l.b16 %v1229
      %v1277 = vunpack.c.h.b16 %v1229
      %v1278 = vpack.c.b16 %v1246, %v1246
      %v1279 = vpack.c.b16 %v1247, %v1247
      %v1280 = vpack.c.b16 %v1248, %v1248
      %v1281 = vpack.c.b16 %v1249, %v1249
      %v1282 = vpack.c.b16 %v1250, %v1250
      %v1283 = vpack.c.b16 %v1251, %v1251
      %v1284 = vpack.c.b16 %v1252, %v1252
      %v1285 = vpack.c.b16 %v1253, %v1253
      %v1286 = vpack.c.b16 %v1254, %v1254
      %v1287 = vpack.c.b16 %v1255, %v1255
      %v1288 = vpack.c.b16 %v1256, %v1256
      %v1289 = vpack.c.b16 %v1257, %v1257
      %v1290 = vpack.c.b16 %v1258, %v1258
      %v1291 = vpack.c.b16 %v1259, %v1259
      %v1292 = vpack.c.b16 %v1260, %v1260
      %v1293 = vpack.c.b16 %v1261, %v1261
      %v1294 = vpack.c.b16 %v1262, %v1262
      %v1295 = vpack.c.b16 %v1263, %v1263
      %v1296 = vpack.c.b16 %v1264, %v1264
      %v1297 = vpack.c.b16 %v1265, %v1265
      %v1298 = vpack.c.b16 %v1266, %v1266
      %v1299 = vpack.c.b16 %v1267, %v1267
      %v1300 = vpack.c.b16 %v1268, %v1268
      %v1301 = vpack.c.b16 %v1269, %v1269
      %v1302 = vpack.c.b16 %v1270, %v1270
      %v1303 = vpack.c.b16 %v1271, %v1271
      %v1304 = vpack.c.b16 %v1272, %v1272
      %v1305 = vpack.c.b16 %v1273, %v1273
      %v1306 = vpack.c.b16 %v1274, %v1274
      %v1307 = vpack.c.b16 %v1275, %v1275
      %v1308 = vpack.c.b16 %v1276, %v1276
      %v1309 = vpack.c.b16 %v1277, %v1277
      %1342 = vst [vmem:[%s267] sm:$0xf] %v1278
      %1343 = vst [vmem:[%s267 + $0x4] sm:$0xf] %v1279
      %1344 = vst [vmem:[%s267 + $0x8] sm:$0xf] %v1280
      %1345 = vst [vmem:[%s267 + $0xc] sm:$0xf] %v1281
      %1346 = vst [vmem:[%s267 + $0x10] sm:$0xf] %v1282
      %1347 = vst [vmem:[%s267 + $0x14] sm:$0xf] %v1283
      %1348 = vst [vmem:[%s267 + $0x18] sm:$0xf] %v1284
      %1349 = vst [vmem:[%s267 + $0x1c] sm:$0xf] %v1285
      %1350 = vst [vmem:[%s267 + $0x20] sm:$0xf] %v1286
      %1351 = vst [vmem:[%s267 + $0x24] sm:$0xf] %v1287
      %1352 = vst [vmem:[%s267 + $0x28] sm:$0xf] %v1288
      %1353 = vst [vmem:[%s267 + $0x2c] sm:$0xf] %v1289
      %1354 = vst [vmem:[%s267 + $0x30] sm:$0xf] %v1290
      %1355 = vst [vmem:[%s267 + $0x34] sm:$0xf] %v1291
      %1356 = vst [vmem:[%s267 + $0x38] sm:$0xf] %v1292
      %1357 = vst [vmem:[%s267 + $0x3c] sm:$0xf] %v1293
      %1358 = vst [vmem:[%s267 + $0x40] sm:$0xf] %v1294
      %1359 = vst [vmem:[%s267 + $0x44] sm:$0xf] %v1295
      %1360 = vst [vmem:[%s267 + $0x48] sm:$0xf] %v1296
      %1361 = vst [vmem:[%s267 + $0x4c] sm:$0xf] %v1297
      %1362 = vst [vmem:[%s267 + $0x50] sm:$0xf] %v1298
      %1363 = vst [vmem:[%s267 + $0x54] sm:$0xf] %v1299
      %1364 = vst [vmem:[%s267 + $0x58] sm:$0xf] %v1300
      %1365 = vst [vmem:[%s267 + $0x5c] sm:$0xf] %v1301
      %1366 = vst [vmem:[%s267 + $0x60] sm:$0xf] %v1302
      %1367 = vst [vmem:[%s267 + $0x64] sm:$0xf] %v1303
      %1368 = vst [vmem:[%s267 + $0x68] sm:$0xf] %v1304
      %1369 = vst [vmem:[%s267 + $0x6c] sm:$0xf] %v1305
      %1370 = vst [vmem:[%s267 + $0x70] sm:$0xf] %v1306
      %1371 = vst [vmem:[%s267 + $0x74] sm:$0xf] %v1307
      %1372 = vst [vmem:[%s267 + $0x78] sm:$0xf] %v1308
      %1373 = vst [vmem:[%s267 + $0x7c] sm:$0xf] %v1309
      %s1374 = smul.u32 32, %s19
      %p1375 = scmp.lt.s32.totalorder %s1374, 63
      %s1376 = scalar_select %p1375, %s1374, 63
      %p1377 = scmp.lt.s32.totalorder %s20, 0
      %s1378 = scalar_select %p1377, %s20, 0
      %s1379 = sadd.s32 %s1378, %s1376
      %s1380 = smul.addr %s1379, 4
      %s1381 = scalar_lea.vmem %s4, %s1380
      // Predicated region
      $region37: #{deeplab_forward.28} parent=35 // pred_check
        %p1382 = pneg %p151
      $region38: #{deeplab_forward.28} parent=35 // pred_check_branch
        %1384 = sbr.rel (%p1382) target = $region40
      $region39: #{deeplab_forward.28} parent=35 // pred_region
        %s1385 = smul.u32 32, %s19
      $region40: #{deeplab_forward.28} parent=35 // pred_fallthru
        _
    $region36: #{deeplab_forward.28} parent=5 // pred_fallthru
      _
    %p1386 = scmp.le.s32.totalorder 2, %s10
    // Predicated region
    $region41: #{deeplab_forward.28} parent=5 // pred_check
      %p1387 = pneg %p1386
    $region42: #{deeplab_forward.28} parent=5 // pred_check_branch
      %1389 = sbr.rel (%p1387) target = $region44
    $region43: #{deeplab_forward.28} parent=5 // pred_region
      %s1390 = ssub.s32 %s10, 2
      // Predicated region
      $region45: #{deeplab_forward.28} parent=43 // pred_check
        %p1391 = pneg %p157
      $region46: #{deeplab_forward.28} parent=43 // pred_check_branch
        %1393 = sbr.rel (%p1391) target = $region48
      $region47: #{deeplab_forward.28} parent=43 // pred_region
        %s1394 = smul.u32 32, %s21
        %p1395 = scmp.lt.s32.totalorder %s1394, 63
        %s1396 = scalar_select %p1395, %s1394, 63
        %p1397 = scmp.lt.s32.totalorder %s22, 0
        %s1398 = scalar_select %p1397, %s22, 0
        %s1399 = sadd.s32 %s1398, %s1396
        %s1400 = smul.addr %s1399, 4
        %s1401 = scalar_lea.vmem %s4, %s1400
      $region48: #{deeplab_forward.28} parent=43 // pred_fallthru
        _
    $region44: #{deeplab_forward.28} parent=5 // pred_fallthru
      _
  $region6: #{deeplab_forward.28} parent=0 // loop_footer
    %s14 = sadd.s32 1, %s10
  $region7: #{deeplab_forward.28} parent=0 // loop_footer_branch
    %9 = sbr.rel target = $region3
  $region8: #{deeplab_forward.28} parent=0 // loop_exit
    _

// kernel: deeplab_forward.30
$region0: #{deeplab_forward.30}
  #allocation0 [shape = 'u32[]', space=smem, size = 0x4, offset = 0x4, fixed_abs, tag = 'smem constant byte address 0x4 - core index']
  #allocation1 [shape = 'u32[144,128]{1,0:T(1,128)}', space=vmem, size = 0x12000, scoped, tag = 'internal scratch']
  %s0 = inlined_call_operand.vmem [shape: bf16[512,128], index: 0, kind: input, shape index: {}]
  %s1 = inlined_call_operand.vmem [shape: bf16[128,128], index: 1, kind: input, shape index: {}]
  %s2 = inlined_call_operand.vmem [shape: f32[1,128], index: 2, kind: input, shape index: {}]
  %s3 = inlined_call_operand.vmem [shape: f32[1,128], index: 3, kind: input, shape index: {}]
  %s4 = inlined_call_operand.vmem [shape: bf16[512,128], index: 4, kind: output, shape index: {}]
  %s5 = sld [smem:[#allocation0]]
  $region49: #{deeplab_forward.30} parent=0
    _
  %s7 = ssub.s32 1, %s5
  %s8 = scalar_select 0, %s7, %s5
  loop: start=0, step=1, limit=4
  $region2: #{deeplab_forward.30} parent=0 // loop_pre_header
    _
  $region3: #{deeplab_forward.30} parent=0 // loop_header
    %s10 = sphi 0, %s14
    %p11 = scmp.ge.s32.totalorder %s10, 4
    %s17 = sphi 0, %s29
    %s18 = sphi 0, %s25
    %s19 = sphi 0, %s17
    %s20 = sphi 0, %s18
    %s21 = sphi 0, %s19
    %s22 = sphi 0, %s20
    %s32 = sphi 0, %s34
    %s35 = sphi 0, %s32
    %s36 = sphi 0, %s35
    %s52 = sphi 0, %s36
    %s58 = sphi 0, %s60
    %s61 = sphi 0, %s58
    %s62 = sphi 0, %s61
    %s78 = sphi 0, %s62
    %s84 = sphi 0, %s86
    %s87 = sphi 0, %s84
    %s88 = sphi 0, %s87
    %s104 = sphi 0, %s88
    %s110 = sphi 0, %s112
    %s113 = sphi 0, %s110
    %s114 = sphi 0, %s113
    %s130 = sphi 0, %s114
    %s138 = sphi 0, %s140
    %s141 = sphi 0, %s138
    %s142 = sphi 0, %s141
    %s158 = sphi 0, %s142
  $region4: #{deeplab_forward.30} parent=0 // loop_header_branch
    %13 = sbr.rel (%p11) target = $region8
  $region5: #{deeplab_forward.30} parent=0 // loop_body
    %s15 = ssub.s32 %s10, 1
    %s16 = ssub.s32 %s10, 2
    %s23 = sadd.s32 1, %s18
    %p24 = scmp.ge.s32.totalorder %s23, 1
    %s25 = scalar_select %p24, 0, %s23
    %s26 = sadd.s32 1, %s17
    %s27 = scalar_select %p24, %s26, %s17
    %p28 = scmp.ge.s32.totalorder %s27, 2
    %s29 = scalar_select %p28, 0, %s27
    %s30 = ssub.s32 %s17, %s29
    %p31 = scmp.eq.s32.totalorder %s30, 0
    %s33 = sadd.s32 %s32, 1
    %s34 = scalar_select %p31, %s32, %s33
    %p37 = pneg %p31
    %p38 = scmp.eq.s32.totalorder %s10, 1
    %p39 = por %p37, %p38
    %p40 = scmp.ne.s32.totalorder %s32, %s35
    %p41 = scmp.eq.s32.totalorder %s10, 0
    %p42 = por %p40, %p41
    %p43 = scmp.ne.s32.totalorder %s32, %s35
    %p44 = scmp.eq.s32.totalorder %s15, 1
    %p45 = por %p43, %p44
    %p46 = scmp.ne.s32.totalorder %s35, %s36
    %p47 = scmp.eq.s32.totalorder %s15, 0
    %p48 = por %p46, %p47
    %p49 = scmp.ne.s32.totalorder %s35, %s36
    %p50 = scmp.eq.s32.totalorder %s16, 1
    %p51 = por %p49, %p50
    %p53 = scmp.ne.s32.totalorder %s36, %s52
    %p54 = scmp.eq.s32.totalorder %s16, 0
    %p55 = por %p53, %p54
    %s56 = ssub.s32 %s18, %s25
    %p57 = scmp.eq.s32.totalorder %s56, 0
    %s59 = sadd.s32 %s58, 1
    %s60 = scalar_select %p57, %s58, %s59
    %p63 = pneg %p57
    %p64 = scmp.eq.s32.totalorder %s10, 1
    %p65 = por %p63, %p64
    %p66 = scmp.ne.s32.totalorder %s58, %s61
    %p67 = scmp.eq.s32.totalorder %s10, 0
    %p68 = por %p66, %p67
    %p69 = scmp.ne.s32.totalorder %s58, %s61
    %p70 = scmp.eq.s32.totalorder %s15, 1
    %p71 = por %p69, %p70
    %p72 = scmp.ne.s32.totalorder %s61, %s62
    %p73 = scmp.eq.s32.totalorder %s15, 0
    %p74 = por %p72, %p73
    %p75 = scmp.ne.s32.totalorder %s61, %s62
    %p76 = scmp.eq.s32.totalorder %s16, 1
    %p77 = por %p75, %p76
    %p79 = scmp.ne.s32.totalorder %s62, %s78
    %p80 = scmp.eq.s32.totalorder %s16, 0
    %p81 = por %p79, %p80
    %s82 = ssub.s32 %s18, %s25
    %p83 = scmp.eq.s32.totalorder %s82, 0
    %s85 = sadd.s32 %s84, 1
    %s86 = scalar_select %p83, %s84, %s85
    %p89 = pneg %p83
    %p90 = scmp.eq.s32.totalorder %s10, 1
    %p91 = por %p89, %p90
    %p92 = scmp.ne.s32.totalorder %s84, %s87
    %p93 = scmp.eq.s32.totalorder %s10, 0
    %p94 = por %p92, %p93
    %p95 = scmp.ne.s32.totalorder %s84, %s87
    %p96 = scmp.eq.s32.totalorder %s15, 1
    %p97 = por %p95, %p96
    %p98 = scmp.ne.s32.totalorder %s87, %s88
    %p99 = scmp.eq.s32.totalorder %s15, 0
    %p100 = por %p98, %p99
    %p101 = scmp.ne.s32.totalorder %s87, %s88
    %p102 = scmp.eq.s32.totalorder %s16, 1
    %p103 = por %p101, %p102
    %p105 = scmp.ne.s32.totalorder %s88, %s104
    %p106 = scmp.eq.s32.totalorder %s16, 0
    %p107 = por %p105, %p106
    %s108 = ssub.s32 %s18, %s25
    %p109 = scmp.eq.s32.totalorder %s108, 0
    %s111 = sadd.s32 %s110, 1
    %s112 = scalar_select %p109, %s110, %s111
    %p115 = pneg %p109
    %p116 = scmp.eq.s32.totalorder %s10, 1
    %p117 = por %p115, %p116
    %p118 = scmp.ne.s32.totalorder %s110, %s113
    %p119 = scmp.eq.s32.totalorder %s10, 0
    %p120 = por %p118, %p119
    %p121 = scmp.ne.s32.totalorder %s110, %s113
    %p122 = scmp.eq.s32.totalorder %s15, 1
    %p123 = por %p121, %p122
    %p124 = scmp.ne.s32.totalorder %s113, %s114
    %p125 = scmp.eq.s32.totalorder %s15, 0
    %p126 = por %p124, %p125
    %p127 = scmp.ne.s32.totalorder %s113, %s114
    %p128 = scmp.eq.s32.totalorder %s16, 1
    %p129 = por %p127, %p128
    %p131 = scmp.ne.s32.totalorder %s114, %s130
    %p132 = scmp.eq.s32.totalorder %s16, 0
    %p133 = por %p131, %p132
    %s134 = ssub.s32 %s17, %s29
    %s135 = ssub.s32 %s18, %s25
    %s136 = sor.u32 %s134, %s135
    %p137 = scmp.eq.s32.totalorder %s136, 0
    %s139 = sadd.s32 %s138, 1
    %s140 = scalar_select %p137, %s138, %s139
    %p143 = pneg %p137
    %p144 = scmp.eq.s32.totalorder %s10, 1
    %p145 = por %p143, %p144
    %p146 = scmp.ne.s32.totalorder %s138, %s141
    %p147 = scmp.eq.s32.totalorder %s10, 0
    %p148 = por %p146, %p147
    %p149 = scmp.ne.s32.totalorder %s138, %s141
    %p150 = scmp.eq.s32.totalorder %s15, 1
    %p151 = por %p149, %p150
    %p152 = scmp.ne.s32.totalorder %s141, %s142
    %p153 = scmp.eq.s32.totalorder %s15, 0
    %p154 = por %p152, %p153
    %p155 = scmp.ne.s32.totalorder %s141, %s142
    %p156 = scmp.eq.s32.totalorder %s16, 1
    %p157 = por %p155, %p156
    %p159 = scmp.ne.s32.totalorder %s142, %s158
    %p160 = scmp.eq.s32.totalorder %s16, 0
    %p161 = por %p159, %p160
    %p162 = scmp.le.s32.totalorder 1, %s10
    %p163 = scmp.lt.s32.totalorder %s10, 3
    %p164 = pnand %p162, %p163
    %p165 = pneg %p164
    // Predicated region
    $region9: #{deeplab_forward.30} parent=5 // pred_check
      _
    $region10: #{deeplab_forward.30} parent=5 // pred_check_branch
      %167 = sbr.rel (%p164) target = $region12
    $region11: #{deeplab_forward.30} parent=5 // pred_region
      %s168 = ssub.s32 %s10, 1
      // Predicated region
      $region13: #{deeplab_forward.30} parent=11 // pred_check
        %p169 = pneg %p74
      $region14: #{deeplab_forward.30} parent=11 // pred_check_branch
        %171 = sbr.rel (%p169) target = $region16
      $region15: #{deeplab_forward.30} parent=11 // pred_region
        %p172 = scmp.lt.s32.totalorder %s20, 0
        %s173 = scalar_select %p172, %s20, 0
        %s174 = smul.addr %s173, 4
        %s175 = scalar_lea.vmem %s1, %s174
      $region16: #{deeplab_forward.30} parent=11 // pred_fallthru
        _
      // Predicated region
      $region17: #{deeplab_forward.30} parent=11 // pred_check
        %p176 = pneg %p100
      $region18: #{deeplab_forward.30} parent=11 // pred_check_branch
        %178 = sbr.rel (%p176) target = $region20
      $region19: #{deeplab_forward.30} parent=11 // pred_region
        %p179 = scmp.lt.s32.totalorder %s20, 0
        %s180 = scalar_select %p179, %s20, 0
        %s181 = scalar_lea.vmem %s2, %s180
      $region20: #{deeplab_forward.30} parent=11 // pred_fallthru
        _
      // Predicated region
      $region21: #{deeplab_forward.30} parent=11 // pred_check
        %p182 = pneg %p126
      $region22: #{deeplab_forward.30} parent=11 // pred_check_branch
        %184 = sbr.rel (%p182) target = $region24
      $region23: #{deeplab_forward.30} parent=11 // pred_region
        %p185 = scmp.lt.s32.totalorder %s20, 0
        %s186 = scalar_select %p185, %s20, 0
        %s187 = scalar_lea.vmem %s3, %s186
      $region24: #{deeplab_forward.30} parent=11 // pred_fallthru
        _
    $region12: #{deeplab_forward.30} parent=5 // pred_fallthru
      _
    %p188 = scmp.lt.s32.totalorder %s10, 2
    // Predicated region
    $region25: #{deeplab_forward.30} parent=5 // pred_check
      %p189 = pneg %p188
    $region26: #{deeplab_forward.30} parent=5 // pred_check_branch
      %191 = sbr.rel (%p189) target = $region28
    $region27: #{deeplab_forward.30} parent=5 // pred_region
      // Predicated region
      $region29: #{deeplab_forward.30} parent=27 // pred_check
        %p192 = pneg %p42
      $region30: #{deeplab_forward.30} parent=27 // pred_check_branch
        %194 = sbr.rel (%p192) target = $region32
      $region31: #{deeplab_forward.30} parent=27 // pred_region
        %s195 = smul.u32 32, %s17
        %p196 = scmp.lt.s32.totalorder %s195, 63
        %s197 = scalar_select %p196, %s195, 63
        %s198 = smul.addr %s197, 4
        %s199 = scalar_lea.vmem %s0, %s198
        %s200 = smul.u32 32, %s17
      $region32: #{deeplab_forward.30} parent=27 // pred_fallthru
        _
    $region28: #{deeplab_forward.30} parent=5 // pred_fallthru
      _
    %p201 = scmp.le.s32.totalorder 1, %s10
    %p202 = scmp.lt.s32.totalorder %s10, 3
    %p203 = pnand %p201, %p202
    %p204 = pneg %p203
    // Predicated region
    $region33: #{deeplab_forward.30} parent=5 // pred_check
      _
    $region34: #{deeplab_forward.30} parent=5 // pred_check_branch
      %206 = sbr.rel (%p203) target = $region36
    $region35: #{deeplab_forward.30} parent=5 // pred_region
      %s207 = ssub.s32 %s10, 1
      %s208 = smul.u32 32, %s19
      %p209 = scmp.lt.s32.totalorder %s208, 63
      %s210 = scalar_select %p209, %s208, 63
      %s211 = smul.addr %s210, 4
      %s212 = scalar_lea.vmem %s0, %s211
      %p213 = pneg %p48
      %p214 = pneg %p45
      %p215 = scmp.lt.s32.totalorder %s20, 0
      %s216 = scalar_select %p215, %s20, 0
      %s217 = smul.addr %s216, 4
      %s218 = scalar_lea.vmem %s1, %s217
      %p219 = pneg %p74
      %p220 = pneg %p71
      %p221 = scmp.lt.s32.totalorder %s20, 0
      %s222 = scalar_select %p221, %s20, 0
      %s223 = scalar_lea.vmem %s2, %s222
      %p224 = pneg %p100
      %p225 = pneg %p97
      %p226 = scmp.lt.s32.totalorder %s20, 0
      %s227 = scalar_select %p226, %s20, 0
      %s228 = scalar_lea.vmem %s3, %s227
      %p229 = pneg %p126
      %p230 = pneg %p123
      %p231 = pneg %p154
      %p232 = pneg %p151
      %s233 = smul.u32 32, %s19
      %p234 = scmp.lt.s32.totalorder %s233, 63
      %s235 = scalar_select %p234, %s233, 63
      %p236 = scmp.lt.s32.totalorder %s20, 0
      %s237 = scalar_select %p236, %s20, 0
      %s238 = sadd.s32 %s237, %s235
      %s239 = smul.addr %s238, 4
      %s240 = scalar_lea.vmem %s4, %s239
      %s241 = smul.u32 32, %s19
      %p242 = scmp.lt.s32.totalorder %s241, 63
      %s243 = scalar_select %p242, %s241, 63
      %s244 = smul.addr %s243, 4
      %s245 = scalar_lea.vmem %s0, %s244
      %s246 = smul.u32 32, %s19
      %p247 = scmp.lt.s32.totalorder %s20, 0
      %s248 = scalar_select %p247, %s20, 0
      %s249 = smul.addr %s248, 4
      %s250 = scalar_lea.vmem %s1, %s249
      %p251 = scmp.lt.s32.totalorder %s20, 0
      %s252 = scalar_select %p251, %s20, 0
      %s253 = scalar_lea.vmem %s2, %s252
      %p254 = scmp.lt.s32.totalorder %s20, 0
      %s255 = scalar_select %p254, %s20, 0
      %s256 = scalar_lea.vmem %s3, %s255
      %s257 = smul.u32 32, %s19
      %p258 = scmp.lt.s32.totalorder %s257, 63
      %s259 = scalar_select %p258, %s257, 63
      %p260 = scmp.lt.s32.totalorder %s20, 0
      %s261 = scalar_select %p260, %s20, 0
      %s262 = sadd.s32 %s261, %s259
      %s263 = smul.addr %s262, 4
      %s264 = scalar_lea.vmem %s4, %s263
      %s265 = smul.u32 32, %s19
      %v267 = vld [vmem:[%s245] sm:$0xf]
      %v268 = vld [vmem:[%s245 + $0x4] sm:$0xf]
      %v269 = vld [vmem:[%s245 + $0x8] sm:$0xf]
      %v270 = vld [vmem:[%s245 + $0xc] sm:$0xf]
      %v271 = vld [vmem:[%s245 + $0x10] sm:$0xf]
      %v272 = vld [vmem:[%s245 + $0x14] sm:$0xf]
      %v273 = vld [vmem:[%s245 + $0x18] sm:$0xf]
      %v274 = vld [vmem:[%s245 + $0x1c] sm:$0xf]
      %v275 = vld [vmem:[%s245 + $0x20] sm:$0xf]
      %v276 = vld [vmem:[%s245 + $0x24] sm:$0xf]
      %v277 = vld [vmem:[%s245 + $0x28] sm:$0xf]
      %v278 = vld [vmem:[%s245 + $0x2c] sm:$0xf]
      %v279 = vld [vmem:[%s245 + $0x30] sm:$0xf]
      %v280 = vld [vmem:[%s245 + $0x34] sm:$0xf]
      %v281 = vld [vmem:[%s245 + $0x38] sm:$0xf]
      %v282 = vld [vmem:[%s245 + $0x3c] sm:$0xf]
      %v283 = vld [vmem:[%s245 + $0x40] sm:$0xf]
      %v284 = vld [vmem:[%s245 + $0x44] sm:$0xf]
      %v285 = vld [vmem:[%s245 + $0x48] sm:$0xf]
      %v286 = vld [vmem:[%s245 + $0x4c] sm:$0xf]
      %v287 = vld [vmem:[%s245 + $0x50] sm:$0xf]
      %v288 = vld [vmem:[%s245 + $0x54] sm:$0xf]
      %v289 = vld [vmem:[%s245 + $0x58] sm:$0xf]
      %v290 = vld [vmem:[%s245 + $0x5c] sm:$0xf]
      %v291 = vld [vmem:[%s245 + $0x60] sm:$0xf]
      %v292 = vld [vmem:[%s245 + $0x64] sm:$0xf]
      %v293 = vld [vmem:[%s245 + $0x68] sm:$0xf]
      %v294 = vld [vmem:[%s245 + $0x6c] sm:$0xf]
      %v295 = vld [vmem:[%s245 + $0x70] sm:$0xf]
      %v296 = vld [vmem:[%s245 + $0x74] sm:$0xf]
      %v297 = vld [vmem:[%s245 + $0x78] sm:$0xf]
      %v298 = vld [vmem:[%s245 + $0x7c] sm:$0xf]
      %v299 = vld [vmem:[%s250] sm:$0xf]
      %v300 = vld [vmem:[%s250 + $0x4] sm:$0xf]
      %v301 = vld [vmem:[%s250 + $0x8] sm:$0xf]
      %v302 = vld [vmem:[%s250 + $0xc] sm:$0xf]
      %v303 = vld [vmem:[%s250 + $0x10] sm:$0xf]
      %v304 = vld [vmem:[%s250 + $0x14] sm:$0xf]
      %v305 = vld [vmem:[%s250 + $0x18] sm:$0xf]
      %v306 = vld [vmem:[%s250 + $0x1c] sm:$0xf]
      %v307 = vld [vmem:[%s250 + $0x20] sm:$0xf]
      %v308 = vld [vmem:[%s250 + $0x24] sm:$0xf]
      %v309 = vld [vmem:[%s250 + $0x28] sm:$0xf]
      %v310 = vld [vmem:[%s250 + $0x2c] sm:$0xf]
      %v311 = vld [vmem:[%s250 + $0x30] sm:$0xf]
      %v312 = vld [vmem:[%s250 + $0x34] sm:$0xf]
      %v313 = vld [vmem:[%s250 + $0x38] sm:$0xf]
      %v314 = vld [vmem:[%s250 + $0x3c] sm:$0xf]
      %v347 = vunpack.c.l.b16 %v267
      %v348 = vunpack.c.l.b16 %v268
      %v349 = vunpack.c.l.b16 %v269
      %v350 = vunpack.c.l.b16 %v270
      %v351 = vunpack.c.l.b16 %v271
      %v352 = vunpack.c.l.b16 %v272
      %v353 = vunpack.c.l.b16 %v273
      %v354 = vunpack.c.l.b16 %v274
      %v355 = vunpack.c.l.b16 %v275
      %v356 = vunpack.c.l.b16 %v276
      %v357 = vunpack.c.l.b16 %v277
      %v358 = vunpack.c.l.b16 %v278
      %v359 = vunpack.c.l.b16 %v279
      %v360 = vunpack.c.l.b16 %v280
      %v361 = vunpack.c.l.b16 %v281
      %v362 = vunpack.c.l.b16 %v282
      %v363 = vunpack.c.l.b16 %v283
      %v364 = vunpack.c.l.b16 %v284
      %v365 = vunpack.c.l.b16 %v285
      %v366 = vunpack.c.l.b16 %v286
      %v367 = vunpack.c.l.b16 %v287
      %v368 = vunpack.c.l.b16 %v288
      %v369 = vunpack.c.l.b16 %v289
      %v370 = vunpack.c.l.b16 %v290
      %v371 = vunpack.c.l.b16 %v291
      %v372 = vunpack.c.l.b16 %v292
      %v373 = vunpack.c.l.b16 %v293
      %v374 = vunpack.c.l.b16 %v294
      %v375 = vunpack.c.l.b16 %v295
      %v376 = vunpack.c.l.b16 %v296
      %v377 = vunpack.c.l.b16 %v297
      %v378 = vunpack.c.l.b16 %v298
      %v379 = vpack.c.b16 %v348, %v347
      %v380 = vpack.c.b16 %v350, %v349
      %v381 = vpack.c.b16 %v352, %v351
      %v382 = vpack.c.b16 %v354, %v353
      %v383 = vpack.c.b16 %v356, %v355
      %v384 = vpack.c.b16 %v358, %v357
      %v385 = vpack.c.b16 %v360, %v359
      %v386 = vpack.c.b16 %v362, %v361
      %v387 = vpack.c.b16 %v364, %v363
      %v388 = vpack.c.b16 %v366, %v365
      %v389 = vpack.c.b16 %v368, %v367
      %v390 = vpack.c.b16 %v370, %v369
      %v391 = vpack.c.b16 %v372, %v371
      %v392 = vpack.c.b16 %v374, %v373
      %v393 = vpack.c.b16 %v376, %v375
      %v394 = vpack.c.b16 %v378, %v377
      %v427 = vunpack.c.l.b16 %v299
      %v428 = vunpack.c.l.b16 %v300
      %v429 = vunpack.c.l.b16 %v301
      %v430 = vunpack.c.l.b16 %v302
      %v431 = vunpack.c.l.b16 %v303
      %v432 = vunpack.c.l.b16 %v304
      %v433 = vunpack.c.l.b16 %v305
      %v434 = vunpack.c.l.b16 %v306
      %v435 = vunpack.c.l.b16 %v307
      %v436 = vunpack.c.l.b16 %v308
      %v437 = vunpack.c.l.b16 %v309
      %v438 = vunpack.c.l.b16 %v310
      %v439 = vunpack.c.l.b16 %v311
      %v440 = vunpack.c.l.b16 %v312
      %v441 = vunpack.c.l.b16 %v313
      %v442 = vunpack.c.l.b16 %v314
      %v443 = vpack.c.b16 %v428, %v427
      %v444 = vpack.c.b16 %v430, %v429
      %v445 = vpack.c.b16 %v432, %v431
      %v446 = vpack.c.b16 %v434, %v433
      %v447 = vpack.c.b16 %v436, %v435
      %v448 = vpack.c.b16 %v438, %v437
      %v449 = vpack.c.b16 %v440, %v439
      %v450 = vpack.c.b16 %v442, %v441
      %459 = vmatprep.subr.bf16.mxu0 0
      %460 = vmatpush1.bf16.msra.mxu0 %v450
      %461 = vmatprep.subr.bf16.mxu0 0
      %462 = vmatpush1.bf16.msra.mxu0 %v449
      %463 = vmatprep.subr.bf16.mxu0 0
      %464 = vmatpush1.bf16.msra.mxu0 %v448
      %465 = vmatprep.subr.bf16.mxu0 0
      %466 = vmatpush1.bf16.msra.mxu0 %v447
      %467 = vmatprep.subr.bf16.mxu0 0
      %468 = vmatpush1.bf16.msra.mxu0 %v446
      %469 = vmatprep.subr.bf16.mxu0 0
      %470 = vmatpush1.bf16.msra.mxu0 %v445
      %471 = vmatprep.subr.bf16.mxu0 0
      %472 = vmatpush1.bf16.msra.mxu0 %v444
      %473 = vmatprep.subr.bf16.mxu0 0
      %474 = vmatpush1.bf16.msra.mxu0 %v443
      %475 = vmatprep.subr.bf16.mxu0 0
      %476 = vmatpush2.bf16.msra.mxu0 0
      %477 = vmatprep.subr.bf16.mxu0 0
      %478 = vmatpush2.bf16.msra.mxu0 0
      %479 = vmatprep.subr.bf16.mxu0 0
      %480 = vmatpush2.bf16.msra.mxu0 0
      %481 = vmatprep.subr.bf16.mxu0 0
      %482 = vmatpush2.bf16.msra.mxu0 0
      %483 = vmatprep.subr.bf16.mxu0 0
      %484 = vmatpush2.bf16.msra.mxu0 0
      %485 = vmatprep.subr.bf16.mxu0 0
      %486 = vmatpush2.bf16.msra.mxu0 0
      %487 = vmatprep.subr.bf16.mxu0 0
      %488 = vmatpush2.bf16.msra.mxu0 0
      %489 = vmatprep.subr.bf16.mxu0 0
      %490 = vmatpush2.bf16.msra.mxu0 0
      %491 = vmatprep.mubr.bf16.mxu0 0
      %492 = vmatmul.mubr.bf16.gmra.mxu0 %v379
      %v493 = vpop.f32.mrf.mxu0
      %v494 = vadd.f32 0.0, %v493
      %v495 = vpop.f32.mrf.mxu0
      %v496 = vpop.f32.mrf.mxu0
      %v497 = vadd.f32 0.0, %v496
      %v498 = vpop.f32.mrf.mxu0
      %499 = vmatprep.mubr.bf16.mxu0 0
      %500 = vmatmul.mubr.bf16.gmra.mxu0 %v380
      %v501 = vpop.f32.mrf.mxu0
      %v502 = vadd.f32 0.0, %v501
      %v503 = vpop.f32.mrf.mxu0
      %v504 = vpop.f32.mrf.mxu0
      %v505 = vadd.f32 0.0, %v504
      %v506 = vpop.f32.mrf.mxu0
      %507 = vmatprep.mubr.bf16.mxu0 0
      %508 = vmatmul.mubr.bf16.gmra.mxu0 %v381
      %v509 = vpop.f32.mrf.mxu0
      %v510 = vadd.f32 0.0, %v509
      %v511 = vpop.f32.mrf.mxu0
      %v512 = vpop.f32.mrf.mxu0
      %v513 = vadd.f32 0.0, %v512
      %v514 = vpop.f32.mrf.mxu0
      %515 = vmatprep.mubr.bf16.mxu0 0
      %516 = vmatmul.mubr.bf16.gmra.mxu0 %v382
      %v517 = vpop.f32.mrf.mxu0
      %v518 = vadd.f32 0.0, %v517
      %v519 = vpop.f32.mrf.mxu0
      %v520 = vpop.f32.mrf.mxu0
      %v521 = vadd.f32 0.0, %v520
      %v522 = vpop.f32.mrf.mxu0
      %523 = vmatprep.mubr.bf16.mxu0 0
      %524 = vmatmul.mubr.bf16.gmra.mxu0 %v383
      %v525 = vpop.f32.mrf.mxu0
      %v526 = vadd.f32 0.0, %v525
      %v527 = vpop.f32.mrf.mxu0
      %v528 = vpop.f32.mrf.mxu0
      %v529 = vadd.f32 0.0, %v528
      %v530 = vpop.f32.mrf.mxu0
      %531 = vmatprep.mubr.bf16.mxu0 0
      %532 = vmatmul.mubr.bf16.gmra.mxu0 %v384
      %v533 = vpop.f32.mrf.mxu0
      %v534 = vadd.f32 0.0, %v533
      %v535 = vpop.f32.mrf.mxu0
      %v536 = vpop.f32.mrf.mxu0
      %v537 = vadd.f32 0.0, %v536
      %v538 = vpop.f32.mrf.mxu0
      %539 = vmatprep.mubr.bf16.mxu0 0
      %540 = vmatmul.mubr.bf16.gmra.mxu0 %v385
      %v541 = vpop.f32.mrf.mxu0
      %v542 = vadd.f32 0.0, %v541
      %v543 = vpop.f32.mrf.mxu0
      %v544 = vpop.f32.mrf.mxu0
      %v545 = vadd.f32 0.0, %v544
      %v546 = vpop.f32.mrf.mxu0
      %547 = vmatprep.mubr.bf16.mxu0 0
      %548 = vmatmul.mubr.bf16.gmra.mxu0 %v386
      %v549 = vpop.f32.mrf.mxu0
      %v550 = vadd.f32 0.0, %v549
      %v551 = vpop.f32.mrf.mxu0
      %v552 = vpop.f32.mrf.mxu0
      %v553 = vadd.f32 0.0, %v552
      %v554 = vpop.f32.mrf.mxu0
      %555 = vmatprep.mubr.bf16.mxu0 0
      %556 = vmatmul.mubr.bf16.gmra.mxu0 %v387
      %v557 = vpop.f32.mrf.mxu0
      %v558 = vadd.f32 0.0, %v557
      %v559 = vpop.f32.mrf.mxu0
      %v560 = vpop.f32.mrf.mxu0
      %v561 = vadd.f32 0.0, %v560
      %v562 = vpop.f32.mrf.mxu0
      %563 = vmatprep.mubr.bf16.mxu0 0
      %564 = vmatmul.mubr.bf16.gmra.mxu0 %v388
      %v565 = vpop.f32.mrf.mxu0
      %v566 = vadd.f32 0.0, %v565
      %v567 = vpop.f32.mrf.mxu0
      %v568 = vpop.f32.mrf.mxu0
      %v569 = vadd.f32 0.0, %v568
      %v570 = vpop.f32.mrf.mxu0
      %571 = vmatprep.mubr.bf16.mxu0 0
      %572 = vmatmul.mubr.bf16.gmra.mxu0 %v389
      %v573 = vpop.f32.mrf.mxu0
      %v574 = vadd.f32 0.0, %v573
      %v575 = vpop.f32.mrf.mxu0
      %v576 = vpop.f32.mrf.mxu0
      %v577 = vadd.f32 0.0, %v576
      %v578 = vpop.f32.mrf.mxu0
      %579 = vmatprep.mubr.bf16.mxu0 0
      %580 = vmatmul.mubr.bf16.gmra.mxu0 %v390
      %v581 = vpop.f32.mrf.mxu0
      %v582 = vadd.f32 0.0, %v581
      %v583 = vpop.f32.mrf.mxu0
      %v584 = vpop.f32.mrf.mxu0
      %v585 = vadd.f32 0.0, %v584
      %v586 = vpop.f32.mrf.mxu0
      %587 = vmatprep.mubr.bf16.mxu0 0
      %588 = vmatmul.mubr.bf16.gmra.mxu0 %v391
      %v589 = vpop.f32.mrf.mxu0
      %v590 = vadd.f32 0.0, %v589
      %v591 = vpop.f32.mrf.mxu0
      %v592 = vpop.f32.mrf.mxu0
      %v593 = vadd.f32 0.0, %v592
      %v594 = vpop.f32.mrf.mxu0
      %595 = vmatprep.mubr.bf16.mxu0 0
      %596 = vmatmul.mubr.bf16.gmra.mxu0 %v392
      %v597 = vpop.f32.mrf.mxu0
      %v598 = vadd.f32 0.0, %v597
      %v599 = vpop.f32.mrf.mxu0
      %v600 = vpop.f32.mrf.mxu0
      %v601 = vadd.f32 0.0, %v600
      %v602 = vpop.f32.mrf.mxu0
      %603 = vmatprep.mubr.bf16.mxu0 0
      %604 = vmatmul.mubr.bf16.gmra.mxu0 %v393
      %v605 = vpop.f32.mrf.mxu0
      %v606 = vadd.f32 0.0, %v605
      %v607 = vpop.f32.mrf.mxu0
      %v608 = vpop.f32.mrf.mxu0
      %v609 = vadd.f32 0.0, %v608
      %v610 = vpop.f32.mrf.mxu0
      %611 = vmatprep.mubr.bf16.mxu0 0
      %612 = vmatmul.mubr.bf16.gmra.mxu0 %v394
      %v613 = vpop.f32.mrf.mxu0
      %v614 = vadd.f32 0.0, %v613
      %v615 = vpop.f32.mrf.mxu0
      %v616 = vpop.f32.mrf.mxu0
      %v617 = vadd.f32 0.0, %v616
      %v618 = vpop.f32.mrf.mxu0
      %619 = vdwg.mxu0
      %v620 = vld [vmem:[%s253] sm:$0x1]
      %v622 = vlaneseq
      %v623 = vshrl.u32 %v622, 7
      %v624 = vsub.s32 0, %v623
      %v625 = vrot.slane %v620, %v624
      %v627 = vmul.f32 %v494, %v625
      %v628 = vmul.f32 %v497, %v625
      %v629 = vmul.f32 %v502, %v625
      %v630 = vmul.f32 %v505, %v625
      %v631 = vmul.f32 %v510, %v625
      %v632 = vmul.f32 %v513, %v625
      %v633 = vmul.f32 %v518, %v625
      %v634 = vmul.f32 %v521, %v625
      %v635 = vmul.f32 %v526, %v625
      %v636 = vmul.f32 %v529, %v625
      %v637 = vmul.f32 %v534, %v625
      %v638 = vmul.f32 %v537, %v625
      %v639 = vmul.f32 %v542, %v625
      %v640 = vmul.f32 %v545, %v625
      %v641 = vmul.f32 %v550, %v625
      %v642 = vmul.f32 %v553, %v625
      %v643 = vmul.f32 %v558, %v625
      %v644 = vmul.f32 %v561, %v625
      %v645 = vmul.f32 %v566, %v625
      %v646 = vmul.f32 %v569, %v625
      %v647 = vmul.f32 %v574, %v625
      %v648 = vmul.f32 %v577, %v625
      %v649 = vmul.f32 %v582, %v625
      %v650 = vmul.f32 %v585, %v625
      %v651 = vmul.f32 %v590, %v625
      %v652 = vmul.f32 %v593, %v625
      %v653 = vmul.f32 %v598, %v625
      %v654 = vmul.f32 %v601, %v625
      %v655 = vmul.f32 %v606, %v625
      %v656 = vmul.f32 %v609, %v625
      %v657 = vmul.f32 %v614, %v625
      %v658 = vmul.f32 %v617, %v625
      %v659 = vld [vmem:[%s256] sm:$0x1]
      %v661 = vlaneseq
      %v662 = vshrl.u32 %v661, 7
      %v663 = vsub.s32 0, %v662
      %v664 = vrot.slane %v659, %v663
      %v666 = vadd.f32 %v627, %v664
      %v667 = vadd.f32 %v628, %v664
      %v668 = vadd.f32 %v629, %v664
      %v669 = vadd.f32 %v630, %v664
      %v670 = vadd.f32 %v631, %v664
      %v671 = vadd.f32 %v632, %v664
      %v672 = vadd.f32 %v633, %v664
      %v673 = vadd.f32 %v634, %v664
      %v674 = vadd.f32 %v635, %v664
      %v675 = vadd.f32 %v636, %v664
      %v676 = vadd.f32 %v637, %v664
      %v677 = vadd.f32 %v638, %v664
      %v678 = vadd.f32 %v639, %v664
      %v679 = vadd.f32 %v640, %v664
      %v680 = vadd.f32 %v641, %v664
      %v681 = vadd.f32 %v642, %v664
      %v682 = vadd.f32 %v643, %v664
      %v683 = vadd.f32 %v644, %v664
      %v684 = vadd.f32 %v645, %v664
      %v685 = vadd.f32 %v646, %v664
      %v686 = vadd.f32 %v647, %v664
      %v687 = vadd.f32 %v648, %v664
      %v688 = vadd.f32 %v649, %v664
      %v689 = vadd.f32 %v650, %v664
      %v690 = vadd.f32 %v651, %v664
      %v691 = vadd.f32 %v652, %v664
      %v692 = vadd.f32 %v653, %v664
      %v693 = vadd.f32 %v654, %v664
      %v694 = vadd.f32 %v655, %v664
      %v695 = vadd.f32 %v656, %v664
      %v696 = vadd.f32 %v657, %v664
      %v697 = vadd.f32 %v658, %v664
      %v698 = vpack.c.bf16 %v667, %v666
      %v699 = vpack.c.bf16 %v669, %v668
      %v700 = vpack.c.bf16 %v671, %v670
      %v701 = vpack.c.bf16 %v673, %v672
      %v702 = vpack.c.bf16 %v675, %v674
      %v703 = vpack.c.bf16 %v677, %v676
      %v704 = vpack.c.bf16 %v679, %v678
      %v705 = vpack.c.bf16 %v681, %v680
      %v706 = vpack.c.bf16 %v683, %v682
      %v707 = vpack.c.bf16 %v685, %v684
      %v708 = vpack.c.bf16 %v687, %v686
      %v709 = vpack.c.bf16 %v689, %v688
      %v710 = vpack.c.bf16 %v691, %v690
      %v711 = vpack.c.bf16 %v693, %v692
      %v712 = vpack.c.bf16 %v695, %v694
      %v713 = vpack.c.bf16 %v697, %v696
      %v730 = vunpack.c.l.b16 %v698
      %v731 = vunpack.c.h.b16 %v698
      %v732 = vunpack.c.l.b16 %v699
      %v733 = vunpack.c.h.b16 %v699
      %v734 = vunpack.c.l.b16 %v700
      %v735 = vunpack.c.h.b16 %v700
      %v736 = vunpack.c.l.b16 %v701
      %v737 = vunpack.c.h.b16 %v701
      %v738 = vunpack.c.l.b16 %v702
      %v739 = vunpack.c.h.b16 %v702
      %v740 = vunpack.c.l.b16 %v703
      %v741 = vunpack.c.h.b16 %v703
      %v742 = vunpack.c.l.b16 %v704
      %v743 = vunpack.c.h.b16 %v704
      %v744 = vunpack.c.l.b16 %v705
      %v745 = vunpack.c.h.b16 %v705
      %v746 = vunpack.c.l.b16 %v706
      %v747 = vunpack.c.h.b16 %v706
      %v748 = vunpack.c.l.b16 %v707
      %v749 = vunpack.c.h.b16 %v707
      %v750 = vunpack.c.l.b16 %v708
      %v751 = vunpack.c.h.b16 %v708
      %v752 = vunpack.c.l.b16 %v709
      %v753 = vunpack.c.h.b16 %v709
      %v754 = vunpack.c.l.b16 %v710
      %v755 = vunpack.c.h.b16 %v710
      %v756 = vunpack.c.l.b16 %v711
      %v757 = vunpack.c.h.b16 %v711
      %v758 = vunpack.c.l.b16 %v712
      %v759 = vunpack.c.h.b16 %v712
      %v760 = vunpack.c.l.b16 %v713
      %v761 = vunpack.c.h.b16 %v713
      %v762 = vpack.c.b16 %v730, %v730
      %v763 = vpack.c.b16 %v731, %v731
      %v764 = vpack.c.b16 %v732, %v732
      %v765 = vpack.c.b16 %v733, %v733
      %v766 = vpack.c.b16 %v734, %v734
      %v767 = vpack.c.b16 %v735, %v735
      %v768 = vpack.c.b16 %v736, %v736
      %v769 = vpack.c.b16 %v737, %v737
      %v770 = vpack.c.b16 %v738, %v738
      %v771 = vpack.c.b16 %v739, %v739
      %v772 = vpack.c.b16 %v740, %v740
      %v773 = vpack.c.b16 %v741, %v741
      %v774 = vpack.c.b16 %v742, %v742
      %v775 = vpack.c.b16 %v743, %v743
      %v776 = vpack.c.b16 %v744, %v744
      %v777 = vpack.c.b16 %v745, %v745
      %v778 = vpack.c.b16 %v746, %v746
      %v779 = vpack.c.b16 %v747, %v747
      %v780 = vpack.c.b16 %v748, %v748
      %v781 = vpack.c.b16 %v749, %v749
      %v782 = vpack.c.b16 %v750, %v750
      %v783 = vpack.c.b16 %v751, %v751
      %v784 = vpack.c.b16 %v752, %v752
      %v785 = vpack.c.b16 %v753, %v753
      %v786 = vpack.c.b16 %v754, %v754
      %v787 = vpack.c.b16 %v755, %v755
      %v788 = vpack.c.b16 %v756, %v756
      %v789 = vpack.c.b16 %v757, %v757
      %v790 = vpack.c.b16 %v758, %v758
      %v791 = vpack.c.b16 %v759, %v759
      %v792 = vpack.c.b16 %v760, %v760
      %v793 = vpack.c.b16 %v761, %v761
      %826 = vst [vmem:[%s264] sm:$0xf] %v762
      %827 = vst [vmem:[%s264 + $0x4] sm:$0xf] %v763
      %828 = vst [vmem:[%s264 + $0x8] sm:$0xf] %v764
      %829 = vst [vmem:[%s264 + $0xc] sm:$0xf] %v765
      %830 = vst [vmem:[%s264 + $0x10] sm:$0xf] %v766
      %831 = vst [vmem:[%s264 + $0x14] sm:$0xf] %v767
      %832 = vst [vmem:[%s264 + $0x18] sm:$0xf] %v768
      %833 = vst [vmem:[%s264 + $0x1c] sm:$0xf] %v769
      %834 = vst [vmem:[%s264 + $0x20] sm:$0xf] %v770
      %835 = vst [vmem:[%s264 + $0x24] sm:$0xf] %v771
      %836 = vst [vmem:[%s264 + $0x28] sm:$0xf] %v772
      %837 = vst [vmem:[%s264 + $0x2c] sm:$0xf] %v773
      %838 = vst [vmem:[%s264 + $0x30] sm:$0xf] %v774
      %839 = vst [vmem:[%s264 + $0x34] sm:$0xf] %v775
      %840 = vst [vmem:[%s264 + $0x38] sm:$0xf] %v776
      %841 = vst [vmem:[%s264 + $0x3c] sm:$0xf] %v777
      %842 = vst [vmem:[%s264 + $0x40] sm:$0xf] %v778
      %843 = vst [vmem:[%s264 + $0x44] sm:$0xf] %v779
      %844 = vst [vmem:[%s264 + $0x48] sm:$0xf] %v780
      %845 = vst [vmem:[%s264 + $0x4c] sm:$0xf] %v781
      %846 = vst [vmem:[%s264 + $0x50] sm:$0xf] %v782
      %847 = vst [vmem:[%s264 + $0x54] sm:$0xf] %v783
      %848 = vst [vmem:[%s264 + $0x58] sm:$0xf] %v784
      %849 = vst [vmem:[%s264 + $0x5c] sm:$0xf] %v785
      %850 = vst [vmem:[%s264 + $0x60] sm:$0xf] %v786
      %851 = vst [vmem:[%s264 + $0x64] sm:$0xf] %v787
      %852 = vst [vmem:[%s264 + $0x68] sm:$0xf] %v788
      %853 = vst [vmem:[%s264 + $0x6c] sm:$0xf] %v789
      %854 = vst [vmem:[%s264 + $0x70] sm:$0xf] %v790
      %855 = vst [vmem:[%s264 + $0x74] sm:$0xf] %v791
      %856 = vst [vmem:[%s264 + $0x78] sm:$0xf] %v792
      %857 = vst [vmem:[%s264 + $0x7c] sm:$0xf] %v793
      %s858 = smul.u32 32, %s19
      %p859 = scmp.lt.s32.totalorder %s858, 63
      %s860 = scalar_select %p859, %s858, 63
      %p861 = scmp.lt.s32.totalorder %s20, 0
      %s862 = scalar_select %p861, %s20, 0
      %s863 = sadd.s32 %s862, %s860
      %s864 = smul.addr %s863, 4
      %s865 = scalar_lea.vmem %s4, %s864
      // Predicated region
      $region37: #{deeplab_forward.30} parent=35 // pred_check
        %p866 = pneg %p151
      $region38: #{deeplab_forward.30} parent=35 // pred_check_branch
        %868 = sbr.rel (%p866) target = $region40
      $region39: #{deeplab_forward.30} parent=35 // pred_region
        %s869 = smul.u32 32, %s19
      $region40: #{deeplab_forward.30} parent=35 // pred_fallthru
        _
    $region36: #{deeplab_forward.30} parent=5 // pred_fallthru
      _
    %p870 = scmp.le.s32.totalorder 2, %s10
    // Predicated region
    $region41: #{deeplab_forward.30} parent=5 // pred_check
      %p871 = pneg %p870
    $region42: #{deeplab_forward.30} parent=5 // pred_check_branch
      %873 = sbr.rel (%p871) target = $region44
    $region43: #{deeplab_forward.30} parent=5 // pred_region
      %s874 = ssub.s32 %s10, 2
      // Predicated region
      $region45: #{deeplab_forward.30} parent=43 // pred_check
        %p875 = pneg %p157
      $region46: #{deeplab_forward.30} parent=43 // pred_check_branch
        %877 = sbr.rel (%p875) target = $region48
      $region47: #{deeplab_forward.30} parent=43 // pred_region
        %s878 = smul.u32 32, %s21
        %p879 = scmp.lt.s32.totalorder %s878, 63
        %s880 = scalar_select %p879, %s878, 63
        %p881 = scmp.lt.s32.totalorder %s22, 0
        %s882 = scalar_select %p881, %s22, 0
        %s883 = sadd.s32 %s882, %s880
        %s884 = smul.addr %s883, 4
        %s885 = scalar_lea.vmem %s4, %s884
      $region48: #{deeplab_forward.30} parent=43 // pred_fallthru
        _
    $region44: #{deeplab_forward.30} parent=5 // pred_fallthru
      _
  $region6: #{deeplab_forward.30} parent=0 // loop_footer
    %s14 = sadd.s32 1, %s10
  $region7: #{deeplab_forward.30} parent=0 // loop_footer_branch
    %9 = sbr.rel target = $region3
  $region8: #{deeplab_forward.30} parent=0 // loop_exit
    _

// kernel: deeplab_forward.31
$region0: #{deeplab_forward.31}
  #allocation0 [shape = 'u32[]', space=smem, size = 0x4, offset = 0x4, fixed_abs, tag = 'smem constant byte address 0x4 - core index']
  #allocation1 [shape = 'u32[144,128]{1,0:T(1,128)}', space=vmem, size = 0x12000, scoped, tag = 'internal scratch']
  %s0 = inlined_call_operand.vmem [shape: bf16[8,256], index: 0, kind: input, shape index: {}]
  %s1 = inlined_call_operand.vmem [shape: bf16[256,4096], index: 1, kind: input, shape index: {}]
  %s2 = inlined_call_operand.vmem [shape: f32[1,4096], index: 2, kind: input, shape index: {}]
  %s3 = inlined_call_operand.vmem [shape: f32[1,4096], index: 3, kind: input, shape index: {}]
  %s4 = inlined_call_operand.vmem [shape: f32[8,4096], index: 4, kind: output, shape index: {}]
  %s5 = sld [smem:[#allocation0]]
  $region90: #{deeplab_forward.31} parent=0
    _
  %s7 = ssub.s32 1, %s5
  %s8 = scalar_select 0, %s7, %s5
  $region1: #{deeplab_forward.31} parent=0
    #allocation2 [shape = 'u8[131072]{0}', space=vmem, size = 0x20000, scoped, tag = 'input window, operand 1']
    loop: start=0, step=1, limit=34
    $region2: #{deeplab_forward.31} parent=1 // loop_pre_header
      _
    $region3: #{deeplab_forward.31} parent=1 // loop_header
      %s10 = sphi 0, %s14
      %p11 = scmp.ge.s32.totalorder %s10, 34
      %s17 = sphi 0, %s29
      %s18 = sphi 0, %s25
      %s19 = sphi 0, %s17
      %s20 = sphi 0, %s18
      %s21 = sphi 0, %s19
      %s22 = sphi 0, %s20
      %s32 = sphi 0, %s34
      %s35 = sphi 0, %s32
      %s36 = sphi 0, %s35
      %s52 = sphi 0, %s36
      %s58 = sphi 0, %s60
      %s61 = sphi 0, %s58
      %s62 = sphi 0, %s61
      %s78 = sphi 0, %s62
      %s84 = sphi 0, %s86
      %s87 = sphi 0, %s84
      %s88 = sphi 0, %s87
      %s104 = sphi 0, %s88
      %s110 = sphi 0, %s112
      %s113 = sphi 0, %s110
      %s114 = sphi 0, %s113
      %s130 = sphi 0, %s114
      %s138 = sphi 0, %s140
      %s141 = sphi 0, %s138
      %s142 = sphi 0, %s141
      %s158 = sphi 0, %s142
    $region4: #{deeplab_forward.31} parent=1 // loop_header_branch
      %13 = sbr.rel (%p11) target = $region8
    $region5: #{deeplab_forward.31} parent=1 // loop_body
      %s15 = ssub.s32 %s10, 1
      %s16 = ssub.s32 %s10, 2
      %s23 = sadd.s32 1, %s18
      %p24 = scmp.ge.s32.totalorder %s23, 32
      %s25 = scalar_select %p24, 0, %s23
      %s26 = sadd.s32 1, %s17
      %s27 = scalar_select %p24, %s26, %s17
      %p28 = scmp.ge.s32.totalorder %s27, 1
      %s29 = scalar_select %p28, 0, %s27
      %s30 = ssub.s32 %s17, %s29
      %p31 = scmp.eq.s32.totalorder %s30, 0
      %s33 = sadd.s32 %s32, 1
      %s34 = scalar_select %p31, %s32, %s33
      %p37 = pneg %p31
      %p38 = scmp.eq.s32.totalorder %s10, 31
      %p39 = por %p37, %p38
      %p40 = scmp.ne.s32.totalorder %s32, %s35
      %p41 = scmp.eq.s32.totalorder %s10, 0
      %p42 = por %p40, %p41
      %p43 = scmp.ne.s32.totalorder %s32, %s35
      %p44 = scmp.eq.s32.totalorder %s15, 31
      %p45 = por %p43, %p44
      %p46 = scmp.ne.s32.totalorder %s35, %s36
      %p47 = scmp.eq.s32.totalorder %s15, 0
      %p48 = por %p46, %p47
      %p49 = scmp.ne.s32.totalorder %s35, %s36
      %p50 = scmp.eq.s32.totalorder %s16, 31
      %p51 = por %p49, %p50
      %p53 = scmp.ne.s32.totalorder %s36, %s52
      %p54 = scmp.eq.s32.totalorder %s16, 0
      %p55 = por %p53, %p54
      %s56 = ssub.s32 %s18, %s25
      %p57 = scmp.eq.s32.totalorder %s56, 0
      %s59 = sadd.s32 %s58, 1
      %s60 = scalar_select %p57, %s58, %s59
      %p63 = pneg %p57
      %p64 = scmp.eq.s32.totalorder %s10, 31
      %p65 = por %p63, %p64
      %p66 = scmp.ne.s32.totalorder %s58, %s61
      %p67 = scmp.eq.s32.totalorder %s10, 0
      %p68 = por %p66, %p67
      %p69 = scmp.ne.s32.totalorder %s58, %s61
      %p70 = scmp.eq.s32.totalorder %s15, 31
      %p71 = por %p69, %p70
      %p72 = scmp.ne.s32.totalorder %s61, %s62
      %p73 = scmp.eq.s32.totalorder %s15, 0
      %p74 = por %p72, %p73
      %p75 = scmp.ne.s32.totalorder %s61, %s62
      %p76 = scmp.eq.s32.totalorder %s16, 31
      %p77 = por %p75, %p76
      %p79 = scmp.ne.s32.totalorder %s62, %s78
      %p80 = scmp.eq.s32.totalorder %s16, 0
      %p81 = por %p79, %p80
      %s82 = ssub.s32 %s18, %s25
      %p83 = scmp.eq.s32.totalorder %s82, 0
      %s85 = sadd.s32 %s84, 1
      %s86 = scalar_select %p83, %s84, %s85
      %p89 = pneg %p83
      %p90 = scmp.eq.s32.totalorder %s10, 31
      %p91 = por %p89, %p90
      %p92 = scmp.ne.s32.totalorder %s84, %s87
      %p93 = scmp.eq.s32.totalorder %s10, 0
      %p94 = por %p92, %p93
      %p95 = scmp.ne.s32.totalorder %s84, %s87
      %p96 = scmp.eq.s32.totalorder %s15, 31
      %p97 = por %p95, %p96
      %p98 = scmp.ne.s32.totalorder %s87, %s88
      %p99 = scmp.eq.s32.totalorder %s15, 0
      %p100 = por %p98, %p99
      %p101 = scmp.ne.s32.totalorder %s87, %s88
      %p102 = scmp.eq.s32.totalorder %s16, 31
      %p103 = por %p101, %p102
      %p105 = scmp.ne.s32.totalorder %s88, %s104
      %p106 = scmp.eq.s32.totalorder %s16, 0
      %p107 = por %p105, %p106
      %s108 = ssub.s32 %s18, %s25
      %p109 = scmp.eq.s32.totalorder %s108, 0
      %s111 = sadd.s32 %s110, 1
      %s112 = scalar_select %p109, %s110, %s111
      %p115 = pneg %p109
      %p116 = scmp.eq.s32.totalorder %s10, 31
      %p117 = por %p115, %p116
      %p118 = scmp.ne.s32.totalorder %s110, %s113
      %p119 = scmp.eq.s32.totalorder %s10, 0
      %p120 = por %p118, %p119
      %p121 = scmp.ne.s32.totalorder %s110, %s113
      %p122 = scmp.eq.s32.totalorder %s15, 31
      %p123 = por %p121, %p122
      %p124 = scmp.ne.s32.totalorder %s113, %s114
      %p125 = scmp.eq.s32.totalorder %s15, 0
      %p126 = por %p124, %p125
      %p127 = scmp.ne.s32.totalorder %s113, %s114
      %p128 = scmp.eq.s32.totalorder %s16, 31
      %p129 = por %p127, %p128
      %p131 = scmp.ne.s32.totalorder %s114, %s130
      %p132 = scmp.eq.s32.totalorder %s16, 0
      %p133 = por %p131, %p132
      %s134 = ssub.s32 %s17, %s29
      %s135 = ssub.s32 %s18, %s25
      %s136 = sor.u32 %s134, %s135
      %p137 = scmp.eq.s32.totalorder %s136, 0
      %s139 = sadd.s32 %s138, 1
      %s140 = scalar_select %p137, %s138, %s139
      %p143 = pneg %p137
      %p144 = scmp.eq.s32.totalorder %s10, 31
      %p145 = por %p143, %p144
      %p146 = scmp.ne.s32.totalorder %s138, %s141
      %p147 = scmp.eq.s32.totalorder %s10, 0
      %p148 = por %p146, %p147
      %p149 = scmp.ne.s32.totalorder %s138, %s141
      %p150 = scmp.eq.s32.totalorder %s15, 31
      %p151 = por %p149, %p150
      %p152 = scmp.ne.s32.totalorder %s141, %s142
      %p153 = scmp.eq.s32.totalorder %s15, 0
      %p154 = por %p152, %p153
      %p155 = scmp.ne.s32.totalorder %s141, %s142
      %p156 = scmp.eq.s32.totalorder %s16, 31
      %p157 = por %p155, %p156
      %p159 = scmp.ne.s32.totalorder %s142, %s158
      %p160 = scmp.eq.s32.totalorder %s16, 0
      %p161 = por %p159, %p160
      %p162 = scmp.le.s32.totalorder 1, %s10
      %p163 = scmp.lt.s32.totalorder %s10, 33
      %p164 = pnand %p162, %p163
      %p165 = pneg %p164
      // Predicated region
      $region9: #{deeplab_forward.31} parent=5 // pred_check
        _
      $region10: #{deeplab_forward.31} parent=5 // pred_check_branch
        %167 = sbr.rel (%p164) target = $region12
      $region11: #{deeplab_forward.31} parent=5 // pred_region
        %s168 = ssub.s32 %s10, 1
        // Predicated region
        $region13: #{deeplab_forward.31} parent=11 // pred_check
          %p169 = pneg %p48
        $region14: #{deeplab_forward.31} parent=11 // pred_check_branch
          %171 = sbr.rel (%p169) target = $region16
        $region15: #{deeplab_forward.31} parent=11 // pred_region
          %p172 = scmp.lt.s32.totalorder %s19, 0
          %s173 = scalar_select %p172, %s19, 0
          %s174 = smul.addr %s173, 2
          %s175 = smul.addr %s174, 4
          %s176 = scalar_lea.vmem %s0, %s175
        $region16: #{deeplab_forward.31} parent=11 // pred_fallthru
          _
      $region12: #{deeplab_forward.31} parent=5 // pred_fallthru
        _
      %p177 = scmp.lt.s32.totalorder %s10, 32
      // Predicated region
      $region17: #{deeplab_forward.31} parent=5 // pred_check
        %p178 = pneg %p177
      $region18: #{deeplab_forward.31} parent=5 // pred_check_branch
        %180 = sbr.rel (%p178) target = $region20
      $region19: #{deeplab_forward.31} parent=5 // pred_region
        // Predicated region
        $region21: #{deeplab_forward.31} parent=19 // pred_check
          %p181 = pneg %p68
        $region22: #{deeplab_forward.31} parent=19 // pred_check_branch
          %183 = sbr.rel (%p181) target = $region24
        $region23: #{deeplab_forward.31} parent=19 // pred_region
          %s184 = sand.u32 %s58, 1
          %s185 = sand.u32 %s58, 1
          %s186 = smul.addr %s185, 128
          %s187 = scalar_lea.vmem [#allocation2], %s186
          %s188 = smul.addr %s18, 4
          %s189 = scalar_lea.vmem %s1, %s188
          // Predicated region
          $region25: #{deeplab_forward.31} parent=23 // pred_check
            _
          $region26: #{deeplab_forward.31} parent=23 // pred_check_branch
            %191 = sbr.rel (0) target = $region28
          $region27: #{deeplab_forward.31} parent=23 // pred_region
            // Predicated region
            $region29: #{deeplab_forward.31} parent=27 // pred_check
              _
            $region30: #{deeplab_forward.31} parent=27 // pred_check_branch
              %193 = sbr.rel target = $region32
            $region31: #{deeplab_forward.31} parent=27 // pred_region
              // Predicated region
              $region44: #{deeplab_forward.31} parent=31 // pred_check
                _
              $region45: #{deeplab_forward.31} parent=31 // pred_check_branch
                %271 = sbr.rel (0) target = $region47
              $region46: #{deeplab_forward.31} parent=31 // pred_region
                loop: start=0, step=1, limit=1
                $region48: #{deeplab_forward.31} parent=46 // loop_pre_header
                  _
                $region49: #{deeplab_forward.31} parent=46 // loop_header
                  %s273 = sphi 0, %s277
                  %p274 = scmp.ge.s32.totalorder %s273, 1
                  %s278 = sphi %s189, %s189
                  %s279 = sphi %s187, %s187
                $region50: #{deeplab_forward.31} parent=46 // loop_header_branch
                  %276 = sbr.rel (%p274) target = $region54
                $region51: #{deeplab_forward.31} parent=46 // loop_body
                  _
                $region52: #{deeplab_forward.31} parent=46 // loop_footer
                  %s277 = sadd.s32 1, %s273
                $region53: #{deeplab_forward.31} parent=46 // loop_footer_branch
                  %272 = sbr.rel target = $region49
                $region54: #{deeplab_forward.31} parent=46 // loop_exit
                  _
                %s281 = ssub.s32 16, 1
                loop: start=0, step=1, limit=1
                $region55: #{deeplab_forward.31} parent=46 // loop_pre_header
                  _
                $region56: #{deeplab_forward.31} parent=46 // loop_header
                  %s283 = sphi 0, %s287
                  %p284 = scmp.ge.s32.totalorder %s283, 1
                  %s288 = sphi %s189, %s189
                  %s289 = sphi %s187, %s187
                $region57: #{deeplab_forward.31} parent=46 // loop_header_branch
                  %286 = sbr.rel (%p284) target = $region61
                $region58: #{deeplab_forward.31} parent=46 // loop_body
                  %v290 = vld [vmem:[%s288] sm:%s281]
                  %291 = vst [vmem:[%s289] sm:%s281] %v290
                  %v292 = vld [vmem:[%s288 + $0x80] sm:%s281]
                  %293 = vst [vmem:[%s289 + $0x4] sm:%s281] %v292
                  %v294 = vld [vmem:[%s288 + $0x100] sm:%s281]
                  %295 = vst [vmem:[%s289 + $0x8] sm:%s281] %v294
                  %v296 = vld [vmem:[%s288 + $0x180] sm:%s281]
                  %297 = vst [vmem:[%s289 + $0xc] sm:%s281] %v296
                  %v298 = vld [vmem:[%s288 + $0x200] sm:%s281]
                  %299 = vst [vmem:[%s289 + $0x10] sm:%s281] %v298
                  %v300 = vld [vmem:[%s288 + $0x280] sm:%s281]
                  %301 = vst [vmem:[%s289 + $0x14] sm:%s281] %v300
                  %v302 = vld [vmem:[%s288 + $0x300] sm:%s281]
                  %303 = vst [vmem:[%s289 + $0x18] sm:%s281] %v302
                  %v304 = vld [vmem:[%s288 + $0x380] sm:%s281]
                  %305 = vst [vmem:[%s289 + $0x1c] sm:%s281] %v304
                  %v306 = vld [vmem:[%s288 + $0x400] sm:%s281]
                  %307 = vst [vmem:[%s289 + $0x20] sm:%s281] %v306
                  %v308 = vld [vmem:[%s288 + $0x480] sm:%s281]
                  %309 = vst [vmem:[%s289 + $0x24] sm:%s281] %v308
                  %v310 = vld [vmem:[%s288 + $0x500] sm:%s281]
                  %311 = vst [vmem:[%s289 + $0x28] sm:%s281] %v310
                  %v312 = vld [vmem:[%s288 + $0x580] sm:%s281]
                  %313 = vst [vmem:[%s289 + $0x2c] sm:%s281] %v312
                  %v314 = vld [vmem:[%s288 + $0x600] sm:%s281]
                  %315 = vst [vmem:[%s289 + $0x30] sm:%s281] %v314
                  %v316 = vld [vmem:[%s288 + $0x680] sm:%s281]
                  %317 = vst [vmem:[%s289 + $0x34] sm:%s281] %v316
                  %v318 = vld [vmem:[%s288 + $0x700] sm:%s281]
                  %319 = vst [vmem:[%s289 + $0x38] sm:%s281] %v318
                  %v320 = vld [vmem:[%s288 + $0x780] sm:%s281]
                  %321 = vst [vmem:[%s289 + $0x3c] sm:%s281] %v320
                  %v322 = vld [vmem:[%s288 + $0x800] sm:%s281]
                  %323 = vst [vmem:[%s289 + $0x40] sm:%s281] %v322
                  %v324 = vld [vmem:[%s288 + $0x880] sm:%s281]
                  %325 = vst [vmem:[%s289 + $0x44] sm:%s281] %v324
                  %v326 = vld [vmem:[%s288 + $0x900] sm:%s281]
                  %327 = vst [vmem:[%s289 + $0x48] sm:%s281] %v326
                  %v328 = vld [vmem:[%s288 + $0x980] sm:%s281]
                  %329 = vst [vmem:[%s289 + $0x4c] sm:%s281] %v328
                  %v330 = vld [vmem:[%s288 + $0xa00] sm:%s281]
                  %331 = vst [vmem:[%s289 + $0x50] sm:%s281] %v330
                  %v332 = vld [vmem:[%s288 + $0xa80] sm:%s281]
                  %333 = vst [vmem:[%s289 + $0x54] sm:%s281] %v332
                  %v334 = vld [vmem:[%s288 + $0xb00] sm:%s281]
                  %335 = vst [vmem:[%s289 + $0x58] sm:%s281] %v334
                  %v336 = vld [vmem:[%s288 + $0xb80] sm:%s281]
                  %337 = vst [vmem:[%s289 + $0x5c] sm:%s281] %v336
                  %v338 = vld [vmem:[%s288 + $0xc00] sm:%s281]
                  %339 = vst [vmem:[%s289 + $0x60] sm:%s281] %v338
                  %v340 = vld [vmem:[%s288 + $0xc80] sm:%s281]
                  %341 = vst [vmem:[%s289 + $0x64] sm:%s281] %v340
                  %v342 = vld [vmem:[%s288 + $0xd00] sm:%s281]
                  %343 = vst [vmem:[%s289 + $0x68] sm:%s281] %v342
                  %v344 = vld [vmem:[%s288 + $0xd80] sm:%s281]
                  %345 = vst [vmem:[%s289 + $0x6c] sm:%s281] %v344
                  %v346 = vld [vmem:[%s288 + $0xe00] sm:%s281]
                  %347 = vst [vmem:[%s289 + $0x70] sm:%s281] %v346
                  %v348 = vld [vmem:[%s288 + $0xe80] sm:%s281]
                  %349 = vst [vmem:[%s289 + $0x74] sm:%s281] %v348
                  %v350 = vld [vmem:[%s288 + $0xf00] sm:%s281]
                  %351 = vst [vmem:[%s289 + $0x78] sm:%s281] %v350
                  %v352 = vld [vmem:[%s288 + $0xf80] sm:%s281]
                  %353 = vst [vmem:[%s289 + $0x7c] sm:%s281] %v352
                $region59: #{deeplab_forward.31} parent=46 // loop_footer
                  %s287 = sadd.s32 1, %s283
                $region60: #{deeplab_forward.31} parent=46 // loop_footer_branch
                  %282 = sbr.rel target = $region56
                $region61: #{deeplab_forward.31} parent=46 // loop_exit
                  _
              $region47: #{deeplab_forward.31} parent=31 // pred_fallthru
                _
            $region32: #{deeplab_forward.31} parent=27 // pred_fallthru
              _
            // Predicated region
            $region33: #{deeplab_forward.31} parent=27 // pred_check
              _
            $region34: #{deeplab_forward.31} parent=27 // pred_check_branch
              %195 = sbr.rel (0) target = $region36
            $region35: #{deeplab_forward.31} parent=27 // pred_region
              %s197 = ssub.s32 16, 1
              loop: start=0, step=1, limit=1
              $region37: #{deeplab_forward.31} parent=35 // loop_pre_header
                _
              $region38: #{deeplab_forward.31} parent=35 // loop_header
                %s199 = sphi 0, %s203
                %p200 = scmp.ge.s32.totalorder %s199, 1
                %s204 = sphi %s189, %s189
                %s205 = sphi %s187, %s187
              $region39: #{deeplab_forward.31} parent=35 // loop_header_branch
                %202 = sbr.rel (%p200) target = $region43
              $region40: #{deeplab_forward.31} parent=35 // loop_body
                %v206 = vld [vmem:[%s204] sm:%s197]
                %207 = vst [vmem:[%s205] sm:%s197] %v206
                %v208 = vld [vmem:[%s204 + $0x80] sm:%s197]
                %209 = vst [vmem:[%s205 + $0x4] sm:%s197] %v208
                %v210 = vld [vmem:[%s204 + $0x100] sm:%s197]
                %211 = vst [vmem:[%s205 + $0x8] sm:%s197] %v210
                %v212 = vld [vmem:[%s204 + $0x180] sm:%s197]
                %213 = vst [vmem:[%s205 + $0xc] sm:%s197] %v212
                %v214 = vld [vmem:[%s204 + $0x200] sm:%s197]
                %215 = vst [vmem:[%s205 + $0x10] sm:%s197] %v214
                %v216 = vld [vmem:[%s204 + $0x280] sm:%s197]
                %217 = vst [vmem:[%s205 + $0x14] sm:%s197] %v216
                %v218 = vld [vmem:[%s204 + $0x300] sm:%s197]
                %219 = vst [vmem:[%s205 + $0x18] sm:%s197] %v218
                %v220 = vld [vmem:[%s204 + $0x380] sm:%s197]
                %221 = vst [vmem:[%s205 + $0x1c] sm:%s197] %v220
                %v222 = vld [vmem:[%s204 + $0x400] sm:%s197]
                %223 = vst [vmem:[%s205 + $0x20] sm:%s197] %v222
                %v224 = vld [vmem:[%s204 + $0x480] sm:%s197]
                %225 = vst [vmem:[%s205 + $0x24] sm:%s197] %v224
                %v226 = vld [vmem:[%s204 + $0x500] sm:%s197]
                %227 = vst [vmem:[%s205 + $0x28] sm:%s197] %v226
                %v228 = vld [vmem:[%s204 + $0x580] sm:%s197]
                %229 = vst [vmem:[%s205 + $0x2c] sm:%s197] %v228
                %v230 = vld [vmem:[%s204 + $0x600] sm:%s197]
                %231 = vst [vmem:[%s205 + $0x30] sm:%s197] %v230
                %v232 = vld [vmem:[%s204 + $0x680] sm:%s197]
                %233 = vst [vmem:[%s205 + $0x34] sm:%s197] %v232
                %v234 = vld [vmem:[%s204 + $0x700] sm:%s197]
                %235 = vst [vmem:[%s205 + $0x38] sm:%s197] %v234
                %v236 = vld [vmem:[%s204 + $0x780] sm:%s197]
                %237 = vst [vmem:[%s205 + $0x3c] sm:%s197] %v236
                %v238 = vld [vmem:[%s204 + $0x800] sm:%s197]
                %239 = vst [vmem:[%s205 + $0x40] sm:%s197] %v238
                %v240 = vld [vmem:[%s204 + $0x880] sm:%s197]
                %241 = vst [vmem:[%s205 + $0x44] sm:%s197] %v240
                %v242 = vld [vmem:[%s204 + $0x900] sm:%s197]
                %243 = vst [vmem:[%s205 + $0x48] sm:%s197] %v242
                %v244 = vld [vmem:[%s204 + $0x980] sm:%s197]
                %245 = vst [vmem:[%s205 + $0x4c] sm:%s197] %v244
                %v246 = vld [vmem:[%s204 + $0xa00] sm:%s197]
                %247 = vst [vmem:[%s205 + $0x50] sm:%s197] %v246
                %v248 = vld [vmem:[%s204 + $0xa80] sm:%s197]
                %249 = vst [vmem:[%s205 + $0x54] sm:%s197] %v248
                %v250 = vld [vmem:[%s204 + $0xb00] sm:%s197]
                %251 = vst [vmem:[%s205 + $0x58] sm:%s197] %v250
                %v252 = vld [vmem:[%s204 + $0xb80] sm:%s197]
                %253 = vst [vmem:[%s205 + $0x5c] sm:%s197] %v252
                %v254 = vld [vmem:[%s204 + $0xc00] sm:%s197]
                %255 = vst [vmem:[%s205 + $0x60] sm:%s197] %v254
                %v256 = vld [vmem:[%s204 + $0xc80] sm:%s197]
                %257 = vst [vmem:[%s205 + $0x64] sm:%s197] %v256
                %v258 = vld [vmem:[%s204 + $0xd00] sm:%s197]
                %259 = vst [vmem:[%s205 + $0x68] sm:%s197] %v258
                %v260 = vld [vmem:[%s204 + $0xd80] sm:%s197]
                %261 = vst [vmem:[%s205 + $0x6c] sm:%s197] %v260
                %v262 = vld [vmem:[%s204 + $0xe00] sm:%s197]
                %263 = vst [vmem:[%s205 + $0x70] sm:%s197] %v262
                %v264 = vld [vmem:[%s204 + $0xe80] sm:%s197]
                %265 = vst [vmem:[%s205 + $0x74] sm:%s197] %v264
                %v266 = vld [vmem:[%s204 + $0xf00] sm:%s197]
                %267 = vst [vmem:[%s205 + $0x78] sm:%s197] %v266
                %v268 = vld [vmem:[%s204 + $0xf80] sm:%s197]
                %269 = vst [vmem:[%s205 + $0x7c] sm:%s197] %v268
              $region41: #{deeplab_forward.31} parent=35 // loop_footer
                %s203 = sadd.s32 1, %s199
              $region42: #{deeplab_forward.31} parent=35 // loop_footer_branch
                %198 = sbr.rel target = $region38
              $region43: #{deeplab_forward.31} parent=35 // loop_exit
                _
            $region36: #{deeplab_forward.31} parent=27 // pred_fallthru
              _
          $region28: #{deeplab_forward.31} parent=23 // pred_fallthru
            _
          %354 = vnop
        $region24: #{deeplab_forward.31} parent=19 // pred_fallthru
          _
        // Predicated region
        $region62: #{deeplab_forward.31} parent=19 // pred_check
          %p355 = pneg %p94
        $region63: #{deeplab_forward.31} parent=19 // pred_check_branch
          %357 = sbr.rel (%p355) target = $region65
        $region64: #{deeplab_forward.31} parent=19 // pred_region
          %p358 = scmp.lt.s32.totalorder %s18, 31
          %s359 = scalar_select %p358, %s18, 31
          %s360 = scalar_lea.vmem %s2, %s359
        $region65: #{deeplab_forward.31} parent=19 // pred_fallthru
          _
        // Predicated region
        $region66: #{deeplab_forward.31} parent=19 // pred_check
          %p361 = pneg %p120
        $region67: #{deeplab_forward.31} parent=19 // pred_check_branch
          %363 = sbr.rel (%p361) target = $region69
        $region68: #{deeplab_forward.31} parent=19 // pred_region
          %p364 = scmp.lt.s32.totalorder %s18, 31
          %s365 = scalar_select %p364, %s18, 31
          %s366 = scalar_lea.vmem %s3, %s365
        $region69: #{deeplab_forward.31} parent=19 // pred_fallthru
          _
      $region20: #{deeplab_forward.31} parent=5 // pred_fallthru
        _
      %p367 = scmp.le.s32.totalorder 1, %s10
      %p368 = scmp.lt.s32.totalorder %s10, 33
      %p369 = pnand %p367, %p368
      %p370 = pneg %p369
      // Predicated region
      $region70: #{deeplab_forward.31} parent=5 // pred_check
        _
      $region71: #{deeplab_forward.31} parent=5 // pred_check_branch
        %372 = sbr.rel (%p369) target = $region73
      $region72: #{deeplab_forward.31} parent=5 // pred_region
        %s373 = ssub.s32 %s10, 1
        %s374 = sand.u32 %s61, 1
        %s375 = sand.u32 %s61, 1
        %s376 = smul.addr %s375, 128
        %s377 = scalar_lea.vmem [#allocation2], %s376
        // Predicated region
        $region74: #{deeplab_forward.31} parent=72 // pred_check
          %p378 = pneg %p74
        $region75: #{deeplab_forward.31} parent=72 // pred_check_branch
          %380 = sbr.rel (%p378) target = $region77
        $region76: #{deeplab_forward.31} parent=72 // pred_region
          _
        $region77: #{deeplab_forward.31} parent=72 // pred_fallthru
          _
        %p381 = scmp.lt.s32.totalorder %s19, 0
        %s382 = scalar_select %p381, %s19, 0
        %s383 = smul.addr %s382, 2
        %s384 = smul.addr %s383, 4
        %s385 = scalar_lea.vmem %s0, %s384
        %p386 = pneg %p48
        %p387 = pneg %p45
        %s388 = sand.u32 %s61, 1
        %s389 = sand.u32 %s61, 1
        %s390 = smul.addr %s389, 128
        %s391 = scalar_lea.vmem [#allocation2], %s390
        %p392 = pneg %p74
        %p393 = pneg %p71
        %p394 = scmp.lt.s32.totalorder %s20, 31
        %s395 = scalar_select %p394, %s20, 31
        %s396 = scalar_lea.vmem %s2, %s395
        %p397 = pneg %p100
        %p398 = pneg %p97
        %p399 = scmp.lt.s32.totalorder %s20, 31
        %s400 = scalar_select %p399, %s20, 31
        %s401 = scalar_lea.vmem %s3, %s400
        %p402 = pneg %p126
        %p403 = pneg %p123
        %p404 = pneg %p154
        %p405 = pneg %p151
        %p406 = scmp.lt.s32.totalorder %s19, 0
        %s407 = scalar_select %p406, %s19, 0
        %p408 = scmp.lt.s32.totalorder %s20, 31
        %s409 = scalar_select %p408, %s20, 31
        %s410 = smul.addr %s407, 32
        %s411 = sadd.s32 %s409, %s410
        %s412 = smul.addr %s411, 8
        %s413 = scalar_lea.vmem %s4, %s412
        %p414 = scmp.lt.s32.totalorder %s19, 0
        %s415 = scalar_select %p414, %s19, 0
        %s416 = smul.addr %s415, 2
        %s417 = smul.addr %s416, 4
        %s418 = scalar_lea.vmem %s0, %s417
        %p419 = scmp.lt.s32.totalorder %s20, 31
        %s420 = scalar_select %p419, %s20, 31
        %s421 = scalar_lea.vmem %s2, %s420
        %p422 = scmp.lt.s32.totalorder %s20, 31
        %s423 = scalar_select %p422, %s20, 31
        %s424 = scalar_lea.vmem %s3, %s423
        %p425 = scmp.lt.s32.totalorder %s19, 0
        %s426 = scalar_select %p425, %s19, 0
        %p427 = scmp.lt.s32.totalorder %s20, 31
        %s428 = scalar_select %p427, %s20, 31
        %s429 = smul.addr %s426, 32
        %s430 = sadd.s32 %s428, %s429
        %s431 = smul.addr %s430, 8
        %s432 = scalar_lea.vmem %s4, %s431
        %v434 = vld [vmem:[%s418] sm:$0xff]
        %v435 = vld [vmem:[%s377] sm:$0xf]
        %v436 = vld [vmem:[%s377 + $0x4] sm:$0xf]
        %v437 = vld [vmem:[%s377 + $0x8] sm:$0xf]
        %v438 = vld [vmem:[%s377 + $0xc] sm:$0xf]
        %v439 = vld [vmem:[%s377 + $0x10] sm:$0xf]
        %v440 = vld [vmem:[%s377 + $0x14] sm:$0xf]
        %v441 = vld [vmem:[%s377 + $0x18] sm:$0xf]
        %v442 = vld [vmem:[%s377 + $0x1c] sm:$0xf]
        %v443 = vld [vmem:[%s377 + $0x20] sm:$0xf]
        %v444 = vld [vmem:[%s377 + $0x24] sm:$0xf]
        %v445 = vld [vmem:[%s377 + $0x28] sm:$0xf]
        %v446 = vld [vmem:[%s377 + $0x2c] sm:$0xf]
        %v447 = vld [vmem:[%s377 + $0x30] sm:$0xf]
        %v448 = vld [vmem:[%s377 + $0x34] sm:$0xf]
        %v449 = vld [vmem:[%s377 + $0x38] sm:$0xf]
        %v450 = vld [vmem:[%s377 + $0x3c] sm:$0xf]
        %v451 = vld [vmem:[%s377 + $0x40] sm:$0xf]
        %v452 = vld [vmem:[%s377 + $0x44] sm:$0xf]
        %v453 = vld [vmem:[%s377 + $0x48] sm:$0xf]
        %v454 = vld [vmem:[%s377 + $0x4c] sm:$0xf]
        %v455 = vld [vmem:[%s377 + $0x50] sm:$0xf]
        %v456 = vld [vmem:[%s377 + $0x54] sm:$0xf]
        %v457 = vld [vmem:[%s377 + $0x58] sm:$0xf]
        %v458 = vld [vmem:[%s377 + $0x5c] sm:$0xf]
        %v459 = vld [vmem:[%s377 + $0x60] sm:$0xf]
        %v460 = vld [vmem:[%s377 + $0x64] sm:$0xf]
        %v461 = vld [vmem:[%s377 + $0x68] sm:$0xf]
        %v462 = vld [vmem:[%s377 + $0x6c] sm:$0xf]
        %v463 = vld [vmem:[%s377 + $0x70] sm:$0xf]
        %v464 = vld [vmem:[%s377 + $0x74] sm:$0xf]
        %v465 = vld [vmem:[%s377 + $0x78] sm:$0xf]
        %v466 = vld [vmem:[%s377 + $0x7c] sm:$0xf]
        %v468 = vunpack.c.l.b16 %v434
        %v469 = vunpack.c.h.b16 %v434
        %v470 = vpack.c.b16 %v468, %v468
        %v471 = vpack.c.b16 %v469, %v469
        %v506 = vunpack.c.l.b16 %v435
        %v507 = vunpack.c.l.b16 %v436
        %v508 = vunpack.c.l.b16 %v437
        %v509 = vunpack.c.l.b16 %v438
        %v510 = vunpack.c.l.b16 %v439
        %v511 = vunpack.c.l.b16 %v440
        %v512 = vunpack.c.l.b16 %v441
        %v513 = vunpack.c.l.b16 %v442
        %v514 = vunpack.c.l.b16 %v443
        %v515 = vunpack.c.l.b16 %v444
        %v516 = vunpack.c.l.b16 %v445
        %v517 = vunpack.c.l.b16 %v446
        %v518 = vunpack.c.l.b16 %v447
        %v519 = vunpack.c.l.b16 %v448
        %v520 = vunpack.c.l.b16 %v449
        %v521 = vunpack.c.l.b16 %v450
        %v522 = vunpack.c.l.b16 %v451
        %v523 = vunpack.c.l.b16 %v452
        %v524 = vunpack.c.l.b16 %v453
        %v525 = vunpack.c.l.b16 %v454
        %v526 = vunpack.c.l.b16 %v455
        %v527 = vunpack.c.l.b16 %v456
        %v528 = vunpack.c.l.b16 %v457
        %v529 = vunpack.c.l.b16 %v458
        %v530 = vunpack.c.l.b16 %v459
        %v531 = vunpack.c.l.b16 %v460
        %v532 = vunpack.c.l.b16 %v461
        %v533 = vunpack.c.l.b16 %v462
        %v534 = vunpack.c.l.b16 %v463
        %v535 = vunpack.c.l.b16 %v464
        %v536 = vunpack.c.l.b16 %v465
        %v537 = vunpack.c.l.b16 %v466
        %v538 = vpack.c.b16 %v507, %v506
        %v539 = vpack.c.b16 %v509, %v508
        %v540 = vpack.c.b16 %v511, %v510
        %v541 = vpack.c.b16 %v513, %v512
        %v542 = vpack.c.b16 %v515, %v514
        %v543 = vpack.c.b16 %v517, %v516
        %v544 = vpack.c.b16 %v519, %v518
        %v545 = vpack.c.b16 %v521, %v520
        %v546 = vpack.c.b16 %v523, %v522
        %v547 = vpack.c.b16 %v525, %v524
        %v548 = vpack.c.b16 %v527, %v526
        %v549 = vpack.c.b16 %v529, %v528
        %v550 = vpack.c.b16 %v531, %v530
        %v551 = vpack.c.b16 %v533, %v532
        %v552 = vpack.c.b16 %v535, %v534
        %v553 = vpack.c.b16 %v537, %v536
        %570 = vmatprep.subr.bf16.mxu0 0
        %571 = vmatpush1.bf16.msra.mxu0 %v545
        %572 = vmatprep.subr.bf16.mxu0 0
        %573 = vmatpush1.bf16.msra.mxu0 %v544
        %574 = vmatprep.subr.bf16.mxu0 0
        %575 = vmatpush1.bf16.msra.mxu0 %v543
        %576 = vmatprep.subr.bf16.mxu0 0
        %577 = vmatpush1.bf16.msra.mxu0 %v542
        %578 = vmatprep.subr.bf16.mxu0 0
        %579 = vmatpush1.bf16.msra.mxu0 %v541
        %580 = vmatprep.subr.bf16.mxu0 0
        %581 = vmatpush1.bf16.msra.mxu0 %v540
        %582 = vmatprep.subr.bf16.mxu0 0
        %583 = vmatpush1.bf16.msra.mxu0 %v539
        %584 = vmatprep.subr.bf16.mxu0 0
        %585 = vmatpush1.bf16.msra.mxu0 %v538
        %586 = vmatprep.subr.bf16.mxu0 0
        %587 = vmatpush2.bf16.msra.mxu0 %v553
        %588 = vmatprep.subr.bf16.mxu0 0
        %589 = vmatpush2.bf16.msra.mxu0 %v552
        %590 = vmatprep.subr.bf16.mxu0 0
        %591 = vmatpush2.bf16.msra.mxu0 %v551
        %592 = vmatprep.subr.bf16.mxu0 0
        %593 = vmatpush2.bf16.msra.mxu0 %v550
        %594 = vmatprep.subr.bf16.mxu0 0
        %595 = vmatpush2.bf16.msra.mxu0 %v549
        %596 = vmatprep.subr.bf16.mxu0 0
        %597 = vmatpush2.bf16.msra.mxu0 %v548
        %598 = vmatprep.subr.bf16.mxu0 0
        %599 = vmatpush2.bf16.msra.mxu0 %v547
        %600 = vmatprep.subr.bf16.mxu0 0
        %601 = vmatpush2.bf16.msra.mxu0 %v546
        %602 = vmatprep.mubr.bf16.mxu0 %v471
        %603 = vmatmul.mubr.bf16.gmra.mxu0 %v470
        %v604 = vpop.f32.mrf.mxu0
        %v605 = vadd.f32 0.0, %v604
        %v606 = vpop.f32.mrf.mxu0
        %v607 = vpop.f32.mrf.mxu0
        %v608 = vpop.f32.mrf.mxu0
        %609 = vdwg.mxu0
        %v610 = vld [vmem:[%s421] sm:$0x1]
        %v612 = vlaneseq
        %v613 = vshrl.u32 %v612, 7
        %v614 = vsub.s32 0, %v613
        %v615 = vrot.slane %v610, %v614
        %v617 = vmul.f32 %v605, %v615
        %v618 = vld [vmem:[%s424] sm:$0x1]
        %v620 = vlaneseq
        %v621 = vshrl.u32 %v620, 7
        %v622 = vsub.s32 0, %v621
        %v623 = vrot.slane %v618, %v622
        %v625 = vadd.f32 %v617, %v623
        %626 = vst [vmem:[%s432] sm:$0xff] %v625
        %p627 = scmp.lt.s32.totalorder %s19, 0
        %s628 = scalar_select %p627, %s19, 0
        %p629 = scmp.lt.s32.totalorder %s20, 31
        %s630 = scalar_select %p629, %s20, 31
        %s631 = smul.addr %s628, 32
        %s632 = sadd.s32 %s630, %s631
        %s633 = smul.addr %s632, 8
        %s634 = scalar_lea.vmem %s4, %s633
        // Predicated region
        $region78: #{deeplab_forward.31} parent=72 // pred_check
          %p635 = pneg %p151
        $region79: #{deeplab_forward.31} parent=72 // pred_check_branch
          %637 = sbr.rel (%p635) target = $region81
        $region80: #{deeplab_forward.31} parent=72 // pred_region
          _
        $region81: #{deeplab_forward.31} parent=72 // pred_fallthru
          _
      $region73: #{deeplab_forward.31} parent=5 // pred_fallthru
        _
      %p638 = scmp.le.s32.totalorder 2, %s10
      // Predicated region
      $region82: #{deeplab_forward.31} parent=5 // pred_check
        %p639 = pneg %p638
      $region83: #{deeplab_forward.31} parent=5 // pred_check_branch
        %641 = sbr.rel (%p639) target = $region85
      $region84: #{deeplab_forward.31} parent=5 // pred_region
        %s642 = ssub.s32 %s10, 2
        // Predicated region
        $region86: #{deeplab_forward.31} parent=84 // pred_check
          %p643 = pneg %p157
        $region87: #{deeplab_forward.31} parent=84 // pred_check_branch
          %645 = sbr.rel (%p643) target = $region89
        $region88: #{deeplab_forward.31} parent=84 // pred_region
          %p646 = scmp.lt.s32.totalorder %s21, 0
          %s647 = scalar_select %p646, %s21, 0
          %p648 = scmp.lt.s32.totalorder %s22, 31
          %s649 = scalar_select %p648, %s22, 31
          %s650 = smul.addr %s647, 32
          %s651 = sadd.s32 %s649, %s650
          %s652 = smul.addr %s651, 8
          %s653 = scalar_lea.vmem %s4, %s652
        $region89: #{deeplab_forward.31} parent=84 // pred_fallthru
          _
      $region85: #{deeplab_forward.31} parent=5 // pred_fallthru
        _
    $region6: #{deeplab_forward.31} parent=1 // loop_footer
      %s14 = sadd.s32 1, %s10
    $region7: #{deeplab_forward.31} parent=1 // loop_footer_branch
      %9 = sbr.rel target = $region3
    $region8: #{deeplab_forward.31} parent=1 // loop_exit
      _

</llo_original>
